<compile_context>
chip_gen: v6e
topology: v6e:2x2x1
jax: 0.10.0
libtpu: 0.0.40
codegen_flags: <defaults>
</compile_context>

<pallas_src>
import numpy as np
import jax
import jax.numpy as jnp
from jax.experimental import pallas as pl
from jax.experimental.pallas import tpu as pltpu

EPS = 1e-6
_PREC = jax.lax.Precision.HIGHEST


# -----------------------------------------------------------------------------
# Parameters (torch-compatible shapes: Linear / 1x1-Conv weights are (out, in))
# -----------------------------------------------------------------------------
def make_params(key, C, block_size, grid_size, reduction=4):
    Cr = C // reduction
    keys = iter(jax.random.split(key, 128))

    def rnd(*shape, scale=0.1):
        return scale * jax.random.normal(next(keys), shape, jnp.float32)

    def ln_p():
        return {'gamma': 1.0 + rnd(C), 'beta': rnd(C)}

    def lin(o, i):
        return {'w': rnd(o, i), 'b': rnd(o)}

    n_grid = grid_size[0] * grid_size[1]
    n_block = block_size[0] * block_size[1]

    def gmlp_layer():
        return {
            'ln_in': ln_p(),
            'in_proj': lin(2 * C, C),
            'grid': {'ln': ln_p(), 'in': lin(2 * C, C), 'gate_ln': ln_p(),
                     'gate': lin(n_grid, n_grid), 'out': lin(C, C)},
            'block': {'ln': ln_p(), 'in': lin(2 * C, C), 'gate_ln': ln_p(),
                      'gate': lin(n_block, n_block), 'out': lin(C, C)},
            'out_proj': lin(C, 2 * C),
        }

    def rdcab():
        return {'ln': ln_p(), 'mlp0': lin(C, C), 'mlp1': lin(C, C),
                'ca0': lin(Cr, C), 'ca1': lin(C, Cr)}

    return {'input_proj': lin(C, C),
            'gmlp': [gmlp_layer(), gmlp_layer()],
            'rdcab': [rdcab(), rdcab()]}


# -----------------------------------------------------------------------------
# Parameter packing (LN folding, token-mix densification, bf16 MXU weights)
# -----------------------------------------------------------------------------
def _token_mix(wmix, bmix, H, W, fh, fw, over):
    """Fold a block/grid gating Dense into a dense (T, T) matrix over raster tokens."""
    T = H * W
    t = np.arange(T)
    hh, ww = t // W, t % W
    gw_count = W // fw
    g = (hh // fh) * gw_count + (ww // fw)        # block index of each token
    p = (hh % fh) * fw + (ww % fw)                # intra-block index of each token
    if over == 'grid':    # GridGatingUnit mixes over the grid axis
        M = wmix[g[:, None], g[None, :]] * jnp.asarray(p[:, None] == p[None, :],
                                                       jnp.float32)
        bvec = bmix[g]
    else:                 # BlockGatingUnit mixes over the intra-block axis
        M = wmix[p[:, None], p[None, :]] * jnp.asarray(g[:, None] == g[None, :],
                                                       jnp.float32)
        bvec = bmix[p]
    # kernel computes (C, T) @ Mt, so pass M transposed; bias becomes a (1, T) row.
    return M.T, bvec.reshape(1, T)


def _pack_params(params, H, W, block_size, grid_size):
    C = params['input_proj']['w'].shape[0]
    C2 = 2 * C
    T = H * W
    Cr = params['rdcab'][0]['ca0']['w'].shape[0]

    wcc, wc2, wca, ms, addm, cab0, vec_cols = [], [], [], [], [], [], []
    idx = {'cc': {}, 'c2': {}, 'ca': {}, 'mix': {}, 'cab0': {}, 'vec': {}}

    def add(lst, table, name, arr):
        table[name] = len(lst)
        lst.append(jnp.asarray(arr, jnp.float32))

    def add_vec(name, v):
        v = jnp.asarray(v, jnp.float32)
        idx['vec'][name] = len(vec_cols)
        vec_cols.append(jnp.pad(v, (0, C2 - v.shape[0])))

    def fold(lin_p, ln_p):
        """Fold LayerNorm affine (gamma, beta over channels) into the next dense."""
        w = jnp.asarray(lin_p['w'], jnp.float32)
        b = jnp.asarray(lin_p['b'], jnp.float32)
        g = jnp.asarray(ln_p['gamma'], jnp.float32)
        be = jnp.asarray(ln_p['beta'], jnp.float32)
        return w * g[None, :], b + w @ be

    # input_proj (no preceding LN)
    add(wcc, idx['cc'], 'input_proj_w', params['input_proj']['w'])
    add_vec('input_proj_b', params['input_proj']['b'])

    for l in range(2):
        p = params['gmlp'][l]
        pre = f"L{l}"
        w_in, b_in = fold(p['in_proj'], p['ln_in'])          # ln_in -> in_proj
        add(wc2, idx['c2'], pre + "_in_w", w_in)
        add_vec(pre + "_in_b", b_in)
        for branch in ('grid', 'block'):
            bp = p[branch]
            bpre = f"{pre}_{branch}"
            w_bi, b_bi = fold(bp['in'], bp['ln'])            # branch ln -> branch in
            add(wc2, idx['c2'], bpre + "_in_w", w_bi)
            add_vec(bpre + "_in_b", b_bi)
            # gate LN: gamma applied in-kernel pre-matmul, beta folded into addmat
            add_vec(bpre + "_gln_g", bp['gate_ln']['gamma'])
            if branch == 'grid':
                gh, gw = grid_size
                fh, fw = H // gh, W // gw
            else:
                fh, fw = block_size
            Mt, bvec = _token_mix(bp['gate']['w'], bp['gate']['b'],
                                  H, W, fh, fw, over=branch)
            rsum = jnp.sum(Mt, axis=0)                       # row sums of M, (T,)
            beta_g = jnp.asarray(bp['gate_ln']['beta'], jnp.float32)
            addmat = beta_g[:, None] * rsum[None, :] + bvec + 1.0   # (C, T)
            idx['mix'][bpre] = len(ms)
            ms.append(Mt)
            addm.append(addmat)
            add(wcc, idx['cc'], bpre + "_out_w", bp['out']['w'])
            add_vec(bpre + "_out_b", bp['out']['b'])
        # out_proj split into two (C, C) halves -> no (2C, T) concat in-kernel
        w_op = jnp.asarray(p['out_proj']['w'], jnp.float32)  # (C, 2C)
        add(wcc, idx['cc'], pre + "_outA_w", w_op[:, :C])
        add(wcc, idx['cc'], pre + "_outB_w", w_op[:, C:])
        add_vec(pre + "_out_b", p['out_proj']['b'])

    for r in range(2):
        p = params['rdcab'][r]
        pre = f"R{r}"
        w0, b0 = fold(p['mlp0'], p['ln'])                    # rdcab ln -> mlp0
        add(wcc, idx['cc'], pre + "_mlp0_w", w0)
        add_vec(pre + "_mlp0_b", b0)
        add(wcc, idx['cc'], pre + "_mlp1_w", p['mlp1']['w'])
        add_vec(pre + "_mlp1_b", p['mlp1']['b'])
        add(wca, idx['ca'], pre + "_w0t", jnp.asarray(p['ca0']['w'], jnp.float32).T)
        idx['cab0'][pre] = len(cab0)
        cab0.append(jnp.asarray(p['ca0']['b'], jnp.float32).reshape(1, Cr))
        add(wca, idx['ca'], pre + "_w1", p['ca1']['w'])
        add_vec(pre + "_ca1_b", p['ca1']['b'])

    packed = dict(
        ms=jnp.stack(ms, 0).astype(jnp.bfloat16),      # (4, T, T)  bf16 MXU input
        addm=jnp.stack(addm, 0),                       # (4, C, T)  f32
        wcc=jnp.stack(wcc, 0).astype(jnp.bfloat16),    # (13, C, C) bf16 MXU input
        wc2=jnp.stack(wc2, 0).astype(jnp.bfloat16),    # (6, 2C, C) bf16 MXU input
        wca=jnp.stack(wca, 0),                         # (4, C, Cr) f32 (VPU SE path)
        cab0=jnp.stack(cab0, 0),                       # (2, 1, Cr) f32
        vecs=jnp.stack(vec_cols, 1),                   # (2C, NV)   f32
    )
    return packed, idx


# -----------------------------------------------------------------------------
# Fused kernel
# -----------------------------------------------------------------------------
def _make_kernel(B, C, Cr, T, idx):
    C2 = 2 * C
    BT = B * T
    cc_i, c2_i, ca_i = idx['cc'], idx['c2'], idx['ca']
    mix_i, cab0_i, v_i = idx['mix'], idx['cab0'], idx['vec']

    def kernel(x_ref, ms_ref, addm_ref, wcc_ref, wc2_ref, wca_ref, cab0_ref,
               vecs_ref, o_ref):
        if B == 1:
            x = x_ref[0]                                        # (C, T)
        else:
            # (B, C, T) -> (C, B*T); one relayout per grid step, amortized over
            # the whole fused block.
            x = jnp.transpose(x_ref[...], (1, 0, 2)).reshape(C, BT)
        vecs = vecs_ref[...]                                    # (2C, NV) f32

        def col(name, length=C):
            j = v_i[name]
            return vecs[0:length, j:j + 1]                      # (length, 1)

        def dot(w_bf16, a):
            # bf16 x bf16 MXU matmul, f32 accumulate.
            return jnp.dot(w_bf16, a.astype(jnp.bfloat16),
                           preferred_element_type=jnp.float32)

        def gelu(z):
            # TODO(synk): torch nn.GELU is the exact erf form; Mosaic has no erf,
            # so the tanh approximation is used (max rel. diff ~1e-3).
            return jax.nn.gelu(z, approximate=True)

        def normalize(z):
            # LayerNorm over the channel axis (rows); affine is folded into the
            # following dense at pack time, so only mean/rsqrt stays in-kernel.
            m = jnp.mean(z, axis=0, keepdims=True)
            v = jnp.mean((z - m) ** 2, axis=0, keepdims=True)
            return (z - m) * jax.lax.rsqrt(v + EPS)

        def gmlp_branch(h, bpre):
            # Grid / Block gMLP sub-layer on (C, B*T); token mixing = MXU matmul
            # per image (mixing never crosses images).
            hn = normalize(h)
            g = gelu(dot(wc2_ref[c2_i[bpre + "_in_w"]], hn)
                     + col(bpre + "_in_b", C2))                 # (2C, BT)
            u1 = g[:C, :]
            v1 = normalize(g[C:, :]) * col(bpre + "_gln_g", C)  # gate-LN gamma
            m = mix_i[bpre]
            Mt = ms_ref[m]                                      # (T, T) bf16
            addmat = addm_ref[m]                                # (C, T) f32
            v1b = v1.astype(jnp.bfloat16)
            if B == 1:
                mix = jnp.dot(v1b, Mt, preferred_element_type=jnp.float32)
                gated = u1 * (mix + addmat)
            else:
                parts = []
                for b in range(B):
                    sl = slice(b * T, (b + 1) * T)
                    mixb = jnp.dot(v1b[:, sl], Mt,
                                   preferred_element_type=jnp.float32)
                    parts.append(u1[:, sl] * (mixb + addmat))
                gated = jnp.concatenate(parts, axis=1)
            y = dot(wcc_ref[cc_i[bpre + "_out_w"]], gated) + col(bpre + "_out_b", C)
            return h + y

        def gmlp_layer(z, l):
            pre = f"L{l}"
            y = gelu(dot(wc2_ref[c2_i[pre + "_in_w"]], normalize(z))
                     + col(pre + "_in_b", C2))                  # (2C, BT)
            u = gmlp_branch(y[:C, :], pre + "_grid")
            v = gmlp_branch(y[C:, :], pre + "_block")
            # out_proj (2C -> C) without a sublane concat: two (C,C) halves.
            y = (dot(wcc_ref[cc_i[pre + "_outA_w"]], u)
                 + dot(wcc_ref[cc_i[pre + "_outB_w"]], v)
                 + col(pre + "_out_b", C))
            return z + y

        def rdcab(z, r):
            pre = f"R{r}"
            y = dot(wcc_ref[cc_i[pre + "_mlp0_w"]], normalize(z)) + col(pre + "_mlp0_b", C)
            y = gelu(y)
            y = dot(wcc_ref[cc_i[pre + "_mlp1_w"]], y) + col(pre + "_mlp1_b", C)
            # Squeeze-excite channel attention: broadcast-mul + reduce (VPU/XLU),
            # pooled per image.
            w0t = wca_ref[ca_i[pre + "_w0t"]]                   # (C, Cr)
            w1 = wca_ref[ca_i[pre + "_w1"]]                     # (C, Cr)
            b0r = cab0_ref[cab0_i[pre]]                         # (1, Cr)
            b1c = col(pre + "_ca1_b", C)                        # (C, 1)

            def attend(yb):
                pooled = jnp.mean(yb, axis=1, keepdims=True)    # (C, 1)
                h = jnp.maximum(jnp.sum(w0t * pooled, axis=0, keepdims=True) + b0r, 0.0)
                att = jax.nn.sigmoid(jnp.sum(w1 * h, axis=1, keepdims=True) + b1c)
                return yb * att

            if B == 1:
                scaled = attend(y)
            else:
                scaled = jnp.concatenate(
                    [attend(y[:, b * T:(b + 1) * T]) for b in range(B)], axis=1)
            return z + scaled

        x0 = dot(wcc_ref[cc_i['input_proj_w']], x) + col('input_proj_b', C)
        z = gmlp_layer(x0, 0)
        z = rdcab(z, 0)
        z = gmlp_layer(z, 1)
        z = rdcab(z, 1)
        res = z + x0                                            # + shortcut_long
        if B == 1:
            o_ref[0] = res.astype(o_ref.dtype)
        else:
            o_ref[...] = jnp.transpose(res.reshape(C, B, T), (1, 0, 2)).astype(o_ref.dtype)

    return kernel


def bottleneck_pallas(x_nchw, params, block_size, grid_size, b_tile=None):
    N, C, H, W = x_nchw.shape
    T = H * W
    assert H % block_size[0] == 0 and W % block_size[1] == 0
    assert H % grid_size[0] == 0 and W % grid_size[1] == 0
    Cr = params['rdcab'][0]['ca0']['w'].shape[0]

    if b_tile is None:
        # Batch several images per grid step to amortize per-step overhead, while
        # keeping >= 2 grid steps so both TensorCores are used on v7x.
        b_tile = 1
        for cand in (8, 4, 2):
            if N % cand == 0 and N // cand >= 2:
                b_tile = cand
                break
    assert N % b_tile == 0
    steps = N // b_tile

    packed, idx = _pack_params(params, H, W, block_size, grid_size)
    kernel = _make_kernel(b_tile, C, Cr, T, idx)

    x_tok = x_nchw.reshape(N, C, T)          # NCHW -> (N, C, T): pure reshape
    operands = [packed['ms'], packed['addm'], packed['wcc'], packed['wc2'],
                packed['wca'], packed['cab0'], packed['vecs']]

    def full_spec(arr):
        nd = arr.ndim
        # TODO(synk): weights are grid-invariant (constant index map); could be
        # single-buffered via pipeline_mode=pl.Buffered(1) to save VMEM headroom.
        return pl.BlockSpec(arr.shape, lambda b, _nd=nd: (0,) * _nd)

    out_tok = pl.pallas_call(
        kernel,
        out_shape=jax.ShapeDtypeStruct((N, C, T), jnp.float32),
        grid=(steps,),
        in_specs=[pl.BlockSpec((b_tile, C, T), lambda b: (b, 0, 0))]
                 + [full_spec(a) for a in operands],
        out_specs=pl.BlockSpec((b_tile, C, T), lambda b: (b, 0, 0)),
        compiler_params=pltpu.CompilerParams(
            dimension_semantics=("parallel",),
        ),
    )(x_tok, *operands)
    return out_tok.reshape(N, C, H, W)


# -----------------------------------------------------------------------------
# Pure-JAX reference mirroring the PyTorch module (independent of the folded
# weights / dense token-mix trick used inside the kernel).
# -----------------------------------------------------------------------------
def _gelu_ref(x):
    return jax.nn.gelu(x, approximate=True)


def _ln_ref(x, gamma, beta):
    mean = jnp.mean(x, axis=-1, keepdims=True)
    var = jnp.mean((x - mean) ** 2, axis=-1, keepdims=True)
    return (x - mean) / jnp.sqrt(var + EPS) * gamma + beta


def _linear_ref(x, p):
    return jnp.dot(x, p['w'].T, precision=_PREC) + p['b']


def _block_images(x, fh, fw):
    n, h, w, c = x.shape
    gh, gw = h // fh, w // fw
    x = x.reshape(n, gh, fh, gw, fw, c)
    x = jnp.transpose(x, (0, 1, 3, 2, 4, 5))
    return x.reshape(n, gh * gw, fh * fw, c)


def _unblock_images(x, gh, gw, fh, fw):
    n, c = x.shape[0], x.shape[-1]
    x = x.reshape(n, gh, gw, fh, fw, c)
    x = jnp.transpose(x, (0, 1, 3, 2, 4, 5))
    return x.reshape(n, gh * fh, gw * fw, c)


def _grid_gmlp_ref(u, p, grid_size):
    n, h, w, c = u.shape
    gh, gw = grid_size
    fh, fw = h // gh, w // gw
    x = _block_images(u, fh, fw)
    y = _ln_ref(x, p['ln']['gamma'], p['ln']['beta'])
    y = _gelu_ref(_linear_ref(y, p['in']))
    u1, v1 = jnp.split(y, 2, axis=-1)
    v1 = _ln_ref(v1, p['gate_ln']['gamma'], p['gate_ln']['beta'])
    v1 = jnp.einsum('og,ngpc->nopc', p['gate']['w'], v1, precision=_PREC) \
        + p['gate']['b'][None, :, None, None]
    y = u1 * (v1 + 1.0)
    y = _linear_ref(y, p['out'])
    return _unblock_images(x + y, gh, gw, fh, fw)


def _block_gmlp_ref(v, p, block_size):
    n, h, w, c = v.shape
    fh, fw = block_size
    gh, gw = h // fh, w // fw
    x = _block_images(v, fh, fw)
    y = _ln_ref(x, p['ln']['gamma'], p['ln']['beta'])
    y = _gelu_ref(_linear_ref(y, p['in']))
    u1, v1 = jnp.split(y, 2, axis=-1)
    v1 = _ln_ref(v1, p['gate_ln']['gamma'], p['gate_ln']['beta'])
    v1 = jnp.einsum('op,ngpc->ngoc', p['gate']['w'], v1, precision=_PREC) \
        + p['gate']['b'][None, None, :, None]
    y = u1 * (v1 + 1.0)
    y = _linear_ref(y, p['out'])
    return _unblock_images(x + y, gh, gw, fh, fw)


def _gmlp_layer_ref(x, p, block_size, grid_size):
    shortcut = x
    y = _ln_ref(x, p['ln_in']['gamma'], p['ln_in']['beta'])
    y = _gelu_ref(_linear_ref(y, p['in_proj']))
    u, v = jnp.split(y, 2, axis=-1)
    u = _grid_gmlp_ref(u, p['grid'], grid_size)
    v = _block_gmlp_ref(v, p['block'], block_size)
    y = jnp.concatenate([u, v], axis=-1)
    y = _linear_ref(y, p['out_proj'])
    return shortcut + y


def _rdcab_ref(x, p):
    y = _ln_ref(x, p['ln']['gamma'], p['ln']['beta'])
    y = _linear_ref(y, p['mlp0'])
    y = _gelu_ref(y)
    y = _linear_ref(y, p['mlp1'])
    pooled = jnp.mean(y, axis=(1, 2))                                   # (N, C)
    h = jnp.maximum(jnp.dot(pooled, p['ca0']['w'].T, precision=_PREC)
                    + p['ca0']['b'], 0.0)
    att = jax.nn.sigmoid(jnp.dot(h, p['ca1']['w'].T, precision=_PREC)
                         + p['ca1']['b'])
    return x + y * att[:, None, None, :]


def bottleneck_ref(x, params, block_size, grid_size):
    # x: (N, C, H, W)
    w, b = params['input_proj']['w'], params['input_proj']['b']
    x = jnp.einsum('oc,nchw->nohw', w, x, precision=_PREC) + b[None, :, None, None]
    shortcut_long = x
    x = jnp.transpose(x, (0, 2, 3, 1))                                  # NHWC
    for l in range(2):
        x = _gmlp_layer_ref(x, params['gmlp'][l], block_size, grid_size)
        x = _rdcab_ref(x, params['rdcab'][l])
    x = jnp.transpose(x, (0, 3, 1, 2))                                  # NCHW
    return x + shortcut_long


if __name__ == "__main__":
    key = jax.random.PRNGKey(0)
    kx, kp = jax.random.split(key)

    N, C, H, W = 2, 32, 16, 16
    block_size = (8, 8)    # BlockGmlp local window
    grid_size = (8, 8)     # GridGmlp global grid
    x = jax.random.normal(kx, (N, C, H, W), jnp.float32)
    params = make_params(kp, C, block_size, grid_size, reduction=4)

    out = jax.block_until_ready(bottleneck_pallas(x, params, block_size, grid_size))
    ref = jax.block_until_ready(bottleneck_ref(x, params, block_size, grid_size))

    # bf16 MXU inputs (per perf guidance) add ~1% drift vs. the f32 HIGHEST reference.
    np.testing.assert_allclose(np.asarray(out), np.asarray(ref),
                               rtol=3e-2, atol=3e-2)
    print("KERNEL_OK")
</pallas_src>

<mosaic_0001>
module attributes {stable_mosaic.version = 11 : i64} {
  func.func @kernel(%arg0: i32, %arg1: memref<1x32x256xf32, #tpu.memory_space<vmem>>, %arg2: memref<4x256x256xbf16, #tpu.memory_space<vmem>>, %arg3: memref<4x32x256xf32, #tpu.memory_space<vmem>>, %arg4: memref<13x32x32xbf16, #tpu.memory_space<vmem>>, %arg5: memref<6x64x32xbf16, #tpu.memory_space<vmem>>, %arg6: memref<4x32x8xf32, #tpu.memory_space<vmem>>, %arg7: memref<2x1x8xf32, #tpu.memory_space<vmem>>, %arg8: memref<64x23xf32, #tpu.memory_space<vmem>>, %arg9: memref<1x32x256xf32, #tpu.memory_space<vmem>>) attributes {dimension_semantics = [#tpu.dimension_semantics<parallel>], iteration_bounds = array<i64: 2>, scalar_prefetch = 0 : i64, scratch_operands = 0 : i64, tpu.core_type = #tpu.core_type<tc>, window_params = [{transform_indices = @transform_0, window_bounds = array<i64: 1, 32, 256>}, {pipeline_mode = #tpu.pipeline_mode<synchronous>, transform_indices = @transform_1, window_bounds = array<i64: 4, 256, 256>}, {pipeline_mode = #tpu.pipeline_mode<synchronous>, transform_indices = @transform_2, window_bounds = array<i64: 4, 32, 256>}, {pipeline_mode = #tpu.pipeline_mode<synchronous>, transform_indices = @transform_3, window_bounds = array<i64: 13, 32, 32>}, {pipeline_mode = #tpu.pipeline_mode<synchronous>, transform_indices = @transform_4, window_bounds = array<i64: 6, 64, 32>}, {pipeline_mode = #tpu.pipeline_mode<synchronous>, transform_indices = @transform_5, window_bounds = array<i64: 4, 32, 8>}, {pipeline_mode = #tpu.pipeline_mode<synchronous>, transform_indices = @transform_6, window_bounds = array<i64: 2, 1, 8>}, {pipeline_mode = #tpu.pipeline_mode<synchronous>, transform_indices = @transform_7, window_bounds = array<i64: 64, 23>}, {transform_indices = @transform_8, window_bounds = array<i64: 1, 32, 256>}]} {
    %c0 = arith.constant 0 : index
    %c0_0 = arith.constant 0 : index
    %c0_1 = arith.constant 0 : index
    %0 = vector.load %arg1[%c0, %c0_0, %c0_1] : memref<1x32x256xf32, #tpu.memory_space<vmem>>, vector<1x32x256xf32>
    %1 = vector.shape_cast %0 : vector<1x32x256xf32> to vector<32x256xf32>
    %c0_2 = arith.constant 0 : index
    %c0_3 = arith.constant 0 : index
    %2 = vector.load %arg8[%c0_2, %c0_3] : memref<64x23xf32, #tpu.memory_space<vmem>>, vector<64x23xf32>
    %c0_4 = arith.constant 0 : index
    %c0_5 = arith.constant 0 : index
    %c0_6 = arith.constant 0 : index
    %3 = vector.load %arg4[%c0_4, %c0_5, %c0_6] : memref<13x32x32xbf16, #tpu.memory_space<vmem>>, vector<1x32x32xbf16>
    %4 = vector.shape_cast %3 : vector<1x32x32xbf16> to vector<32x32xbf16>
    %5 = arith.truncf %1 : vector<32x256xf32> to vector<32x256xbf16>
    %cst = arith.constant dense<0.000000e+00> : vector<32x256xf32>
    %6 = tpu.matmul %4, %5, %cst {dimension_numbers = #tpu.dot_dimension_numbers<[1], [0], [0], [1], [0, 0, 1, 1], [], []>} : vector<32x32xbf16>, vector<32x256xbf16>, vector<32x256xf32> -> vector<32x256xf32>
    %7 = vector.extract_strided_slice %2 {offsets = [0, 0], sizes = [32, 1], strides = [1, 1]} : vector<64x23xf32> to vector<32x1xf32>
    %8 = vector.broadcast %7 : vector<32x1xf32> to vector<32x256xf32>
    %9 = arith.addf %6, %8 : vector<32x256xf32>
    %c0_7 = arith.constant 0 : index
    %c0_8 = arith.constant 0 : index
    %c0_9 = arith.constant 0 : index
    %10 = vector.load %arg5[%c0_7, %c0_8, %c0_9] : memref<6x64x32xbf16, #tpu.memory_space<vmem>>, vector<1x64x32xbf16>
    %11 = vector.shape_cast %10 : vector<1x64x32xbf16> to vector<64x32xbf16>
    %cst_10 = arith.constant dense<0.000000e+00> : vector<256xf32>
    %12 = vector.multi_reduction <add>, %9, %cst_10 [0] : vector<32x256xf32> to vector<256xf32>
    %13 = vector.shape_cast %12 : vector<256xf32> to vector<1x256xf32>
    %cst_11 = arith.constant 3.200000e+01 : f32
    %14 = vector.broadcast %cst_11 : f32 to vector<1x256xf32>
    %15 = arith.divf %13, %14 : vector<1x256xf32>
    %16 = vector.broadcast %15 : vector<1x256xf32> to vector<32x256xf32>
    %17 = arith.subf %9, %16 : vector<32x256xf32>
    %18 = arith.mulf %17, %17 : vector<32x256xf32>
    %cst_12 = arith.constant dense<0.000000e+00> : vector<256xf32>
    %19 = vector.multi_reduction <add>, %18, %cst_12 [0] : vector<32x256xf32> to vector<256xf32>
    %20 = vector.shape_cast %19 : vector<256xf32> to vector<1x256xf32>
    %cst_13 = arith.constant 3.200000e+01 : f32
    %21 = vector.broadcast %cst_13 : f32 to vector<1x256xf32>
    %22 = arith.divf %20, %21 : vector<1x256xf32>
    %23 = vector.broadcast %15 : vector<1x256xf32> to vector<32x256xf32>
    %24 = arith.subf %9, %23 : vector<32x256xf32>
    %cst_14 = arith.constant 9.99999997E-7 : f32
    %25 = vector.broadcast %cst_14 : f32 to vector<1x256xf32>
    %26 = arith.addf %22, %25 : vector<1x256xf32>
    %27 = math.rsqrt %26 : vector<1x256xf32>
    %28 = vector.broadcast %27 : vector<1x256xf32> to vector<32x256xf32>
    %29 = arith.mulf %24, %28 : vector<32x256xf32>
    %30 = arith.truncf %29 : vector<32x256xf32> to vector<32x256xbf16>
    %cst_15 = arith.constant dense<0.000000e+00> : vector<64x256xf32>
    %31 = tpu.matmul %11, %30, %cst_15 {dimension_numbers = #tpu.dot_dimension_numbers<[1], [0], [0], [1], [0, 0, 1, 1], [], []>} : vector<64x32xbf16>, vector<32x256xbf16>, vector<64x256xf32> -> vector<64x256xf32>
    %32 = vector.extract_strided_slice %2 {offsets = [0, 1], sizes = [64, 1], strides = [1, 1]} : vector<64x23xf32> to vector<64x1xf32>
    %33 = vector.broadcast %32 : vector<64x1xf32> to vector<64x256xf32>
    %34 = arith.addf %31, %33 : vector<64x256xf32>
    %35 = arith.mulf %34, %34 : vector<64x256xf32>
    %36 = arith.mulf %34, %35 : vector<64x256xf32>
    %cst_16 = arith.constant 4.471500e-02 : f32
    %37 = vector.broadcast %cst_16 : f32 to vector<64x256xf32>
    %38 = arith.mulf %37, %36 : vector<64x256xf32>
    %39 = arith.addf %34, %38 : vector<64x256xf32>
    %cst_17 = arith.constant 0.797884583 : f32
    %40 = vector.broadcast %cst_17 : f32 to vector<64x256xf32>
    %41 = arith.mulf %40, %39 : vector<64x256xf32>
    %42 = math.tanh %41 : vector<64x256xf32>
    %cst_18 = arith.constant 1.000000e+00 : f32
    %43 = vector.broadcast %cst_18 : f32 to vector<64x256xf32>
    %44 = arith.addf %43, %42 : vector<64x256xf32>
    %cst_19 = arith.constant 5.000000e-01 : f32
    %45 = vector.broadcast %cst_19 : f32 to vector<64x256xf32>
    %46 = arith.mulf %45, %44 : vector<64x256xf32>
    %47 = arith.mulf %34, %46 : vector<64x256xf32>
    %48 = vector.extract_strided_slice %47 {offsets = [0, 0], sizes = [32, 256], strides = [1, 1]} : vector<64x256xf32> to vector<32x256xf32>
    %cst_20 = arith.constant dense<0.000000e+00> : vector<256xf32>
    %49 = vector.multi_reduction <add>, %48, %cst_20 [0] : vector<32x256xf32> to vector<256xf32>
    %50 = vector.shape_cast %49 : vector<256xf32> to vector<1x256xf32>
    %cst_21 = arith.constant 3.200000e+01 : f32
    %51 = vector.broadcast %cst_21 : f32 to vector<1x256xf32>
    %52 = arith.divf %50, %51 : vector<1x256xf32>
    %53 = vector.broadcast %52 : vector<1x256xf32> to vector<32x256xf32>
    %54 = arith.subf %48, %53 : vector<32x256xf32>
    %55 = arith.mulf %54, %54 : vector<32x256xf32>
    %cst_22 = arith.constant dense<0.000000e+00> : vector<256xf32>
    %56 = vector.multi_reduction <add>, %55, %cst_22 [0] : vector<32x256xf32> to vector<256xf32>
    %57 = vector.shape_cast %56 : vector<256xf32> to vector<1x256xf32>
    %cst_23 = arith.constant 3.200000e+01 : f32
    %58 = vector.broadcast %cst_23 : f32 to vector<1x256xf32>
    %59 = arith.divf %57, %58 : vector<1x256xf32>
    %60 = vector.broadcast %52 : vector<1x256xf32> to vector<32x256xf32>
    %61 = arith.subf %48, %60 : vector<32x256xf32>
    %cst_24 = arith.constant 9.99999997E-7 : f32
    %62 = vector.broadcast %cst_24 : f32 to vector<1x256xf32>
    %63 = arith.addf %59, %62 : vector<1x256xf32>
    %64 = math.rsqrt %63 : vector<1x256xf32>
    %65 = vector.broadcast %64 : vector<1x256xf32> to vector<32x256xf32>
    %66 = arith.mulf %61, %65 : vector<32x256xf32>
    %c1 = arith.constant 1 : index
    %c0_25 = arith.constant 0 : index
    %c0_26 = arith.constant 0 : index
    %67 = vector.load %arg5[%c1, %c0_25, %c0_26] : memref<6x64x32xbf16, #tpu.memory_space<vmem>>, vector<1x64x32xbf16>
    %68 = vector.shape_cast %67 : vector<1x64x32xbf16> to vector<64x32xbf16>
    %69 = arith.truncf %66 : vector<32x256xf32> to vector<32x256xbf16>
    %cst_27 = arith.constant dense<0.000000e+00> : vector<64x256xf32>
    %70 = tpu.matmul %68, %69, %cst_27 {dimension_numbers = #tpu.dot_dimension_numbers<[1], [0], [0], [1], [0, 0, 1, 1], [], []>} : vector<64x32xbf16>, vector<32x256xbf16>, vector<64x256xf32> -> vector<64x256xf32>
    %71 = vector.extract_strided_slice %2 {offsets = [0, 2], sizes = [64, 1], strides = [1, 1]} : vector<64x23xf32> to vector<64x1xf32>
    %72 = vector.broadcast %71 : vector<64x1xf32> to vector<64x256xf32>
    %73 = arith.addf %70, %72 : vector<64x256xf32>
    %74 = arith.mulf %73, %73 : vector<64x256xf32>
    %75 = arith.mulf %73, %74 : vector<64x256xf32>
    %cst_28 = arith.constant 4.471500e-02 : f32
    %76 = vector.broadcast %cst_28 : f32 to vector<64x256xf32>
    %77 = arith.mulf %76, %75 : vector<64x256xf32>
    %78 = arith.addf %73, %77 : vector<64x256xf32>
    %cst_29 = arith.constant 0.797884583 : f32
    %79 = vector.broadcast %cst_29 : f32 to vector<64x256xf32>
    %80 = arith.mulf %79, %78 : vector<64x256xf32>
    %81 = math.tanh %80 : vector<64x256xf32>
    %cst_30 = arith.constant 1.000000e+00 : f32
    %82 = vector.broadcast %cst_30 : f32 to vector<64x256xf32>
    %83 = arith.addf %82, %81 : vector<64x256xf32>
    %cst_31 = arith.constant 5.000000e-01 : f32
    %84 = vector.broadcast %cst_31 : f32 to vector<64x256xf32>
    %85 = arith.mulf %84, %83 : vector<64x256xf32>
    %86 = arith.mulf %73, %85 : vector<64x256xf32>
    %87 = vector.extract_strided_slice %86 {offsets = [0, 0], sizes = [32, 256], strides = [1, 1]} : vector<64x256xf32> to vector<32x256xf32>
    %88 = vector.extract_strided_slice %86 {offsets = [32, 0], sizes = [32, 256], strides = [1, 1]} : vector<64x256xf32> to vector<32x256xf32>
    %cst_32 = arith.constant dense<0.000000e+00> : vector<256xf32>
    %89 = vector.multi_reduction <add>, %88, %cst_32 [0] : vector<32x256xf32> to vector<256xf32>
    %90 = vector.shape_cast %89 : vector<256xf32> to vector<1x256xf32>
    %cst_33 = arith.constant 3.200000e+01 : f32
    %91 = vector.broadcast %cst_33 : f32 to vector<1x256xf32>
    %92 = arith.divf %90, %91 : vector<1x256xf32>
    %93 = vector.broadcast %92 : vector<1x256xf32> to vector<32x256xf32>
    %94 = arith.subf %88, %93 : vector<32x256xf32>
    %95 = arith.mulf %94, %94 : vector<32x256xf32>
    %cst_34 = arith.constant dense<0.000000e+00> : vector<256xf32>
    %96 = vector.multi_reduction <add>, %95, %cst_34 [0] : vector<32x256xf32> to vector<256xf32>
    %97 = vector.shape_cast %96 : vector<256xf32> to vector<1x256xf32>
    %cst_35 = arith.constant 3.200000e+01 : f32
    %98 = vector.broadcast %cst_35 : f32 to vector<1x256xf32>
    %99 = arith.divf %97, %98 : vector<1x256xf32>
    %100 = vector.broadcast %92 : vector<1x256xf32> to vector<32x256xf32>
    %101 = arith.subf %88, %100 : vector<32x256xf32>
    %cst_36 = arith.constant 9.99999997E-7 : f32
    %102 = vector.broadcast %cst_36 : f32 to vector<1x256xf32>
    %103 = arith.addf %99, %102 : vector<1x256xf32>
    %104 = math.rsqrt %103 : vector<1x256xf32>
    %105 = vector.broadcast %104 : vector<1x256xf32> to vector<32x256xf32>
    %106 = arith.mulf %101, %105 : vector<32x256xf32>
    %107 = vector.extract_strided_slice %2 {offsets = [0, 3], sizes = [32, 1], strides = [1, 1]} : vector<64x23xf32> to vector<32x1xf32>
    %108 = vector.broadcast %107 : vector<32x1xf32> to vector<32x256xf32>
    %109 = arith.mulf %106, %108 : vector<32x256xf32>
    %c0_37 = arith.constant 0 : index
    %c0_38 = arith.constant 0 : index
    %c0_39 = arith.constant 0 : index
    %110 = vector.load %arg2[%c0_37, %c0_38, %c0_39] : memref<4x256x256xbf16, #tpu.memory_space<vmem>>, vector<1x256x256xbf16>
    %111 = vector.shape_cast %110 : vector<1x256x256xbf16> to vector<256x256xbf16>
    %c0_40 = arith.constant 0 : index
    %c0_41 = arith.constant 0 : index
    %c0_42 = arith.constant 0 : index
    %112 = vector.load %arg3[%c0_40, %c0_41, %c0_42] : memref<4x32x256xf32, #tpu.memory_space<vmem>>, vector<1x32x256xf32>
    %113 = vector.shape_cast %112 : vector<1x32x256xf32> to vector<32x256xf32>
    %114 = arith.truncf %109 : vector<32x256xf32> to vector<32x256xbf16>
    %cst_43 = arith.constant dense<0.000000e+00> : vector<32x256xf32>
    %115 = tpu.matmul %114, %111, %cst_43 {dimension_numbers = #tpu.dot_dimension_numbers<[1], [0], [0], [1], [0, 0, 1, 1], [], []>} : vector<32x256xbf16>, vector<256x256xbf16>, vector<32x256xf32> -> vector<32x256xf32>
    %116 = arith.addf %115, %113 : vector<32x256xf32>
    %117 = arith.mulf %87, %116 : vector<32x256xf32>
    %c1_44 = arith.constant 1 : index
    %c0_45 = arith.constant 0 : index
    %c0_46 = arith.constant 0 : index
    %118 = vector.load %arg4[%c1_44, %c0_45, %c0_46] : memref<13x32x32xbf16, #tpu.memory_space<vmem>>, vector<1x32x32xbf16>
    %119 = vector.shape_cast %118 : vector<1x32x32xbf16> to vector<32x32xbf16>
    %120 = arith.truncf %117 : vector<32x256xf32> to vector<32x256xbf16>
    %cst_47 = arith.constant dense<0.000000e+00> : vector<32x256xf32>
    %121 = tpu.matmul %119, %120, %cst_47 {dimension_numbers = #tpu.dot_dimension_numbers<[1], [0], [0], [1], [0, 0, 1, 1], [], []>} : vector<32x32xbf16>, vector<32x256xbf16>, vector<32x256xf32> -> vector<32x256xf32>
    %122 = vector.extract_strided_slice %2 {offsets = [0, 4], sizes = [32, 1], strides = [1, 1]} : vector<64x23xf32> to vector<32x1xf32>
    %123 = vector.broadcast %122 : vector<32x1xf32> to vector<32x256xf32>
    %124 = arith.addf %121, %123 : vector<32x256xf32>
    %125 = arith.addf %48, %124 : vector<32x256xf32>
    %126 = vector.extract_strided_slice %47 {offsets = [32, 0], sizes = [32, 256], strides = [1, 1]} : vector<64x256xf32> to vector<32x256xf32>
    %cst_48 = arith.constant dense<0.000000e+00> : vector<256xf32>
    %127 = vector.multi_reduction <add>, %126, %cst_48 [0] : vector<32x256xf32> to vector<256xf32>
    %128 = vector.shape_cast %127 : vector<256xf32> to vector<1x256xf32>
    %cst_49 = arith.constant 3.200000e+01 : f32
    %129 = vector.broadcast %cst_49 : f32 to vector<1x256xf32>
    %130 = arith.divf %128, %129 : vector<1x256xf32>
    %131 = vector.broadcast %130 : vector<1x256xf32> to vector<32x256xf32>
    %132 = arith.subf %126, %131 : vector<32x256xf32>
    %133 = arith.mulf %132, %132 : vector<32x256xf32>
    %cst_50 = arith.constant dense<0.000000e+00> : vector<256xf32>
    %134 = vector.multi_reduction <add>, %133, %cst_50 [0] : vector<32x256xf32> to vector<256xf32>
    %135 = vector.shape_cast %134 : vector<256xf32> to vector<1x256xf32>
    %cst_51 = arith.constant 3.200000e+01 : f32
    %136 = vector.broadcast %cst_51 : f32 to vector<1x256xf32>
    %137 = arith.divf %135, %136 : vector<1x256xf32>
    %138 = vector.broadcast %130 : vector<1x256xf32> to vector<32x256xf32>
    %139 = arith.subf %126, %138 : vector<32x256xf32>
    %cst_52 = arith.constant 9.99999997E-7 : f32
    %140 = vector.broadcast %cst_52 : f32 to vector<1x256xf32>
    %141 = arith.addf %137, %140 : vector<1x256xf32>
    %142 = math.rsqrt %141 : vector<1x256xf32>
    %143 = vector.broadcast %142 : vector<1x256xf32> to vector<32x256xf32>
    %144 = arith.mulf %139, %143 : vector<32x256xf32>
    %c2 = arith.constant 2 : index
    %c0_53 = arith.constant 0 : index
    %c0_54 = arith.constant 0 : index
    %145 = vector.load %arg5[%c2, %c0_53, %c0_54] : memref<6x64x32xbf16, #tpu.memory_space<vmem>>, vector<1x64x32xbf16>
    %146 = vector.shape_cast %145 : vector<1x64x32xbf16> to vector<64x32xbf16>
    %147 = arith.truncf %144 : vector<32x256xf32> to vector<32x256xbf16>
    %cst_55 = arith.constant dense<0.000000e+00> : vector<64x256xf32>
    %148 = tpu.matmul %146, %147, %cst_55 {dimension_numbers = #tpu.dot_dimension_numbers<[1], [0], [0], [1], [0, 0, 1, 1], [], []>} : vector<64x32xbf16>, vector<32x256xbf16>, vector<64x256xf32> -> vector<64x256xf32>
    %149 = vector.extract_strided_slice %2 {offsets = [0, 5], sizes = [64, 1], strides = [1, 1]} : vector<64x23xf32> to vector<64x1xf32>
    %150 = vector.broadcast %149 : vector<64x1xf32> to vector<64x256xf32>
    %151 = arith.addf %148, %150 : vector<64x256xf32>
    %152 = arith.mulf %151, %151 : vector<64x256xf32>
    %153 = arith.mulf %151, %152 : vector<64x256xf32>
    %cst_56 = arith.constant 4.471500e-02 : f32
    %154 = vector.broadcast %cst_56 : f32 to vector<64x256xf32>
    %155 = arith.mulf %154, %153 : vector<64x256xf32>
    %156 = arith.addf %151, %155 : vector<64x256xf32>
    %cst_57 = arith.constant 0.797884583 : f32
    %157 = vector.broadcast %cst_57 : f32 to vector<64x256xf32>
    %158 = arith.mulf %157, %156 : vector<64x256xf32>
    %159 = math.tanh %158 : vector<64x256xf32>
    %cst_58 = arith.constant 1.000000e+00 : f32
    %160 = vector.broadcast %cst_58 : f32 to vector<64x256xf32>
    %161 = arith.addf %160, %159 : vector<64x256xf32>
    %cst_59 = arith.constant 5.000000e-01 : f32
    %162 = vector.broadcast %cst_59 : f32 to vector<64x256xf32>
    %163 = arith.mulf %162, %161 : vector<64x256xf32>
    %164 = arith.mulf %151, %163 : vector<64x256xf32>
    %165 = vector.extract_strided_slice %164 {offsets = [0, 0], sizes = [32, 256], strides = [1, 1]} : vector<64x256xf32> to vector<32x256xf32>
    %166 = vector.extract_strided_slice %164 {offsets = [32, 0], sizes = [32, 256], strides = [1, 1]} : vector<64x256xf32> to vector<32x256xf32>
    %cst_60 = arith.constant dense<0.000000e+00> : vector<256xf32>
    %167 = vector.multi_reduction <add>, %166, %cst_60 [0] : vector<32x256xf32> to vector<256xf32>
    %168 = vector.shape_cast %167 : vector<256xf32> to vector<1x256xf32>
    %cst_61 = arith.constant 3.200000e+01 : f32
    %169 = vector.broadcast %cst_61 : f32 to vector<1x256xf32>
    %170 = arith.divf %168, %169 : vector<1x256xf32>
    %171 = vector.broadcast %170 : vector<1x256xf32> to vector<32x256xf32>
    %172 = arith.subf %166, %171 : vector<32x256xf32>
    %173 = arith.mulf %172, %172 : vector<32x256xf32>
    %cst_62 = arith.constant dense<0.000000e+00> : vector<256xf32>
    %174 = vector.multi_reduction <add>, %173, %cst_62 [0] : vector<32x256xf32> to vector<256xf32>
    %175 = vector.shape_cast %174 : vector<256xf32> to vector<1x256xf32>
    %cst_63 = arith.constant 3.200000e+01 : f32
    %176 = vector.broadcast %cst_63 : f32 to vector<1x256xf32>
    %177 = arith.divf %175, %176 : vector<1x256xf32>
    %178 = vector.broadcast %170 : vector<1x256xf32> to vector<32x256xf32>
    %179 = arith.subf %166, %178 : vector<32x256xf32>
    %cst_64 = arith.constant 9.99999997E-7 : f32
    %180 = vector.broadcast %cst_64 : f32 to vector<1x256xf32>
    %181 = arith.addf %177, %180 : vector<1x256xf32>
    %182 = math.rsqrt %181 : vector<1x256xf32>
    %183 = vector.broadcast %182 : vector<1x256xf32> to vector<32x256xf32>
    %184 = arith.mulf %179, %183 : vector<32x256xf32>
    %185 = vector.extract_strided_slice %2 {offsets = [0, 6], sizes = [32, 1], strides = [1, 1]} : vector<64x23xf32> to vector<32x1xf32>
    %186 = vector.broadcast %185 : vector<32x1xf32> to vector<32x256xf32>
    %187 = arith.mulf %184, %186 : vector<32x256xf32>
    %c1_65 = arith.constant 1 : index
    %c0_66 = arith.constant 0 : index
    %c0_67 = arith.constant 0 : index
    %188 = vector.load %arg2[%c1_65, %c0_66, %c0_67] : memref<4x256x256xbf16, #tpu.memory_space<vmem>>, vector<1x256x256xbf16>
    %189 = vector.shape_cast %188 : vector<1x256x256xbf16> to vector<256x256xbf16>
    %c1_68 = arith.constant 1 : index
    %c0_69 = arith.constant 0 : index
    %c0_70 = arith.constant 0 : index
    %190 = vector.load %arg3[%c1_68, %c0_69, %c0_70] : memref<4x32x256xf32, #tpu.memory_space<vmem>>, vector<1x32x256xf32>
    %191 = vector.shape_cast %190 : vector<1x32x256xf32> to vector<32x256xf32>
    %192 = arith.truncf %187 : vector<32x256xf32> to vector<32x256xbf16>
    %cst_71 = arith.constant dense<0.000000e+00> : vector<32x256xf32>
    %193 = tpu.matmul %192, %189, %cst_71 {dimension_numbers = #tpu.dot_dimension_numbers<[1], [0], [0], [1], [0, 0, 1, 1], [], []>} : vector<32x256xbf16>, vector<256x256xbf16>, vector<32x256xf32> -> vector<32x256xf32>
    %194 = arith.addf %193, %191 : vector<32x256xf32>
    %195 = arith.mulf %165, %194 : vector<32x256xf32>
    %c2_72 = arith.constant 2 : index
    %c0_73 = arith.constant 0 : index
    %c0_74 = arith.constant 0 : index
    %196 = vector.load %arg4[%c2_72, %c0_73, %c0_74] : memref<13x32x32xbf16, #tpu.memory_space<vmem>>, vector<1x32x32xbf16>
    %197 = vector.shape_cast %196 : vector<1x32x32xbf16> to vector<32x32xbf16>
    %198 = arith.truncf %195 : vector<32x256xf32> to vector<32x256xbf16>
    %cst_75 = arith.constant dense<0.000000e+00> : vector<32x256xf32>
    %199 = tpu.matmul %197, %198, %cst_75 {dimension_numbers = #tpu.dot_dimension_numbers<[1], [0], [0], [1], [0, 0, 1, 1], [], []>} : vector<32x32xbf16>, vector<32x256xbf16>, vector<32x256xf32> -> vector<32x256xf32>
    %200 = vector.extract_strided_slice %2 {offsets = [0, 7], sizes = [32, 1], strides = [1, 1]} : vector<64x23xf32> to vector<32x1xf32>
    %201 = vector.broadcast %200 : vector<32x1xf32> to vector<32x256xf32>
    %202 = arith.addf %199, %201 : vector<32x256xf32>
    %203 = arith.addf %126, %202 : vector<32x256xf32>
    %c3 = arith.constant 3 : index
    %c0_76 = arith.constant 0 : index
    %c0_77 = arith.constant 0 : index
    %204 = vector.load %arg4[%c3, %c0_76, %c0_77] : memref<13x32x32xbf16, #tpu.memory_space<vmem>>, vector<1x32x32xbf16>
    %205 = vector.shape_cast %204 : vector<1x32x32xbf16> to vector<32x32xbf16>
    %206 = arith.truncf %125 : vector<32x256xf32> to vector<32x256xbf16>
    %cst_78 = arith.constant dense<0.000000e+00> : vector<32x256xf32>
    %207 = tpu.matmul %205, %206, %cst_78 {dimension_numbers = #tpu.dot_dimension_numbers<[1], [0], [0], [1], [0, 0, 1, 1], [], []>} : vector<32x32xbf16>, vector<32x256xbf16>, vector<32x256xf32> -> vector<32x256xf32>
    %c4 = arith.constant 4 : index
    %c0_79 = arith.constant 0 : index
    %c0_80 = arith.constant 0 : index
    %208 = vector.load %arg4[%c4, %c0_79, %c0_80] : memref<13x32x32xbf16, #tpu.memory_space<vmem>>, vector<1x32x32xbf16>
    %209 = vector.shape_cast %208 : vector<1x32x32xbf16> to vector<32x32xbf16>
    %210 = arith.truncf %203 : vector<32x256xf32> to vector<32x256xbf16>
    %cst_81 = arith.constant dense<0.000000e+00> : vector<32x256xf32>
    %211 = tpu.matmul %209, %210, %cst_81 {dimension_numbers = #tpu.dot_dimension_numbers<[1], [0], [0], [1], [0, 0, 1, 1], [], []>} : vector<32x32xbf16>, vector<32x256xbf16>, vector<32x256xf32> -> vector<32x256xf32>
    %212 = arith.addf %207, %211 : vector<32x256xf32>
    %213 = vector.extract_strided_slice %2 {offsets = [0, 8], sizes = [32, 1], strides = [1, 1]} : vector<64x23xf32> to vector<32x1xf32>
    %214 = vector.broadcast %213 : vector<32x1xf32> to vector<32x256xf32>
    %215 = arith.addf %212, %214 : vector<32x256xf32>
    %216 = arith.addf %9, %215 : vector<32x256xf32>
    %c9 = arith.constant 9 : index
    %c0_82 = arith.constant 0 : index
    %c0_83 = arith.constant 0 : index
    %217 = vector.load %arg4[%c9, %c0_82, %c0_83] : memref<13x32x32xbf16, #tpu.memory_space<vmem>>, vector<1x32x32xbf16>
    %218 = vector.shape_cast %217 : vector<1x32x32xbf16> to vector<32x32xbf16>
    %cst_84 = arith.constant dense<0.000000e+00> : vector<256xf32>
    %219 = vector.multi_reduction <add>, %216, %cst_84 [0] : vector<32x256xf32> to vector<256xf32>
    %220 = vector.shape_cast %219 : vector<256xf32> to vector<1x256xf32>
    %cst_85 = arith.constant 3.200000e+01 : f32
    %221 = vector.broadcast %cst_85 : f32 to vector<1x256xf32>
    %222 = arith.divf %220, %221 : vector<1x256xf32>
    %223 = vector.broadcast %222 : vector<1x256xf32> to vector<32x256xf32>
    %224 = arith.subf %216, %223 : vector<32x256xf32>
    %225 = arith.mulf %224, %224 : vector<32x256xf32>
    %cst_86 = arith.constant dense<0.000000e+00> : vector<256xf32>
    %226 = vector.multi_reduction <add>, %225, %cst_86 [0] : vector<32x256xf32> to vector<256xf32>
    %227 = vector.shape_cast %226 : vector<256xf32> to vector<1x256xf32>
    %cst_87 = arith.constant 3.200000e+01 : f32
    %228 = vector.broadcast %cst_87 : f32 to vector<1x256xf32>
    %229 = arith.divf %227, %228 : vector<1x256xf32>
    %230 = vector.broadcast %222 : vector<1x256xf32> to vector<32x256xf32>
    %231 = arith.subf %216, %230 : vector<32x256xf32>
    %cst_88 = arith.constant 9.99999997E-7 : f32
    %232 = vector.broadcast %cst_88 : f32 to vector<1x256xf32>
    %233 = arith.addf %229, %232 : vector<1x256xf32>
    %234 = math.rsqrt %233 : vector<1x256xf32>
    %235 = vector.broadcast %234 : vector<1x256xf32> to vector<32x256xf32>
    %236 = arith.mulf %231, %235 : vector<32x256xf32>
    %237 = arith.truncf %236 : vector<32x256xf32> to vector<32x256xbf16>
    %cst_89 = arith.constant dense<0.000000e+00> : vector<32x256xf32>
    %238 = tpu.matmul %218, %237, %cst_89 {dimension_numbers = #tpu.dot_dimension_numbers<[1], [0], [0], [1], [0, 0, 1, 1], [], []>} : vector<32x32xbf16>, vector<32x256xbf16>, vector<32x256xf32> -> vector<32x256xf32>
    %239 = vector.extract_strided_slice %2 {offsets = [0, 17], sizes = [32, 1], strides = [1, 1]} : vector<64x23xf32> to vector<32x1xf32>
    %240 = vector.broadcast %239 : vector<32x1xf32> to vector<32x256xf32>
    %241 = arith.addf %238, %240 : vector<32x256xf32>
    %242 = arith.mulf %241, %241 : vector<32x256xf32>
    %243 = arith.mulf %241, %242 : vector<32x256xf32>
    %cst_90 = arith.constant 4.471500e-02 : f32
    %244 = vector.broadcast %cst_90 : f32 to vector<32x256xf32>
    %245 = arith.mulf %244, %243 : vector<32x256xf32>
    %246 = arith.addf %241, %245 : vector<32x256xf32>
    %cst_91 = arith.constant 0.797884583 : f32
    %247 = vector.broadcast %cst_91 : f32 to vector<32x256xf32>
    %248 = arith.mulf %247, %246 : vector<32x256xf32>
    %249 = math.tanh %248 : vector<32x256xf32>
    %cst_92 = arith.constant 1.000000e+00 : f32
    %250 = vector.broadcast %cst_92 : f32 to vector<32x256xf32>
    %251 = arith.addf %250, %249 : vector<32x256xf32>
    %cst_93 = arith.constant 5.000000e-01 : f32
    %252 = vector.broadcast %cst_93 : f32 to vector<32x256xf32>
    %253 = arith.mulf %252, %251 : vector<32x256xf32>
    %254 = arith.mulf %241, %253 : vector<32x256xf32>
    %c10 = arith.constant 10 : index
    %c0_94 = arith.constant 0 : index
    %c0_95 = arith.constant 0 : index
    %255 = vector.load %arg4[%c10, %c0_94, %c0_95] : memref<13x32x32xbf16, #tpu.memory_space<vmem>>, vector<1x32x32xbf16>
    %256 = vector.shape_cast %255 : vector<1x32x32xbf16> to vector<32x32xbf16>
    %257 = arith.truncf %254 : vector<32x256xf32> to vector<32x256xbf16>
    %cst_96 = arith.constant dense<0.000000e+00> : vector<32x256xf32>
    %258 = tpu.matmul %256, %257, %cst_96 {dimension_numbers = #tpu.dot_dimension_numbers<[1], [0], [0], [1], [0, 0, 1, 1], [], []>} : vector<32x32xbf16>, vector<32x256xbf16>, vector<32x256xf32> -> vector<32x256xf32>
    %259 = vector.extract_strided_slice %2 {offsets = [0, 18], sizes = [32, 1], strides = [1, 1]} : vector<64x23xf32> to vector<32x1xf32>
    %260 = vector.broadcast %259 : vector<32x1xf32> to vector<32x256xf32>
    %261 = arith.addf %258, %260 : vector<32x256xf32>
    %c0_97 = arith.constant 0 : index
    %c0_98 = arith.constant 0 : index
    %c0_99 = arith.constant 0 : index
    %262 = vector.load %arg6[%c0_97, %c0_98, %c0_99] : memref<4x32x8xf32, #tpu.memory_space<vmem>>, vector<1x32x8xf32>
    %263 = vector.shape_cast %262 : vector<1x32x8xf32> to vector<32x8xf32>
    %c1_100 = arith.constant 1 : index
    %c0_101 = arith.constant 0 : index
    %c0_102 = arith.constant 0 : index
    %264 = vector.load %arg6[%c1_100, %c0_101, %c0_102] : memref<4x32x8xf32, #tpu.memory_space<vmem>>, vector<1x32x8xf32>
    %265 = vector.shape_cast %264 : vector<1x32x8xf32> to vector<32x8xf32>
    %c0_103 = arith.constant 0 : index
    %c0_104 = arith.constant 0 : index
    %c0_105 = arith.constant 0 : index
    %266 = vector.load %arg7[%c0_103, %c0_104, %c0_105] : memref<2x1x8xf32, #tpu.memory_space<vmem>>, vector<1x1x8xf32>
    %267 = vector.shape_cast %266 : vector<1x1x8xf32> to vector<1x8xf32>
    %268 = vector.extract_strided_slice %2 {offsets = [0, 19], sizes = [32, 1], strides = [1, 1]} : vector<64x23xf32> to vector<32x1xf32>
    %cst_106 = arith.constant dense<0.000000e+00> : vector<32xf32>
    %269 = vector.multi_reduction <add>, %261, %cst_106 [1] : vector<32x256xf32> to vector<32xf32>
    %270 = vector.shape_cast %269 : vector<32xf32> to vector<32x1xf32>
    %cst_107 = arith.constant 2.560000e+02 : f32
    %271 = vector.broadcast %cst_107 : f32 to vector<32x1xf32>
    %272 = arith.divf %270, %271 : vector<32x1xf32>
    %273 = vector.broadcast %272 : vector<32x1xf32> to vector<32x8xf32>
    %274 = arith.mulf %263, %273 : vector<32x8xf32>
    %cst_108 = arith.constant dense<0.000000e+00> : vector<8xf32>
    %275 = vector.multi_reduction <add>, %274, %cst_108 [0] : vector<32x8xf32> to vector<8xf32>
    %276 = vector.shape_cast %275 : vector<8xf32> to vector<1x8xf32>
    %277 = arith.addf %276, %267 : vector<1x8xf32>
    %cst_109 = arith.constant 0.000000e+00 : f32
    %278 = vector.broadcast %cst_109 : f32 to vector<1x8xf32>
    %279 = arith.maximumf %277, %278 : vector<1x8xf32>
    %280 = vector.broadcast %279 : vector<1x8xf32> to vector<32x8xf32>
    %281 = arith.mulf %265, %280 : vector<32x8xf32>
    %cst_110 = arith.constant dense<0.000000e+00> : vector<32xf32>
    %282 = vector.multi_reduction <add>, %281, %cst_110 [1] : vector<32x8xf32> to vector<32xf32>
    %283 = vector.shape_cast %282 : vector<32xf32> to vector<32x1xf32>
    %284 = arith.addf %283, %268 : vector<32x1xf32>
    %285 = arith.negf %284 : vector<32x1xf32>
    %286 = math.exp %285 : vector<32x1xf32>
    %cst_111 = arith.constant 1.000000e+00 : f32
    %287 = vector.broadcast %cst_111 : f32 to vector<32x1xf32>
    %288 = arith.addf %287, %286 : vector<32x1xf32>
    %289 = arith.divf %287, %288 : vector<32x1xf32>
    %290 = vector.broadcast %289 : vector<32x1xf32> to vector<32x256xf32>
    %291 = arith.mulf %261, %290 : vector<32x256xf32>
    %292 = arith.addf %216, %291 : vector<32x256xf32>
    %c3_112 = arith.constant 3 : index
    %c0_113 = arith.constant 0 : index
    %c0_114 = arith.constant 0 : index
    %293 = vector.load %arg5[%c3_112, %c0_113, %c0_114] : memref<6x64x32xbf16, #tpu.memory_space<vmem>>, vector<1x64x32xbf16>
    %294 = vector.shape_cast %293 : vector<1x64x32xbf16> to vector<64x32xbf16>
    %cst_115 = arith.constant dense<0.000000e+00> : vector<256xf32>
    %295 = vector.multi_reduction <add>, %292, %cst_115 [0] : vector<32x256xf32> to vector<256xf32>
    %296 = vector.shape_cast %295 : vector<256xf32> to vector<1x256xf32>
    %cst_116 = arith.constant 3.200000e+01 : f32
    %297 = vector.broadcast %cst_116 : f32 to vector<1x256xf32>
    %298 = arith.divf %296, %297 : vector<1x256xf32>
    %299 = vector.broadcast %298 : vector<1x256xf32> to vector<32x256xf32>
    %300 = arith.subf %292, %299 : vector<32x256xf32>
    %301 = arith.mulf %300, %300 : vector<32x256xf32>
    %cst_117 = arith.constant dense<0.000000e+00> : vector<256xf32>
    %302 = vector.multi_reduction <add>, %301, %cst_117 [0] : vector<32x256xf32> to vector<256xf32>
    %303 = vector.shape_cast %302 : vector<256xf32> to vector<1x256xf32>
    %cst_118 = arith.constant 3.200000e+01 : f32
    %304 = vector.broadcast %cst_118 : f32 to vector<1x256xf32>
    %305 = arith.divf %303, %304 : vector<1x256xf32>
    %306 = vector.broadcast %298 : vector<1x256xf32> to vector<32x256xf32>
    %307 = arith.subf %292, %306 : vector<32x256xf32>
    %cst_119 = arith.constant 9.99999997E-7 : f32
    %308 = vector.broadcast %cst_119 : f32 to vector<1x256xf32>
    %309 = arith.addf %305, %308 : vector<1x256xf32>
    %310 = math.rsqrt %309 : vector<1x256xf32>
    %311 = vector.broadcast %310 : vector<1x256xf32> to vector<32x256xf32>
    %312 = arith.mulf %307, %311 : vector<32x256xf32>
    %313 = arith.truncf %312 : vector<32x256xf32> to vector<32x256xbf16>
    %cst_120 = arith.constant dense<0.000000e+00> : vector<64x256xf32>
    %314 = tpu.matmul %294, %313, %cst_120 {dimension_numbers = #tpu.dot_dimension_numbers<[1], [0], [0], [1], [0, 0, 1, 1], [], []>} : vector<64x32xbf16>, vector<32x256xbf16>, vector<64x256xf32> -> vector<64x256xf32>
    %315 = vector.extract_strided_slice %2 {offsets = [0, 9], sizes = [64, 1], strides = [1, 1]} : vector<64x23xf32> to vector<64x1xf32>
    %316 = vector.broadcast %315 : vector<64x1xf32> to vector<64x256xf32>
    %317 = arith.addf %314, %316 : vector<64x256xf32>
    %318 = arith.mulf %317, %317 : vector<64x256xf32>
    %319 = arith.mulf %317, %318 : vector<64x256xf32>
    %cst_121 = arith.constant 4.471500e-02 : f32
    %320 = vector.broadcast %cst_121 : f32 to vector<64x256xf32>
    %321 = arith.mulf %320, %319 : vector<64x256xf32>
    %322 = arith.addf %317, %321 : vector<64x256xf32>
    %cst_122 = arith.constant 0.797884583 : f32
    %323 = vector.broadcast %cst_122 : f32 to vector<64x256xf32>
    %324 = arith.mulf %323, %322 : vector<64x256xf32>
    %325 = math.tanh %324 : vector<64x256xf32>
    %cst_123 = arith.constant 1.000000e+00 : f32
    %326 = vector.broadcast %cst_123 : f32 to vector<64x256xf32>
    %327 = arith.addf %326, %325 : vector<64x256xf32>
    %cst_124 = arith.constant 5.000000e-01 : f32
    %328 = vector.broadcast %cst_124 : f32 to vector<64x256xf32>
    %329 = arith.mulf %328, %327 : vector<64x256xf32>
    %330 = arith.mulf %317, %329 : vector<64x256xf32>
    %331 = vector.extract_strided_slice %330 {offsets = [0, 0], sizes = [32, 256], strides = [1, 1]} : vector<64x256xf32> to vector<32x256xf32>
    %cst_125 = arith.constant dense<0.000000e+00> : vector<256xf32>
    %332 = vector.multi_reduction <add>, %331, %cst_125 [0] : vector<32x256xf32> to vector<256xf32>
    %333 = vector.shape_cast %332 : vector<256xf32> to vector<1x256xf32>
    %cst_126 = arith.constant 3.200000e+01 : f32
    %334 = vector.broadcast %cst_126 : f32 to vector<1x256xf32>
    %335 = arith.divf %333, %334 : vector<1x256xf32>
    %336 = vector.broadcast %335 : vector<1x256xf32> to vector<32x256xf32>
    %337 = arith.subf %331, %336 : vector<32x256xf32>
    %338 = arith.mulf %337, %337 : vector<32x256xf32>
    %cst_127 = arith.constant dense<0.000000e+00> : vector<256xf32>
    %339 = vector.multi_reduction <add>, %338, %cst_127 [0] : vector<32x256xf32> to vector<256xf32>
    %340 = vector.shape_cast %339 : vector<256xf32> to vector<1x256xf32>
    %cst_128 = arith.constant 3.200000e+01 : f32
    %341 = vector.broadcast %cst_128 : f32 to vector<1x256xf32>
    %342 = arith.divf %340, %341 : vector<1x256xf32>
    %343 = vector.broadcast %335 : vector<1x256xf32> to vector<32x256xf32>
    %344 = arith.subf %331, %343 : vector<32x256xf32>
    %cst_129 = arith.constant 9.99999997E-7 : f32
    %345 = vector.broadcast %cst_129 : f32 to vector<1x256xf32>
    %346 = arith.addf %342, %345 : vector<1x256xf32>
    %347 = math.rsqrt %346 : vector<1x256xf32>
    %348 = vector.broadcast %347 : vector<1x256xf32> to vector<32x256xf32>
    %349 = arith.mulf %344, %348 : vector<32x256xf32>
    %c4_130 = arith.constant 4 : index
    %c0_131 = arith.constant 0 : index
    %c0_132 = arith.constant 0 : index
    %350 = vector.load %arg5[%c4_130, %c0_131, %c0_132] : memref<6x64x32xbf16, #tpu.memory_space<vmem>>, vector<1x64x32xbf16>
    %351 = vector.shape_cast %350 : vector<1x64x32xbf16> to vector<64x32xbf16>
    %352 = arith.truncf %349 : vector<32x256xf32> to vector<32x256xbf16>
    %cst_133 = arith.constant dense<0.000000e+00> : vector<64x256xf32>
    %353 = tpu.matmul %351, %352, %cst_133 {dimension_numbers = #tpu.dot_dimension_numbers<[1], [0], [0], [1], [0, 0, 1, 1], [], []>} : vector<64x32xbf16>, vector<32x256xbf16>, vector<64x256xf32> -> vector<64x256xf32>
    %354 = vector.extract_strided_slice %2 {offsets = [0, 10], sizes = [64, 1], strides = [1, 1]} : vector<64x23xf32> to vector<64x1xf32>
    %355 = vector.broadcast %354 : vector<64x1xf32> to vector<64x256xf32>
    %356 = arith.addf %353, %355 : vector<64x256xf32>
    %357 = arith.mulf %356, %356 : vector<64x256xf32>
    %358 = arith.mulf %356, %357 : vector<64x256xf32>
    %cst_134 = arith.constant 4.471500e-02 : f32
    %359 = vector.broadcast %cst_134 : f32 to vector<64x256xf32>
    %360 = arith.mulf %359, %358 : vector<64x256xf32>
    %361 = arith.addf %356, %360 : vector<64x256xf32>
    %cst_135 = arith.constant 0.797884583 : f32
    %362 = vector.broadcast %cst_135 : f32 to vector<64x256xf32>
    %363 = arith.mulf %362, %361 : vector<64x256xf32>
    %364 = math.tanh %363 : vector<64x256xf32>
    %cst_136 = arith.constant 1.000000e+00 : f32
    %365 = vector.broadcast %cst_136 : f32 to vector<64x256xf32>
    %366 = arith.addf %365, %364 : vector<64x256xf32>
    %cst_137 = arith.constant 5.000000e-01 : f32
    %367 = vector.broadcast %cst_137 : f32 to vector<64x256xf32>
    %368 = arith.mulf %367, %366 : vector<64x256xf32>
    %369 = arith.mulf %356, %368 : vector<64x256xf32>
    %370 = vector.extract_strided_slice %369 {offsets = [0, 0], sizes = [32, 256], strides = [1, 1]} : vector<64x256xf32> to vector<32x256xf32>
    %371 = vector.extract_strided_slice %369 {offsets = [32, 0], sizes = [32, 256], strides = [1, 1]} : vector<64x256xf32> to vector<32x256xf32>
    %cst_138 = arith.constant dense<0.000000e+00> : vector<256xf32>
    %372 = vector.multi_reduction <add>, %371, %cst_138 [0] : vector<32x256xf32> to vector<256xf32>
    %373 = vector.shape_cast %372 : vector<256xf32> to vector<1x256xf32>
    %cst_139 = arith.constant 3.200000e+01 : f32
    %374 = vector.broadcast %cst_139 : f32 to vector<1x256xf32>
    %375 = arith.divf %373, %374 : vector<1x256xf32>
    %376 = vector.broadcast %375 : vector<1x256xf32> to vector<32x256xf32>
    %377 = arith.subf %371, %376 : vector<32x256xf32>
    %378 = arith.mulf %377, %377 : vector<32x256xf32>
    %cst_140 = arith.constant dense<0.000000e+00> : vector<256xf32>
    %379 = vector.multi_reduction <add>, %378, %cst_140 [0] : vector<32x256xf32> to vector<256xf32>
    %380 = vector.shape_cast %379 : vector<256xf32> to vector<1x256xf32>
    %cst_141 = arith.constant 3.200000e+01 : f32
    %381 = vector.broadcast %cst_141 : f32 to vector<1x256xf32>
    %382 = arith.divf %380, %381 : vector<1x256xf32>
    %383 = vector.broadcast %375 : vector<1x256xf32> to vector<32x256xf32>
    %384 = arith.subf %371, %383 : vector<32x256xf32>
    %cst_142 = arith.constant 9.99999997E-7 : f32
    %385 = vector.broadcast %cst_142 : f32 to vector<1x256xf32>
    %386 = arith.addf %382, %385 : vector<1x256xf32>
    %387 = math.rsqrt %386 : vector<1x256xf32>
    %388 = vector.broadcast %387 : vector<1x256xf32> to vector<32x256xf32>
    %389 = arith.mulf %384, %388 : vector<32x256xf32>
    %390 = vector.extract_strided_slice %2 {offsets = [0, 11], sizes = [32, 1], strides = [1, 1]} : vector<64x23xf32> to vector<32x1xf32>
    %391 = vector.broadcast %390 : vector<32x1xf32> to vector<32x256xf32>
    %392 = arith.mulf %389, %391 : vector<32x256xf32>
    %c2_143 = arith.constant 2 : index
    %c0_144 = arith.constant 0 : index
    %c0_145 = arith.constant 0 : index
    %393 = vector.load %arg2[%c2_143, %c0_144, %c0_145] : memref<4x256x256xbf16, #tpu.memory_space<vmem>>, vector<1x256x256xbf16>
    %394 = vector.shape_cast %393 : vector<1x256x256xbf16> to vector<256x256xbf16>
    %c2_146 = arith.constant 2 : index
    %c0_147 = arith.constant 0 : index
    %c0_148 = arith.constant 0 : index
    %395 = vector.load %arg3[%c2_146, %c0_147, %c0_148] : memref<4x32x256xf32, #tpu.memory_space<vmem>>, vector<1x32x256xf32>
    %396 = vector.shape_cast %395 : vector<1x32x256xf32> to vector<32x256xf32>
    %397 = arith.truncf %392 : vector<32x256xf32> to vector<32x256xbf16>
    %cst_149 = arith.constant dense<0.000000e+00> : vector<32x256xf32>
    %398 = tpu.matmul %397, %394, %cst_149 {dimension_numbers = #tpu.dot_dimension_numbers<[1], [0], [0], [1], [0, 0, 1, 1], [], []>} : vector<32x256xbf16>, vector<256x256xbf16>, vector<32x256xf32> -> vector<32x256xf32>
    %399 = arith.addf %398, %396 : vector<32x256xf32>
    %400 = arith.mulf %370, %399 : vector<32x256xf32>
    %c5 = arith.constant 5 : index
    %c0_150 = arith.constant 0 : index
    %c0_151 = arith.constant 0 : index
    %401 = vector.load %arg4[%c5, %c0_150, %c0_151] : memref<13x32x32xbf16, #tpu.memory_space<vmem>>, vector<1x32x32xbf16>
    %402 = vector.shape_cast %401 : vector<1x32x32xbf16> to vector<32x32xbf16>
    %403 = arith.truncf %400 : vector<32x256xf32> to vector<32x256xbf16>
    %cst_152 = arith.constant dense<0.000000e+00> : vector<32x256xf32>
    %404 = tpu.matmul %402, %403, %cst_152 {dimension_numbers = #tpu.dot_dimension_numbers<[1], [0], [0], [1], [0, 0, 1, 1], [], []>} : vector<32x32xbf16>, vector<32x256xbf16>, vector<32x256xf32> -> vector<32x256xf32>
    %405 = vector.extract_strided_slice %2 {offsets = [0, 12], sizes = [32, 1], strides = [1, 1]} : vector<64x23xf32> to vector<32x1xf32>
    %406 = vector.broadcast %405 : vector<32x1xf32> to vector<32x256xf32>
    %407 = arith.addf %404, %406 : vector<32x256xf32>
    %408 = arith.addf %331, %407 : vector<32x256xf32>
    %409 = vector.extract_strided_slice %330 {offsets = [32, 0], sizes = [32, 256], strides = [1, 1]} : vector<64x256xf32> to vector<32x256xf32>
    %cst_153 = arith.constant dense<0.000000e+00> : vector<256xf32>
    %410 = vector.multi_reduction <add>, %409, %cst_153 [0] : vector<32x256xf32> to vector<256xf32>
    %411 = vector.shape_cast %410 : vector<256xf32> to vector<1x256xf32>
    %cst_154 = arith.constant 3.200000e+01 : f32
    %412 = vector.broadcast %cst_154 : f32 to vector<1x256xf32>
    %413 = arith.divf %411, %412 : vector<1x256xf32>
    %414 = vector.broadcast %413 : vector<1x256xf32> to vector<32x256xf32>
    %415 = arith.subf %409, %414 : vector<32x256xf32>
    %416 = arith.mulf %415, %415 : vector<32x256xf32>
    %cst_155 = arith.constant dense<0.000000e+00> : vector<256xf32>
    %417 = vector.multi_reduction <add>, %416, %cst_155 [0] : vector<32x256xf32> to vector<256xf32>
    %418 = vector.shape_cast %417 : vector<256xf32> to vector<1x256xf32>
    %cst_156 = arith.constant 3.200000e+01 : f32
    %419 = vector.broadcast %cst_156 : f32 to vector<1x256xf32>
    %420 = arith.divf %418, %419 : vector<1x256xf32>
    %421 = vector.broadcast %413 : vector<1x256xf32> to vector<32x256xf32>
    %422 = arith.subf %409, %421 : vector<32x256xf32>
    %cst_157 = arith.constant 9.99999997E-7 : f32
    %423 = vector.broadcast %cst_157 : f32 to vector<1x256xf32>
    %424 = arith.addf %420, %423 : vector<1x256xf32>
    %425 = math.rsqrt %424 : vector<1x256xf32>
    %426 = vector.broadcast %425 : vector<1x256xf32> to vector<32x256xf32>
    %427 = arith.mulf %422, %426 : vector<32x256xf32>
    %c5_158 = arith.constant 5 : index
    %c0_159 = arith.constant 0 : index
    %c0_160 = arith.constant 0 : index
    %428 = vector.load %arg5[%c5_158, %c0_159, %c0_160] : memref<6x64x32xbf16, #tpu.memory_space<vmem>>, vector<1x64x32xbf16>
    %429 = vector.shape_cast %428 : vector<1x64x32xbf16> to vector<64x32xbf16>
    %430 = arith.truncf %427 : vector<32x256xf32> to vector<32x256xbf16>
    %cst_161 = arith.constant dense<0.000000e+00> : vector<64x256xf32>
    %431 = tpu.matmul %429, %430, %cst_161 {dimension_numbers = #tpu.dot_dimension_numbers<[1], [0], [0], [1], [0, 0, 1, 1], [], []>} : vector<64x32xbf16>, vector<32x256xbf16>, vector<64x256xf32> -> vector<64x256xf32>
    %432 = vector.extract_strided_slice %2 {offsets = [0, 13], sizes = [64, 1], strides = [1, 1]} : vector<64x23xf32> to vector<64x1xf32>
    %433 = vector.broadcast %432 : vector<64x1xf32> to vector<64x256xf32>
    %434 = arith.addf %431, %433 : vector<64x256xf32>
    %435 = arith.mulf %434, %434 : vector<64x256xf32>
    %436 = arith.mulf %434, %435 : vector<64x256xf32>
    %cst_162 = arith.constant 4.471500e-02 : f32
    %437 = vector.broadcast %cst_162 : f32 to vector<64x256xf32>
    %438 = arith.mulf %437, %436 : vector<64x256xf32>
    %439 = arith.addf %434, %438 : vector<64x256xf32>
    %cst_163 = arith.constant 0.797884583 : f32
    %440 = vector.broadcast %cst_163 : f32 to vector<64x256xf32>
    %441 = arith.mulf %440, %439 : vector<64x256xf32>
    %442 = math.tanh %441 : vector<64x256xf32>
    %cst_164 = arith.constant 1.000000e+00 : f32
    %443 = vector.broadcast %cst_164 : f32 to vector<64x256xf32>
    %444 = arith.addf %443, %442 : vector<64x256xf32>
    %cst_165 = arith.constant 5.000000e-01 : f32
    %445 = vector.broadcast %cst_165 : f32 to vector<64x256xf32>
    %446 = arith.mulf %445, %444 : vector<64x256xf32>
    %447 = arith.mulf %434, %446 : vector<64x256xf32>
    %448 = vector.extract_strided_slice %447 {offsets = [0, 0], sizes = [32, 256], strides = [1, 1]} : vector<64x256xf32> to vector<32x256xf32>
    %449 = vector.extract_strided_slice %447 {offsets = [32, 0], sizes = [32, 256], strides = [1, 1]} : vector<64x256xf32> to vector<32x256xf32>
    %cst_166 = arith.constant dense<0.000000e+00> : vector<256xf32>
    %450 = vector.multi_reduction <add>, %449, %cst_166 [0] : vector<32x256xf32> to vector<256xf32>
    %451 = vector.shape_cast %450 : vector<256xf32> to vector<1x256xf32>
    %cst_167 = arith.constant 3.200000e+01 : f32
    %452 = vector.broadcast %cst_167 : f32 to vector<1x256xf32>
    %453 = arith.divf %451, %452 : vector<1x256xf32>
    %454 = vector.broadcast %453 : vector<1x256xf32> to vector<32x256xf32>
    %455 = arith.subf %449, %454 : vector<32x256xf32>
    %456 = arith.mulf %455, %455 : vector<32x256xf32>
    %cst_168 = arith.constant dense<0.000000e+00> : vector<256xf32>
    %457 = vector.multi_reduction <add>, %456, %cst_168 [0] : vector<32x256xf32> to vector<256xf32>
    %458 = vector.shape_cast %457 : vector<256xf32> to vector<1x256xf32>
    %cst_169 = arith.constant 3.200000e+01 : f32
    %459 = vector.broadcast %cst_169 : f32 to vector<1x256xf32>
    %460 = arith.divf %458, %459 : vector<1x256xf32>
    %461 = vector.broadcast %453 : vector<1x256xf32> to vector<32x256xf32>
    %462 = arith.subf %449, %461 : vector<32x256xf32>
    %cst_170 = arith.constant 9.99999997E-7 : f32
    %463 = vector.broadcast %cst_170 : f32 to vector<1x256xf32>
    %464 = arith.addf %460, %463 : vector<1x256xf32>
    %465 = math.rsqrt %464 : vector<1x256xf32>
    %466 = vector.broadcast %465 : vector<1x256xf32> to vector<32x256xf32>
    %467 = arith.mulf %462, %466 : vector<32x256xf32>
    %468 = vector.extract_strided_slice %2 {offsets = [0, 14], sizes = [32, 1], strides = [1, 1]} : vector<64x23xf32> to vector<32x1xf32>
    %469 = vector.broadcast %468 : vector<32x1xf32> to vector<32x256xf32>
    %470 = arith.mulf %467, %469 : vector<32x256xf32>
    %c3_171 = arith.constant 3 : index
    %c0_172 = arith.constant 0 : index
    %c0_173 = arith.constant 0 : index
    %471 = vector.load %arg2[%c3_171, %c0_172, %c0_173] : memref<4x256x256xbf16, #tpu.memory_space<vmem>>, vector<1x256x256xbf16>
    %472 = vector.shape_cast %471 : vector<1x256x256xbf16> to vector<256x256xbf16>
    %c3_174 = arith.constant 3 : index
    %c0_175 = arith.constant 0 : index
    %c0_176 = arith.constant 0 : index
    %473 = vector.load %arg3[%c3_174, %c0_175, %c0_176] : memref<4x32x256xf32, #tpu.memory_space<vmem>>, vector<1x32x256xf32>
    %474 = vector.shape_cast %473 : vector<1x32x256xf32> to vector<32x256xf32>
    %475 = arith.truncf %470 : vector<32x256xf32> to vector<32x256xbf16>
    %cst_177 = arith.constant dense<0.000000e+00> : vector<32x256xf32>
    %476 = tpu.matmul %475, %472, %cst_177 {dimension_numbers = #tpu.dot_dimension_numbers<[1], [0], [0], [1], [0, 0, 1, 1], [], []>} : vector<32x256xbf16>, vector<256x256xbf16>, vector<32x256xf32> -> vector<32x256xf32>
    %477 = arith.addf %476, %474 : vector<32x256xf32>
    %478 = arith.mulf %448, %477 : vector<32x256xf32>
    %c6 = arith.constant 6 : index
    %c0_178 = arith.constant 0 : index
    %c0_179 = arith.constant 0 : index
    %479 = vector.load %arg4[%c6, %c0_178, %c0_179] : memref<13x32x32xbf16, #tpu.memory_space<vmem>>, vector<1x32x32xbf16>
    %480 = vector.shape_cast %479 : vector<1x32x32xbf16> to vector<32x32xbf16>
    %481 = arith.truncf %478 : vector<32x256xf32> to vector<32x256xbf16>
    %cst_180 = arith.constant dense<0.000000e+00> : vector<32x256xf32>
    %482 = tpu.matmul %480, %481, %cst_180 {dimension_numbers = #tpu.dot_dimension_numbers<[1], [0], [0], [1], [0, 0, 1, 1], [], []>} : vector<32x32xbf16>, vector<32x256xbf16>, vector<32x256xf32> -> vector<32x256xf32>
    %483 = vector.extract_strided_slice %2 {offsets = [0, 15], sizes = [32, 1], strides = [1, 1]} : vector<64x23xf32> to vector<32x1xf32>
    %484 = vector.broadcast %483 : vector<32x1xf32> to vector<32x256xf32>
    %485 = arith.addf %482, %484 : vector<32x256xf32>
    %486 = arith.addf %409, %485 : vector<32x256xf32>
    %c7 = arith.constant 7 : index
    %c0_181 = arith.constant 0 : index
    %c0_182 = arith.constant 0 : index
    %487 = vector.load %arg4[%c7, %c0_181, %c0_182] : memref<13x32x32xbf16, #tpu.memory_space<vmem>>, vector<1x32x32xbf16>
    %488 = vector.shape_cast %487 : vector<1x32x32xbf16> to vector<32x32xbf16>
    %489 = arith.truncf %408 : vector<32x256xf32> to vector<32x256xbf16>
    %cst_183 = arith.constant dense<0.000000e+00> : vector<32x256xf32>
    %490 = tpu.matmul %488, %489, %cst_183 {dimension_numbers = #tpu.dot_dimension_numbers<[1], [0], [0], [1], [0, 0, 1, 1], [], []>} : vector<32x32xbf16>, vector<32x256xbf16>, vector<32x256xf32> -> vector<32x256xf32>
    %c8 = arith.constant 8 : index
    %c0_184 = arith.constant 0 : index
    %c0_185 = arith.constant 0 : index
    %491 = vector.load %arg4[%c8, %c0_184, %c0_185] : memref<13x32x32xbf16, #tpu.memory_space<vmem>>, vector<1x32x32xbf16>
    %492 = vector.shape_cast %491 : vector<1x32x32xbf16> to vector<32x32xbf16>
    %493 = arith.truncf %486 : vector<32x256xf32> to vector<32x256xbf16>
    %cst_186 = arith.constant dense<0.000000e+00> : vector<32x256xf32>
    %494 = tpu.matmul %492, %493, %cst_186 {dimension_numbers = #tpu.dot_dimension_numbers<[1], [0], [0], [1], [0, 0, 1, 1], [], []>} : vector<32x32xbf16>, vector<32x256xbf16>, vector<32x256xf32> -> vector<32x256xf32>
    %495 = arith.addf %490, %494 : vector<32x256xf32>
    %496 = vector.extract_strided_slice %2 {offsets = [0, 16], sizes = [32, 1], strides = [1, 1]} : vector<64x23xf32> to vector<32x1xf32>
    %497 = vector.broadcast %496 : vector<32x1xf32> to vector<32x256xf32>
    %498 = arith.addf %495, %497 : vector<32x256xf32>
    %499 = arith.addf %292, %498 : vector<32x256xf32>
    %c11 = arith.constant 11 : index
    %c0_187 = arith.constant 0 : index
    %c0_188 = arith.constant 0 : index
    %500 = vector.load %arg4[%c11, %c0_187, %c0_188] : memref<13x32x32xbf16, #tpu.memory_space<vmem>>, vector<1x32x32xbf16>
    %501 = vector.shape_cast %500 : vector<1x32x32xbf16> to vector<32x32xbf16>
    %cst_189 = arith.constant dense<0.000000e+00> : vector<256xf32>
    %502 = vector.multi_reduction <add>, %499, %cst_189 [0] : vector<32x256xf32> to vector<256xf32>
    %503 = vector.shape_cast %502 : vector<256xf32> to vector<1x256xf32>
    %cst_190 = arith.constant 3.200000e+01 : f32
    %504 = vector.broadcast %cst_190 : f32 to vector<1x256xf32>
    %505 = arith.divf %503, %504 : vector<1x256xf32>
    %506 = vector.broadcast %505 : vector<1x256xf32> to vector<32x256xf32>
    %507 = arith.subf %499, %506 : vector<32x256xf32>
    %508 = arith.mulf %507, %507 : vector<32x256xf32>
    %cst_191 = arith.constant dense<0.000000e+00> : vector<256xf32>
    %509 = vector.multi_reduction <add>, %508, %cst_191 [0] : vector<32x256xf32> to vector<256xf32>
    %510 = vector.shape_cast %509 : vector<256xf32> to vector<1x256xf32>
    %cst_192 = arith.constant 3.200000e+01 : f32
    %511 = vector.broadcast %cst_192 : f32 to vector<1x256xf32>
    %512 = arith.divf %510, %511 : vector<1x256xf32>
    %513 = vector.broadcast %505 : vector<1x256xf32> to vector<32x256xf32>
    %514 = arith.subf %499, %513 : vector<32x256xf32>
    %cst_193 = arith.constant 9.99999997E-7 : f32
    %515 = vector.broadcast %cst_193 : f32 to vector<1x256xf32>
    %516 = arith.addf %512, %515 : vector<1x256xf32>
    %517 = math.rsqrt %516 : vector<1x256xf32>
    %518 = vector.broadcast %517 : vector<1x256xf32> to vector<32x256xf32>
    %519 = arith.mulf %514, %518 : vector<32x256xf32>
    %520 = arith.truncf %519 : vector<32x256xf32> to vector<32x256xbf16>
    %cst_194 = arith.constant dense<0.000000e+00> : vector<32x256xf32>
    %521 = tpu.matmul %501, %520, %cst_194 {dimension_numbers = #tpu.dot_dimension_numbers<[1], [0], [0], [1], [0, 0, 1, 1], [], []>} : vector<32x32xbf16>, vector<32x256xbf16>, vector<32x256xf32> -> vector<32x256xf32>
    %522 = vector.extract_strided_slice %2 {offsets = [0, 20], sizes = [32, 1], strides = [1, 1]} : vector<64x23xf32> to vector<32x1xf32>
    %523 = vector.broadcast %522 : vector<32x1xf32> to vector<32x256xf32>
    %524 = arith.addf %521, %523 : vector<32x256xf32>
    %525 = arith.mulf %524, %524 : vector<32x256xf32>
    %526 = arith.mulf %524, %525 : vector<32x256xf32>
    %cst_195 = arith.constant 4.471500e-02 : f32
    %527 = vector.broadcast %cst_195 : f32 to vector<32x256xf32>
    %528 = arith.mulf %527, %526 : vector<32x256xf32>
    %529 = arith.addf %524, %528 : vector<32x256xf32>
    %cst_196 = arith.constant 0.797884583 : f32
    %530 = vector.broadcast %cst_196 : f32 to vector<32x256xf32>
    %531 = arith.mulf %530, %529 : vector<32x256xf32>
    %532 = math.tanh %531 : vector<32x256xf32>
    %cst_197 = arith.constant 1.000000e+00 : f32
    %533 = vector.broadcast %cst_197 : f32 to vector<32x256xf32>
    %534 = arith.addf %533, %532 : vector<32x256xf32>
    %cst_198 = arith.constant 5.000000e-01 : f32
    %535 = vector.broadcast %cst_198 : f32 to vector<32x256xf32>
    %536 = arith.mulf %535, %534 : vector<32x256xf32>
    %537 = arith.mulf %524, %536 : vector<32x256xf32>
    %c12 = arith.constant 12 : index
    %c0_199 = arith.constant 0 : index
    %c0_200 = arith.constant 0 : index
    %538 = vector.load %arg4[%c12, %c0_199, %c0_200] : memref<13x32x32xbf16, #tpu.memory_space<vmem>>, vector<1x32x32xbf16>
    %539 = vector.shape_cast %538 : vector<1x32x32xbf16> to vector<32x32xbf16>
    %540 = arith.truncf %537 : vector<32x256xf32> to vector<32x256xbf16>
    %cst_201 = arith.constant dense<0.000000e+00> : vector<32x256xf32>
    %541 = tpu.matmul %539, %540, %cst_201 {dimension_numbers = #tpu.dot_dimension_numbers<[1], [0], [0], [1], [0, 0, 1, 1], [], []>} : vector<32x32xbf16>, vector<32x256xbf16>, vector<32x256xf32> -> vector<32x256xf32>
    %542 = vector.extract_strided_slice %2 {offsets = [0, 21], sizes = [32, 1], strides = [1, 1]} : vector<64x23xf32> to vector<32x1xf32>
    %543 = vector.broadcast %542 : vector<32x1xf32> to vector<32x256xf32>
    %544 = arith.addf %541, %543 : vector<32x256xf32>
    %c2_202 = arith.constant 2 : index
    %c0_203 = arith.constant 0 : index
    %c0_204 = arith.constant 0 : index
    %545 = vector.load %arg6[%c2_202, %c0_203, %c0_204] : memref<4x32x8xf32, #tpu.memory_space<vmem>>, vector<1x32x8xf32>
    %546 = vector.shape_cast %545 : vector<1x32x8xf32> to vector<32x8xf32>
    %c3_205 = arith.constant 3 : index
    %c0_206 = arith.constant 0 : index
    %c0_207 = arith.constant 0 : index
    %547 = vector.load %arg6[%c3_205, %c0_206, %c0_207] : memref<4x32x8xf32, #tpu.memory_space<vmem>>, vector<1x32x8xf32>
    %548 = vector.shape_cast %547 : vector<1x32x8xf32> to vector<32x8xf32>
    %c1_208 = arith.constant 1 : index
    %c0_209 = arith.constant 0 : index
    %c0_210 = arith.constant 0 : index
    %549 = vector.load %arg7[%c1_208, %c0_209, %c0_210] : memref<2x1x8xf32, #tpu.memory_space<vmem>>, vector<1x1x8xf32>
    %550 = vector.shape_cast %549 : vector<1x1x8xf32> to vector<1x8xf32>
    %551 = vector.extract_strided_slice %2 {offsets = [0, 22], sizes = [32, 1], strides = [1, 1]} : vector<64x23xf32> to vector<32x1xf32>
    %cst_211 = arith.constant dense<0.000000e+00> : vector<32xf32>
    %552 = vector.multi_reduction <add>, %544, %cst_211 [1] : vector<32x256xf32> to vector<32xf32>
    %553 = vector.shape_cast %552 : vector<32xf32> to vector<32x1xf32>
    %cst_212 = arith.constant 2.560000e+02 : f32
    %554 = vector.broadcast %cst_212 : f32 to vector<32x1xf32>
    %555 = arith.divf %553, %554 : vector<32x1xf32>
    %556 = vector.broadcast %555 : vector<32x1xf32> to vector<32x8xf32>
    %557 = arith.mulf %546, %556 : vector<32x8xf32>
    %cst_213 = arith.constant dense<0.000000e+00> : vector<8xf32>
    %558 = vector.multi_reduction <add>, %557, %cst_213 [0] : vector<32x8xf32> to vector<8xf32>
    %559 = vector.shape_cast %558 : vector<8xf32> to vector<1x8xf32>
    %560 = arith.addf %559, %550 : vector<1x8xf32>
    %cst_214 = arith.constant 0.000000e+00 : f32
    %561 = vector.broadcast %cst_214 : f32 to vector<1x8xf32>
    %562 = arith.maximumf %560, %561 : vector<1x8xf32>
    %563 = vector.broadcast %562 : vector<1x8xf32> to vector<32x8xf32>
    %564 = arith.mulf %548, %563 : vector<32x8xf32>
    %cst_215 = arith.constant dense<0.000000e+00> : vector<32xf32>
    %565 = vector.multi_reduction <add>, %564, %cst_215 [1] : vector<32x8xf32> to vector<32xf32>
    %566 = vector.shape_cast %565 : vector<32xf32> to vector<32x1xf32>
    %567 = arith.addf %566, %551 : vector<32x1xf32>
    %568 = arith.negf %567 : vector<32x1xf32>
    %569 = math.exp %568 : vector<32x1xf32>
    %cst_216 = arith.constant 1.000000e+00 : f32
    %570 = vector.broadcast %cst_216 : f32 to vector<32x1xf32>
    %571 = arith.addf %570, %569 : vector<32x1xf32>
    %572 = arith.divf %570, %571 : vector<32x1xf32>
    %573 = vector.broadcast %572 : vector<32x1xf32> to vector<32x256xf32>
    %574 = arith.mulf %544, %573 : vector<32x256xf32>
    %575 = arith.addf %499, %574 : vector<32x256xf32>
    %576 = arith.addf %575, %9 : vector<32x256xf32>
    %c0_217 = arith.constant 0 : index
    %c0_218 = arith.constant 0 : index
    %c0_219 = arith.constant 0 : index
    %577 = vector.load %arg9[%c0_217, %c0_218, %c0_219] : memref<1x32x256xf32, #tpu.memory_space<vmem>>, vector<1x32x256xf32>
    %578 = vector.shape_cast %577 : vector<1x32x256xf32> to vector<32x256xf32>
    %579 = vector.shape_cast %576 : vector<32x256xf32> to vector<1x32x256xf32>
    tpu.vector_store %arg9[%c0_217, %c0_218, %c0_219], %579 {strides = array<i32>} : memref<1x32x256xf32, #tpu.memory_space<vmem>>, vector<1x32x256xf32>,
    return
  }
  func.func @transform_0(%arg0: i32) -> (i32, i32, i32) {
    %c0_i32 = arith.constant 0 : i32
    %c0_i32_0 = arith.constant 0 : i32
    %c0_i32_1 = arith.constant 0 : i32
    return %arg0, %c0_i32, %c0_i32_0 : i32, i32, i32
  }
  func.func @transform_1(%arg0: i32) -> (i32, i32, i32) {
    %c0_i32 = arith.constant 0 : i32
    %c0_i32_0 = arith.constant 0 : i32
    %c0_i32_1 = arith.constant 0 : i32
    %c0_i32_2 = arith.constant 0 : i32
    return %c0_i32, %c0_i32_0, %c0_i32_1 : i32, i32, i32
  }
  func.func @transform_2(%arg0: i32) -> (i32, i32, i32) {
    %c0_i32 = arith.constant 0 : i32
    %c0_i32_0 = arith.constant 0 : i32
    %c0_i32_1 = arith.constant 0 : i32
    %c0_i32_2 = arith.constant 0 : i32
    return %c0_i32, %c0_i32_0, %c0_i32_1 : i32, i32, i32
  }
  func.func @transform_3(%arg0: i32) -> (i32, i32, i32) {
    %c0_i32 = arith.constant 0 : i32
    %c0_i32_0 = arith.constant 0 : i32
    %c0_i32_1 = arith.constant 0 : i32
    %c0_i32_2 = arith.constant 0 : i32
    return %c0_i32, %c0_i32_0, %c0_i32_1 : i32, i32, i32
  }
  func.func @transform_4(%arg0: i32) -> (i32, i32, i32) {
    %c0_i32 = arith.constant 0 : i32
    %c0_i32_0 = arith.constant 0 : i32
    %c0_i32_1 = arith.constant 0 : i32
    %c0_i32_2 = arith.constant 0 : i32
    return %c0_i32, %c0_i32_0, %c0_i32_1 : i32, i32, i32
  }
  func.func @transform_5(%arg0: i32) -> (i32, i32, i32) {
    %c0_i32 = arith.constant 0 : i32
    %c0_i32_0 = arith.constant 0 : i32
    %c0_i32_1 = arith.constant 0 : i32
    %c0_i32_2 = arith.constant 0 : i32
    return %c0_i32, %c0_i32_0, %c0_i32_1 : i32, i32, i32
  }
  func.func @transform_6(%arg0: i32) -> (i32, i32, i32) {
    %c0_i32 = arith.constant 0 : i32
    %c0_i32_0 = arith.constant 0 : i32
    %c0_i32_1 = arith.constant 0 : i32
    %c0_i32_2 = arith.constant 0 : i32
    return %c0_i32, %c0_i32_0, %c0_i32_1 : i32, i32, i32
  }
  func.func @transform_7(%arg0: i32) -> (i32, i32) {
    %c0_i32 = arith.constant 0 : i32
    %c0_i32_0 = arith.constant 0 : i32
    %c0_i32_1 = arith.constant 0 : i32
    return %c0_i32, %c0_i32_0 : i32, i32
  }
  func.func @transform_8(%arg0: i32) -> (i32, i32, i32) {
    %c0_i32 = arith.constant 0 : i32
    %c0_i32_0 = arith.constant 0 : i32
    %c0_i32_1 = arith.constant 0 : i32
    return %arg0, %c0_i32, %c0_i32_0 : i32, i32, i32
  }
}

</mosaic_0001>

<llo_original>
// kernel: tpu_custom_call.1
$region0: #{tpu_custom_call.1}
  #allocation0 [shape = 'u32[]', space=smem, size = 0x4, offset = 0x4, fixed_abs, tag = 'smem constant byte address 0x4 - core index']
  #allocation1 [shape = 'u32[144,128]{1,0:T(1,128)}', space=vmem, size = 0x12000, scoped, tag = 'internal scratch']
  %s0 = inlined_call_operand.hbm [shape: f32[2,32,256], index: 0, kind: input, shape index: {}]
  %s1 = inlined_call_operand.hbm [shape: bf16[4,256,256], index: 1, kind: input, shape index: {}]
  %s2 = inlined_call_operand.vmem [shape: f32[4,32,256], index: 2, kind: input, shape index: {}]
  %s3 = inlined_call_operand.vmem [shape: bf16[13,32,32], index: 3, kind: input, shape index: {}]
  %s4 = inlined_call_operand.vmem [shape: bf16[6,64,32], index: 4, kind: input, shape index: {}]
  %s5 = inlined_call_operand.vmem [shape: f32[4,32,8], index: 5, kind: input, shape index: {}]
  %s6 = inlined_call_operand.vmem [shape: f32[2,1,8], index: 6, kind: input, shape index: {}]
  %s7 = inlined_call_operand.vmem [shape: f32[64,23], index: 7, kind: input, shape index: {}]
  %s8 = inlined_call_operand.hbm [shape: f32[2,32,256], index: 8, kind: output, shape index: {}]
  %s9 = sld [smem:[#allocation0]]
  $region73: #{tpu_custom_call.1} parent=0
    _
  %s11 = ssub.s32 1, %s9
  %s12 = scalar_select 0, %s11, %s9
  $region1: #{tpu_custom_call.1} parent=0
    #allocation2 [shape = 'u8[65536]{0}', space=vmem, size = 0x10000, scoped, tag = 'input window, operand 0']
    #allocation3 [shape = 's32[2]{0}', space=sflag, size = 0x8, scoped, tag = 'scoped memory for tpu_custom_call.1']
    #allocation4 [shape = 's32[2]{0}', space=sflag, size = 0x8, scoped, tag = 'scoped memory for tpu_custom_call.1']
    #allocation5 [shape = 'u8[524288]{0}', space=vmem, size = 0x80000, scoped, tag = 'input window, operand 1, single buffered']
    #allocation6 [shape = 's32[1]{0}', space=sflag, size = 0x4, scoped, tag = 'scoped memory for tpu_custom_call.1']
    #allocation7 [shape = 'u8[65536]{0}', space=vmem, size = 0x10000, scoped, tag = 'output window, operand 0']
    %13 = vsyncpa [#allocation3], 0
    %s14 = scalar_lea.sflag [#allocation3], 1
    %15 = vsyncpa %s14, 0
    %16 = vsyncpa [#allocation6], 0
    %17 = vsyncpa [#allocation4], 0
    %s18 = scalar_lea.sflag [#allocation4], 1
    %19 = vsyncpa %s18, 0
    loop: start=0, step=1, limit=4
    $region2: #{tpu_custom_call.1} parent=1 // loop_pre_header
      _
    $region3: #{tpu_custom_call.1} parent=1 // loop_header
      %s21 = sphi 0, %s25
      %p22 = scmp.ge.s32.totalorder %s21, 4
      %s31 = sphi 0, %s33
      %s34 = sphi 0, %s31
      %s35 = sphi 0, %s34
      %s51 = sphi 0, %s35
      %s55 = sphi 0, %s55
      %s57 = sphi 0, %s55
      %s58 = sphi 0, %s57
      %s72 = sphi 0, %s58
      %s76 = sphi 0, %s76
      %s78 = sphi 0, %s76
      %s79 = sphi 0, %s78
      %s93 = sphi 0, %s79
      %s97 = sphi 0, %s97
      %s99 = sphi 0, %s97
      %s100 = sphi 0, %s99
      %s114 = sphi 0, %s100
      %s118 = sphi 0, %s118
      %s120 = sphi 0, %s118
      %s121 = sphi 0, %s120
      %s135 = sphi 0, %s121
      %s139 = sphi 0, %s139
      %s141 = sphi 0, %s139
      %s142 = sphi 0, %s141
      %s156 = sphi 0, %s142
      %s160 = sphi 0, %s160
      %s162 = sphi 0, %s160
      %s163 = sphi 0, %s162
      %s177 = sphi 0, %s163
      %s181 = sphi 0, %s181
      %s183 = sphi 0, %s181
      %s184 = sphi 0, %s183
      %s198 = sphi 0, %s184
      %s204 = sphi 0, %s206
      %s207 = sphi 0, %s204
      %s208 = sphi 0, %s207
      %s224 = sphi 0, %s208
    $region4: #{tpu_custom_call.1} parent=1 // loop_header_branch
      %24 = sbr.rel (%p22) target = $region8
    $region5: #{tpu_custom_call.1} parent=1 // loop_body
      %s26 = ssub.s32 %s21, 1
      %s27 = ssub.s32 %s21, 2
      %s28 = sadd.s32 %s21, 1
      %s29 = ssub.s32 %s21, %s28
      %p30 = scmp.eq.s32.totalorder %s29, 0
      %s32 = sadd.s32 %s31, 1
      %s33 = scalar_select %p30, %s31, %s32
      %p36 = pneg %p30
      %p37 = scmp.eq.s32.totalorder %s21, 1
      %p38 = por %p36, %p37
      %p39 = scmp.ne.s32.totalorder %s31, %s34
      %p40 = scmp.eq.s32.totalorder %s21, 0
      %p41 = por %p39, %p40
      %p42 = scmp.ne.s32.totalorder %s31, %s34
      %p43 = scmp.eq.s32.totalorder %s26, 1
      %p44 = por %p42, %p43
      %p45 = scmp.ne.s32.totalorder %s34, %s35
      %p46 = scmp.eq.s32.totalorder %s26, 0
      %p47 = por %p45, %p46
      %p48 = scmp.ne.s32.totalorder %s34, %s35
      %p49 = scmp.eq.s32.totalorder %s27, 1
      %p50 = por %p48, %p49
      %p52 = scmp.ne.s32.totalorder %s35, %s51
      %p53 = scmp.eq.s32.totalorder %s27, 0
      %p54 = por %p52, %p53
      %s56 = sadd.s32 %s55, 1
      %p59 = scmp.eq.s32.totalorder %s21, 1
      %p60 = scmp.ne.s32.totalorder %s55, %s57
      %p61 = scmp.eq.s32.totalorder %s21, 0
      %p62 = por %p60, %p61
      %p63 = scmp.ne.s32.totalorder %s55, %s57
      %p64 = scmp.eq.s32.totalorder %s26, 1
      %p65 = por %p63, %p64
      %p66 = scmp.ne.s32.totalorder %s57, %s58
      %p67 = scmp.eq.s32.totalorder %s26, 0
      %p68 = por %p66, %p67
      %p69 = scmp.ne.s32.totalorder %s57, %s58
      %p70 = scmp.eq.s32.totalorder %s27, 1
      %p71 = por %p69, %p70
      %p73 = scmp.ne.s32.totalorder %s58, %s72
      %p74 = scmp.eq.s32.totalorder %s27, 0
      %p75 = por %p73, %p74
      %s77 = sadd.s32 %s76, 1
      %p80 = scmp.eq.s32.totalorder %s21, 1
      %p81 = scmp.ne.s32.totalorder %s76, %s78
      %p82 = scmp.eq.s32.totalorder %s21, 0
      %p83 = por %p81, %p82
      %p84 = scmp.ne.s32.totalorder %s76, %s78
      %p85 = scmp.eq.s32.totalorder %s26, 1
      %p86 = por %p84, %p85
      %p87 = scmp.ne.s32.totalorder %s78, %s79
      %p88 = scmp.eq.s32.totalorder %s26, 0
      %p89 = por %p87, %p88
      %p90 = scmp.ne.s32.totalorder %s78, %s79
      %p91 = scmp.eq.s32.totalorder %s27, 1
      %p92 = por %p90, %p91
      %p94 = scmp.ne.s32.totalorder %s79, %s93
      %p95 = scmp.eq.s32.totalorder %s27, 0
      %p96 = por %p94, %p95
      %s98 = sadd.s32 %s97, 1
      %p101 = scmp.eq.s32.totalorder %s21, 1
      %p102 = scmp.ne.s32.totalorder %s97, %s99
      %p103 = scmp.eq.s32.totalorder %s21, 0
      %p104 = por %p102, %p103
      %p105 = scmp.ne.s32.totalorder %s97, %s99
      %p106 = scmp.eq.s32.totalorder %s26, 1
      %p107 = por %p105, %p106
      %p108 = scmp.ne.s32.totalorder %s99, %s100
      %p109 = scmp.eq.s32.totalorder %s26, 0
      %p110 = por %p108, %p109
      %p111 = scmp.ne.s32.totalorder %s99, %s100
      %p112 = scmp.eq.s32.totalorder %s27, 1
      %p113 = por %p111, %p112
      %p115 = scmp.ne.s32.totalorder %s100, %s114
      %p116 = scmp.eq.s32.totalorder %s27, 0
      %p117 = por %p115, %p116
      %s119 = sadd.s32 %s118, 1
      %p122 = scmp.eq.s32.totalorder %s21, 1
      %p123 = scmp.ne.s32.totalorder %s118, %s120
      %p124 = scmp.eq.s32.totalorder %s21, 0
      %p125 = por %p123, %p124
      %p126 = scmp.ne.s32.totalorder %s118, %s120
      %p127 = scmp.eq.s32.totalorder %s26, 1
      %p128 = por %p126, %p127
      %p129 = scmp.ne.s32.totalorder %s120, %s121
      %p130 = scmp.eq.s32.totalorder %s26, 0
      %p131 = por %p129, %p130
      %p132 = scmp.ne.s32.totalorder %s120, %s121
      %p133 = scmp.eq.s32.totalorder %s27, 1
      %p134 = por %p132, %p133
      %p136 = scmp.ne.s32.totalorder %s121, %s135
      %p137 = scmp.eq.s32.totalorder %s27, 0
      %p138 = por %p136, %p137
      %s140 = sadd.s32 %s139, 1
      %p143 = scmp.eq.s32.totalorder %s21, 1
      %p144 = scmp.ne.s32.totalorder %s139, %s141
      %p145 = scmp.eq.s32.totalorder %s21, 0
      %p146 = por %p144, %p145
      %p147 = scmp.ne.s32.totalorder %s139, %s141
      %p148 = scmp.eq.s32.totalorder %s26, 1
      %p149 = por %p147, %p148
      %p150 = scmp.ne.s32.totalorder %s141, %s142
      %p151 = scmp.eq.s32.totalorder %s26, 0
      %p152 = por %p150, %p151
      %p153 = scmp.ne.s32.totalorder %s141, %s142
      %p154 = scmp.eq.s32.totalorder %s27, 1
      %p155 = por %p153, %p154
      %p157 = scmp.ne.s32.totalorder %s142, %s156
      %p158 = scmp.eq.s32.totalorder %s27, 0
      %p159 = por %p157, %p158
      %s161 = sadd.s32 %s160, 1
      %p164 = scmp.eq.s32.totalorder %s21, 1
      %p165 = scmp.ne.s32.totalorder %s160, %s162
      %p166 = scmp.eq.s32.totalorder %s21, 0
      %p167 = por %p165, %p166
      %p168 = scmp.ne.s32.totalorder %s160, %s162
      %p169 = scmp.eq.s32.totalorder %s26, 1
      %p170 = por %p168, %p169
      %p171 = scmp.ne.s32.totalorder %s162, %s163
      %p172 = scmp.eq.s32.totalorder %s26, 0
      %p173 = por %p171, %p172
      %p174 = scmp.ne.s32.totalorder %s162, %s163
      %p175 = scmp.eq.s32.totalorder %s27, 1
      %p176 = por %p174, %p175
      %p178 = scmp.ne.s32.totalorder %s163, %s177
      %p179 = scmp.eq.s32.totalorder %s27, 0
      %p180 = por %p178, %p179
      %s182 = sadd.s32 %s181, 1
      %p185 = scmp.eq.s32.totalorder %s21, 1
      %p186 = scmp.ne.s32.totalorder %s181, %s183
      %p187 = scmp.eq.s32.totalorder %s21, 0
      %p188 = por %p186, %p187
      %p189 = scmp.ne.s32.totalorder %s181, %s183
      %p190 = scmp.eq.s32.totalorder %s26, 1
      %p191 = por %p189, %p190
      %p192 = scmp.ne.s32.totalorder %s183, %s184
      %p193 = scmp.eq.s32.totalorder %s26, 0
      %p194 = por %p192, %p193
      %p195 = scmp.ne.s32.totalorder %s183, %s184
      %p196 = scmp.eq.s32.totalorder %s27, 1
      %p197 = por %p195, %p196
      %p199 = scmp.ne.s32.totalorder %s184, %s198
      %p200 = scmp.eq.s32.totalorder %s27, 0
      %p201 = por %p199, %p200
      %s202 = ssub.s32 %s21, %s28
      %p203 = scmp.eq.s32.totalorder %s202, 0
      %s205 = sadd.s32 %s204, 1
      %s206 = scalar_select %p203, %s204, %s205
      %p209 = pneg %p203
      %p210 = scmp.eq.s32.totalorder %s21, 1
      %p211 = por %p209, %p210
      %p212 = scmp.ne.s32.totalorder %s204, %s207
      %p213 = scmp.eq.s32.totalorder %s21, 0
      %p214 = por %p212, %p213
      %p215 = scmp.ne.s32.totalorder %s204, %s207
      %p216 = scmp.eq.s32.totalorder %s26, 1
      %p217 = por %p215, %p216
      %p218 = scmp.ne.s32.totalorder %s207, %s208
      %p219 = scmp.eq.s32.totalorder %s26, 0
      %p220 = por %p218, %p219
      %p221 = scmp.ne.s32.totalorder %s207, %s208
      %p222 = scmp.eq.s32.totalorder %s27, 1
      %p223 = por %p221, %p222
      %p225 = scmp.ne.s32.totalorder %s208, %s224
      %p226 = scmp.eq.s32.totalorder %s27, 0
      %p227 = por %p225, %p226
      %p228 = scmp.le.s32.totalorder 1, %s21
      %p229 = scmp.lt.s32.totalorder %s21, 3
      %p230 = pnand %p228, %p229
      %p231 = pneg %p230
      // Predicated region
      $region9: #{tpu_custom_call.1} parent=5 // pred_check
        _
      $region10: #{tpu_custom_call.1} parent=5 // pred_check_branch
        %233 = sbr.rel (%p230) target = $region12
      $region11: #{tpu_custom_call.1} parent=5 // pred_region
        %s234 = ssub.s32 %s21, 1
        // Predicated region
        $region13: #{tpu_custom_call.1} parent=11 // pred_check
          %p235 = pneg %p68
        $region14: #{tpu_custom_call.1} parent=11 // pred_check_branch
          %237 = sbr.rel (%p235) target = $region16
        $region15: #{tpu_custom_call.1} parent=11 // pred_region
          %s239 = ssub.s32 16384, 16384
          %240 = vsyncadd [#allocation6], %s239
          %s241 = sshll.u32 [#allocation5], 4
          %s242 = int_to_ptr.vmem [resolvable:$true] %s241
          %247 = dma.hbm_to_vmem [thread:$0]  %s1, 16384, %s242, [#allocation6], 128, 128, 8
        $region16: #{tpu_custom_call.1} parent=11 // pred_fallthru
          _
        // Predicated region
        $region17: #{tpu_custom_call.1} parent=11 // pred_check
          %p248 = pneg %p89
        $region18: #{tpu_custom_call.1} parent=11 // pred_check_branch
          %250 = sbr.rel (%p248) target = $region20
        $region19: #{tpu_custom_call.1} parent=11 // pred_region
          _
        $region20: #{tpu_custom_call.1} parent=11 // pred_fallthru
          _
        // Predicated region
        $region21: #{tpu_custom_call.1} parent=11 // pred_check
          %p251 = pneg %p110
        $region22: #{tpu_custom_call.1} parent=11 // pred_check_branch
          %253 = sbr.rel (%p251) target = $region24
        $region23: #{tpu_custom_call.1} parent=11 // pred_region
          _
        $region24: #{tpu_custom_call.1} parent=11 // pred_fallthru
          _
        // Predicated region
        $region25: #{tpu_custom_call.1} parent=11 // pred_check
          %p254 = pneg %p131
        $region26: #{tpu_custom_call.1} parent=11 // pred_check_branch
          %256 = sbr.rel (%p254) target = $region28
        $region27: #{tpu_custom_call.1} parent=11 // pred_region
          _
        $region28: #{tpu_custom_call.1} parent=11 // pred_fallthru
          _
        // Predicated region
        $region29: #{tpu_custom_call.1} parent=11 // pred_check
          %p257 = pneg %p152
        $region30: #{tpu_custom_call.1} parent=11 // pred_check_branch
          %259 = sbr.rel (%p257) target = $region32
        $region31: #{tpu_custom_call.1} parent=11 // pred_region
          _
        $region32: #{tpu_custom_call.1} parent=11 // pred_fallthru
          _
        // Predicated region
        $region33: #{tpu_custom_call.1} parent=11 // pred_check
          %p260 = pneg %p173
        $region34: #{tpu_custom_call.1} parent=11 // pred_check_branch
          %262 = sbr.rel (%p260) target = $region36
        $region35: #{tpu_custom_call.1} parent=11 // pred_region
          _
        $region36: #{tpu_custom_call.1} parent=11 // pred_fallthru
          _
        // Predicated region
        $region37: #{tpu_custom_call.1} parent=11 // pred_check
          %p263 = pneg %p194
        $region38: #{tpu_custom_call.1} parent=11 // pred_check_branch
          %265 = sbr.rel (%p263) target = $region40
        $region39: #{tpu_custom_call.1} parent=11 // pred_region
          _
        $region40: #{tpu_custom_call.1} parent=11 // pred_fallthru
          _
      $region12: #{tpu_custom_call.1} parent=5 // pred_fallthru
        _
      %p266 = scmp.lt.s32.totalorder %s21, 2
      // Predicated region
      $region41: #{tpu_custom_call.1} parent=5 // pred_check
        %p267 = pneg %p266
      $region42: #{tpu_custom_call.1} parent=5 // pred_check_branch
        %269 = sbr.rel (%p267) target = $region44
      $region43: #{tpu_custom_call.1} parent=5 // pred_region
        // Predicated region
        $region45: #{tpu_custom_call.1} parent=43 // pred_check
          %p270 = pneg %p41
        $region46: #{tpu_custom_call.1} parent=43 // pred_check_branch
          %272 = sbr.rel (%p270) target = $region48
        $region47: #{tpu_custom_call.1} parent=43 // pred_region
          %s273 = sand.u32 %s31, 1
          %s274 = scalar_lea.sflag [#allocation3], %s273
          %s275 = sand.u32 %s31, 1
          %s276 = smul.addr %s275, 64
          %s277 = scalar_lea.vmem [#allocation2], %s276
          %s279 = ssub.s32 1024, 1024
          %280 = vsyncadd %s274, %s279
          %s281 = smul.addr %s21, 8
          %s282 = smul.addr %s281, 128
          %s283 = scalar_lea.hbm %s0, %s282
          %s284 = sshll.u32 %s277, 4
          %s285 = int_to_ptr.vmem [resolvable:$true] %s284
          %290 = dma.hbm_to_vmem [thread:$0]  %s283, 1024, %s285, %s274, 256, 256, 16
        $region48: #{tpu_custom_call.1} parent=43 // pred_fallthru
          _
      $region44: #{tpu_custom_call.1} parent=5 // pred_fallthru
        _
      %p291 = scmp.le.s32.totalorder 1, %s21
      %p292 = scmp.lt.s32.totalorder %s21, 3
      %p293 = pnand %p291, %p292
      %p294 = pneg %p293
      // Predicated region
      $region49: #{tpu_custom_call.1} parent=5 // pred_check
        _
      $region50: #{tpu_custom_call.1} parent=5 // pred_check_branch
        %296 = sbr.rel (%p293) target = $region52
      $region51: #{tpu_custom_call.1} parent=5 // pred_region
        %s297 = ssub.s32 %s21, 1
        %s298 = sand.u32 %s34, 1
        %s299 = scalar_lea.sflag [#allocation3], %s298
        %s300 = sand.u32 %s34, 1
        %s301 = smul.addr %s300, 64
        %s302 = scalar_lea.vmem [#allocation2], %s301
        // Predicated region
        $region53: #{tpu_custom_call.1} parent=51 // pred_check
          %p303 = pneg %p47
        $region54: #{tpu_custom_call.1} parent=51 // pred_check_branch
          %305 = sbr.rel (%p303) target = $region56
        $region55: #{tpu_custom_call.1} parent=51 // pred_region
          %306 = dma.done %s299, 1024
        $region56: #{tpu_custom_call.1} parent=51 // pred_fallthru
          _
        // Predicated region
        $region57: #{tpu_custom_call.1} parent=51 // pred_check
          %p307 = pneg %p68
        $region58: #{tpu_custom_call.1} parent=51 // pred_check_branch
          %309 = sbr.rel (%p307) target = $region60
        $region59: #{tpu_custom_call.1} parent=51 // pred_region
          %310 = dma.done [#allocation6], 16384
        $region60: #{tpu_custom_call.1} parent=51 // pred_fallthru
          _
        %s311 = sand.u32 %s34, 1
        %s312 = scalar_lea.sflag [#allocation3], %s311
        %s313 = sand.u32 %s34, 1
        %s314 = smul.addr %s313, 64
        %s315 = scalar_lea.vmem [#allocation2], %s314
        %p316 = pneg %p47
        %p317 = pneg %p44
        %p318 = pneg %p68
        %p319 = pneg %p65
        %p320 = pneg %p89
        %p321 = pneg %p86
        %p322 = pneg %p110
        %p323 = pneg %p107
        %p324 = pneg %p131
        %p325 = pneg %p128
        %p326 = pneg %p152
        %p327 = pneg %p149
        %p328 = pneg %p173
        %p329 = pneg %p170
        %p330 = pneg %p194
        %p331 = pneg %p191
        %p332 = pneg %p220
        %p333 = pneg %p217
        %s334 = sand.u32 %s207, 1
        %s335 = scalar_lea.sflag [#allocation4], %s334
        %s336 = sand.u32 %s207, 1
        %s337 = smul.addr %s336, 64
        %s338 = scalar_lea.vmem [#allocation7], %s337
        %v340 = vld [vmem:[%s302] sm:$0xff]
        %v341 = vld [vmem:[%s302 + $0x8] sm:$0xff]
        %v342 = vld [vmem:[%s302 + $0x10] sm:$0xff]
        %v343 = vld [vmem:[%s302 + $0x18] sm:$0xff]
        %v344 = vld [vmem:[%s302 + $0x20] sm:$0xff]
        %v345 = vld [vmem:[%s302 + $0x28] sm:$0xff]
        %v346 = vld [vmem:[%s302 + $0x30] sm:$0xff]
        %v347 = vld [vmem:[%s302 + $0x38] sm:$0xff]
        %v348 = vld [vmem:[%s7] sm:$0xff]
        %v349 = vld [vmem:[%s7 + $0x8] sm:$0xff]
        %v350 = vld [vmem:[%s7 + $0x10] sm:$0xff]
        %v351 = vld [vmem:[%s7 + $0x18] sm:$0xff]
        %v352 = vld [vmem:[%s7 + $0x20] sm:$0xff]
        %v353 = vld [vmem:[%s7 + $0x28] sm:$0xff]
        %v354 = vld [vmem:[%s7 + $0x30] sm:$0xff]
        %v355 = vld [vmem:[%s7 + $0x38] sm:$0xff]
        %v356 = vld [vmem:[%s3] sm:$0xf]
        %v357 = vld [vmem:[%s3 + $0x4] sm:$0xf]
        %v358 = vld [vmem:[%s3 + $0x8] sm:$0xf]
        %v359 = vld [vmem:[%s3 + $0xc] sm:$0xf]
        %v360 = vpack.c.bf16 %v342, %v340
        %v361 = vpack.c.bf16 %v343, %v341
        %v362 = vpack.c.bf16 %v346, %v344
        %v363 = vpack.c.bf16 %v347, %v345
        %365 = vset.pattern.permute.xlu0 0
        %366 = vperm.xlu0 %365, %v348
        %v367 = vpop.permute.xlu0 %366
        %370 = vset.pattern.permute.xlu0 0
        %371 = vperm.xlu0 %370, %v349
        %v372 = vpop.permute.xlu0 %371
        %375 = vset.pattern.permute.xlu0 0
        %376 = vperm.xlu0 %375, %v350
        %v377 = vpop.permute.xlu0 %376
        %380 = vset.pattern.permute.xlu0 0
        %381 = vperm.xlu0 %380, %v351
        %v382 = vpop.permute.xlu0 %381
        %v388 = vunpack.c.l.b16 %v356
        %v389 = vunpack.c.l.b16 %v357
        %v390 = vunpack.c.l.b16 %v358
        %v391 = vunpack.c.l.b16 %v359
        %v392 = vpack.c.b16 %v389, %v388
        %v393 = vpack.c.b16 %v391, %v390
        %vm394 = vcmask 261120
        %v396 = vsel %vm394, %v392, 0
        %v399 = vsel %vm394, %v393, 0
        %401 = vmatprep.subr.bf16.mxu0 0
        %402 = vmatpush1.bf16.msra.mxu0 0
        %403 = vmatprep.subr.bf16.mxu0 0
        %404 = vmatpush1.bf16.msra.mxu0 0
        %405 = vmatprep.subr.bf16.mxu0 0
        %406 = vmatpush1.bf16.msra.mxu0 0
        %407 = vmatprep.subr.bf16.mxu0 0
        %408 = vmatpush1.bf16.msra.mxu0 0
        %409 = vmatprep.subr.bf16.mxu0 0
        %410 = vmatpush1.bf16.msra.mxu0 0
        %411 = vmatprep.subr.bf16.mxu0 0
        %412 = vmatpush1.bf16.msra.mxu0 0
        %413 = vmatprep.subr.bf16.mxu0 %v363
        %414 = vmatpush1.bf16.msra.mxu0 %v362
        %415 = vmatprep.subr.bf16.mxu0 %v361
        %416 = vmatpush1.bf16.msra.mxu0 %v360
        %417 = vmatprep.subr.bf16.mxu0 0
        %418 = vmatpush2.bf16.msra.mxu0 0
        %419 = vmatprep.subr.bf16.mxu0 0
        %420 = vmatpush2.bf16.msra.mxu0 0
        %421 = vmatprep.subr.bf16.mxu0 0
        %422 = vmatpush2.bf16.msra.mxu0 0
        %423 = vmatprep.subr.bf16.mxu0 0
        %424 = vmatpush2.bf16.msra.mxu0 0
        %425 = vmatprep.subr.bf16.mxu0 0
        %426 = vmatpush2.bf16.msra.mxu0 0
        %427 = vmatprep.subr.bf16.mxu0 0
        %428 = vmatpush2.bf16.msra.mxu0 0
        %429 = vmatprep.subr.bf16.mxu0 0
        %430 = vmatpush2.bf16.msra.mxu0 0
        %431 = vmatprep.subr.bf16.mxu0 0
        %432 = vmatpush2.bf16.msra.mxu0 0
        %433 = vmatprep.mubr.bf16.mxu0 0
        %434 = vmatmul.mubr.bf16.gmra.mxu0 %v396
        %v435 = vpop.f32.mrf.mxu0
        %v436 = vadd.f32 %v367, %v435
        %v437 = vpop.f32.mrf.mxu0
        %v438 = vadd.f32 %v367, %v437
        %v439 = vpop.f32.mrf.mxu0
        %v440 = vadd.f32 %v372, %v439
        %v441 = vpop.f32.mrf.mxu0
        %v442 = vadd.f32 %v372, %v441
        %443 = vmatprep.mubr.bf16.mxu0 0
        %444 = vmatmul.mubr.bf16.gmra.mxu0 %v399
        %v445 = vpop.f32.mrf.mxu0
        %v446 = vadd.f32 %v377, %v445
        %v447 = vpop.f32.mrf.mxu0
        %v448 = vadd.f32 %v377, %v447
        %v449 = vpop.f32.mrf.mxu0
        %v450 = vadd.f32 %v382, %v449
        %v451 = vpop.f32.mrf.mxu0
        %v452 = vadd.f32 %v382, %v451
        %453 = vdwg.mxu0
        %v454 = vld [vmem:[%s4] sm:$0xf]
        %v455 = vld [vmem:[%s4 + $0x4] sm:$0xf]
        %v456 = vld [vmem:[%s4 + $0x8] sm:$0xf]
        %v457 = vld [vmem:[%s4 + $0xc] sm:$0xf]
        %v458 = vld [vmem:[%s4 + $0x10] sm:$0xf]
        %v459 = vld [vmem:[%s4 + $0x14] sm:$0xf]
        %v460 = vld [vmem:[%s4 + $0x18] sm:$0xf]
        %v461 = vld [vmem:[%s4 + $0x1c] sm:$0xf]
        %v462 = vadd.f32 %v436, %v440
        %v463 = vadd.f32 %v462, %v446
        %v464 = vadd.f32 %v463, %v450
        %v465 = vrot.slane %v464, 4
        %v466 = vadd.f32 %v464, %v465
        %v467 = vrot.slane %v466, 2
        %v468 = vadd.f32 %v466, %v467
        %v469 = vrot.slane %v468, 1
        %v470 = vadd.f32 %v468, %v469
        %v471 = vadd.f32 %v438, %v442
        %v472 = vadd.f32 %v471, %v448
        %v473 = vadd.f32 %v472, %v452
        %v474 = vrot.slane %v473, 4
        %v475 = vadd.f32 %v473, %v474
        %v476 = vrot.slane %v475, 2
        %v477 = vadd.f32 %v475, %v476
        %v478 = vrot.slane %v477, 1
        %v479 = vadd.f32 %v477, %v478
        %v480 = vrcp.pop 32.0
        %v481 = vmul.f32 %v470, %v480
        %v482 = vmul.f32 %v479, %v480
        %v483 = vsub.f32 %v436, %v481
        %v484 = vsub.f32 %v438, %v482
        %v485 = vsub.f32 %v440, %v481
        %v486 = vsub.f32 %v442, %v482
        %v487 = vsub.f32 %v446, %v481
        %v488 = vsub.f32 %v448, %v482
        %v489 = vsub.f32 %v450, %v481
        %v490 = vsub.f32 %v452, %v482
        %v491 = vmul.f32 %v483, %v483
        %v492 = vmul.f32 %v484, %v484
        %v493 = vmul.f32 %v485, %v485
        %v494 = vmul.f32 %v486, %v486
        %v495 = vmul.f32 %v487, %v487
        %v496 = vmul.f32 %v488, %v488
        %v497 = vmul.f32 %v489, %v489
        %v498 = vmul.f32 %v490, %v490
        %v499 = vadd.f32 %v491, %v493
        %v500 = vadd.f32 %v499, %v495
        %v501 = vadd.f32 %v500, %v497
        %v502 = vrot.slane %v501, 4
        %v503 = vadd.f32 %v501, %v502
        %v504 = vrot.slane %v503, 2
        %v505 = vadd.f32 %v503, %v504
        %v506 = vrot.slane %v505, 1
        %v507 = vadd.f32 %v505, %v506
        %v508 = vadd.f32 %v492, %v494
        %v509 = vadd.f32 %v508, %v496
        %v510 = vadd.f32 %v509, %v498
        %v511 = vrot.slane %v510, 4
        %v512 = vadd.f32 %v510, %v511
        %v513 = vrot.slane %v512, 2
        %v514 = vadd.f32 %v512, %v513
        %v515 = vrot.slane %v514, 1
        %v516 = vadd.f32 %v514, %v515
        %v517 = vmul.f32 %v507, %v480
        %v518 = vmul.f32 %v516, %v480
        %v519 = vadd.f32 %v517, 1e-06
        %v520 = vadd.f32 %v518, 1e-06
        %v521 = vrsqrt.pop %v519
        %v522 = vrsqrt.pop %v520
        %v523 = vmul.f32 %v483, %v521
        %v524 = vmul.f32 %v484, %v522
        %v525 = vmul.f32 %v485, %v521
        %v526 = vmul.f32 %v486, %v522
        %v527 = vmul.f32 %v487, %v521
        %v528 = vmul.f32 %v488, %v522
        %v529 = vmul.f32 %v489, %v521
        %v530 = vmul.f32 %v490, %v522
        %v531 = vpack.c.bf16 %v525, %v523
        %v532 = vpack.c.bf16 %v526, %v524
        %v533 = vpack.c.bf16 %v529, %v527
        %v534 = vpack.c.bf16 %v530, %v528
        %535 = vset.pattern.permute.xlu0 1
        %536 = vperm.xlu0 %535, %v348
        %v537 = vpop.permute.xlu0 %536
        %539 = vset.pattern.permute.xlu0 1
        %540 = vperm.xlu0 %539, %v349
        %v541 = vpop.permute.xlu0 %540
        %543 = vset.pattern.permute.xlu0 1
        %544 = vperm.xlu0 %543, %v350
        %v545 = vpop.permute.xlu0 %544
        %547 = vset.pattern.permute.xlu0 1
        %548 = vperm.xlu0 %547, %v351
        %v549 = vpop.permute.xlu0 %548
        %552 = vset.pattern.permute.xlu0 1
        %553 = vperm.xlu0 %552, %v352
        %v554 = vpop.permute.xlu0 %553
        %557 = vset.pattern.permute.xlu0 1
        %558 = vperm.xlu0 %557, %v353
        %v559 = vpop.permute.xlu0 %558
        %562 = vset.pattern.permute.xlu0 1
        %563 = vperm.xlu0 %562, %v354
        %v564 = vpop.permute.xlu0 %563
        %567 = vset.pattern.permute.xlu0 1
        %568 = vperm.xlu0 %567, %v355
        %v569 = vpop.permute.xlu0 %568
        %v579 = vunpack.c.l.b16 %v454
        %v580 = vunpack.c.l.b16 %v455
        %v581 = vunpack.c.l.b16 %v456
        %v582 = vunpack.c.l.b16 %v457
        %v583 = vunpack.c.l.b16 %v458
        %v584 = vunpack.c.l.b16 %v459
        %v585 = vunpack.c.l.b16 %v460
        %v586 = vunpack.c.l.b16 %v461
        %v587 = vpack.c.b16 %v580, %v579
        %v588 = vpack.c.b16 %v582, %v581
        %v589 = vpack.c.b16 %v584, %v583
        %v590 = vpack.c.b16 %v586, %v585
        %v592 = vsel %vm394, %v587, 0
        %v595 = vsel %vm394, %v588, 0
        %v598 = vsel %vm394, %v589, 0
        %v601 = vsel %vm394, %v590, 0
        %603 = vmatprep.subr.bf16.mxu0 0
        %604 = vmatpush1.bf16.msra.mxu0 0
        %605 = vmatprep.subr.bf16.mxu0 0
        %606 = vmatpush1.bf16.msra.mxu0 0
        %607 = vmatprep.subr.bf16.mxu0 0
        %608 = vmatpush1.bf16.msra.mxu0 0
        %609 = vmatprep.subr.bf16.mxu0 0
        %610 = vmatpush1.bf16.msra.mxu0 0
        %611 = vmatprep.subr.bf16.mxu0 0
        %612 = vmatpush1.bf16.msra.mxu0 0
        %613 = vmatprep.subr.bf16.mxu0 0
        %614 = vmatpush1.bf16.msra.mxu0 0
        %615 = vmatprep.subr.bf16.mxu0 %v534
        %616 = vmatpush1.bf16.msra.mxu0 %v533
        %617 = vmatprep.subr.bf16.mxu0 %v532
        %618 = vmatpush1.bf16.msra.mxu0 %v531
        %619 = vmatprep.subr.bf16.mxu0 0
        %620 = vmatpush2.bf16.msra.mxu0 0
        %621 = vmatprep.subr.bf16.mxu0 0
        %622 = vmatpush2.bf16.msra.mxu0 0
        %623 = vmatprep.subr.bf16.mxu0 0
        %624 = vmatpush2.bf16.msra.mxu0 0
        %625 = vmatprep.subr.bf16.mxu0 0
        %626 = vmatpush2.bf16.msra.mxu0 0
        %627 = vmatprep.subr.bf16.mxu0 0
        %628 = vmatpush2.bf16.msra.mxu0 0
        %629 = vmatprep.subr.bf16.mxu0 0
        %630 = vmatpush2.bf16.msra.mxu0 0
        %631 = vmatprep.subr.bf16.mxu0 0
        %632 = vmatpush2.bf16.msra.mxu0 0
        %633 = vmatprep.subr.bf16.mxu0 0
        %634 = vmatpush2.bf16.msra.mxu0 0
        %635 = vmatprep.mubr.bf16.mxu0 0
        %636 = vmatmul.mubr.bf16.gmra.mxu0 %v592
        %v637 = vpop.f32.mrf.mxu0
        %v638 = vadd.f32 %v537, %v637
        %v639 = vpop.f32.mrf.mxu0
        %v640 = vadd.f32 %v537, %v639
        %v641 = vpop.f32.mrf.mxu0
        %v642 = vadd.f32 %v541, %v641
        %v643 = vpop.f32.mrf.mxu0
        %v644 = vadd.f32 %v541, %v643
        %645 = vmatprep.mubr.bf16.mxu0 0
        %646 = vmatmul.mubr.bf16.gmra.mxu0 %v595
        %v647 = vpop.f32.mrf.mxu0
        %v648 = vadd.f32 %v545, %v647
        %v649 = vpop.f32.mrf.mxu0
        %v650 = vadd.f32 %v545, %v649
        %v651 = vpop.f32.mrf.mxu0
        %v652 = vadd.f32 %v549, %v651
        %v653 = vpop.f32.mrf.mxu0
        %v654 = vadd.f32 %v549, %v653
        %655 = vmatprep.mubr.bf16.mxu0 0
        %656 = vmatmul.mubr.bf16.gmra.mxu0 %v598
        %v657 = vpop.f32.mrf.mxu0
        %v658 = vadd.f32 %v554, %v657
        %v659 = vpop.f32.mrf.mxu0
        %v660 = vadd.f32 %v554, %v659
        %v661 = vpop.f32.mrf.mxu0
        %v662 = vadd.f32 %v559, %v661
        %v663 = vpop.f32.mrf.mxu0
        %v664 = vadd.f32 %v559, %v663
        %665 = vmatprep.mubr.bf16.mxu0 0
        %666 = vmatmul.mubr.bf16.gmra.mxu0 %v601
        %v667 = vpop.f32.mrf.mxu0
        %v668 = vadd.f32 %v564, %v667
        %v669 = vpop.f32.mrf.mxu0
        %v670 = vadd.f32 %v564, %v669
        %v671 = vpop.f32.mrf.mxu0
        %v672 = vadd.f32 %v569, %v671
        %v673 = vpop.f32.mrf.mxu0
        %v674 = vadd.f32 %v569, %v673
        %675 = vdwg.mxu0
        %v676 = vmul.f32 %v638, %v638
        %v677 = vmul.f32 %v640, %v640
        %v678 = vmul.f32 %v642, %v642
        %v679 = vmul.f32 %v644, %v644
        %v680 = vmul.f32 %v648, %v648
        %v681 = vmul.f32 %v650, %v650
        %v682 = vmul.f32 %v652, %v652
        %v683 = vmul.f32 %v654, %v654
        %v684 = vmul.f32 %v658, %v658
        %v685 = vmul.f32 %v660, %v660
        %v686 = vmul.f32 %v662, %v662
        %v687 = vmul.f32 %v664, %v664
        %v688 = vmul.f32 %v668, %v668
        %v689 = vmul.f32 %v670, %v670
        %v690 = vmul.f32 %v672, %v672
        %v691 = vmul.f32 %v674, %v674
        %v692 = vmul.f32 %v638, %v676
        %v693 = vmul.f32 %v640, %v677
        %v694 = vmul.f32 %v642, %v678
        %v695 = vmul.f32 %v644, %v679
        %v696 = vmul.f32 %v648, %v680
        %v697 = vmul.f32 %v650, %v681
        %v698 = vmul.f32 %v652, %v682
        %v699 = vmul.f32 %v654, %v683
        %v700 = vmul.f32 %v658, %v684
        %v701 = vmul.f32 %v660, %v685
        %v702 = vmul.f32 %v662, %v686
        %v703 = vmul.f32 %v664, %v687
        %v704 = vmul.f32 %v668, %v688
        %v705 = vmul.f32 %v670, %v689
        %v706 = vmul.f32 %v672, %v690
        %v707 = vmul.f32 %v674, %v691
        %v708 = vmul.f32 %v692, 0.044715
        %v709 = vmul.f32 %v693, 0.044715
        %v710 = vmul.f32 %v694, 0.044715
        %v711 = vmul.f32 %v695, 0.044715
        %v712 = vmul.f32 %v696, 0.044715
        %v713 = vmul.f32 %v697, 0.044715
        %v714 = vmul.f32 %v698, 0.044715
        %v715 = vmul.f32 %v699, 0.044715
        %v716 = vmul.f32 %v700, 0.044715
        %v717 = vmul.f32 %v701, 0.044715
        %v718 = vmul.f32 %v702, 0.044715
        %v719 = vmul.f32 %v703, 0.044715
        %v720 = vmul.f32 %v704, 0.044715
        %v721 = vmul.f32 %v705, 0.044715
        %v722 = vmul.f32 %v706, 0.044715
        %v723 = vmul.f32 %v707, 0.044715
        %v724 = vadd.f32 %v638, %v708
        %v725 = vadd.f32 %v640, %v709
        %v726 = vadd.f32 %v642, %v710
        %v727 = vadd.f32 %v644, %v711
        %v728 = vadd.f32 %v648, %v712
        %v729 = vadd.f32 %v650, %v713
        %v730 = vadd.f32 %v652, %v714
        %v731 = vadd.f32 %v654, %v715
        %v732 = vadd.f32 %v658, %v716
        %v733 = vadd.f32 %v660, %v717
        %v734 = vadd.f32 %v662, %v718
        %v735 = vadd.f32 %v664, %v719
        %v736 = vadd.f32 %v668, %v720
        %v737 = vadd.f32 %v670, %v721
        %v738 = vadd.f32 %v672, %v722
        %v739 = vadd.f32 %v674, %v723
        %v740 = vmul.f32 %v724, 0.7978846
        %v741 = vmul.f32 %v725, 0.7978846
        %v742 = vmul.f32 %v726, 0.7978846
        %v743 = vmul.f32 %v727, 0.7978846
        %v744 = vmul.f32 %v728, 0.7978846
        %v745 = vmul.f32 %v729, 0.7978846
        %v746 = vmul.f32 %v730, 0.7978846
        %v747 = vmul.f32 %v731, 0.7978846
        %v748 = vmul.f32 %v732, 0.7978846
        %v749 = vmul.f32 %v733, 0.7978846
        %v750 = vmul.f32 %v734, 0.7978846
        %v751 = vmul.f32 %v735, 0.7978846
        %v752 = vmul.f32 %v736, 0.7978846
        %v753 = vmul.f32 %v737, 0.7978846
        %v754 = vmul.f32 %v738, 0.7978846
        %v755 = vmul.f32 %v739, 0.7978846
        %v756 = vtanh.pop %v740
        %v757 = vtanh.pop %v741
        %v758 = vtanh.pop %v742
        %v759 = vtanh.pop %v743
        %v760 = vtanh.pop %v744
        %v761 = vtanh.pop %v745
        %v762 = vtanh.pop %v746
        %v763 = vtanh.pop %v747
        %v764 = vtanh.pop %v748
        %v765 = vtanh.pop %v749
        %v766 = vtanh.pop %v750
        %v767 = vtanh.pop %v751
        %v768 = vtanh.pop %v752
        %v769 = vtanh.pop %v753
        %v770 = vtanh.pop %v754
        %v771 = vtanh.pop %v755
        %v772 = vadd.f32 %v756, 1.0
        %v773 = vadd.f32 %v757, 1.0
        %v774 = vadd.f32 %v758, 1.0
        %v775 = vadd.f32 %v759, 1.0
        %v776 = vadd.f32 %v760, 1.0
        %v777 = vadd.f32 %v761, 1.0
        %v778 = vadd.f32 %v762, 1.0
        %v779 = vadd.f32 %v763, 1.0
        %v780 = vadd.f32 %v764, 1.0
        %v781 = vadd.f32 %v765, 1.0
        %v782 = vadd.f32 %v766, 1.0
        %v783 = vadd.f32 %v767, 1.0
        %v784 = vadd.f32 %v768, 1.0
        %v785 = vadd.f32 %v769, 1.0
        %v786 = vadd.f32 %v770, 1.0
        %v787 = vadd.f32 %v771, 1.0
        %v788 = vmul.f32 %v772, 0.5
        %v789 = vmul.f32 %v773, 0.5
        %v790 = vmul.f32 %v774, 0.5
        %v791 = vmul.f32 %v775, 0.5
        %v792 = vmul.f32 %v776, 0.5
        %v793 = vmul.f32 %v777, 0.5
        %v794 = vmul.f32 %v778, 0.5
        %v795 = vmul.f32 %v779, 0.5
        %v796 = vmul.f32 %v780, 0.5
        %v797 = vmul.f32 %v781, 0.5
        %v798 = vmul.f32 %v782, 0.5
        %v799 = vmul.f32 %v783, 0.5
        %v800 = vmul.f32 %v784, 0.5
        %v801 = vmul.f32 %v785, 0.5
        %v802 = vmul.f32 %v786, 0.5
        %v803 = vmul.f32 %v787, 0.5
        %v804 = vmul.f32 %v638, %v788
        %v805 = vmul.f32 %v640, %v789
        %v806 = vmul.f32 %v642, %v790
        %v807 = vmul.f32 %v644, %v791
        %v808 = vmul.f32 %v648, %v792
        %v809 = vmul.f32 %v650, %v793
        %v810 = vmul.f32 %v652, %v794
        %v811 = vmul.f32 %v654, %v795
        %v812 = vmul.f32 %v658, %v796
        %v813 = vmul.f32 %v660, %v797
        %v814 = vmul.f32 %v662, %v798
        %v815 = vmul.f32 %v664, %v799
        %v816 = vmul.f32 %v668, %v800
        %v817 = vmul.f32 %v670, %v801
        %v818 = vmul.f32 %v672, %v802
        %v819 = vmul.f32 %v674, %v803
        %v820 = vadd.f32 %v804, %v806
        %v821 = vadd.f32 %v820, %v808
        %v822 = vadd.f32 %v821, %v810
        %v823 = vrot.slane %v822, 4
        %v824 = vadd.f32 %v822, %v823
        %v825 = vrot.slane %v824, 2
        %v826 = vadd.f32 %v824, %v825
        %v827 = vrot.slane %v826, 1
        %v828 = vadd.f32 %v826, %v827
        %v829 = vadd.f32 %v805, %v807
        %v830 = vadd.f32 %v829, %v809
        %v831 = vadd.f32 %v830, %v811
        %v832 = vrot.slane %v831, 4
        %v833 = vadd.f32 %v831, %v832
        %v834 = vrot.slane %v833, 2
        %v835 = vadd.f32 %v833, %v834
        %v836 = vrot.slane %v835, 1
        %v837 = vadd.f32 %v835, %v836
        %v838 = vmul.f32 %v828, %v480
        %v839 = vmul.f32 %v837, %v480
        %v840 = vsub.f32 %v804, %v838
        %v841 = vsub.f32 %v805, %v839
        %v842 = vsub.f32 %v806, %v838
        %v843 = vsub.f32 %v807, %v839
        %v844 = vsub.f32 %v808, %v838
        %v845 = vsub.f32 %v809, %v839
        %v846 = vsub.f32 %v810, %v838
        %v847 = vsub.f32 %v811, %v839
        %v848 = vmul.f32 %v840, %v840
        %v849 = vmul.f32 %v841, %v841
        %v850 = vmul.f32 %v842, %v842
        %v851 = vmul.f32 %v843, %v843
        %v852 = vmul.f32 %v844, %v844
        %v853 = vmul.f32 %v845, %v845
        %v854 = vmul.f32 %v846, %v846
        %v855 = vmul.f32 %v847, %v847
        %v856 = vadd.f32 %v848, %v850
        %v857 = vadd.f32 %v856, %v852
        %v858 = vadd.f32 %v857, %v854
        %v859 = vrot.slane %v858, 4
        %v860 = vadd.f32 %v858, %v859
        %v861 = vrot.slane %v860, 2
        %v862 = vadd.f32 %v860, %v861
        %v863 = vrot.slane %v862, 1
        %v864 = vadd.f32 %v862, %v863
        %v865 = vadd.f32 %v849, %v851
        %v866 = vadd.f32 %v865, %v853
        %v867 = vadd.f32 %v866, %v855
        %v868 = vrot.slane %v867, 4
        %v869 = vadd.f32 %v867, %v868
        %v870 = vrot.slane %v869, 2
        %v871 = vadd.f32 %v869, %v870
        %v872 = vrot.slane %v871, 1
        %v873 = vadd.f32 %v871, %v872
        %v874 = vmul.f32 %v864, %v480
        %v875 = vmul.f32 %v873, %v480
        %v876 = vadd.f32 %v874, 1e-06
        %v877 = vadd.f32 %v875, 1e-06
        %v878 = vrsqrt.pop %v876
        %v879 = vrsqrt.pop %v877
        %v880 = vmul.f32 %v840, %v878
        %v881 = vmul.f32 %v841, %v879
        %v882 = vmul.f32 %v842, %v878
        %v883 = vmul.f32 %v843, %v879
        %v884 = vmul.f32 %v844, %v878
        %v885 = vmul.f32 %v845, %v879
        %v886 = vmul.f32 %v846, %v878
        %v887 = vmul.f32 %v847, %v879
        %s888 = scalar_lea.vmem %s4, 32
        %v889 = vld [vmem:[%s888] sm:$0xf]
        %v890 = vld [vmem:[%s888 + $0x4] sm:$0xf]
        %v891 = vld [vmem:[%s888 + $0x8] sm:$0xf]
        %v892 = vld [vmem:[%s888 + $0xc] sm:$0xf]
        %v893 = vld [vmem:[%s888 + $0x10] sm:$0xf]
        %v894 = vld [vmem:[%s888 + $0x14] sm:$0xf]
        %v895 = vld [vmem:[%s888 + $0x18] sm:$0xf]
        %v896 = vld [vmem:[%s888 + $0x1c] sm:$0xf]
        %v897 = vpack.c.bf16 %v882, %v880
        %v898 = vpack.c.bf16 %v883, %v881
        %v899 = vpack.c.bf16 %v886, %v884
        %v900 = vpack.c.bf16 %v887, %v885
        %901 = vset.pattern.permute.xlu0 2
        %902 = vperm.xlu0 %901, %v348
        %v903 = vpop.permute.xlu0 %902
        %905 = vset.pattern.permute.xlu0 2
        %906 = vperm.xlu0 %905, %v349
        %v907 = vpop.permute.xlu0 %906
        %909 = vset.pattern.permute.xlu0 2
        %910 = vperm.xlu0 %909, %v350
        %v911 = vpop.permute.xlu0 %910
        %913 = vset.pattern.permute.xlu0 2
        %914 = vperm.xlu0 %913, %v351
        %v915 = vpop.permute.xlu0 %914
        %917 = vset.pattern.permute.xlu0 2
        %918 = vperm.xlu0 %917, %v352
        %v919 = vpop.permute.xlu0 %918
        %921 = vset.pattern.permute.xlu0 2
        %922 = vperm.xlu0 %921, %v353
        %v923 = vpop.permute.xlu0 %922
        %925 = vset.pattern.permute.xlu0 2
        %926 = vperm.xlu0 %925, %v354
        %v927 = vpop.permute.xlu0 %926
        %929 = vset.pattern.permute.xlu0 2
        %930 = vperm.xlu0 %929, %v355
        %v931 = vpop.permute.xlu0 %930
        %v941 = vunpack.c.l.b16 %v889
        %v942 = vunpack.c.l.b16 %v890
        %v943 = vunpack.c.l.b16 %v891
        %v944 = vunpack.c.l.b16 %v892
        %v945 = vunpack.c.l.b16 %v893
        %v946 = vunpack.c.l.b16 %v894
        %v947 = vunpack.c.l.b16 %v895
        %v948 = vunpack.c.l.b16 %v896
        %v949 = vpack.c.b16 %v942, %v941
        %v950 = vpack.c.b16 %v944, %v943
        %v951 = vpack.c.b16 %v946, %v945
        %v952 = vpack.c.b16 %v948, %v947
        %v954 = vsel %vm394, %v949, 0
        %v957 = vsel %vm394, %v950, 0
        %v960 = vsel %vm394, %v951, 0
        %v963 = vsel %vm394, %v952, 0
        %965 = vmatprep.subr.bf16.mxu0 0
        %966 = vmatpush1.bf16.msra.mxu0 0
        %967 = vmatprep.subr.bf16.mxu0 0
        %968 = vmatpush1.bf16.msra.mxu0 0
        %969 = vmatprep.subr.bf16.mxu0 0
        %970 = vmatpush1.bf16.msra.mxu0 0
        %971 = vmatprep.subr.bf16.mxu0 0
        %972 = vmatpush1.bf16.msra.mxu0 0
        %973 = vmatprep.subr.bf16.mxu0 0
        %974 = vmatpush1.bf16.msra.mxu0 0
        %975 = vmatprep.subr.bf16.mxu0 0
        %976 = vmatpush1.bf16.msra.mxu0 0
        %977 = vmatprep.subr.bf16.mxu0 %v900
        %978 = vmatpush1.bf16.msra.mxu0 %v899
        %979 = vmatprep.subr.bf16.mxu0 %v898
        %980 = vmatpush1.bf16.msra.mxu0 %v897
        %981 = vmatprep.subr.bf16.mxu0 0
        %982 = vmatpush2.bf16.msra.mxu0 0
        %983 = vmatprep.subr.bf16.mxu0 0
        %984 = vmatpush2.bf16.msra.mxu0 0
        %985 = vmatprep.subr.bf16.mxu0 0
        %986 = vmatpush2.bf16.msra.mxu0 0
        %987 = vmatprep.subr.bf16.mxu0 0
        %988 = vmatpush2.bf16.msra.mxu0 0
        %989 = vmatprep.subr.bf16.mxu0 0
        %990 = vmatpush2.bf16.msra.mxu0 0
        %991 = vmatprep.subr.bf16.mxu0 0
        %992 = vmatpush2.bf16.msra.mxu0 0
        %993 = vmatprep.subr.bf16.mxu0 0
        %994 = vmatpush2.bf16.msra.mxu0 0
        %995 = vmatprep.subr.bf16.mxu0 0
        %996 = vmatpush2.bf16.msra.mxu0 0
        %997 = vmatprep.mubr.bf16.mxu0 0
        %998 = vmatmul.mubr.bf16.gmra.mxu0 %v954
        %v999 = vpop.f32.mrf.mxu0
        %v1000 = vadd.f32 %v903, %v999
        %v1001 = vpop.f32.mrf.mxu0
        %v1002 = vadd.f32 %v903, %v1001
        %v1003 = vpop.f32.mrf.mxu0
        %v1004 = vadd.f32 %v907, %v1003
        %v1005 = vpop.f32.mrf.mxu0
        %v1006 = vadd.f32 %v907, %v1005
        %1007 = vmatprep.mubr.bf16.mxu0 0
        %1008 = vmatmul.mubr.bf16.gmra.mxu0 %v957
        %v1009 = vpop.f32.mrf.mxu0
        %v1010 = vadd.f32 %v911, %v1009
        %v1011 = vpop.f32.mrf.mxu0
        %v1012 = vadd.f32 %v911, %v1011
        %v1013 = vpop.f32.mrf.mxu0
        %v1014 = vadd.f32 %v915, %v1013
        %v1015 = vpop.f32.mrf.mxu0
        %v1016 = vadd.f32 %v915, %v1015
        %1017 = vmatprep.mubr.bf16.mxu0 0
        %1018 = vmatmul.mubr.bf16.gmra.mxu0 %v960
        %v1019 = vpop.f32.mrf.mxu0
        %v1020 = vadd.f32 %v919, %v1019
        %v1021 = vpop.f32.mrf.mxu0
        %v1022 = vadd.f32 %v919, %v1021
        %v1023 = vpop.f32.mrf.mxu0
        %v1024 = vadd.f32 %v923, %v1023
        %v1025 = vpop.f32.mrf.mxu0
        %v1026 = vadd.f32 %v923, %v1025
        %1027 = vmatprep.mubr.bf16.mxu0 0
        %1028 = vmatmul.mubr.bf16.gmra.mxu0 %v963
        %v1029 = vpop.f32.mrf.mxu0
        %v1030 = vadd.f32 %v927, %v1029
        %v1031 = vpop.f32.mrf.mxu0
        %v1032 = vadd.f32 %v927, %v1031
        %v1033 = vpop.f32.mrf.mxu0
        %v1034 = vadd.f32 %v931, %v1033
        %v1035 = vpop.f32.mrf.mxu0
        %v1036 = vadd.f32 %v931, %v1035
        %1037 = vdwg.mxu0
        %v1038 = vmul.f32 %v1000, %v1000
        %v1039 = vmul.f32 %v1002, %v1002
        %v1040 = vmul.f32 %v1004, %v1004
        %v1041 = vmul.f32 %v1006, %v1006
        %v1042 = vmul.f32 %v1010, %v1010
        %v1043 = vmul.f32 %v1012, %v1012
        %v1044 = vmul.f32 %v1014, %v1014
        %v1045 = vmul.f32 %v1016, %v1016
        %v1046 = vmul.f32 %v1020, %v1020
        %v1047 = vmul.f32 %v1022, %v1022
        %v1048 = vmul.f32 %v1024, %v1024
        %v1049 = vmul.f32 %v1026, %v1026
        %v1050 = vmul.f32 %v1030, %v1030
        %v1051 = vmul.f32 %v1032, %v1032
        %v1052 = vmul.f32 %v1034, %v1034
        %v1053 = vmul.f32 %v1036, %v1036
        %v1054 = vmul.f32 %v1000, %v1038
        %v1055 = vmul.f32 %v1002, %v1039
        %v1056 = vmul.f32 %v1004, %v1040
        %v1057 = vmul.f32 %v1006, %v1041
        %v1058 = vmul.f32 %v1010, %v1042
        %v1059 = vmul.f32 %v1012, %v1043
        %v1060 = vmul.f32 %v1014, %v1044
        %v1061 = vmul.f32 %v1016, %v1045
        %v1062 = vmul.f32 %v1020, %v1046
        %v1063 = vmul.f32 %v1022, %v1047
        %v1064 = vmul.f32 %v1024, %v1048
        %v1065 = vmul.f32 %v1026, %v1049
        %v1066 = vmul.f32 %v1030, %v1050
        %v1067 = vmul.f32 %v1032, %v1051
        %v1068 = vmul.f32 %v1034, %v1052
        %v1069 = vmul.f32 %v1036, %v1053
        %v1070 = vmul.f32 %v1054, 0.044715
        %v1071 = vmul.f32 %v1055, 0.044715
        %v1072 = vmul.f32 %v1056, 0.044715
        %v1073 = vmul.f32 %v1057, 0.044715
        %v1074 = vmul.f32 %v1058, 0.044715
        %v1075 = vmul.f32 %v1059, 0.044715
        %v1076 = vmul.f32 %v1060, 0.044715
        %v1077 = vmul.f32 %v1061, 0.044715
        %v1078 = vmul.f32 %v1062, 0.044715
        %v1079 = vmul.f32 %v1063, 0.044715
        %v1080 = vmul.f32 %v1064, 0.044715
        %v1081 = vmul.f32 %v1065, 0.044715
        %v1082 = vmul.f32 %v1066, 0.044715
        %v1083 = vmul.f32 %v1067, 0.044715
        %v1084 = vmul.f32 %v1068, 0.044715
        %v1085 = vmul.f32 %v1069, 0.044715
        %v1086 = vadd.f32 %v1000, %v1070
        %v1087 = vadd.f32 %v1002, %v1071
        %v1088 = vadd.f32 %v1004, %v1072
        %v1089 = vadd.f32 %v1006, %v1073
        %v1090 = vadd.f32 %v1010, %v1074
        %v1091 = vadd.f32 %v1012, %v1075
        %v1092 = vadd.f32 %v1014, %v1076
        %v1093 = vadd.f32 %v1016, %v1077
        %v1094 = vadd.f32 %v1020, %v1078
        %v1095 = vadd.f32 %v1022, %v1079
        %v1096 = vadd.f32 %v1024, %v1080
        %v1097 = vadd.f32 %v1026, %v1081
        %v1098 = vadd.f32 %v1030, %v1082
        %v1099 = vadd.f32 %v1032, %v1083
        %v1100 = vadd.f32 %v1034, %v1084
        %v1101 = vadd.f32 %v1036, %v1085
        %v1102 = vmul.f32 %v1086, 0.7978846
        %v1103 = vmul.f32 %v1087, 0.7978846
        %v1104 = vmul.f32 %v1088, 0.7978846
        %v1105 = vmul.f32 %v1089, 0.7978846
        %v1106 = vmul.f32 %v1090, 0.7978846
        %v1107 = vmul.f32 %v1091, 0.7978846
        %v1108 = vmul.f32 %v1092, 0.7978846
        %v1109 = vmul.f32 %v1093, 0.7978846
        %v1110 = vmul.f32 %v1094, 0.7978846
        %v1111 = vmul.f32 %v1095, 0.7978846
        %v1112 = vmul.f32 %v1096, 0.7978846
        %v1113 = vmul.f32 %v1097, 0.7978846
        %v1114 = vmul.f32 %v1098, 0.7978846
        %v1115 = vmul.f32 %v1099, 0.7978846
        %v1116 = vmul.f32 %v1100, 0.7978846
        %v1117 = vmul.f32 %v1101, 0.7978846
        %v1118 = vtanh.pop %v1102
        %v1119 = vtanh.pop %v1103
        %v1120 = vtanh.pop %v1104
        %v1121 = vtanh.pop %v1105
        %v1122 = vtanh.pop %v1106
        %v1123 = vtanh.pop %v1107
        %v1124 = vtanh.pop %v1108
        %v1125 = vtanh.pop %v1109
        %v1126 = vtanh.pop %v1110
        %v1127 = vtanh.pop %v1111
        %v1128 = vtanh.pop %v1112
        %v1129 = vtanh.pop %v1113
        %v1130 = vtanh.pop %v1114
        %v1131 = vtanh.pop %v1115
        %v1132 = vtanh.pop %v1116
        %v1133 = vtanh.pop %v1117
        %v1134 = vadd.f32 %v1118, 1.0
        %v1135 = vadd.f32 %v1119, 1.0
        %v1136 = vadd.f32 %v1120, 1.0
        %v1137 = vadd.f32 %v1121, 1.0
        %v1138 = vadd.f32 %v1122, 1.0
        %v1139 = vadd.f32 %v1123, 1.0
        %v1140 = vadd.f32 %v1124, 1.0
        %v1141 = vadd.f32 %v1125, 1.0
        %v1142 = vadd.f32 %v1126, 1.0
        %v1143 = vadd.f32 %v1127, 1.0
        %v1144 = vadd.f32 %v1128, 1.0
        %v1145 = vadd.f32 %v1129, 1.0
        %v1146 = vadd.f32 %v1130, 1.0
        %v1147 = vadd.f32 %v1131, 1.0
        %v1148 = vadd.f32 %v1132, 1.0
        %v1149 = vadd.f32 %v1133, 1.0
        %v1150 = vmul.f32 %v1134, 0.5
        %v1151 = vmul.f32 %v1135, 0.5
        %v1152 = vmul.f32 %v1136, 0.5
        %v1153 = vmul.f32 %v1137, 0.5
        %v1154 = vmul.f32 %v1138, 0.5
        %v1155 = vmul.f32 %v1139, 0.5
        %v1156 = vmul.f32 %v1140, 0.5
        %v1157 = vmul.f32 %v1141, 0.5
        %v1158 = vmul.f32 %v1142, 0.5
        %v1159 = vmul.f32 %v1143, 0.5
        %v1160 = vmul.f32 %v1144, 0.5
        %v1161 = vmul.f32 %v1145, 0.5
        %v1162 = vmul.f32 %v1146, 0.5
        %v1163 = vmul.f32 %v1147, 0.5
        %v1164 = vmul.f32 %v1148, 0.5
        %v1165 = vmul.f32 %v1149, 0.5
        %v1166 = vmul.f32 %v1000, %v1150
        %v1167 = vmul.f32 %v1002, %v1151
        %v1168 = vmul.f32 %v1004, %v1152
        %v1169 = vmul.f32 %v1006, %v1153
        %v1170 = vmul.f32 %v1010, %v1154
        %v1171 = vmul.f32 %v1012, %v1155
        %v1172 = vmul.f32 %v1014, %v1156
        %v1173 = vmul.f32 %v1016, %v1157
        %v1174 = vmul.f32 %v1020, %v1158
        %v1175 = vmul.f32 %v1022, %v1159
        %v1176 = vmul.f32 %v1024, %v1160
        %v1177 = vmul.f32 %v1026, %v1161
        %v1178 = vmul.f32 %v1030, %v1162
        %v1179 = vmul.f32 %v1032, %v1163
        %v1180 = vmul.f32 %v1034, %v1164
        %v1181 = vmul.f32 %v1036, %v1165
        %v1182 = vadd.f32 %v1174, %v1176
        %v1183 = vadd.f32 %v1182, %v1178
        %v1184 = vadd.f32 %v1183, %v1180
        %v1185 = vrot.slane %v1184, 4
        %v1186 = vadd.f32 %v1184, %v1185
        %v1187 = vrot.slane %v1186, 2
        %v1188 = vadd.f32 %v1186, %v1187
        %v1189 = vrot.slane %v1188, 1
        %v1190 = vadd.f32 %v1188, %v1189
        %v1191 = vadd.f32 %v1175, %v1177
        %v1192 = vadd.f32 %v1191, %v1179
        %v1193 = vadd.f32 %v1192, %v1181
        %v1194 = vrot.slane %v1193, 4
        %v1195 = vadd.f32 %v1193, %v1194
        %v1196 = vrot.slane %v1195, 2
        %v1197 = vadd.f32 %v1195, %v1196
        %v1198 = vrot.slane %v1197, 1
        %v1199 = vadd.f32 %v1197, %v1198
        %v1200 = vmul.f32 %v1190, %v480
        %v1201 = vmul.f32 %v1199, %v480
        %v1202 = vsub.f32 %v1174, %v1200
        %v1203 = vsub.f32 %v1175, %v1201
        %v1204 = vsub.f32 %v1176, %v1200
        %v1205 = vsub.f32 %v1177, %v1201
        %v1206 = vsub.f32 %v1178, %v1200
        %v1207 = vsub.f32 %v1179, %v1201
        %v1208 = vsub.f32 %v1180, %v1200
        %v1209 = vsub.f32 %v1181, %v1201
        %v1210 = vmul.f32 %v1202, %v1202
        %v1211 = vmul.f32 %v1203, %v1203
        %v1212 = vmul.f32 %v1204, %v1204
        %v1213 = vmul.f32 %v1205, %v1205
        %v1214 = vmul.f32 %v1206, %v1206
        %v1215 = vmul.f32 %v1207, %v1207
        %v1216 = vmul.f32 %v1208, %v1208
        %v1217 = vmul.f32 %v1209, %v1209
        %v1218 = vadd.f32 %v1210, %v1212
        %v1219 = vadd.f32 %v1218, %v1214
        %v1220 = vadd.f32 %v1219, %v1216
        %v1221 = vrot.slane %v1220, 4
        %v1222 = vadd.f32 %v1220, %v1221
        %v1223 = vrot.slane %v1222, 2
        %v1224 = vadd.f32 %v1222, %v1223
        %v1225 = vrot.slane %v1224, 1
        %v1226 = vadd.f32 %v1224, %v1225
        %v1227 = vadd.f32 %v1211, %v1213
        %v1228 = vadd.f32 %v1227, %v1215
        %v1229 = vadd.f32 %v1228, %v1217
        %v1230 = vrot.slane %v1229, 4
        %v1231 = vadd.f32 %v1229, %v1230
        %v1232 = vrot.slane %v1231, 2
        %v1233 = vadd.f32 %v1231, %v1232
        %v1234 = vrot.slane %v1233, 1
        %v1235 = vadd.f32 %v1233, %v1234
        %v1236 = vmul.f32 %v1226, %v480
        %v1237 = vmul.f32 %v1235, %v480
        %v1238 = vadd.f32 %v1236, 1e-06
        %v1239 = vadd.f32 %v1237, 1e-06
        %v1240 = vrsqrt.pop %v1238
        %v1241 = vrsqrt.pop %v1239
        %v1242 = vmul.f32 %v1202, %v1240
        %v1243 = vmul.f32 %v1203, %v1241
        %v1244 = vmul.f32 %v1204, %v1240
        %v1245 = vmul.f32 %v1205, %v1241
        %v1246 = vmul.f32 %v1206, %v1240
        %v1247 = vmul.f32 %v1207, %v1241
        %v1248 = vmul.f32 %v1208, %v1240
        %v1249 = vmul.f32 %v1209, %v1241
        %1250 = vset.pattern.permute.xlu0 3
        %1251 = vperm.xlu0 %1250, %v348
        %v1252 = vpop.permute.xlu0 %1251
        %1254 = vset.pattern.permute.xlu0 3
        %1255 = vperm.xlu0 %1254, %v349
        %v1256 = vpop.permute.xlu0 %1255
        %1258 = vset.pattern.permute.xlu0 3
        %1259 = vperm.xlu0 %1258, %v350
        %v1260 = vpop.permute.xlu0 %1259
        %1262 = vset.pattern.permute.xlu0 3
        %1263 = vperm.xlu0 %1262, %v351
        %v1264 = vpop.permute.xlu0 %1263
        %v1266 = vmul.f32 %v1242, %v1252
        %v1267 = vmul.f32 %v1243, %v1252
        %v1268 = vmul.f32 %v1244, %v1256
        %v1269 = vmul.f32 %v1245, %v1256
        %v1270 = vmul.f32 %v1246, %v1260
        %v1271 = vmul.f32 %v1247, %v1260
        %v1272 = vmul.f32 %v1248, %v1264
        %v1273 = vmul.f32 %v1249, %v1264
        %v1274 = vld [vmem:[#allocation5] sm:$0xff]
        %v1275 = vld [vmem:[#allocation5 + $0x8] sm:$0xff]
        %v1276 = vld [vmem:[#allocation5 + $0x10] sm:$0xff]
        %v1277 = vld [vmem:[#allocation5 + $0x18] sm:$0xff]
        %v1278 = vld [vmem:[#allocation5 + $0x20] sm:$0xff]
        %v1279 = vld [vmem:[#allocation5 + $0x28] sm:$0xff]
        %v1280 = vld [vmem:[#allocation5 + $0x30] sm:$0xff]
        %v1281 = vld [vmem:[#allocation5 + $0x38] sm:$0xff]
        %v1282 = vld [vmem:[#allocation5 + $0x40] sm:$0xff]
        %v1283 = vld [vmem:[#allocation5 + $0x48] sm:$0xff]
        %v1284 = vld [vmem:[#allocation5 + $0x50] sm:$0xff]
        %v1285 = vld [vmem:[#allocation5 + $0x58] sm:$0xff]
        %v1286 = vld [vmem:[#allocation5 + $0x60] sm:$0xff]
        %v1287 = vld [vmem:[#allocation5 + $0x68] sm:$0xff]
        %v1288 = vld [vmem:[#allocation5 + $0x70] sm:$0xff]
        %v1289 = vld [vmem:[#allocation5 + $0x78] sm:$0xff]
        %v1290 = vld [vmem:[#allocation5 + $0x80] sm:$0xff]
        %v1291 = vld [vmem:[#allocation5 + $0x88] sm:$0xff]
        %v1292 = vld [vmem:[#allocation5 + $0x90] sm:$0xff]
        %v1293 = vld [vmem:[#allocation5 + $0x98] sm:$0xff]
        %v1294 = vld [vmem:[#allocation5 + $0xa0] sm:$0xff]
        %v1295 = vld [vmem:[#allocation5 + $0xa8] sm:$0xff]
        %v1296 = vld [vmem:[#allocation5 + $0xb0] sm:$0xff]
        %v1297 = vld [vmem:[#allocation5 + $0xb8] sm:$0xff]
        %v1298 = vld [vmem:[#allocation5 + $0xc0] sm:$0xff]
        %v1299 = vld [vmem:[#allocation5 + $0xc8] sm:$0xff]
        %v1300 = vld [vmem:[#allocation5 + $0xd0] sm:$0xff]
        %v1301 = vld [vmem:[#allocation5 + $0xd8] sm:$0xff]
        %v1302 = vld [vmem:[#allocation5 + $0xe0] sm:$0xff]
        %v1303 = vld [vmem:[#allocation5 + $0xe8] sm:$0xff]
        %v1304 = vld [vmem:[#allocation5 + $0xf0] sm:$0xff]
        %v1305 = vld [vmem:[#allocation5 + $0xf8] sm:$0xff]
        %v1306 = vld [vmem:[%s2] sm:$0xff]
        %v1307 = vld [vmem:[%s2 + $0x8] sm:$0xff]
        %v1308 = vld [vmem:[%s2 + $0x10] sm:$0xff]
        %v1309 = vld [vmem:[%s2 + $0x18] sm:$0xff]
        %v1310 = vld [vmem:[%s2 + $0x20] sm:$0xff]
        %v1311 = vld [vmem:[%s2 + $0x28] sm:$0xff]
        %v1312 = vld [vmem:[%s2 + $0x30] sm:$0xff]
        %v1313 = vld [vmem:[%s2 + $0x38] sm:$0xff]
        %v1314 = vpack.c.bf16 %v1268, %v1266
        %v1315 = vpack.c.bf16 %v1269, %v1267
        %v1316 = vpack.c.bf16 %v1272, %v1270
        %v1317 = vpack.c.bf16 %v1273, %v1271
        %v1350 = vunpack.c.l.b16 %v1274
        %v1351 = vunpack.c.h.b16 %v1274
        %v1352 = vunpack.c.l.b16 %v1275
        %v1353 = vunpack.c.h.b16 %v1275
        %v1354 = vunpack.c.l.b16 %v1276
        %v1355 = vunpack.c.h.b16 %v1276
        %v1356 = vunpack.c.l.b16 %v1277
        %v1357 = vunpack.c.h.b16 %v1277
        %v1358 = vunpack.c.l.b16 %v1278
        %v1359 = vunpack.c.h.b16 %v1278
        %v1360 = vunpack.c.l.b16 %v1279
        %v1361 = vunpack.c.h.b16 %v1279
        %v1362 = vunpack.c.l.b16 %v1280
        %v1363 = vunpack.c.h.b16 %v1280
        %v1364 = vunpack.c.l.b16 %v1281
        %v1365 = vunpack.c.h.b16 %v1281
        %v1366 = vunpack.c.l.b16 %v1282
        %v1367 = vunpack.c.h.b16 %v1282
        %v1368 = vunpack.c.l.b16 %v1283
        %v1369 = vunpack.c.h.b16 %v1283
        %v1370 = vunpack.c.l.b16 %v1284
        %v1371 = vunpack.c.h.b16 %v1284
        %v1372 = vunpack.c.l.b16 %v1285
        %v1373 = vunpack.c.h.b16 %v1285
        %v1374 = vunpack.c.l.b16 %v1286
        %v1375 = vunpack.c.h.b16 %v1286
        %v1376 = vunpack.c.l.b16 %v1287
        %v1377 = vunpack.c.h.b16 %v1287
        %v1378 = vunpack.c.l.b16 %v1288
        %v1379 = vunpack.c.h.b16 %v1288
        %v1380 = vunpack.c.l.b16 %v1289
        %v1381 = vunpack.c.h.b16 %v1289
        %v1382 = vunpack.c.l.b16 %v1290
        %v1383 = vunpack.c.h.b16 %v1290
        %v1384 = vunpack.c.l.b16 %v1291
        %v1385 = vunpack.c.h.b16 %v1291
        %v1386 = vunpack.c.l.b16 %v1292
        %v1387 = vunpack.c.h.b16 %v1292
        %v1388 = vunpack.c.l.b16 %v1293
        %v1389 = vunpack.c.h.b16 %v1293
        %v1390 = vunpack.c.l.b16 %v1294
        %v1391 = vunpack.c.h.b16 %v1294
        %v1392 = vunpack.c.l.b16 %v1295
        %v1393 = vunpack.c.h.b16 %v1295
        %v1394 = vunpack.c.l.b16 %v1296
        %v1395 = vunpack.c.h.b16 %v1296
        %v1396 = vunpack.c.l.b16 %v1297
        %v1397 = vunpack.c.h.b16 %v1297
        %v1398 = vunpack.c.l.b16 %v1298
        %v1399 = vunpack.c.h.b16 %v1298
        %v1400 = vunpack.c.l.b16 %v1299
        %v1401 = vunpack.c.h.b16 %v1299
        %v1402 = vunpack.c.l.b16 %v1300
        %v1403 = vunpack.c.h.b16 %v1300
        %v1404 = vunpack.c.l.b16 %v1301
        %v1405 = vunpack.c.h.b16 %v1301
        %v1406 = vunpack.c.l.b16 %v1302
        %v1407 = vunpack.c.h.b16 %v1302
        %v1408 = vunpack.c.l.b16 %v1303
        %v1409 = vunpack.c.h.b16 %v1303
        %v1410 = vunpack.c.l.b16 %v1304
        %v1411 = vunpack.c.h.b16 %v1304
        %v1412 = vunpack.c.l.b16 %v1305
        %v1413 = vunpack.c.h.b16 %v1305
        %v1414 = vpack.c.b16 %v1352, %v1350
        %v1415 = vpack.c.b16 %v1353, %v1351
        %v1416 = vpack.c.b16 %v1356, %v1354
        %v1417 = vpack.c.b16 %v1357, %v1355
        %v1418 = vpack.c.b16 %v1360, %v1358
        %v1419 = vpack.c.b16 %v1361, %v1359
        %v1420 = vpack.c.b16 %v1364, %v1362
        %v1421 = vpack.c.b16 %v1365, %v1363
        %v1422 = vpack.c.b16 %v1368, %v1366
        %v1423 = vpack.c.b16 %v1369, %v1367
        %v1424 = vpack.c.b16 %v1372, %v1370
        %v1425 = vpack.c.b16 %v1373, %v1371
        %v1426 = vpack.c.b16 %v1376, %v1374
        %v1427 = vpack.c.b16 %v1377, %v1375
        %v1428 = vpack.c.b16 %v1380, %v1378
        %v1429 = vpack.c.b16 %v1381, %v1379
        %v1430 = vpack.c.b16 %v1384, %v1382
        %v1431 = vpack.c.b16 %v1385, %v1383
        %v1432 = vpack.c.b16 %v1388, %v1386
        %v1433 = vpack.c.b16 %v1389, %v1387
        %v1434 = vpack.c.b16 %v1392, %v1390
        %v1435 = vpack.c.b16 %v1393, %v1391
        %v1436 = vpack.c.b16 %v1396, %v1394
        %v1437 = vpack.c.b16 %v1397, %v1395
        %v1438 = vpack.c.b16 %v1400, %v1398
        %v1439 = vpack.c.b16 %v1401, %v1399
        %v1440 = vpack.c.b16 %v1404, %v1402
        %v1441 = vpack.c.b16 %v1405, %v1403
        %v1442 = vpack.c.b16 %v1408, %v1406
        %v1443 = vpack.c.b16 %v1409, %v1407
        %v1444 = vpack.c.b16 %v1412, %v1410
        %v1445 = vpack.c.b16 %v1413, %v1411
        %1478 = vmatprep.subr.bf16.mxu0 %v1429
        %1479 = vmatpush1.bf16.msra.mxu0 %v1428
        %1480 = vmatprep.subr.bf16.mxu0 %v1427
        %1481 = vmatpush1.bf16.msra.mxu0 %v1426
        %1482 = vmatprep.subr.bf16.mxu0 %v1425
        %1483 = vmatpush1.bf16.msra.mxu0 %v1424
        %1484 = vmatprep.subr.bf16.mxu0 %v1423
        %1485 = vmatpush1.bf16.msra.mxu0 %v1422
        %1486 = vmatprep.subr.bf16.mxu0 %v1421
        %1487 = vmatpush1.bf16.msra.mxu0 %v1420
        %1488 = vmatprep.subr.bf16.mxu0 %v1419
        %1489 = vmatpush1.bf16.msra.mxu0 %v1418
        %1490 = vmatprep.subr.bf16.mxu0 %v1417
        %1491 = vmatpush1.bf16.msra.mxu0 %v1416
        %1492 = vmatprep.subr.bf16.mxu0 %v1415
        %1493 = vmatpush1.bf16.msra.mxu0 %v1414
        %1494 = vmatprep.subr.bf16.mxu0 %v1445
        %1495 = vmatpush2.bf16.msra.mxu0 %v1444
        %1496 = vmatprep.subr.bf16.mxu0 %v1443
        %1497 = vmatpush2.bf16.msra.mxu0 %v1442
        %1498 = vmatprep.subr.bf16.mxu0 %v1441
        %1499 = vmatpush2.bf16.msra.mxu0 %v1440
        %1500 = vmatprep.subr.bf16.mxu0 %v1439
        %1501 = vmatpush2.bf16.msra.mxu0 %v1438
        %1502 = vmatprep.subr.bf16.mxu0 %v1437
        %1503 = vmatpush2.bf16.msra.mxu0 %v1436
        %1504 = vmatprep.subr.bf16.mxu0 %v1435
        %1505 = vmatpush2.bf16.msra.mxu0 %v1434
        %1506 = vmatprep.subr.bf16.mxu0 %v1433
        %1507 = vmatpush2.bf16.msra.mxu0 %v1432
        %1508 = vmatprep.subr.bf16.mxu0 %v1431
        %1509 = vmatpush2.bf16.msra.mxu0 %v1430
        %1510 = vmatprep.mubr.bf16.mxu0 %v1315
        %1511 = vmatmul.mubr.bf16.gmra.mxu0 %v1314
        %v1512 = vpop.f32.mrf.mxu0
        %v1513 = vadd.f32 %v1306, %v1512
        %v1514 = vpop.f32.mrf.mxu0
        %v1515 = vadd.f32 %v1307, %v1514
        %v1516 = vpop.f32.mrf.mxu0
        %v1517 = vadd.f32 %v1308, %v1516
        %v1518 = vpop.f32.mrf.mxu0
        %v1519 = vadd.f32 %v1309, %v1518
        %1520 = vmatprep.mubr.bf16.mxu0 %v1317
        %1521 = vmatmul.mubr.bf16.gmra.mxu0 %v1316
        %v1522 = vpop.f32.mrf.mxu0
        %v1523 = vadd.f32 %v1310, %v1522
        %v1524 = vpop.f32.mrf.mxu0
        %v1525 = vadd.f32 %v1311, %v1524
        %v1526 = vpop.f32.mrf.mxu0
        %v1527 = vadd.f32 %v1312, %v1526
        %v1528 = vpop.f32.mrf.mxu0
        %v1529 = vadd.f32 %v1313, %v1528
        %1530 = vdwg.mxu0
        %v1531 = vmul.f32 %v1166, %v1513
        %v1532 = vmul.f32 %v1167, %v1515
        %v1533 = vmul.f32 %v1168, %v1517
        %v1534 = vmul.f32 %v1169, %v1519
        %v1535 = vmul.f32 %v1170, %v1523
        %v1536 = vmul.f32 %v1171, %v1525
        %v1537 = vmul.f32 %v1172, %v1527
        %v1538 = vmul.f32 %v1173, %v1529
        %s1539 = scalar_lea.vmem %s3, 16
        %v1540 = vld [vmem:[%s1539] sm:$0xf]
        %v1541 = vld [vmem:[%s1539 + $0x4] sm:$0xf]
        %v1542 = vld [vmem:[%s1539 + $0x8] sm:$0xf]
        %v1543 = vld [vmem:[%s1539 + $0xc] sm:$0xf]
        %v1544 = vpack.c.bf16 %v1533, %v1531
        %v1545 = vpack.c.bf16 %v1534, %v1532
        %v1546 = vpack.c.bf16 %v1537, %v1535
        %v1547 = vpack.c.bf16 %v1538, %v1536
        %1548 = vset.pattern.permute.xlu0 4
        %1549 = vperm.xlu0 %1548, %v348
        %v1550 = vpop.permute.xlu0 %1549
        %1552 = vset.pattern.permute.xlu0 4
        %1553 = vperm.xlu0 %1552, %v349
        %v1554 = vpop.permute.xlu0 %1553
        %1556 = vset.pattern.permute.xlu0 4
        %1557 = vperm.xlu0 %1556, %v350
        %v1558 = vpop.permute.xlu0 %1557
        %1560 = vset.pattern.permute.xlu0 4
        %1561 = vperm.xlu0 %1560, %v351
        %v1562 = vpop.permute.xlu0 %1561
        %v1568 = vunpack.c.l.b16 %v1540
        %v1569 = vunpack.c.l.b16 %v1541
        %v1570 = vunpack.c.l.b16 %v1542
        %v1571 = vunpack.c.l.b16 %v1543
        %v1572 = vpack.c.b16 %v1569, %v1568
        %v1573 = vpack.c.b16 %v1571, %v1570
        %v1575 = vsel %vm394, %v1572, 0
        %v1578 = vsel %vm394, %v1573, 0
        %1580 = vmatprep.subr.bf16.mxu0 0
        %1581 = vmatpush1.bf16.msra.mxu0 0
        %1582 = vmatprep.subr.bf16.mxu0 0
        %1583 = vmatpush1.bf16.msra.mxu0 0
        %1584 = vmatprep.subr.bf16.mxu0 0
        %1585 = vmatpush1.bf16.msra.mxu0 0
        %1586 = vmatprep.subr.bf16.mxu0 0
        %1587 = vmatpush1.bf16.msra.mxu0 0
        %1588 = vmatprep.subr.bf16.mxu0 0
        %1589 = vmatpush1.bf16.msra.mxu0 0
        %1590 = vmatprep.subr.bf16.mxu0 0
        %1591 = vmatpush1.bf16.msra.mxu0 0
        %1592 = vmatprep.subr.bf16.mxu0 %v1547
        %1593 = vmatpush1.bf16.msra.mxu0 %v1546
        %1594 = vmatprep.subr.bf16.mxu0 %v1545
        %1595 = vmatpush1.bf16.msra.mxu0 %v1544
        %1596 = vmatprep.subr.bf16.mxu0 0
        %1597 = vmatpush2.bf16.msra.mxu0 0
        %1598 = vmatprep.subr.bf16.mxu0 0
        %1599 = vmatpush2.bf16.msra.mxu0 0
        %1600 = vmatprep.subr.bf16.mxu0 0
        %1601 = vmatpush2.bf16.msra.mxu0 0
        %1602 = vmatprep.subr.bf16.mxu0 0
        %1603 = vmatpush2.bf16.msra.mxu0 0
        %1604 = vmatprep.subr.bf16.mxu0 0
        %1605 = vmatpush2.bf16.msra.mxu0 0
        %1606 = vmatprep.subr.bf16.mxu0 0
        %1607 = vmatpush2.bf16.msra.mxu0 0
        %1608 = vmatprep.subr.bf16.mxu0 0
        %1609 = vmatpush2.bf16.msra.mxu0 0
        %1610 = vmatprep.subr.bf16.mxu0 0
        %1611 = vmatpush2.bf16.msra.mxu0 0
        %1612 = vmatprep.mubr.bf16.mxu0 0
        %1613 = vmatmul.mubr.bf16.gmra.mxu0 %v1575
        %v1614 = vpop.f32.mrf.mxu0
        %v1615 = vadd.f32 %v1550, %v1614
        %v1616 = vpop.f32.mrf.mxu0
        %v1617 = vadd.f32 %v1550, %v1616
        %v1618 = vpop.f32.mrf.mxu0
        %v1619 = vadd.f32 %v1554, %v1618
        %v1620 = vpop.f32.mrf.mxu0
        %v1621 = vadd.f32 %v1554, %v1620
        %1622 = vmatprep.mubr.bf16.mxu0 0
        %1623 = vmatmul.mubr.bf16.gmra.mxu0 %v1578
        %v1624 = vpop.f32.mrf.mxu0
        %v1625 = vadd.f32 %v1558, %v1624
        %v1626 = vpop.f32.mrf.mxu0
        %v1627 = vadd.f32 %v1558, %v1626
        %v1628 = vpop.f32.mrf.mxu0
        %v1629 = vadd.f32 %v1562, %v1628
        %v1630 = vpop.f32.mrf.mxu0
        %v1631 = vadd.f32 %v1562, %v1630
        %1632 = vdwg.mxu0
        %v1633 = vadd.f32 %v804, %v1615
        %v1634 = vadd.f32 %v805, %v1617
        %v1635 = vadd.f32 %v806, %v1619
        %v1636 = vadd.f32 %v807, %v1621
        %v1637 = vadd.f32 %v808, %v1625
        %v1638 = vadd.f32 %v809, %v1627
        %v1639 = vadd.f32 %v810, %v1629
        %v1640 = vadd.f32 %v811, %v1631
        %v1641 = vadd.f32 %v812, %v814
        %v1642 = vadd.f32 %v1641, %v816
        %v1643 = vadd.f32 %v1642, %v818
        %v1644 = vrot.slane %v1643, 4
        %v1645 = vadd.f32 %v1643, %v1644
        %v1646 = vrot.slane %v1645, 2
        %v1647 = vadd.f32 %v1645, %v1646
        %v1648 = vrot.slane %v1647, 1
        %v1649 = vadd.f32 %v1647, %v1648
        %v1650 = vadd.f32 %v813, %v815
        %v1651 = vadd.f32 %v1650, %v817
        %v1652 = vadd.f32 %v1651, %v819
        %v1653 = vrot.slane %v1652, 4
        %v1654 = vadd.f32 %v1652, %v1653
        %v1655 = vrot.slane %v1654, 2
        %v1656 = vadd.f32 %v1654, %v1655
        %v1657 = vrot.slane %v1656, 1
        %v1658 = vadd.f32 %v1656, %v1657
        %v1659 = vmul.f32 %v1649, %v480
        %v1660 = vmul.f32 %v1658, %v480
        %v1661 = vsub.f32 %v812, %v1659
        %v1662 = vsub.f32 %v813, %v1660
        %v1663 = vsub.f32 %v814, %v1659
        %v1664 = vsub.f32 %v815, %v1660
        %v1665 = vsub.f32 %v816, %v1659
        %v1666 = vsub.f32 %v817, %v1660
        %v1667 = vsub.f32 %v818, %v1659
        %v1668 = vsub.f32 %v819, %v1660
        %v1669 = vmul.f32 %v1661, %v1661
        %v1670 = vmul.f32 %v1662, %v1662
        %v1671 = vmul.f32 %v1663, %v1663
        %v1672 = vmul.f32 %v1664, %v1664
        %v1673 = vmul.f32 %v1665, %v1665
        %v1674 = vmul.f32 %v1666, %v1666
        %v1675 = vmul.f32 %v1667, %v1667
        %v1676 = vmul.f32 %v1668, %v1668
        %v1677 = vadd.f32 %v1669, %v1671
        %v1678 = vadd.f32 %v1677, %v1673
        %v1679 = vadd.f32 %v1678, %v1675
        %v1680 = vrot.slane %v1679, 4
        %v1681 = vadd.f32 %v1679, %v1680
        %v1682 = vrot.slane %v1681, 2
        %v1683 = vadd.f32 %v1681, %v1682
        %v1684 = vrot.slane %v1683, 1
        %v1685 = vadd.f32 %v1683, %v1684
        %v1686 = vadd.f32 %v1670, %v1672
        %v1687 = vadd.f32 %v1686, %v1674
        %v1688 = vadd.f32 %v1687, %v1676
        %v1689 = vrot.slane %v1688, 4
        %v1690 = vadd.f32 %v1688, %v1689
        %v1691 = vrot.slane %v1690, 2
        %v1692 = vadd.f32 %v1690, %v1691
        %v1693 = vrot.slane %v1692, 1
        %v1694 = vadd.f32 %v1692, %v1693
        %v1695 = vmul.f32 %v1685, %v480
        %v1696 = vmul.f32 %v1694, %v480
        %v1697 = vadd.f32 %v1695, 1e-06
        %v1698 = vadd.f32 %v1696, 1e-06
        %v1699 = vrsqrt.pop %v1697
        %v1700 = vrsqrt.pop %v1698
        %v1701 = vmul.f32 %v1661, %v1699
        %v1702 = vmul.f32 %v1662, %v1700
        %v1703 = vmul.f32 %v1663, %v1699
        %v1704 = vmul.f32 %v1664, %v1700
        %v1705 = vmul.f32 %v1665, %v1699
        %v1706 = vmul.f32 %v1666, %v1700
        %v1707 = vmul.f32 %v1667, %v1699
        %v1708 = vmul.f32 %v1668, %v1700
        %s1709 = scalar_lea.vmem %s4, 64
        %v1710 = vld [vmem:[%s1709] sm:$0xf]
        %v1711 = vld [vmem:[%s1709 + $0x4] sm:$0xf]
        %v1712 = vld [vmem:[%s1709 + $0x8] sm:$0xf]
        %v1713 = vld [vmem:[%s1709 + $0xc] sm:$0xf]
        %v1714 = vld [vmem:[%s1709 + $0x10] sm:$0xf]
        %v1715 = vld [vmem:[%s1709 + $0x14] sm:$0xf]
        %v1716 = vld [vmem:[%s1709 + $0x18] sm:$0xf]
        %v1717 = vld [vmem:[%s1709 + $0x1c] sm:$0xf]
        %v1718 = vpack.c.bf16 %v1703, %v1701
        %v1719 = vpack.c.bf16 %v1704, %v1702
        %v1720 = vpack.c.bf16 %v1707, %v1705
        %v1721 = vpack.c.bf16 %v1708, %v1706
        %1722 = vset.pattern.permute.xlu0 5
        %1723 = vperm.xlu0 %1722, %v348
        %v1724 = vpop.permute.xlu0 %1723
        %1726 = vset.pattern.permute.xlu0 5
        %1727 = vperm.xlu0 %1726, %v349
        %v1728 = vpop.permute.xlu0 %1727
        %1730 = vset.pattern.permute.xlu0 5
        %1731 = vperm.xlu0 %1730, %v350
        %v1732 = vpop.permute.xlu0 %1731
        %1734 = vset.pattern.permute.xlu0 5
        %1735 = vperm.xlu0 %1734, %v351
        %v1736 = vpop.permute.xlu0 %1735
        %1738 = vset.pattern.permute.xlu0 5
        %1739 = vperm.xlu0 %1738, %v352
        %v1740 = vpop.permute.xlu0 %1739
        %1742 = vset.pattern.permute.xlu0 5
        %1743 = vperm.xlu0 %1742, %v353
        %v1744 = vpop.permute.xlu0 %1743
        %1746 = vset.pattern.permute.xlu0 5
        %1747 = vperm.xlu0 %1746, %v354
        %v1748 = vpop.permute.xlu0 %1747
        %1750 = vset.pattern.permute.xlu0 5
        %1751 = vperm.xlu0 %1750, %v355
        %v1752 = vpop.permute.xlu0 %1751
        %v1762 = vunpack.c.l.b16 %v1710
        %v1763 = vunpack.c.l.b16 %v1711
        %v1764 = vunpack.c.l.b16 %v1712
        %v1765 = vunpack.c.l.b16 %v1713
        %v1766 = vunpack.c.l.b16 %v1714
        %v1767 = vunpack.c.l.b16 %v1715
        %v1768 = vunpack.c.l.b16 %v1716
        %v1769 = vunpack.c.l.b16 %v1717
        %v1770 = vpack.c.b16 %v1763, %v1762
        %v1771 = vpack.c.b16 %v1765, %v1764
        %v1772 = vpack.c.b16 %v1767, %v1766
        %v1773 = vpack.c.b16 %v1769, %v1768
        %v1775 = vsel %vm394, %v1770, 0
        %v1778 = vsel %vm394, %v1771, 0
        %v1781 = vsel %vm394, %v1772, 0
        %v1784 = vsel %vm394, %v1773, 0
        %1786 = vmatprep.subr.bf16.mxu0 0
        %1787 = vmatpush1.bf16.msra.mxu0 0
        %1788 = vmatprep.subr.bf16.mxu0 0
        %1789 = vmatpush1.bf16.msra.mxu0 0
        %1790 = vmatprep.subr.bf16.mxu0 0
        %1791 = vmatpush1.bf16.msra.mxu0 0
        %1792 = vmatprep.subr.bf16.mxu0 0
        %1793 = vmatpush1.bf16.msra.mxu0 0
        %1794 = vmatprep.subr.bf16.mxu0 0
        %1795 = vmatpush1.bf16.msra.mxu0 0
        %1796 = vmatprep.subr.bf16.mxu0 0
        %1797 = vmatpush1.bf16.msra.mxu0 0
        %1798 = vmatprep.subr.bf16.mxu0 %v1721
        %1799 = vmatpush1.bf16.msra.mxu0 %v1720
        %1800 = vmatprep.subr.bf16.mxu0 %v1719
        %1801 = vmatpush1.bf16.msra.mxu0 %v1718
        %1802 = vmatprep.subr.bf16.mxu0 0
        %1803 = vmatpush2.bf16.msra.mxu0 0
        %1804 = vmatprep.subr.bf16.mxu0 0
        %1805 = vmatpush2.bf16.msra.mxu0 0
        %1806 = vmatprep.subr.bf16.mxu0 0
        %1807 = vmatpush2.bf16.msra.mxu0 0
        %1808 = vmatprep.subr.bf16.mxu0 0
        %1809 = vmatpush2.bf16.msra.mxu0 0
        %1810 = vmatprep.subr.bf16.mxu0 0
        %1811 = vmatpush2.bf16.msra.mxu0 0
        %1812 = vmatprep.subr.bf16.mxu0 0
        %1813 = vmatpush2.bf16.msra.mxu0 0
        %1814 = vmatprep.subr.bf16.mxu0 0
        %1815 = vmatpush2.bf16.msra.mxu0 0
        %1816 = vmatprep.subr.bf16.mxu0 0
        %1817 = vmatpush2.bf16.msra.mxu0 0
        %1818 = vmatprep.mubr.bf16.mxu0 0
        %1819 = vmatmul.mubr.bf16.gmra.mxu0 %v1775
        %v1820 = vpop.f32.mrf.mxu0
        %v1821 = vadd.f32 %v1724, %v1820
        %v1822 = vpop.f32.mrf.mxu0
        %v1823 = vadd.f32 %v1724, %v1822
        %v1824 = vpop.f32.mrf.mxu0
        %v1825 = vadd.f32 %v1728, %v1824
        %v1826 = vpop.f32.mrf.mxu0
        %v1827 = vadd.f32 %v1728, %v1826
        %1828 = vmatprep.mubr.bf16.mxu0 0
        %1829 = vmatmul.mubr.bf16.gmra.mxu0 %v1778
        %v1830 = vpop.f32.mrf.mxu0
        %v1831 = vadd.f32 %v1732, %v1830
        %v1832 = vpop.f32.mrf.mxu0
        %v1833 = vadd.f32 %v1732, %v1832
        %v1834 = vpop.f32.mrf.mxu0
        %v1835 = vadd.f32 %v1736, %v1834
        %v1836 = vpop.f32.mrf.mxu0
        %v1837 = vadd.f32 %v1736, %v1836
        %1838 = vmatprep.mubr.bf16.mxu0 0
        %1839 = vmatmul.mubr.bf16.gmra.mxu0 %v1781
        %v1840 = vpop.f32.mrf.mxu0
        %v1841 = vadd.f32 %v1740, %v1840
        %v1842 = vpop.f32.mrf.mxu0
        %v1843 = vadd.f32 %v1740, %v1842
        %v1844 = vpop.f32.mrf.mxu0
        %v1845 = vadd.f32 %v1744, %v1844
        %v1846 = vpop.f32.mrf.mxu0
        %v1847 = vadd.f32 %v1744, %v1846
        %1848 = vmatprep.mubr.bf16.mxu0 0
        %1849 = vmatmul.mubr.bf16.gmra.mxu0 %v1784
        %v1850 = vpop.f32.mrf.mxu0
        %v1851 = vadd.f32 %v1748, %v1850
        %v1852 = vpop.f32.mrf.mxu0
        %v1853 = vadd.f32 %v1748, %v1852
        %v1854 = vpop.f32.mrf.mxu0
        %v1855 = vadd.f32 %v1752, %v1854
        %v1856 = vpop.f32.mrf.mxu0
        %v1857 = vadd.f32 %v1752, %v1856
        %1858 = vdwg.mxu0
        %v1859 = vmul.f32 %v1821, %v1821
        %v1860 = vmul.f32 %v1823, %v1823
        %v1861 = vmul.f32 %v1825, %v1825
        %v1862 = vmul.f32 %v1827, %v1827
        %v1863 = vmul.f32 %v1831, %v1831
        %v1864 = vmul.f32 %v1833, %v1833
        %v1865 = vmul.f32 %v1835, %v1835
        %v1866 = vmul.f32 %v1837, %v1837
        %v1867 = vmul.f32 %v1841, %v1841
        %v1868 = vmul.f32 %v1843, %v1843
        %v1869 = vmul.f32 %v1845, %v1845
        %v1870 = vmul.f32 %v1847, %v1847
        %v1871 = vmul.f32 %v1851, %v1851
        %v1872 = vmul.f32 %v1853, %v1853
        %v1873 = vmul.f32 %v1855, %v1855
        %v1874 = vmul.f32 %v1857, %v1857
        %v1875 = vmul.f32 %v1821, %v1859
        %v1876 = vmul.f32 %v1823, %v1860
        %v1877 = vmul.f32 %v1825, %v1861
        %v1878 = vmul.f32 %v1827, %v1862
        %v1879 = vmul.f32 %v1831, %v1863
        %v1880 = vmul.f32 %v1833, %v1864
        %v1881 = vmul.f32 %v1835, %v1865
        %v1882 = vmul.f32 %v1837, %v1866
        %v1883 = vmul.f32 %v1841, %v1867
        %v1884 = vmul.f32 %v1843, %v1868
        %v1885 = vmul.f32 %v1845, %v1869
        %v1886 = vmul.f32 %v1847, %v1870
        %v1887 = vmul.f32 %v1851, %v1871
        %v1888 = vmul.f32 %v1853, %v1872
        %v1889 = vmul.f32 %v1855, %v1873
        %v1890 = vmul.f32 %v1857, %v1874
        %v1891 = vmul.f32 %v1875, 0.044715
        %v1892 = vmul.f32 %v1876, 0.044715
        %v1893 = vmul.f32 %v1877, 0.044715
        %v1894 = vmul.f32 %v1878, 0.044715
        %v1895 = vmul.f32 %v1879, 0.044715
        %v1896 = vmul.f32 %v1880, 0.044715
        %v1897 = vmul.f32 %v1881, 0.044715
        %v1898 = vmul.f32 %v1882, 0.044715
        %v1899 = vmul.f32 %v1883, 0.044715
        %v1900 = vmul.f32 %v1884, 0.044715
        %v1901 = vmul.f32 %v1885, 0.044715
        %v1902 = vmul.f32 %v1886, 0.044715
        %v1903 = vmul.f32 %v1887, 0.044715
        %v1904 = vmul.f32 %v1888, 0.044715
        %v1905 = vmul.f32 %v1889, 0.044715
        %v1906 = vmul.f32 %v1890, 0.044715
        %v1907 = vadd.f32 %v1821, %v1891
        %v1908 = vadd.f32 %v1823, %v1892
        %v1909 = vadd.f32 %v1825, %v1893
        %v1910 = vadd.f32 %v1827, %v1894
        %v1911 = vadd.f32 %v1831, %v1895
        %v1912 = vadd.f32 %v1833, %v1896
        %v1913 = vadd.f32 %v1835, %v1897
        %v1914 = vadd.f32 %v1837, %v1898
        %v1915 = vadd.f32 %v1841, %v1899
        %v1916 = vadd.f32 %v1843, %v1900
        %v1917 = vadd.f32 %v1845, %v1901
        %v1918 = vadd.f32 %v1847, %v1902
        %v1919 = vadd.f32 %v1851, %v1903
        %v1920 = vadd.f32 %v1853, %v1904
        %v1921 = vadd.f32 %v1855, %v1905
        %v1922 = vadd.f32 %v1857, %v1906
        %v1923 = vmul.f32 %v1907, 0.7978846
        %v1924 = vmul.f32 %v1908, 0.7978846
        %v1925 = vmul.f32 %v1909, 0.7978846
        %v1926 = vmul.f32 %v1910, 0.7978846
        %v1927 = vmul.f32 %v1911, 0.7978846
        %v1928 = vmul.f32 %v1912, 0.7978846
        %v1929 = vmul.f32 %v1913, 0.7978846
        %v1930 = vmul.f32 %v1914, 0.7978846
        %v1931 = vmul.f32 %v1915, 0.7978846
        %v1932 = vmul.f32 %v1916, 0.7978846
        %v1933 = vmul.f32 %v1917, 0.7978846
        %v1934 = vmul.f32 %v1918, 0.7978846
        %v1935 = vmul.f32 %v1919, 0.7978846
        %v1936 = vmul.f32 %v1920, 0.7978846
        %v1937 = vmul.f32 %v1921, 0.7978846
        %v1938 = vmul.f32 %v1922, 0.7978846
        %v1939 = vtanh.pop %v1923
        %v1940 = vtanh.pop %v1924
        %v1941 = vtanh.pop %v1925
        %v1942 = vtanh.pop %v1926
        %v1943 = vtanh.pop %v1927
        %v1944 = vtanh.pop %v1928
        %v1945 = vtanh.pop %v1929
        %v1946 = vtanh.pop %v1930
        %v1947 = vtanh.pop %v1931
        %v1948 = vtanh.pop %v1932
        %v1949 = vtanh.pop %v1933
        %v1950 = vtanh.pop %v1934
        %v1951 = vtanh.pop %v1935
        %v1952 = vtanh.pop %v1936
        %v1953 = vtanh.pop %v1937
        %v1954 = vtanh.pop %v1938
        %v1955 = vadd.f32 %v1939, 1.0
        %v1956 = vadd.f32 %v1940, 1.0
        %v1957 = vadd.f32 %v1941, 1.0
        %v1958 = vadd.f32 %v1942, 1.0
        %v1959 = vadd.f32 %v1943, 1.0
        %v1960 = vadd.f32 %v1944, 1.0
        %v1961 = vadd.f32 %v1945, 1.0
        %v1962 = vadd.f32 %v1946, 1.0
        %v1963 = vadd.f32 %v1947, 1.0
        %v1964 = vadd.f32 %v1948, 1.0
        %v1965 = vadd.f32 %v1949, 1.0
        %v1966 = vadd.f32 %v1950, 1.0
        %v1967 = vadd.f32 %v1951, 1.0
        %v1968 = vadd.f32 %v1952, 1.0
        %v1969 = vadd.f32 %v1953, 1.0
        %v1970 = vadd.f32 %v1954, 1.0
        %v1971 = vmul.f32 %v1955, 0.5
        %v1972 = vmul.f32 %v1956, 0.5
        %v1973 = vmul.f32 %v1957, 0.5
        %v1974 = vmul.f32 %v1958, 0.5
        %v1975 = vmul.f32 %v1959, 0.5
        %v1976 = vmul.f32 %v1960, 0.5
        %v1977 = vmul.f32 %v1961, 0.5
        %v1978 = vmul.f32 %v1962, 0.5
        %v1979 = vmul.f32 %v1963, 0.5
        %v1980 = vmul.f32 %v1964, 0.5
        %v1981 = vmul.f32 %v1965, 0.5
        %v1982 = vmul.f32 %v1966, 0.5
        %v1983 = vmul.f32 %v1967, 0.5
        %v1984 = vmul.f32 %v1968, 0.5
        %v1985 = vmul.f32 %v1969, 0.5
        %v1986 = vmul.f32 %v1970, 0.5
        %v1987 = vmul.f32 %v1821, %v1971
        %v1988 = vmul.f32 %v1823, %v1972
        %v1989 = vmul.f32 %v1825, %v1973
        %v1990 = vmul.f32 %v1827, %v1974
        %v1991 = vmul.f32 %v1831, %v1975
        %v1992 = vmul.f32 %v1833, %v1976
        %v1993 = vmul.f32 %v1835, %v1977
        %v1994 = vmul.f32 %v1837, %v1978
        %v1995 = vmul.f32 %v1841, %v1979
        %v1996 = vmul.f32 %v1843, %v1980
        %v1997 = vmul.f32 %v1845, %v1981
        %v1998 = vmul.f32 %v1847, %v1982
        %v1999 = vmul.f32 %v1851, %v1983
        %v2000 = vmul.f32 %v1853, %v1984
        %v2001 = vmul.f32 %v1855, %v1985
        %v2002 = vmul.f32 %v1857, %v1986
        %v2003 = vadd.f32 %v1995, %v1997
        %v2004 = vadd.f32 %v2003, %v1999
        %v2005 = vadd.f32 %v2004, %v2001
        %v2006 = vrot.slane %v2005, 4
        %v2007 = vadd.f32 %v2005, %v2006
        %v2008 = vrot.slane %v2007, 2
        %v2009 = vadd.f32 %v2007, %v2008
        %v2010 = vrot.slane %v2009, 1
        %v2011 = vadd.f32 %v2009, %v2010
        %v2012 = vadd.f32 %v1996, %v1998
        %v2013 = vadd.f32 %v2012, %v2000
        %v2014 = vadd.f32 %v2013, %v2002
        %v2015 = vrot.slane %v2014, 4
        %v2016 = vadd.f32 %v2014, %v2015
        %v2017 = vrot.slane %v2016, 2
        %v2018 = vadd.f32 %v2016, %v2017
        %v2019 = vrot.slane %v2018, 1
        %v2020 = vadd.f32 %v2018, %v2019
        %v2021 = vmul.f32 %v2011, %v480
        %v2022 = vmul.f32 %v2020, %v480
        %v2023 = vsub.f32 %v1995, %v2021
        %v2024 = vsub.f32 %v1996, %v2022
        %v2025 = vsub.f32 %v1997, %v2021
        %v2026 = vsub.f32 %v1998, %v2022
        %v2027 = vsub.f32 %v1999, %v2021
        %v2028 = vsub.f32 %v2000, %v2022
        %v2029 = vsub.f32 %v2001, %v2021
        %v2030 = vsub.f32 %v2002, %v2022
        %v2031 = vmul.f32 %v2023, %v2023
        %v2032 = vmul.f32 %v2024, %v2024
        %v2033 = vmul.f32 %v2025, %v2025
        %v2034 = vmul.f32 %v2026, %v2026
        %v2035 = vmul.f32 %v2027, %v2027
        %v2036 = vmul.f32 %v2028, %v2028
        %v2037 = vmul.f32 %v2029, %v2029
        %v2038 = vmul.f32 %v2030, %v2030
        %v2039 = vadd.f32 %v2031, %v2033
        %v2040 = vadd.f32 %v2039, %v2035
        %v2041 = vadd.f32 %v2040, %v2037
        %v2042 = vrot.slane %v2041, 4
        %v2043 = vadd.f32 %v2041, %v2042
        %v2044 = vrot.slane %v2043, 2
        %v2045 = vadd.f32 %v2043, %v2044
        %v2046 = vrot.slane %v2045, 1
        %v2047 = vadd.f32 %v2045, %v2046
        %v2048 = vadd.f32 %v2032, %v2034
        %v2049 = vadd.f32 %v2048, %v2036
        %v2050 = vadd.f32 %v2049, %v2038
        %v2051 = vrot.slane %v2050, 4
        %v2052 = vadd.f32 %v2050, %v2051
        %v2053 = vrot.slane %v2052, 2
        %v2054 = vadd.f32 %v2052, %v2053
        %v2055 = vrot.slane %v2054, 1
        %v2056 = vadd.f32 %v2054, %v2055
        %v2057 = vmul.f32 %v2047, %v480
        %v2058 = vmul.f32 %v2056, %v480
        %v2059 = vadd.f32 %v2057, 1e-06
        %v2060 = vadd.f32 %v2058, 1e-06
        %v2061 = vrsqrt.pop %v2059
        %v2062 = vrsqrt.pop %v2060
        %v2063 = vmul.f32 %v2023, %v2061
        %v2064 = vmul.f32 %v2024, %v2062
        %v2065 = vmul.f32 %v2025, %v2061
        %v2066 = vmul.f32 %v2026, %v2062
        %v2067 = vmul.f32 %v2027, %v2061
        %v2068 = vmul.f32 %v2028, %v2062
        %v2069 = vmul.f32 %v2029, %v2061
        %v2070 = vmul.f32 %v2030, %v2062
        %2071 = vset.pattern.permute.xlu0 6
        %2072 = vperm.xlu0 %2071, %v348
        %v2073 = vpop.permute.xlu0 %2072
        %2075 = vset.pattern.permute.xlu0 6
        %2076 = vperm.xlu0 %2075, %v349
        %v2077 = vpop.permute.xlu0 %2076
        %2079 = vset.pattern.permute.xlu0 6
        %2080 = vperm.xlu0 %2079, %v350
        %v2081 = vpop.permute.xlu0 %2080
        %2083 = vset.pattern.permute.xlu0 6
        %2084 = vperm.xlu0 %2083, %v351
        %v2085 = vpop.permute.xlu0 %2084
        %v2087 = vmul.f32 %v2063, %v2073
        %v2088 = vmul.f32 %v2064, %v2073
        %v2089 = vmul.f32 %v2065, %v2077
        %v2090 = vmul.f32 %v2066, %v2077
        %v2091 = vmul.f32 %v2067, %v2081
        %v2092 = vmul.f32 %v2068, %v2081
        %v2093 = vmul.f32 %v2069, %v2085
        %v2094 = vmul.f32 %v2070, %v2085
        %s2095 = scalar_lea.vmem [#allocation5], 256
        %v2096 = vld [vmem:[%s2095] sm:$0xff]
        %v2097 = vld [vmem:[%s2095 + $0x8] sm:$0xff]
        %v2098 = vld [vmem:[%s2095 + $0x10] sm:$0xff]
        %v2099 = vld [vmem:[%s2095 + $0x18] sm:$0xff]
        %v2100 = vld [vmem:[%s2095 + $0x20] sm:$0xff]
        %v2101 = vld [vmem:[%s2095 + $0x28] sm:$0xff]
        %v2102 = vld [vmem:[%s2095 + $0x30] sm:$0xff]
        %v2103 = vld [vmem:[%s2095 + $0x38] sm:$0xff]
        %v2104 = vld [vmem:[%s2095 + $0x40] sm:$0xff]
        %v2105 = vld [vmem:[%s2095 + $0x48] sm:$0xff]
        %v2106 = vld [vmem:[%s2095 + $0x50] sm:$0xff]
        %v2107 = vld [vmem:[%s2095 + $0x58] sm:$0xff]
        %v2108 = vld [vmem:[%s2095 + $0x60] sm:$0xff]
        %v2109 = vld [vmem:[%s2095 + $0x68] sm:$0xff]
        %v2110 = vld [vmem:[%s2095 + $0x70] sm:$0xff]
        %v2111 = vld [vmem:[%s2095 + $0x78] sm:$0xff]
        %v2112 = vld [vmem:[%s2095 + $0x80] sm:$0xff]
        %v2113 = vld [vmem:[%s2095 + $0x88] sm:$0xff]
        %v2114 = vld [vmem:[%s2095 + $0x90] sm:$0xff]
        %v2115 = vld [vmem:[%s2095 + $0x98] sm:$0xff]
        %v2116 = vld [vmem:[%s2095 + $0xa0] sm:$0xff]
        %v2117 = vld [vmem:[%s2095 + $0xa8] sm:$0xff]
        %v2118 = vld [vmem:[%s2095 + $0xb0] sm:$0xff]
        %v2119 = vld [vmem:[%s2095 + $0xb8] sm:$0xff]
        %v2120 = vld [vmem:[%s2095 + $0xc0] sm:$0xff]
        %v2121 = vld [vmem:[%s2095 + $0xc8] sm:$0xff]
        %v2122 = vld [vmem:[%s2095 + $0xd0] sm:$0xff]
        %v2123 = vld [vmem:[%s2095 + $0xd8] sm:$0xff]
        %v2124 = vld [vmem:[%s2095 + $0xe0] sm:$0xff]
        %v2125 = vld [vmem:[%s2095 + $0xe8] sm:$0xff]
        %v2126 = vld [vmem:[%s2095 + $0xf0] sm:$0xff]
        %v2127 = vld [vmem:[%s2095 + $0xf8] sm:$0xff]
        %s2128 = scalar_lea.vmem %s2, 64
        %v2129 = vld [vmem:[%s2128] sm:$0xff]
        %v2130 = vld [vmem:[%s2128 + $0x8] sm:$0xff]
        %v2131 = vld [vmem:[%s2128 + $0x10] sm:$0xff]
        %v2132 = vld [vmem:[%s2128 + $0x18] sm:$0xff]
        %v2133 = vld [vmem:[%s2128 + $0x20] sm:$0xff]
        %v2134 = vld [vmem:[%s2128 + $0x28] sm:$0xff]
        %v2135 = vld [vmem:[%s2128 + $0x30] sm:$0xff]
        %v2136 = vld [vmem:[%s2128 + $0x38] sm:$0xff]
        %v2137 = vpack.c.bf16 %v2089, %v2087
        %v2138 = vpack.c.bf16 %v2090, %v2088
        %v2139 = vpack.c.bf16 %v2093, %v2091
        %v2140 = vpack.c.bf16 %v2094, %v2092
        %v2173 = vunpack.c.l.b16 %v2096
        %v2174 = vunpack.c.h.b16 %v2096
        %v2175 = vunpack.c.l.b16 %v2097
        %v2176 = vunpack.c.h.b16 %v2097
        %v2177 = vunpack.c.l.b16 %v2098
        %v2178 = vunpack.c.h.b16 %v2098
        %v2179 = vunpack.c.l.b16 %v2099
        %v2180 = vunpack.c.h.b16 %v2099
        %v2181 = vunpack.c.l.b16 %v2100
        %v2182 = vunpack.c.h.b16 %v2100
        %v2183 = vunpack.c.l.b16 %v2101
        %v2184 = vunpack.c.h.b16 %v2101
        %v2185 = vunpack.c.l.b16 %v2102
        %v2186 = vunpack.c.h.b16 %v2102
        %v2187 = vunpack.c.l.b16 %v2103
        %v2188 = vunpack.c.h.b16 %v2103
        %v2189 = vunpack.c.l.b16 %v2104
        %v2190 = vunpack.c.h.b16 %v2104
        %v2191 = vunpack.c.l.b16 %v2105
        %v2192 = vunpack.c.h.b16 %v2105
        %v2193 = vunpack.c.l.b16 %v2106
        %v2194 = vunpack.c.h.b16 %v2106
        %v2195 = vunpack.c.l.b16 %v2107
        %v2196 = vunpack.c.h.b16 %v2107
        %v2197 = vunpack.c.l.b16 %v2108
        %v2198 = vunpack.c.h.b16 %v2108
        %v2199 = vunpack.c.l.b16 %v2109
        %v2200 = vunpack.c.h.b16 %v2109
        %v2201 = vunpack.c.l.b16 %v2110
        %v2202 = vunpack.c.h.b16 %v2110
        %v2203 = vunpack.c.l.b16 %v2111
        %v2204 = vunpack.c.h.b16 %v2111
        %v2205 = vunpack.c.l.b16 %v2112
        %v2206 = vunpack.c.h.b16 %v2112
        %v2207 = vunpack.c.l.b16 %v2113
        %v2208 = vunpack.c.h.b16 %v2113
        %v2209 = vunpack.c.l.b16 %v2114
        %v2210 = vunpack.c.h.b16 %v2114
        %v2211 = vunpack.c.l.b16 %v2115
        %v2212 = vunpack.c.h.b16 %v2115
        %v2213 = vunpack.c.l.b16 %v2116
        %v2214 = vunpack.c.h.b16 %v2116
        %v2215 = vunpack.c.l.b16 %v2117
        %v2216 = vunpack.c.h.b16 %v2117
        %v2217 = vunpack.c.l.b16 %v2118
        %v2218 = vunpack.c.h.b16 %v2118
        %v2219 = vunpack.c.l.b16 %v2119
        %v2220 = vunpack.c.h.b16 %v2119
        %v2221 = vunpack.c.l.b16 %v2120
        %v2222 = vunpack.c.h.b16 %v2120
        %v2223 = vunpack.c.l.b16 %v2121
        %v2224 = vunpack.c.h.b16 %v2121
        %v2225 = vunpack.c.l.b16 %v2122
        %v2226 = vunpack.c.h.b16 %v2122
        %v2227 = vunpack.c.l.b16 %v2123
        %v2228 = vunpack.c.h.b16 %v2123
        %v2229 = vunpack.c.l.b16 %v2124
        %v2230 = vunpack.c.h.b16 %v2124
        %v2231 = vunpack.c.l.b16 %v2125
        %v2232 = vunpack.c.h.b16 %v2125
        %v2233 = vunpack.c.l.b16 %v2126
        %v2234 = vunpack.c.h.b16 %v2126
        %v2235 = vunpack.c.l.b16 %v2127
        %v2236 = vunpack.c.h.b16 %v2127
        %v2237 = vpack.c.b16 %v2175, %v2173
        %v2238 = vpack.c.b16 %v2176, %v2174
        %v2239 = vpack.c.b16 %v2179, %v2177
        %v2240 = vpack.c.b16 %v2180, %v2178
        %v2241 = vpack.c.b16 %v2183, %v2181
        %v2242 = vpack.c.b16 %v2184, %v2182
        %v2243 = vpack.c.b16 %v2187, %v2185
        %v2244 = vpack.c.b16 %v2188, %v2186
        %v2245 = vpack.c.b16 %v2191, %v2189
        %v2246 = vpack.c.b16 %v2192, %v2190
        %v2247 = vpack.c.b16 %v2195, %v2193
        %v2248 = vpack.c.b16 %v2196, %v2194
        %v2249 = vpack.c.b16 %v2199, %v2197
        %v2250 = vpack.c.b16 %v2200, %v2198
        %v2251 = vpack.c.b16 %v2203, %v2201
        %v2252 = vpack.c.b16 %v2204, %v2202
        %v2253 = vpack.c.b16 %v2207, %v2205
        %v2254 = vpack.c.b16 %v2208, %v2206
        %v2255 = vpack.c.b16 %v2211, %v2209
        %v2256 = vpack.c.b16 %v2212, %v2210
        %v2257 = vpack.c.b16 %v2215, %v2213
        %v2258 = vpack.c.b16 %v2216, %v2214
        %v2259 = vpack.c.b16 %v2219, %v2217
        %v2260 = vpack.c.b16 %v2220, %v2218
        %v2261 = vpack.c.b16 %v2223, %v2221
        %v2262 = vpack.c.b16 %v2224, %v2222
        %v2263 = vpack.c.b16 %v2227, %v2225
        %v2264 = vpack.c.b16 %v2228, %v2226
        %v2265 = vpack.c.b16 %v2231, %v2229
        %v2266 = vpack.c.b16 %v2232, %v2230
        %v2267 = vpack.c.b16 %v2235, %v2233
        %v2268 = vpack.c.b16 %v2236, %v2234
        %2301 = vmatprep.subr.bf16.mxu0 %v2252
        %2302 = vmatpush1.bf16.msra.mxu0 %v2251
        %2303 = vmatprep.subr.bf16.mxu0 %v2250
        %2304 = vmatpush1.bf16.msra.mxu0 %v2249
        %2305 = vmatprep.subr.bf16.mxu0 %v2248
        %2306 = vmatpush1.bf16.msra.mxu0 %v2247
        %2307 = vmatprep.subr.bf16.mxu0 %v2246
        %2308 = vmatpush1.bf16.msra.mxu0 %v2245
        %2309 = vmatprep.subr.bf16.mxu0 %v2244
        %2310 = vmatpush1.bf16.msra.mxu0 %v2243
        %2311 = vmatprep.subr.bf16.mxu0 %v2242
        %2312 = vmatpush1.bf16.msra.mxu0 %v2241
        %2313 = vmatprep.subr.bf16.mxu0 %v2240
        %2314 = vmatpush1.bf16.msra.mxu0 %v2239
        %2315 = vmatprep.subr.bf16.mxu0 %v2238
        %2316 = vmatpush1.bf16.msra.mxu0 %v2237
        %2317 = vmatprep.subr.bf16.mxu0 %v2268
        %2318 = vmatpush2.bf16.msra.mxu0 %v2267
        %2319 = vmatprep.subr.bf16.mxu0 %v2266
        %2320 = vmatpush2.bf16.msra.mxu0 %v2265
        %2321 = vmatprep.subr.bf16.mxu0 %v2264
        %2322 = vmatpush2.bf16.msra.mxu0 %v2263
        %2323 = vmatprep.subr.bf16.mxu0 %v2262
        %2324 = vmatpush2.bf16.msra.mxu0 %v2261
        %2325 = vmatprep.subr.bf16.mxu0 %v2260
        %2326 = vmatpush2.bf16.msra.mxu0 %v2259
        %2327 = vmatprep.subr.bf16.mxu0 %v2258
        %2328 = vmatpush2.bf16.msra.mxu0 %v2257
        %2329 = vmatprep.subr.bf16.mxu0 %v2256
        %2330 = vmatpush2.bf16.msra.mxu0 %v2255
        %2331 = vmatprep.subr.bf16.mxu0 %v2254
        %2332 = vmatpush2.bf16.msra.mxu0 %v2253
        %2333 = vmatprep.mubr.bf16.mxu0 %v2138
        %2334 = vmatmul.mubr.bf16.gmra.mxu0 %v2137
        %v2335 = vpop.f32.mrf.mxu0
        %v2336 = vadd.f32 %v2129, %v2335
        %v2337 = vpop.f32.mrf.mxu0
        %v2338 = vadd.f32 %v2130, %v2337
        %v2339 = vpop.f32.mrf.mxu0
        %v2340 = vadd.f32 %v2131, %v2339
        %v2341 = vpop.f32.mrf.mxu0
        %v2342 = vadd.f32 %v2132, %v2341
        %2343 = vmatprep.mubr.bf16.mxu0 %v2140
        %2344 = vmatmul.mubr.bf16.gmra.mxu0 %v2139
        %v2345 = vpop.f32.mrf.mxu0
        %v2346 = vadd.f32 %v2133, %v2345
        %v2347 = vpop.f32.mrf.mxu0
        %v2348 = vadd.f32 %v2134, %v2347
        %v2349 = vpop.f32.mrf.mxu0
        %v2350 = vadd.f32 %v2135, %v2349
        %v2351 = vpop.f32.mrf.mxu0
        %v2352 = vadd.f32 %v2136, %v2351
        %2353 = vdwg.mxu0
        %v2354 = vmul.f32 %v1987, %v2336
        %v2355 = vmul.f32 %v1988, %v2338
        %v2356 = vmul.f32 %v1989, %v2340
        %v2357 = vmul.f32 %v1990, %v2342
        %v2358 = vmul.f32 %v1991, %v2346
        %v2359 = vmul.f32 %v1992, %v2348
        %v2360 = vmul.f32 %v1993, %v2350
        %v2361 = vmul.f32 %v1994, %v2352
        %s2362 = scalar_lea.vmem %s3, 32
        %v2363 = vld [vmem:[%s2362] sm:$0xf]
        %v2364 = vld [vmem:[%s2362 + $0x4] sm:$0xf]
        %v2365 = vld [vmem:[%s2362 + $0x8] sm:$0xf]
        %v2366 = vld [vmem:[%s2362 + $0xc] sm:$0xf]
        %v2367 = vpack.c.bf16 %v2356, %v2354
        %v2368 = vpack.c.bf16 %v2357, %v2355
        %v2369 = vpack.c.bf16 %v2360, %v2358
        %v2370 = vpack.c.bf16 %v2361, %v2359
        %2371 = vset.pattern.permute.xlu0 7
        %2372 = vperm.xlu0 %2371, %v348
        %v2373 = vpop.permute.xlu0 %2372
        %2375 = vset.pattern.permute.xlu0 7
        %2376 = vperm.xlu0 %2375, %v349
        %v2377 = vpop.permute.xlu0 %2376
        %2379 = vset.pattern.permute.xlu0 7
        %2380 = vperm.xlu0 %2379, %v350
        %v2381 = vpop.permute.xlu0 %2380
        %2383 = vset.pattern.permute.xlu0 7
        %2384 = vperm.xlu0 %2383, %v351
        %v2385 = vpop.permute.xlu0 %2384
        %v2391 = vunpack.c.l.b16 %v2363
        %v2392 = vunpack.c.l.b16 %v2364
        %v2393 = vunpack.c.l.b16 %v2365
        %v2394 = vunpack.c.l.b16 %v2366
        %v2395 = vpack.c.b16 %v2392, %v2391
        %v2396 = vpack.c.b16 %v2394, %v2393
        %v2398 = vsel %vm394, %v2395, 0
        %v2401 = vsel %vm394, %v2396, 0
        %2403 = vmatprep.subr.bf16.mxu0 0
        %2404 = vmatpush1.bf16.msra.mxu0 0
        %2405 = vmatprep.subr.bf16.mxu0 0
        %2406 = vmatpush1.bf16.msra.mxu0 0
        %2407 = vmatprep.subr.bf16.mxu0 0
        %2408 = vmatpush1.bf16.msra.mxu0 0
        %2409 = vmatprep.subr.bf16.mxu0 0
        %2410 = vmatpush1.bf16.msra.mxu0 0
        %2411 = vmatprep.subr.bf16.mxu0 0
        %2412 = vmatpush1.bf16.msra.mxu0 0
        %2413 = vmatprep.subr.bf16.mxu0 0
        %2414 = vmatpush1.bf16.msra.mxu0 0
        %2415 = vmatprep.subr.bf16.mxu0 %v2370
        %2416 = vmatpush1.bf16.msra.mxu0 %v2369
        %2417 = vmatprep.subr.bf16.mxu0 %v2368
        %2418 = vmatpush1.bf16.msra.mxu0 %v2367
        %2419 = vmatprep.subr.bf16.mxu0 0
        %2420 = vmatpush2.bf16.msra.mxu0 0
        %2421 = vmatprep.subr.bf16.mxu0 0
        %2422 = vmatpush2.bf16.msra.mxu0 0
        %2423 = vmatprep.subr.bf16.mxu0 0
        %2424 = vmatpush2.bf16.msra.mxu0 0
        %2425 = vmatprep.subr.bf16.mxu0 0
        %2426 = vmatpush2.bf16.msra.mxu0 0
        %2427 = vmatprep.subr.bf16.mxu0 0
        %2428 = vmatpush2.bf16.msra.mxu0 0
        %2429 = vmatprep.subr.bf16.mxu0 0
        %2430 = vmatpush2.bf16.msra.mxu0 0
        %2431 = vmatprep.subr.bf16.mxu0 0
        %2432 = vmatpush2.bf16.msra.mxu0 0
        %2433 = vmatprep.subr.bf16.mxu0 0
        %2434 = vmatpush2.bf16.msra.mxu0 0
        %2435 = vmatprep.mubr.bf16.mxu0 0
        %2436 = vmatmul.mubr.bf16.gmra.mxu0 %v2398
        %v2437 = vpop.f32.mrf.mxu0
        %v2438 = vadd.f32 %v2373, %v2437
        %v2439 = vpop.f32.mrf.mxu0
        %v2440 = vadd.f32 %v2373, %v2439
        %v2441 = vpop.f32.mrf.mxu0
        %v2442 = vadd.f32 %v2377, %v2441
        %v2443 = vpop.f32.mrf.mxu0
        %v2444 = vadd.f32 %v2377, %v2443
        %2445 = vmatprep.mubr.bf16.mxu0 0
        %2446 = vmatmul.mubr.bf16.gmra.mxu0 %v2401
        %v2447 = vpop.f32.mrf.mxu0
        %v2448 = vadd.f32 %v2381, %v2447
        %v2449 = vpop.f32.mrf.mxu0
        %v2450 = vadd.f32 %v2381, %v2449
        %v2451 = vpop.f32.mrf.mxu0
        %v2452 = vadd.f32 %v2385, %v2451
        %v2453 = vpop.f32.mrf.mxu0
        %v2454 = vadd.f32 %v2385, %v2453
        %2455 = vdwg.mxu0
        %v2456 = vadd.f32 %v812, %v2438
        %v2457 = vadd.f32 %v813, %v2440
        %v2458 = vadd.f32 %v814, %v2442
        %v2459 = vadd.f32 %v815, %v2444
        %v2460 = vadd.f32 %v816, %v2448
        %v2461 = vadd.f32 %v817, %v2450
        %v2462 = vadd.f32 %v818, %v2452
        %v2463 = vadd.f32 %v819, %v2454
        %s2464 = scalar_lea.vmem %s3, 48
        %v2465 = vld [vmem:[%s2464] sm:$0xf]
        %v2466 = vld [vmem:[%s2464 + $0x4] sm:$0xf]
        %v2467 = vld [vmem:[%s2464 + $0x8] sm:$0xf]
        %v2468 = vld [vmem:[%s2464 + $0xc] sm:$0xf]
        %v2469 = vpack.c.bf16 %v1635, %v1633
        %v2470 = vpack.c.bf16 %v1636, %v1634
        %v2471 = vpack.c.bf16 %v1639, %v1637
        %v2472 = vpack.c.bf16 %v1640, %v1638
        %s2473 = scalar_lea.vmem %s3, 64
        %v2474 = vld [vmem:[%s2473] sm:$0xf]
        %v2475 = vld [vmem:[%s2473 + $0x4] sm:$0xf]
        %v2476 = vld [vmem:[%s2473 + $0x8] sm:$0xf]
        %v2477 = vld [vmem:[%s2473 + $0xc] sm:$0xf]
        %v2478 = vpack.c.bf16 %v2458, %v2456
        %v2479 = vpack.c.bf16 %v2459, %v2457
        %v2480 = vpack.c.bf16 %v2462, %v2460
        %v2481 = vpack.c.bf16 %v2463, %v2461
        %v2486 = vunpack.c.l.b16 %v2474
        %v2487 = vunpack.c.l.b16 %v2475
        %v2488 = vunpack.c.l.b16 %v2476
        %v2489 = vunpack.c.l.b16 %v2477
        %v2490 = vpack.c.b16 %v2487, %v2486
        %v2491 = vpack.c.b16 %v2489, %v2488
        %v2493 = vsel %vm394, %v2490, 0
        %v2496 = vsel %vm394, %v2491, 0
        %2498 = vmatprep.subr.bf16.mxu0 0
        %2499 = vmatpush1.bf16.msra.mxu0 0
        %2500 = vmatprep.subr.bf16.mxu0 0
        %2501 = vmatpush1.bf16.msra.mxu0 0
        %2502 = vmatprep.subr.bf16.mxu0 0
        %2503 = vmatpush1.bf16.msra.mxu0 0
        %2504 = vmatprep.subr.bf16.mxu0 0
        %2505 = vmatpush1.bf16.msra.mxu0 0
        %2506 = vmatprep.subr.bf16.mxu0 0
        %2507 = vmatpush1.bf16.msra.mxu0 0
        %2508 = vmatprep.subr.bf16.mxu0 0
        %2509 = vmatpush1.bf16.msra.mxu0 0
        %2510 = vmatprep.subr.bf16.mxu0 %v2481
        %2511 = vmatpush1.bf16.msra.mxu0 %v2480
        %2512 = vmatprep.subr.bf16.mxu0 %v2479
        %2513 = vmatpush1.bf16.msra.mxu0 %v2478
        %2514 = vmatprep.subr.bf16.mxu0 0
        %2515 = vmatpush2.bf16.msra.mxu0 0
        %2516 = vmatprep.subr.bf16.mxu0 0
        %2517 = vmatpush2.bf16.msra.mxu0 0
        %2518 = vmatprep.subr.bf16.mxu0 0
        %2519 = vmatpush2.bf16.msra.mxu0 0
        %2520 = vmatprep.subr.bf16.mxu0 0
        %2521 = vmatpush2.bf16.msra.mxu0 0
        %2522 = vmatprep.subr.bf16.mxu0 0
        %2523 = vmatpush2.bf16.msra.mxu0 0
        %2524 = vmatprep.subr.bf16.mxu0 0
        %2525 = vmatpush2.bf16.msra.mxu0 0
        %2526 = vmatprep.subr.bf16.mxu0 0
        %2527 = vmatpush2.bf16.msra.mxu0 0
        %2528 = vmatprep.subr.bf16.mxu0 0
        %2529 = vmatpush2.bf16.msra.mxu0 0
        %2530 = vmatprep.mubr.bf16.mxu0 0
        %2531 = vmatmul.mubr.bf16.gmra.mxu0 %v2493
        %v2532 = vpop.f32.mrf.mxu0
        %v2533 = vadd.f32 0.0, %v2532
        %v2534 = vpop.f32.mrf.mxu0
        %v2535 = vadd.f32 0.0, %v2534
        %v2536 = vpop.f32.mrf.mxu0
        %v2537 = vadd.f32 0.0, %v2536
        %v2538 = vpop.f32.mrf.mxu0
        %v2539 = vadd.f32 0.0, %v2538
        %2540 = vmatprep.mubr.bf16.mxu0 0
        %2541 = vmatmul.mubr.bf16.gmra.mxu0 %v2496
        %v2542 = vpop.f32.mrf.mxu0
        %v2543 = vadd.f32 0.0, %v2542
        %v2544 = vpop.f32.mrf.mxu0
        %v2545 = vadd.f32 0.0, %v2544
        %v2546 = vpop.f32.mrf.mxu0
        %v2547 = vadd.f32 0.0, %v2546
        %v2548 = vpop.f32.mrf.mxu0
        %v2549 = vadd.f32 0.0, %v2548
        %2550 = vdwg.mxu0
        %v2555 = vunpack.c.l.b16 %v2465
        %v2556 = vunpack.c.l.b16 %v2466
        %v2557 = vunpack.c.l.b16 %v2467
        %v2558 = vunpack.c.l.b16 %v2468
        %v2559 = vpack.c.b16 %v2556, %v2555
        %v2560 = vpack.c.b16 %v2558, %v2557
        %v2562 = vsel %vm394, %v2559, 0
        %v2565 = vsel %vm394, %v2560, 0
        %2567 = vmatprep.subr.bf16.mxu0 0
        %2568 = vmatpush1.bf16.msra.mxu0 0
        %2569 = vmatprep.subr.bf16.mxu0 0
        %2570 = vmatpush1.bf16.msra.mxu0 0
        %2571 = vmatprep.subr.bf16.mxu0 0
        %2572 = vmatpush1.bf16.msra.mxu0 0
        %2573 = vmatprep.subr.bf16.mxu0 0
        %2574 = vmatpush1.bf16.msra.mxu0 0
        %2575 = vmatprep.subr.bf16.mxu0 0
        %2576 = vmatpush1.bf16.msra.mxu0 0
        %2577 = vmatprep.subr.bf16.mxu0 0
        %2578 = vmatpush1.bf16.msra.mxu0 0
        %2579 = vmatprep.subr.bf16.mxu0 %v2472
        %2580 = vmatpush1.bf16.msra.mxu0 %v2471
        %2581 = vmatprep.subr.bf16.mxu0 %v2470
        %2582 = vmatpush1.bf16.msra.mxu0 %v2469
        %2583 = vmatprep.subr.bf16.mxu0 0
        %2584 = vmatpush2.bf16.msra.mxu0 0
        %2585 = vmatprep.subr.bf16.mxu0 0
        %2586 = vmatpush2.bf16.msra.mxu0 0
        %2587 = vmatprep.subr.bf16.mxu0 0
        %2588 = vmatpush2.bf16.msra.mxu0 0
        %2589 = vmatprep.subr.bf16.mxu0 0
        %2590 = vmatpush2.bf16.msra.mxu0 0
        %2591 = vmatprep.subr.bf16.mxu0 0
        %2592 = vmatpush2.bf16.msra.mxu0 0
        %2593 = vmatprep.subr.bf16.mxu0 0
        %2594 = vmatpush2.bf16.msra.mxu0 0
        %2595 = vmatprep.subr.bf16.mxu0 0
        %2596 = vmatpush2.bf16.msra.mxu0 0
        %2597 = vmatprep.subr.bf16.mxu0 0
        %2598 = vmatpush2.bf16.msra.mxu0 0
        %2599 = vmatprep.mubr.bf16.mxu0 0
        %2600 = vmatmul.mubr.bf16.gmra.mxu0 %v2562
        %v2601 = vpop.f32.mrf.mxu0
        %v2602 = vadd.f32 %v2533, %v2601
        %v2603 = vpop.f32.mrf.mxu0
        %v2604 = vadd.f32 %v2535, %v2603
        %v2605 = vpop.f32.mrf.mxu0
        %v2606 = vadd.f32 %v2537, %v2605
        %v2607 = vpop.f32.mrf.mxu0
        %v2608 = vadd.f32 %v2539, %v2607
        %2609 = vmatprep.mubr.bf16.mxu0 0
        %2610 = vmatmul.mubr.bf16.gmra.mxu0 %v2565
        %v2611 = vpop.f32.mrf.mxu0
        %v2612 = vadd.f32 %v2543, %v2611
        %v2613 = vpop.f32.mrf.mxu0
        %v2614 = vadd.f32 %v2545, %v2613
        %v2615 = vpop.f32.mrf.mxu0
        %v2616 = vadd.f32 %v2547, %v2615
        %v2617 = vpop.f32.mrf.mxu0
        %v2618 = vadd.f32 %v2549, %v2617
        %2619 = vdwg.mxu0
        %2620 = vset.pattern.permute.xlu0 8
        %2621 = vperm.xlu0 %2620, %v348
        %v2622 = vpop.permute.xlu0 %2621
        %2624 = vset.pattern.permute.xlu0 8
        %2625 = vperm.xlu0 %2624, %v349
        %v2626 = vpop.permute.xlu0 %2625
        %2628 = vset.pattern.permute.xlu0 8
        %2629 = vperm.xlu0 %2628, %v350
        %v2630 = vpop.permute.xlu0 %2629
        %2632 = vset.pattern.permute.xlu0 8
        %2633 = vperm.xlu0 %2632, %v351
        %v2634 = vpop.permute.xlu0 %2633
        %v2636 = vadd.f32 %v2602, %v2622
        %v2637 = vadd.f32 %v2604, %v2622
        %v2638 = vadd.f32 %v2606, %v2626
        %v2639 = vadd.f32 %v2608, %v2626
        %v2640 = vadd.f32 %v2612, %v2630
        %v2641 = vadd.f32 %v2614, %v2630
        %v2642 = vadd.f32 %v2616, %v2634
        %v2643 = vadd.f32 %v2618, %v2634
        %v2644 = vadd.f32 %v436, %v2636
        %v2645 = vadd.f32 %v438, %v2637
        %v2646 = vadd.f32 %v440, %v2638
        %v2647 = vadd.f32 %v442, %v2639
        %v2648 = vadd.f32 %v446, %v2640
        %v2649 = vadd.f32 %v448, %v2641
        %v2650 = vadd.f32 %v450, %v2642
        %v2651 = vadd.f32 %v452, %v2643
        %s2652 = scalar_lea.vmem %s3, 144
        %v2653 = vld [vmem:[%s2652] sm:$0xf]
        %v2654 = vld [vmem:[%s2652 + $0x4] sm:$0xf]
        %v2655 = vld [vmem:[%s2652 + $0x8] sm:$0xf]
        %v2656 = vld [vmem:[%s2652 + $0xc] sm:$0xf]
        %v2657 = vadd.f32 %v2644, %v2646
        %v2658 = vadd.f32 %v2657, %v2648
        %v2659 = vadd.f32 %v2658, %v2650
        %v2660 = vrot.slane %v2659, 4
        %v2661 = vadd.f32 %v2659, %v2660
        %v2662 = vrot.slane %v2661, 2
        %v2663 = vadd.f32 %v2661, %v2662
        %v2664 = vrot.slane %v2663, 1
        %v2665 = vadd.f32 %v2663, %v2664
        %v2666 = vadd.f32 %v2645, %v2647
        %v2667 = vadd.f32 %v2666, %v2649
        %v2668 = vadd.f32 %v2667, %v2651
        %v2669 = vrot.slane %v2668, 4
        %v2670 = vadd.f32 %v2668, %v2669
        %v2671 = vrot.slane %v2670, 2
        %v2672 = vadd.f32 %v2670, %v2671
        %v2673 = vrot.slane %v2672, 1
        %v2674 = vadd.f32 %v2672, %v2673
        %v2675 = vmul.f32 %v2665, %v480
        %v2676 = vmul.f32 %v2674, %v480
        %v2677 = vsub.f32 %v2644, %v2675
        %v2678 = vsub.f32 %v2645, %v2676
        %v2679 = vsub.f32 %v2646, %v2675
        %v2680 = vsub.f32 %v2647, %v2676
        %v2681 = vsub.f32 %v2648, %v2675
        %v2682 = vsub.f32 %v2649, %v2676
        %v2683 = vsub.f32 %v2650, %v2675
        %v2684 = vsub.f32 %v2651, %v2676
        %v2685 = vmul.f32 %v2677, %v2677
        %v2686 = vmul.f32 %v2678, %v2678
        %v2687 = vmul.f32 %v2679, %v2679
        %v2688 = vmul.f32 %v2680, %v2680
        %v2689 = vmul.f32 %v2681, %v2681
        %v2690 = vmul.f32 %v2682, %v2682
        %v2691 = vmul.f32 %v2683, %v2683
        %v2692 = vmul.f32 %v2684, %v2684
        %v2693 = vadd.f32 %v2685, %v2687
        %v2694 = vadd.f32 %v2693, %v2689
        %v2695 = vadd.f32 %v2694, %v2691
        %v2696 = vrot.slane %v2695, 4
        %v2697 = vadd.f32 %v2695, %v2696
        %v2698 = vrot.slane %v2697, 2
        %v2699 = vadd.f32 %v2697, %v2698
        %v2700 = vrot.slane %v2699, 1
        %v2701 = vadd.f32 %v2699, %v2700
        %v2702 = vadd.f32 %v2686, %v2688
        %v2703 = vadd.f32 %v2702, %v2690
        %v2704 = vadd.f32 %v2703, %v2692
        %v2705 = vrot.slane %v2704, 4
        %v2706 = vadd.f32 %v2704, %v2705
        %v2707 = vrot.slane %v2706, 2
        %v2708 = vadd.f32 %v2706, %v2707
        %v2709 = vrot.slane %v2708, 1
        %v2710 = vadd.f32 %v2708, %v2709
        %v2711 = vmul.f32 %v2701, %v480
        %v2712 = vmul.f32 %v2710, %v480
        %v2713 = vadd.f32 %v2711, 1e-06
        %v2714 = vadd.f32 %v2712, 1e-06
        %v2715 = vrsqrt.pop %v2713
        %v2716 = vrsqrt.pop %v2714
        %v2717 = vmul.f32 %v2677, %v2715
        %v2718 = vmul.f32 %v2678, %v2716
        %v2719 = vmul.f32 %v2679, %v2715
        %v2720 = vmul.f32 %v2680, %v2716
        %v2721 = vmul.f32 %v2681, %v2715
        %v2722 = vmul.f32 %v2682, %v2716
        %v2723 = vmul.f32 %v2683, %v2715
        %v2724 = vmul.f32 %v2684, %v2716
        %v2725 = vpack.c.bf16 %v2719, %v2717
        %v2726 = vpack.c.bf16 %v2720, %v2718
        %v2727 = vpack.c.bf16 %v2723, %v2721
        %v2728 = vpack.c.bf16 %v2724, %v2722
        %2729 = vset.pattern.permute.xlu0 17
        %2730 = vperm.xlu0 %2729, %v348
        %v2731 = vpop.permute.xlu0 %2730
        %2733 = vset.pattern.permute.xlu0 17
        %2734 = vperm.xlu0 %2733, %v349
        %v2735 = vpop.permute.xlu0 %2734
        %2737 = vset.pattern.permute.xlu0 17
        %2738 = vperm.xlu0 %2737, %v350
        %v2739 = vpop.permute.xlu0 %2738
        %2741 = vset.pattern.permute.xlu0 17
        %2742 = vperm.xlu0 %2741, %v351
        %v2743 = vpop.permute.xlu0 %2742
        %v2749 = vunpack.c.l.b16 %v2653
        %v2750 = vunpack.c.l.b16 %v2654
        %v2751 = vunpack.c.l.b16 %v2655
        %v2752 = vunpack.c.l.b16 %v2656
        %v2753 = vpack.c.b16 %v2750, %v2749
        %v2754 = vpack.c.b16 %v2752, %v2751
        %v2756 = vsel %vm394, %v2753, 0
        %v2759 = vsel %vm394, %v2754, 0
        %2761 = vmatprep.subr.bf16.mxu0 0
        %2762 = vmatpush1.bf16.msra.mxu0 0
        %2763 = vmatprep.subr.bf16.mxu0 0
        %2764 = vmatpush1.bf16.msra.mxu0 0
        %2765 = vmatprep.subr.bf16.mxu0 0
        %2766 = vmatpush1.bf16.msra.mxu0 0
        %2767 = vmatprep.subr.bf16.mxu0 0
        %2768 = vmatpush1.bf16.msra.mxu0 0
        %2769 = vmatprep.subr.bf16.mxu0 0
        %2770 = vmatpush1.bf16.msra.mxu0 0
        %2771 = vmatprep.subr.bf16.mxu0 0
        %2772 = vmatpush1.bf16.msra.mxu0 0
        %2773 = vmatprep.subr.bf16.mxu0 %v2728
        %2774 = vmatpush1.bf16.msra.mxu0 %v2727
        %2775 = vmatprep.subr.bf16.mxu0 %v2726
        %2776 = vmatpush1.bf16.msra.mxu0 %v2725
        %2777 = vmatprep.subr.bf16.mxu0 0
        %2778 = vmatpush2.bf16.msra.mxu0 0
        %2779 = vmatprep.subr.bf16.mxu0 0
        %2780 = vmatpush2.bf16.msra.mxu0 0
        %2781 = vmatprep.subr.bf16.mxu0 0
        %2782 = vmatpush2.bf16.msra.mxu0 0
        %2783 = vmatprep.subr.bf16.mxu0 0
        %2784 = vmatpush2.bf16.msra.mxu0 0
        %2785 = vmatprep.subr.bf16.mxu0 0
        %2786 = vmatpush2.bf16.msra.mxu0 0
        %2787 = vmatprep.subr.bf16.mxu0 0
        %2788 = vmatpush2.bf16.msra.mxu0 0
        %2789 = vmatprep.subr.bf16.mxu0 0
        %2790 = vmatpush2.bf16.msra.mxu0 0
        %2791 = vmatprep.subr.bf16.mxu0 0
        %2792 = vmatpush2.bf16.msra.mxu0 0
        %2793 = vmatprep.mubr.bf16.mxu0 0
        %2794 = vmatmul.mubr.bf16.gmra.mxu0 %v2756
        %v2795 = vpop.f32.mrf.mxu0
        %v2796 = vadd.f32 %v2731, %v2795
        %v2797 = vpop.f32.mrf.mxu0
        %v2798 = vadd.f32 %v2731, %v2797
        %v2799 = vpop.f32.mrf.mxu0
        %v2800 = vadd.f32 %v2735, %v2799
        %v2801 = vpop.f32.mrf.mxu0
        %v2802 = vadd.f32 %v2735, %v2801
        %2803 = vmatprep.mubr.bf16.mxu0 0
        %2804 = vmatmul.mubr.bf16.gmra.mxu0 %v2759
        %v2805 = vpop.f32.mrf.mxu0
        %v2806 = vadd.f32 %v2739, %v2805
        %v2807 = vpop.f32.mrf.mxu0
        %v2808 = vadd.f32 %v2739, %v2807
        %v2809 = vpop.f32.mrf.mxu0
        %v2810 = vadd.f32 %v2743, %v2809
        %v2811 = vpop.f32.mrf.mxu0
        %v2812 = vadd.f32 %v2743, %v2811
        %2813 = vdwg.mxu0
        %v2814 = vmul.f32 %v2796, %v2796
        %v2815 = vmul.f32 %v2798, %v2798
        %v2816 = vmul.f32 %v2800, %v2800
        %v2817 = vmul.f32 %v2802, %v2802
        %v2818 = vmul.f32 %v2806, %v2806
        %v2819 = vmul.f32 %v2808, %v2808
        %v2820 = vmul.f32 %v2810, %v2810
        %v2821 = vmul.f32 %v2812, %v2812
        %v2822 = vmul.f32 %v2796, %v2814
        %v2823 = vmul.f32 %v2798, %v2815
        %v2824 = vmul.f32 %v2800, %v2816
        %v2825 = vmul.f32 %v2802, %v2817
        %v2826 = vmul.f32 %v2806, %v2818
        %v2827 = vmul.f32 %v2808, %v2819
        %v2828 = vmul.f32 %v2810, %v2820
        %v2829 = vmul.f32 %v2812, %v2821
        %v2830 = vmul.f32 %v2822, 0.044715
        %v2831 = vmul.f32 %v2823, 0.044715
        %v2832 = vmul.f32 %v2824, 0.044715
        %v2833 = vmul.f32 %v2825, 0.044715
        %v2834 = vmul.f32 %v2826, 0.044715
        %v2835 = vmul.f32 %v2827, 0.044715
        %v2836 = vmul.f32 %v2828, 0.044715
        %v2837 = vmul.f32 %v2829, 0.044715
        %v2838 = vadd.f32 %v2796, %v2830
        %v2839 = vadd.f32 %v2798, %v2831
        %v2840 = vadd.f32 %v2800, %v2832
        %v2841 = vadd.f32 %v2802, %v2833
        %v2842 = vadd.f32 %v2806, %v2834
        %v2843 = vadd.f32 %v2808, %v2835
        %v2844 = vadd.f32 %v2810, %v2836
        %v2845 = vadd.f32 %v2812, %v2837
        %v2846 = vmul.f32 %v2838, 0.7978846
        %v2847 = vmul.f32 %v2839, 0.7978846
        %v2848 = vmul.f32 %v2840, 0.7978846
        %v2849 = vmul.f32 %v2841, 0.7978846
        %v2850 = vmul.f32 %v2842, 0.7978846
        %v2851 = vmul.f32 %v2843, 0.7978846
        %v2852 = vmul.f32 %v2844, 0.7978846
        %v2853 = vmul.f32 %v2845, 0.7978846
        %v2854 = vtanh.pop %v2846
        %v2855 = vtanh.pop %v2847
        %v2856 = vtanh.pop %v2848
        %v2857 = vtanh.pop %v2849
        %v2858 = vtanh.pop %v2850
        %v2859 = vtanh.pop %v2851
        %v2860 = vtanh.pop %v2852
        %v2861 = vtanh.pop %v2853
        %v2862 = vadd.f32 %v2854, 1.0
        %v2863 = vadd.f32 %v2855, 1.0
        %v2864 = vadd.f32 %v2856, 1.0
        %v2865 = vadd.f32 %v2857, 1.0
        %v2866 = vadd.f32 %v2858, 1.0
        %v2867 = vadd.f32 %v2859, 1.0
        %v2868 = vadd.f32 %v2860, 1.0
        %v2869 = vadd.f32 %v2861, 1.0
        %v2870 = vmul.f32 %v2862, 0.5
        %v2871 = vmul.f32 %v2863, 0.5
        %v2872 = vmul.f32 %v2864, 0.5
        %v2873 = vmul.f32 %v2865, 0.5
        %v2874 = vmul.f32 %v2866, 0.5
        %v2875 = vmul.f32 %v2867, 0.5
        %v2876 = vmul.f32 %v2868, 0.5
        %v2877 = vmul.f32 %v2869, 0.5
        %v2878 = vmul.f32 %v2796, %v2870
        %v2879 = vmul.f32 %v2798, %v2871
        %v2880 = vmul.f32 %v2800, %v2872
        %v2881 = vmul.f32 %v2802, %v2873
        %v2882 = vmul.f32 %v2806, %v2874
        %v2883 = vmul.f32 %v2808, %v2875
        %v2884 = vmul.f32 %v2810, %v2876
        %v2885 = vmul.f32 %v2812, %v2877
        %s2886 = scalar_lea.vmem %s3, 160
        %v2887 = vld [vmem:[%s2886] sm:$0xf]
        %v2888 = vld [vmem:[%s2886 + $0x4] sm:$0xf]
        %v2889 = vld [vmem:[%s2886 + $0x8] sm:$0xf]
        %v2890 = vld [vmem:[%s2886 + $0xc] sm:$0xf]
        %v2891 = vpack.c.bf16 %v2880, %v2878
        %v2892 = vpack.c.bf16 %v2881, %v2879
        %v2893 = vpack.c.bf16 %v2884, %v2882
        %v2894 = vpack.c.bf16 %v2885, %v2883
        %2895 = vset.pattern.permute.xlu0 18
        %2896 = vperm.xlu0 %2895, %v348
        %v2897 = vpop.permute.xlu0 %2896
        %2899 = vset.pattern.permute.xlu0 18
        %2900 = vperm.xlu0 %2899, %v349
        %v2901 = vpop.permute.xlu0 %2900
        %2903 = vset.pattern.permute.xlu0 18
        %2904 = vperm.xlu0 %2903, %v350
        %v2905 = vpop.permute.xlu0 %2904
        %2907 = vset.pattern.permute.xlu0 18
        %2908 = vperm.xlu0 %2907, %v351
        %v2909 = vpop.permute.xlu0 %2908
        %v2915 = vunpack.c.l.b16 %v2887
        %v2916 = vunpack.c.l.b16 %v2888
        %v2917 = vunpack.c.l.b16 %v2889
        %v2918 = vunpack.c.l.b16 %v2890
        %v2919 = vpack.c.b16 %v2916, %v2915
        %v2920 = vpack.c.b16 %v2918, %v2917
        %v2922 = vsel %vm394, %v2919, 0
        %v2925 = vsel %vm394, %v2920, 0
        %2927 = vmatprep.subr.bf16.mxu0 0
        %2928 = vmatpush1.bf16.msra.mxu0 0
        %2929 = vmatprep.subr.bf16.mxu0 0
        %2930 = vmatpush1.bf16.msra.mxu0 0
        %2931 = vmatprep.subr.bf16.mxu0 0
        %2932 = vmatpush1.bf16.msra.mxu0 0
        %2933 = vmatprep.subr.bf16.mxu0 0
        %2934 = vmatpush1.bf16.msra.mxu0 0
        %2935 = vmatprep.subr.bf16.mxu0 0
        %2936 = vmatpush1.bf16.msra.mxu0 0
        %2937 = vmatprep.subr.bf16.mxu0 0
        %2938 = vmatpush1.bf16.msra.mxu0 0
        %2939 = vmatprep.subr.bf16.mxu0 %v2894
        %2940 = vmatpush1.bf16.msra.mxu0 %v2893
        %2941 = vmatprep.subr.bf16.mxu0 %v2892
        %2942 = vmatpush1.bf16.msra.mxu0 %v2891
        %2943 = vmatprep.subr.bf16.mxu0 0
        %2944 = vmatpush2.bf16.msra.mxu0 0
        %2945 = vmatprep.subr.bf16.mxu0 0
        %2946 = vmatpush2.bf16.msra.mxu0 0
        %2947 = vmatprep.subr.bf16.mxu0 0
        %2948 = vmatpush2.bf16.msra.mxu0 0
        %2949 = vmatprep.subr.bf16.mxu0 0
        %2950 = vmatpush2.bf16.msra.mxu0 0
        %2951 = vmatprep.subr.bf16.mxu0 0
        %2952 = vmatpush2.bf16.msra.mxu0 0
        %2953 = vmatprep.subr.bf16.mxu0 0
        %2954 = vmatpush2.bf16.msra.mxu0 0
        %2955 = vmatprep.subr.bf16.mxu0 0
        %2956 = vmatpush2.bf16.msra.mxu0 0
        %2957 = vmatprep.subr.bf16.mxu0 0
        %2958 = vmatpush2.bf16.msra.mxu0 0
        %2959 = vmatprep.mubr.bf16.mxu0 0
        %2960 = vmatmul.mubr.bf16.gmra.mxu0 %v2922
        %v2961 = vpop.f32.mrf.mxu0
        %v2962 = vadd.f32 %v2897, %v2961
        %v2963 = vpop.f32.mrf.mxu0
        %v2964 = vadd.f32 %v2897, %v2963
        %v2965 = vpop.f32.mrf.mxu0
        %v2966 = vadd.f32 %v2901, %v2965
        %v2967 = vpop.f32.mrf.mxu0
        %v2968 = vadd.f32 %v2901, %v2967
        %2969 = vmatprep.mubr.bf16.mxu0 0
        %2970 = vmatmul.mubr.bf16.gmra.mxu0 %v2925
        %v2971 = vpop.f32.mrf.mxu0
        %v2972 = vadd.f32 %v2905, %v2971
        %v2973 = vpop.f32.mrf.mxu0
        %v2974 = vadd.f32 %v2905, %v2973
        %v2975 = vpop.f32.mrf.mxu0
        %v2976 = vadd.f32 %v2909, %v2975
        %v2977 = vpop.f32.mrf.mxu0
        %v2978 = vadd.f32 %v2909, %v2977
        %2979 = vdwg.mxu0
        %v2980 = vld [vmem:[%s5] sm:$0xff]
        %v2981 = vld [vmem:[%s5 + $0x8] sm:$0xff]
        %v2982 = vld [vmem:[%s5 + $0x10] sm:$0xff]
        %v2983 = vld [vmem:[%s5 + $0x18] sm:$0xff]
        %s2984 = scalar_lea.vmem %s5, 32
        %v2985 = vld [vmem:[%s2984] sm:$0xff]
        %v2986 = vld [vmem:[%s2984 + $0x8] sm:$0xff]
        %v2987 = vld [vmem:[%s2984 + $0x10] sm:$0xff]
        %v2988 = vld [vmem:[%s2984 + $0x18] sm:$0xff]
        %v2989 = vld [vmem:[%s6] sm:$0x1]
        %v2990 = vadd.f32 %v2962, %v2964
        %2991 = vadd.xlane.f32.xlu0 %v2990
        %v2992 = vpop.xlane.xlu0 %2991
        %v2993 = vadd.f32 %v2966, %v2968
        %2994 = vadd.xlane.f32.xlu0 %v2993
        %v2995 = vpop.xlane.xlu0 %2994
        %v2996 = vadd.f32 %v2972, %v2974
        %2997 = vadd.xlane.f32.xlu0 %v2996
        %v2998 = vpop.xlane.xlu0 %2997
        %v2999 = vadd.f32 %v2976, %v2978
        %3000 = vadd.xlane.f32.xlu0 %v2999
        %v3001 = vpop.xlane.xlu0 %3000
        %v3002 = vrcp.pop 256.0
        %v3003 = vmul.f32 %v2992, %v3002
        %v3004 = vmul.f32 %v2995, %v3002
        %v3005 = vmul.f32 %v2998, %v3002
        %v3006 = vmul.f32 %v3001, %v3002
        %v3007 = vmul.f32 %v2980, %v3003
        %v3008 = vmul.f32 %v2981, %v3004
        %v3009 = vmul.f32 %v2982, %v3005
        %v3010 = vmul.f32 %v2983, %v3006
        %vm3011 = vcmask 64512
        %v3012 = vsel %vm3011, %v3007, 0.0
        %v3013 = vsel %vm3011, %v3008, 0.0
        %v3014 = vadd.f32 %v3012, %v3013
        %v3015 = vsel %vm3011, %v3009, 0.0
        %v3016 = vadd.f32 %v3014, %v3015
        %v3017 = vsel %vm3011, %v3010, 0.0
        %v3018 = vadd.f32 %v3016, %v3017
        %v3019 = vrot.slane %v3018, 4
        %v3020 = vadd.f32 %v3018, %v3019
        %v3021 = vrot.slane %v3020, 2
        %v3022 = vadd.f32 %v3020, %v3021
        %v3023 = vrot.slane %v3022, 1
        %v3024 = vadd.f32 %v3022, %v3023
        %v3025 = vadd.f32 %v3024, %v2989
        %v3026 = vmax.f32 %v3025, 0.0
        %v3027 = vlaneseq
        %v3028 = vshrl.u32 %v3027, 7
        %v3029 = vsub.s32 0, %v3028
        %v3030 = vrot.slane %v3026, %v3029
        %v3031 = vmul.f32 %v2985, %v3030
        %v3032 = vmul.f32 %v2986, %v3030
        %v3033 = vmul.f32 %v2987, %v3030
        %v3034 = vmul.f32 %v2988, %v3030
        %v3035 = vsel %vm3011, %v3031, 0.0
        %3036 = vadd.xlane.f32.xlu0 %v3035
        %v3037 = vpop.xlane.xlu0 %3036
        %v3038 = vsel %vm3011, %v3032, 0.0
        %3039 = vadd.xlane.f32.xlu0 %v3038
        %v3040 = vpop.xlane.xlu0 %3039
        %v3041 = vsel %vm3011, %v3033, 0.0
        %3042 = vadd.xlane.f32.xlu0 %v3041
        %v3043 = vpop.xlane.xlu0 %3042
        %v3044 = vsel %vm3011, %v3034, 0.0
        %3045 = vadd.xlane.f32.xlu0 %v3044
        %v3046 = vpop.xlane.xlu0 %3045
        %v3047 = vadd.f32 %v3037, %v348
        %v3048 = vadd.f32 %v3040, %v349
        %v3049 = vadd.f32 %v3043, %v350
        %v3050 = vadd.f32 %v3046, %v351
        %v3051 = vxor.u32 %v3047, 2147483648
        %v3052 = vxor.u32 %v3048, 2147483648
        %v3053 = vxor.u32 %v3049, 2147483648
        %v3054 = vxor.u32 %v3050, 2147483648
        %v3055 = vmul.f32 %v3051, 1.442695
        %v3056 = vpow.pop %v3055
        %v3057 = vmul.f32 %v3052, 1.442695
        %v3058 = vpow.pop %v3057
        %v3059 = vmul.f32 %v3053, 1.442695
        %v3060 = vpow.pop %v3059
        %v3061 = vmul.f32 %v3054, 1.442695
        %v3062 = vpow.pop %v3061
        %v3063 = vadd.f32 %v3056, 1.0
        %v3064 = vadd.f32 %v3058, 1.0
        %v3065 = vadd.f32 %v3060, 1.0
        %v3066 = vadd.f32 %v3062, 1.0
        %v3067 = vrcp.pop %v3063
        %v3068 = vmul.f32 1.0, %v3067
        %v3069 = vrcp.pop %v3064
        %v3070 = vmul.f32 1.0, %v3069
        %v3071 = vrcp.pop %v3065
        %v3072 = vmul.f32 1.0, %v3071
        %v3073 = vrcp.pop %v3066
        %v3074 = vmul.f32 1.0, %v3073
        %3076 = vset.pattern.permute.xlu0 19
        %3077 = vperm.xlu0 %3076, %v3068
        %v3078 = vpop.permute.xlu0 %3077
        %3081 = vset.pattern.permute.xlu0 19
        %3082 = vperm.xlu0 %3081, %v3070
        %v3083 = vpop.permute.xlu0 %3082
        %3086 = vset.pattern.permute.xlu0 19
        %3087 = vperm.xlu0 %3086, %v3072
        %v3088 = vpop.permute.xlu0 %3087
        %3091 = vset.pattern.permute.xlu0 19
        %3092 = vperm.xlu0 %3091, %v3074
        %v3093 = vpop.permute.xlu0 %3092
        %v3095 = vmul.f32 %v2962, %v3078
        %v3096 = vmul.f32 %v2964, %v3078
        %v3097 = vmul.f32 %v2966, %v3083
        %v3098 = vmul.f32 %v2968, %v3083
        %v3099 = vmul.f32 %v2972, %v3088
        %v3100 = vmul.f32 %v2974, %v3088
        %v3101 = vmul.f32 %v2976, %v3093
        %v3102 = vmul.f32 %v2978, %v3093
        %v3103 = vadd.f32 %v2644, %v3095
        %v3104 = vadd.f32 %v2645, %v3096
        %v3105 = vadd.f32 %v2646, %v3097
        %v3106 = vadd.f32 %v2647, %v3098
        %v3107 = vadd.f32 %v2648, %v3099
        %v3108 = vadd.f32 %v2649, %v3100
        %v3109 = vadd.f32 %v2650, %v3101
        %v3110 = vadd.f32 %v2651, %v3102
        %s3111 = scalar_lea.vmem %s4, 96
        %v3112 = vld [vmem:[%s3111] sm:$0xf]
        %v3113 = vld [vmem:[%s3111 + $0x4] sm:$0xf]
        %v3114 = vld [vmem:[%s3111 + $0x8] sm:$0xf]
        %v3115 = vld [vmem:[%s3111 + $0xc] sm:$0xf]
        %v3116 = vld [vmem:[%s3111 + $0x10] sm:$0xf]
        %v3117 = vld [vmem:[%s3111 + $0x14] sm:$0xf]
        %v3118 = vld [vmem:[%s3111 + $0x18] sm:$0xf]
        %v3119 = vld [vmem:[%s3111 + $0x1c] sm:$0xf]
        %v3120 = vadd.f32 %v3103, %v3105
        %v3121 = vadd.f32 %v3120, %v3107
        %v3122 = vadd.f32 %v3121, %v3109
        %v3123 = vrot.slane %v3122, 4
        %v3124 = vadd.f32 %v3122, %v3123
        %v3125 = vrot.slane %v3124, 2
        %v3126 = vadd.f32 %v3124, %v3125
        %v3127 = vrot.slane %v3126, 1
        %v3128 = vadd.f32 %v3126, %v3127
        %v3129 = vadd.f32 %v3104, %v3106
        %v3130 = vadd.f32 %v3129, %v3108
        %v3131 = vadd.f32 %v3130, %v3110
        %v3132 = vrot.slane %v3131, 4
        %v3133 = vadd.f32 %v3131, %v3132
        %v3134 = vrot.slane %v3133, 2
        %v3135 = vadd.f32 %v3133, %v3134
        %v3136 = vrot.slane %v3135, 1
        %v3137 = vadd.f32 %v3135, %v3136
        %v3138 = vmul.f32 %v3128, %v480
        %v3139 = vmul.f32 %v3137, %v480
        %v3140 = vsub.f32 %v3103, %v3138
        %v3141 = vsub.f32 %v3104, %v3139
        %v3142 = vsub.f32 %v3105, %v3138
        %v3143 = vsub.f32 %v3106, %v3139
        %v3144 = vsub.f32 %v3107, %v3138
        %v3145 = vsub.f32 %v3108, %v3139
        %v3146 = vsub.f32 %v3109, %v3138
        %v3147 = vsub.f32 %v3110, %v3139
        %v3148 = vmul.f32 %v3140, %v3140
        %v3149 = vmul.f32 %v3141, %v3141
        %v3150 = vmul.f32 %v3142, %v3142
        %v3151 = vmul.f32 %v3143, %v3143
        %v3152 = vmul.f32 %v3144, %v3144
        %v3153 = vmul.f32 %v3145, %v3145
        %v3154 = vmul.f32 %v3146, %v3146
        %v3155 = vmul.f32 %v3147, %v3147
        %v3156 = vadd.f32 %v3148, %v3150
        %v3157 = vadd.f32 %v3156, %v3152
        %v3158 = vadd.f32 %v3157, %v3154
        %v3159 = vrot.slane %v3158, 4
        %v3160 = vadd.f32 %v3158, %v3159
        %v3161 = vrot.slane %v3160, 2
        %v3162 = vadd.f32 %v3160, %v3161
        %v3163 = vrot.slane %v3162, 1
        %v3164 = vadd.f32 %v3162, %v3163
        %v3165 = vadd.f32 %v3149, %v3151
        %v3166 = vadd.f32 %v3165, %v3153
        %v3167 = vadd.f32 %v3166, %v3155
        %v3168 = vrot.slane %v3167, 4
        %v3169 = vadd.f32 %v3167, %v3168
        %v3170 = vrot.slane %v3169, 2
        %v3171 = vadd.f32 %v3169, %v3170
        %v3172 = vrot.slane %v3171, 1
        %v3173 = vadd.f32 %v3171, %v3172
        %v3174 = vmul.f32 %v3164, %v480
        %v3175 = vmul.f32 %v3173, %v480
        %v3176 = vadd.f32 %v3174, 1e-06
        %v3177 = vadd.f32 %v3175, 1e-06
        %v3178 = vrsqrt.pop %v3176
        %v3179 = vrsqrt.pop %v3177
        %v3180 = vmul.f32 %v3140, %v3178
        %v3181 = vmul.f32 %v3141, %v3179
        %v3182 = vmul.f32 %v3142, %v3178
        %v3183 = vmul.f32 %v3143, %v3179
        %v3184 = vmul.f32 %v3144, %v3178
        %v3185 = vmul.f32 %v3145, %v3179
        %v3186 = vmul.f32 %v3146, %v3178
        %v3187 = vmul.f32 %v3147, %v3179
        %v3188 = vpack.c.bf16 %v3182, %v3180
        %v3189 = vpack.c.bf16 %v3183, %v3181
        %v3190 = vpack.c.bf16 %v3186, %v3184
        %v3191 = vpack.c.bf16 %v3187, %v3185
        %3192 = vset.pattern.permute.xlu0 9
        %3193 = vperm.xlu0 %3192, %v348
        %v3194 = vpop.permute.xlu0 %3193
        %3196 = vset.pattern.permute.xlu0 9
        %3197 = vperm.xlu0 %3196, %v349
        %v3198 = vpop.permute.xlu0 %3197
        %3200 = vset.pattern.permute.xlu0 9
        %3201 = vperm.xlu0 %3200, %v350
        %v3202 = vpop.permute.xlu0 %3201
        %3204 = vset.pattern.permute.xlu0 9
        %3205 = vperm.xlu0 %3204, %v351
        %v3206 = vpop.permute.xlu0 %3205
        %3208 = vset.pattern.permute.xlu0 9
        %3209 = vperm.xlu0 %3208, %v352
        %v3210 = vpop.permute.xlu0 %3209
        %3212 = vset.pattern.permute.xlu0 9
        %3213 = vperm.xlu0 %3212, %v353
        %v3214 = vpop.permute.xlu0 %3213
        %3216 = vset.pattern.permute.xlu0 9
        %3217 = vperm.xlu0 %3216, %v354
        %v3218 = vpop.permute.xlu0 %3217
        %3220 = vset.pattern.permute.xlu0 9
        %3221 = vperm.xlu0 %3220, %v355
        %v3222 = vpop.permute.xlu0 %3221
        %v3232 = vunpack.c.l.b16 %v3112
        %v3233 = vunpack.c.l.b16 %v3113
        %v3234 = vunpack.c.l.b16 %v3114
        %v3235 = vunpack.c.l.b16 %v3115
        %v3236 = vunpack.c.l.b16 %v3116
        %v3237 = vunpack.c.l.b16 %v3117
        %v3238 = vunpack.c.l.b16 %v3118
        %v3239 = vunpack.c.l.b16 %v3119
        %v3240 = vpack.c.b16 %v3233, %v3232
        %v3241 = vpack.c.b16 %v3235, %v3234
        %v3242 = vpack.c.b16 %v3237, %v3236
        %v3243 = vpack.c.b16 %v3239, %v3238
        %v3245 = vsel %vm394, %v3240, 0
        %v3248 = vsel %vm394, %v3241, 0
        %v3251 = vsel %vm394, %v3242, 0
        %v3254 = vsel %vm394, %v3243, 0
        %3256 = vmatprep.subr.bf16.mxu0 0
        %3257 = vmatpush1.bf16.msra.mxu0 0
        %3258 = vmatprep.subr.bf16.mxu0 0
        %3259 = vmatpush1.bf16.msra.mxu0 0
        %3260 = vmatprep.subr.bf16.mxu0 0
        %3261 = vmatpush1.bf16.msra.mxu0 0
        %3262 = vmatprep.subr.bf16.mxu0 0
        %3263 = vmatpush1.bf16.msra.mxu0 0
        %3264 = vmatprep.subr.bf16.mxu0 0
        %3265 = vmatpush1.bf16.msra.mxu0 0
        %3266 = vmatprep.subr.bf16.mxu0 0
        %3267 = vmatpush1.bf16.msra.mxu0 0
        %3268 = vmatprep.subr.bf16.mxu0 %v3191
        %3269 = vmatpush1.bf16.msra.mxu0 %v3190
        %3270 = vmatprep.subr.bf16.mxu0 %v3189
        %3271 = vmatpush1.bf16.msra.mxu0 %v3188
        %3272 = vmatprep.subr.bf16.mxu0 0
        %3273 = vmatpush2.bf16.msra.mxu0 0
        %3274 = vmatprep.subr.bf16.mxu0 0
        %3275 = vmatpush2.bf16.msra.mxu0 0
        %3276 = vmatprep.subr.bf16.mxu0 0
        %3277 = vmatpush2.bf16.msra.mxu0 0
        %3278 = vmatprep.subr.bf16.mxu0 0
        %3279 = vmatpush2.bf16.msra.mxu0 0
        %3280 = vmatprep.subr.bf16.mxu0 0
        %3281 = vmatpush2.bf16.msra.mxu0 0
        %3282 = vmatprep.subr.bf16.mxu0 0
        %3283 = vmatpush2.bf16.msra.mxu0 0
        %3284 = vmatprep.subr.bf16.mxu0 0
        %3285 = vmatpush2.bf16.msra.mxu0 0
        %3286 = vmatprep.subr.bf16.mxu0 0
        %3287 = vmatpush2.bf16.msra.mxu0 0
        %3288 = vmatprep.mubr.bf16.mxu0 0
        %3289 = vmatmul.mubr.bf16.gmra.mxu0 %v3245
        %v3290 = vpop.f32.mrf.mxu0
        %v3291 = vadd.f32 %v3194, %v3290
        %v3292 = vpop.f32.mrf.mxu0
        %v3293 = vadd.f32 %v3194, %v3292
        %v3294 = vpop.f32.mrf.mxu0
        %v3295 = vadd.f32 %v3198, %v3294
        %v3296 = vpop.f32.mrf.mxu0
        %v3297 = vadd.f32 %v3198, %v3296
        %3298 = vmatprep.mubr.bf16.mxu0 0
        %3299 = vmatmul.mubr.bf16.gmra.mxu0 %v3248
        %v3300 = vpop.f32.mrf.mxu0
        %v3301 = vadd.f32 %v3202, %v3300
        %v3302 = vpop.f32.mrf.mxu0
        %v3303 = vadd.f32 %v3202, %v3302
        %v3304 = vpop.f32.mrf.mxu0
        %v3305 = vadd.f32 %v3206, %v3304
        %v3306 = vpop.f32.mrf.mxu0
        %v3307 = vadd.f32 %v3206, %v3306
        %3308 = vmatprep.mubr.bf16.mxu0 0
        %3309 = vmatmul.mubr.bf16.gmra.mxu0 %v3251
        %v3310 = vpop.f32.mrf.mxu0
        %v3311 = vadd.f32 %v3210, %v3310
        %v3312 = vpop.f32.mrf.mxu0
        %v3313 = vadd.f32 %v3210, %v3312
        %v3314 = vpop.f32.mrf.mxu0
        %v3315 = vadd.f32 %v3214, %v3314
        %v3316 = vpop.f32.mrf.mxu0
        %v3317 = vadd.f32 %v3214, %v3316
        %3318 = vmatprep.mubr.bf16.mxu0 0
        %3319 = vmatmul.mubr.bf16.gmra.mxu0 %v3254
        %v3320 = vpop.f32.mrf.mxu0
        %v3321 = vadd.f32 %v3218, %v3320
        %v3322 = vpop.f32.mrf.mxu0
        %v3323 = vadd.f32 %v3218, %v3322
        %v3324 = vpop.f32.mrf.mxu0
        %v3325 = vadd.f32 %v3222, %v3324
        %v3326 = vpop.f32.mrf.mxu0
        %v3327 = vadd.f32 %v3222, %v3326
        %3328 = vdwg.mxu0
        %v3329 = vmul.f32 %v3291, %v3291
        %v3330 = vmul.f32 %v3293, %v3293
        %v3331 = vmul.f32 %v3295, %v3295
        %v3332 = vmul.f32 %v3297, %v3297
        %v3333 = vmul.f32 %v3301, %v3301
        %v3334 = vmul.f32 %v3303, %v3303
        %v3335 = vmul.f32 %v3305, %v3305
        %v3336 = vmul.f32 %v3307, %v3307
        %v3337 = vmul.f32 %v3311, %v3311
        %v3338 = vmul.f32 %v3313, %v3313
        %v3339 = vmul.f32 %v3315, %v3315
        %v3340 = vmul.f32 %v3317, %v3317
        %v3341 = vmul.f32 %v3321, %v3321
        %v3342 = vmul.f32 %v3323, %v3323
        %v3343 = vmul.f32 %v3325, %v3325
        %v3344 = vmul.f32 %v3327, %v3327
        %v3345 = vmul.f32 %v3291, %v3329
        %v3346 = vmul.f32 %v3293, %v3330
        %v3347 = vmul.f32 %v3295, %v3331
        %v3348 = vmul.f32 %v3297, %v3332
        %v3349 = vmul.f32 %v3301, %v3333
        %v3350 = vmul.f32 %v3303, %v3334
        %v3351 = vmul.f32 %v3305, %v3335
        %v3352 = vmul.f32 %v3307, %v3336
        %v3353 = vmul.f32 %v3311, %v3337
        %v3354 = vmul.f32 %v3313, %v3338
        %v3355 = vmul.f32 %v3315, %v3339
        %v3356 = vmul.f32 %v3317, %v3340
        %v3357 = vmul.f32 %v3321, %v3341
        %v3358 = vmul.f32 %v3323, %v3342
        %v3359 = vmul.f32 %v3325, %v3343
        %v3360 = vmul.f32 %v3327, %v3344
        %v3361 = vmul.f32 %v3345, 0.044715
        %v3362 = vmul.f32 %v3346, 0.044715
        %v3363 = vmul.f32 %v3347, 0.044715
        %v3364 = vmul.f32 %v3348, 0.044715
        %v3365 = vmul.f32 %v3349, 0.044715
        %v3366 = vmul.f32 %v3350, 0.044715
        %v3367 = vmul.f32 %v3351, 0.044715
        %v3368 = vmul.f32 %v3352, 0.044715
        %v3369 = vmul.f32 %v3353, 0.044715
        %v3370 = vmul.f32 %v3354, 0.044715
        %v3371 = vmul.f32 %v3355, 0.044715
        %v3372 = vmul.f32 %v3356, 0.044715
        %v3373 = vmul.f32 %v3357, 0.044715
        %v3374 = vmul.f32 %v3358, 0.044715
        %v3375 = vmul.f32 %v3359, 0.044715
        %v3376 = vmul.f32 %v3360, 0.044715
        %v3377 = vadd.f32 %v3291, %v3361
        %v3378 = vadd.f32 %v3293, %v3362
        %v3379 = vadd.f32 %v3295, %v3363
        %v3380 = vadd.f32 %v3297, %v3364
        %v3381 = vadd.f32 %v3301, %v3365
        %v3382 = vadd.f32 %v3303, %v3366
        %v3383 = vadd.f32 %v3305, %v3367
        %v3384 = vadd.f32 %v3307, %v3368
        %v3385 = vadd.f32 %v3311, %v3369
        %v3386 = vadd.f32 %v3313, %v3370
        %v3387 = vadd.f32 %v3315, %v3371
        %v3388 = vadd.f32 %v3317, %v3372
        %v3389 = vadd.f32 %v3321, %v3373
        %v3390 = vadd.f32 %v3323, %v3374
        %v3391 = vadd.f32 %v3325, %v3375
        %v3392 = vadd.f32 %v3327, %v3376
        %v3393 = vmul.f32 %v3377, 0.7978846
        %v3394 = vmul.f32 %v3378, 0.7978846
        %v3395 = vmul.f32 %v3379, 0.7978846
        %v3396 = vmul.f32 %v3380, 0.7978846
        %v3397 = vmul.f32 %v3381, 0.7978846
        %v3398 = vmul.f32 %v3382, 0.7978846
        %v3399 = vmul.f32 %v3383, 0.7978846
        %v3400 = vmul.f32 %v3384, 0.7978846
        %v3401 = vmul.f32 %v3385, 0.7978846
        %v3402 = vmul.f32 %v3386, 0.7978846
        %v3403 = vmul.f32 %v3387, 0.7978846
        %v3404 = vmul.f32 %v3388, 0.7978846
        %v3405 = vmul.f32 %v3389, 0.7978846
        %v3406 = vmul.f32 %v3390, 0.7978846
        %v3407 = vmul.f32 %v3391, 0.7978846
        %v3408 = vmul.f32 %v3392, 0.7978846
        %v3409 = vtanh.pop %v3393
        %v3410 = vtanh.pop %v3394
        %v3411 = vtanh.pop %v3395
        %v3412 = vtanh.pop %v3396
        %v3413 = vtanh.pop %v3397
        %v3414 = vtanh.pop %v3398
        %v3415 = vtanh.pop %v3399
        %v3416 = vtanh.pop %v3400
        %v3417 = vtanh.pop %v3401
        %v3418 = vtanh.pop %v3402
        %v3419 = vtanh.pop %v3403
        %v3420 = vtanh.pop %v3404
        %v3421 = vtanh.pop %v3405
        %v3422 = vtanh.pop %v3406
        %v3423 = vtanh.pop %v3407
        %v3424 = vtanh.pop %v3408
        %v3425 = vadd.f32 %v3409, 1.0
        %v3426 = vadd.f32 %v3410, 1.0
        %v3427 = vadd.f32 %v3411, 1.0
        %v3428 = vadd.f32 %v3412, 1.0
        %v3429 = vadd.f32 %v3413, 1.0
        %v3430 = vadd.f32 %v3414, 1.0
        %v3431 = vadd.f32 %v3415, 1.0
        %v3432 = vadd.f32 %v3416, 1.0
        %v3433 = vadd.f32 %v3417, 1.0
        %v3434 = vadd.f32 %v3418, 1.0
        %v3435 = vadd.f32 %v3419, 1.0
        %v3436 = vadd.f32 %v3420, 1.0
        %v3437 = vadd.f32 %v3421, 1.0
        %v3438 = vadd.f32 %v3422, 1.0
        %v3439 = vadd.f32 %v3423, 1.0
        %v3440 = vadd.f32 %v3424, 1.0
        %v3441 = vmul.f32 %v3425, 0.5
        %v3442 = vmul.f32 %v3426, 0.5
        %v3443 = vmul.f32 %v3427, 0.5
        %v3444 = vmul.f32 %v3428, 0.5
        %v3445 = vmul.f32 %v3429, 0.5
        %v3446 = vmul.f32 %v3430, 0.5
        %v3447 = vmul.f32 %v3431, 0.5
        %v3448 = vmul.f32 %v3432, 0.5
        %v3449 = vmul.f32 %v3433, 0.5
        %v3450 = vmul.f32 %v3434, 0.5
        %v3451 = vmul.f32 %v3435, 0.5
        %v3452 = vmul.f32 %v3436, 0.5
        %v3453 = vmul.f32 %v3437, 0.5
        %v3454 = vmul.f32 %v3438, 0.5
        %v3455 = vmul.f32 %v3439, 0.5
        %v3456 = vmul.f32 %v3440, 0.5
        %v3457 = vmul.f32 %v3291, %v3441
        %v3458 = vmul.f32 %v3293, %v3442
        %v3459 = vmul.f32 %v3295, %v3443
        %v3460 = vmul.f32 %v3297, %v3444
        %v3461 = vmul.f32 %v3301, %v3445
        %v3462 = vmul.f32 %v3303, %v3446
        %v3463 = vmul.f32 %v3305, %v3447
        %v3464 = vmul.f32 %v3307, %v3448
        %v3465 = vmul.f32 %v3311, %v3449
        %v3466 = vmul.f32 %v3313, %v3450
        %v3467 = vmul.f32 %v3315, %v3451
        %v3468 = vmul.f32 %v3317, %v3452
        %v3469 = vmul.f32 %v3321, %v3453
        %v3470 = vmul.f32 %v3323, %v3454
        %v3471 = vmul.f32 %v3325, %v3455
        %v3472 = vmul.f32 %v3327, %v3456
        %v3473 = vadd.f32 %v3457, %v3459
        %v3474 = vadd.f32 %v3473, %v3461
        %v3475 = vadd.f32 %v3474, %v3463
        %v3476 = vrot.slane %v3475, 4
        %v3477 = vadd.f32 %v3475, %v3476
        %v3478 = vrot.slane %v3477, 2
        %v3479 = vadd.f32 %v3477, %v3478
        %v3480 = vrot.slane %v3479, 1
        %v3481 = vadd.f32 %v3479, %v3480
        %v3482 = vadd.f32 %v3458, %v3460
        %v3483 = vadd.f32 %v3482, %v3462
        %v3484 = vadd.f32 %v3483, %v3464
        %v3485 = vrot.slane %v3484, 4
        %v3486 = vadd.f32 %v3484, %v3485
        %v3487 = vrot.slane %v3486, 2
        %v3488 = vadd.f32 %v3486, %v3487
        %v3489 = vrot.slane %v3488, 1
        %v3490 = vadd.f32 %v3488, %v3489
        %v3491 = vmul.f32 %v3481, %v480
        %v3492 = vmul.f32 %v3490, %v480
        %v3493 = vsub.f32 %v3457, %v3491
        %v3494 = vsub.f32 %v3458, %v3492
        %v3495 = vsub.f32 %v3459, %v3491
        %v3496 = vsub.f32 %v3460, %v3492
        %v3497 = vsub.f32 %v3461, %v3491
        %v3498 = vsub.f32 %v3462, %v3492
        %v3499 = vsub.f32 %v3463, %v3491
        %v3500 = vsub.f32 %v3464, %v3492
        %v3501 = vmul.f32 %v3493, %v3493
        %v3502 = vmul.f32 %v3494, %v3494
        %v3503 = vmul.f32 %v3495, %v3495
        %v3504 = vmul.f32 %v3496, %v3496
        %v3505 = vmul.f32 %v3497, %v3497
        %v3506 = vmul.f32 %v3498, %v3498
        %v3507 = vmul.f32 %v3499, %v3499
        %v3508 = vmul.f32 %v3500, %v3500
        %v3509 = vadd.f32 %v3501, %v3503
        %v3510 = vadd.f32 %v3509, %v3505
        %v3511 = vadd.f32 %v3510, %v3507
        %v3512 = vrot.slane %v3511, 4
        %v3513 = vadd.f32 %v3511, %v3512
        %v3514 = vrot.slane %v3513, 2
        %v3515 = vadd.f32 %v3513, %v3514
        %v3516 = vrot.slane %v3515, 1
        %v3517 = vadd.f32 %v3515, %v3516
        %v3518 = vadd.f32 %v3502, %v3504
        %v3519 = vadd.f32 %v3518, %v3506
        %v3520 = vadd.f32 %v3519, %v3508
        %v3521 = vrot.slane %v3520, 4
        %v3522 = vadd.f32 %v3520, %v3521
        %v3523 = vrot.slane %v3522, 2
        %v3524 = vadd.f32 %v3522, %v3523
        %v3525 = vrot.slane %v3524, 1
        %v3526 = vadd.f32 %v3524, %v3525
        %v3527 = vmul.f32 %v3517, %v480
        %v3528 = vmul.f32 %v3526, %v480
        %v3529 = vadd.f32 %v3527, 1e-06
        %v3530 = vadd.f32 %v3528, 1e-06
        %v3531 = vrsqrt.pop %v3529
        %v3532 = vrsqrt.pop %v3530
        %v3533 = vmul.f32 %v3493, %v3531
        %v3534 = vmul.f32 %v3494, %v3532
        %v3535 = vmul.f32 %v3495, %v3531
        %v3536 = vmul.f32 %v3496, %v3532
        %v3537 = vmul.f32 %v3497, %v3531
        %v3538 = vmul.f32 %v3498, %v3532
        %v3539 = vmul.f32 %v3499, %v3531
        %v3540 = vmul.f32 %v3500, %v3532
        %s3541 = scalar_lea.vmem %s4, 128
        %v3542 = vld [vmem:[%s3541] sm:$0xf]
        %v3543 = vld [vmem:[%s3541 + $0x4] sm:$0xf]
        %v3544 = vld [vmem:[%s3541 + $0x8] sm:$0xf]
        %v3545 = vld [vmem:[%s3541 + $0xc] sm:$0xf]
        %v3546 = vld [vmem:[%s3541 + $0x10] sm:$0xf]
        %v3547 = vld [vmem:[%s3541 + $0x14] sm:$0xf]
        %v3548 = vld [vmem:[%s3541 + $0x18] sm:$0xf]
        %v3549 = vld [vmem:[%s3541 + $0x1c] sm:$0xf]
        %v3550 = vpack.c.bf16 %v3535, %v3533
        %v3551 = vpack.c.bf16 %v3536, %v3534
        %v3552 = vpack.c.bf16 %v3539, %v3537
        %v3553 = vpack.c.bf16 %v3540, %v3538
        %3554 = vset.pattern.permute.xlu0 10
        %3555 = vperm.xlu0 %3554, %v348
        %v3556 = vpop.permute.xlu0 %3555
        %3558 = vset.pattern.permute.xlu0 10
        %3559 = vperm.xlu0 %3558, %v349
        %v3560 = vpop.permute.xlu0 %3559
        %3562 = vset.pattern.permute.xlu0 10
        %3563 = vperm.xlu0 %3562, %v350
        %v3564 = vpop.permute.xlu0 %3563
        %3566 = vset.pattern.permute.xlu0 10
        %3567 = vperm.xlu0 %3566, %v351
        %v3568 = vpop.permute.xlu0 %3567
        %3570 = vset.pattern.permute.xlu0 10
        %3571 = vperm.xlu0 %3570, %v352
        %v3572 = vpop.permute.xlu0 %3571
        %3574 = vset.pattern.permute.xlu0 10
        %3575 = vperm.xlu0 %3574, %v353
        %v3576 = vpop.permute.xlu0 %3575
        %3578 = vset.pattern.permute.xlu0 10
        %3579 = vperm.xlu0 %3578, %v354
        %v3580 = vpop.permute.xlu0 %3579
        %3582 = vset.pattern.permute.xlu0 10
        %3583 = vperm.xlu0 %3582, %v355
        %v3584 = vpop.permute.xlu0 %3583
        %v3594 = vunpack.c.l.b16 %v3542
        %v3595 = vunpack.c.l.b16 %v3543
        %v3596 = vunpack.c.l.b16 %v3544
        %v3597 = vunpack.c.l.b16 %v3545
        %v3598 = vunpack.c.l.b16 %v3546
        %v3599 = vunpack.c.l.b16 %v3547
        %v3600 = vunpack.c.l.b16 %v3548
        %v3601 = vunpack.c.l.b16 %v3549
        %v3602 = vpack.c.b16 %v3595, %v3594
        %v3603 = vpack.c.b16 %v3597, %v3596
        %v3604 = vpack.c.b16 %v3599, %v3598
        %v3605 = vpack.c.b16 %v3601, %v3600
        %v3607 = vsel %vm394, %v3602, 0
        %v3610 = vsel %vm394, %v3603, 0
        %v3613 = vsel %vm394, %v3604, 0
        %v3616 = vsel %vm394, %v3605, 0
        %3618 = vmatprep.subr.bf16.mxu0 0
        %3619 = vmatpush1.bf16.msra.mxu0 0
        %3620 = vmatprep.subr.bf16.mxu0 0
        %3621 = vmatpush1.bf16.msra.mxu0 0
        %3622 = vmatprep.subr.bf16.mxu0 0
        %3623 = vmatpush1.bf16.msra.mxu0 0
        %3624 = vmatprep.subr.bf16.mxu0 0
        %3625 = vmatpush1.bf16.msra.mxu0 0
        %3626 = vmatprep.subr.bf16.mxu0 0
        %3627 = vmatpush1.bf16.msra.mxu0 0
        %3628 = vmatprep.subr.bf16.mxu0 0
        %3629 = vmatpush1.bf16.msra.mxu0 0
        %3630 = vmatprep.subr.bf16.mxu0 %v3553
        %3631 = vmatpush1.bf16.msra.mxu0 %v3552
        %3632 = vmatprep.subr.bf16.mxu0 %v3551
        %3633 = vmatpush1.bf16.msra.mxu0 %v3550
        %3634 = vmatprep.subr.bf16.mxu0 0
        %3635 = vmatpush2.bf16.msra.mxu0 0
        %3636 = vmatprep.subr.bf16.mxu0 0
        %3637 = vmatpush2.bf16.msra.mxu0 0
        %3638 = vmatprep.subr.bf16.mxu0 0
        %3639 = vmatpush2.bf16.msra.mxu0 0
        %3640 = vmatprep.subr.bf16.mxu0 0
        %3641 = vmatpush2.bf16.msra.mxu0 0
        %3642 = vmatprep.subr.bf16.mxu0 0
        %3643 = vmatpush2.bf16.msra.mxu0 0
        %3644 = vmatprep.subr.bf16.mxu0 0
        %3645 = vmatpush2.bf16.msra.mxu0 0
        %3646 = vmatprep.subr.bf16.mxu0 0
        %3647 = vmatpush2.bf16.msra.mxu0 0
        %3648 = vmatprep.subr.bf16.mxu0 0
        %3649 = vmatpush2.bf16.msra.mxu0 0
        %3650 = vmatprep.mubr.bf16.mxu0 0
        %3651 = vmatmul.mubr.bf16.gmra.mxu0 %v3607
        %v3652 = vpop.f32.mrf.mxu0
        %v3653 = vadd.f32 %v3556, %v3652
        %v3654 = vpop.f32.mrf.mxu0
        %v3655 = vadd.f32 %v3556, %v3654
        %v3656 = vpop.f32.mrf.mxu0
        %v3657 = vadd.f32 %v3560, %v3656
        %v3658 = vpop.f32.mrf.mxu0
        %v3659 = vadd.f32 %v3560, %v3658
        %3660 = vmatprep.mubr.bf16.mxu0 0
        %3661 = vmatmul.mubr.bf16.gmra.mxu0 %v3610
        %v3662 = vpop.f32.mrf.mxu0
        %v3663 = vadd.f32 %v3564, %v3662
        %v3664 = vpop.f32.mrf.mxu0
        %v3665 = vadd.f32 %v3564, %v3664
        %v3666 = vpop.f32.mrf.mxu0
        %v3667 = vadd.f32 %v3568, %v3666
        %v3668 = vpop.f32.mrf.mxu0
        %v3669 = vadd.f32 %v3568, %v3668
        %3670 = vmatprep.mubr.bf16.mxu0 0
        %3671 = vmatmul.mubr.bf16.gmra.mxu0 %v3613
        %v3672 = vpop.f32.mrf.mxu0
        %v3673 = vadd.f32 %v3572, %v3672
        %v3674 = vpop.f32.mrf.mxu0
        %v3675 = vadd.f32 %v3572, %v3674
        %v3676 = vpop.f32.mrf.mxu0
        %v3677 = vadd.f32 %v3576, %v3676
        %v3678 = vpop.f32.mrf.mxu0
        %v3679 = vadd.f32 %v3576, %v3678
        %3680 = vmatprep.mubr.bf16.mxu0 0
        %3681 = vmatmul.mubr.bf16.gmra.mxu0 %v3616
        %v3682 = vpop.f32.mrf.mxu0
        %v3683 = vadd.f32 %v3580, %v3682
        %v3684 = vpop.f32.mrf.mxu0
        %v3685 = vadd.f32 %v3580, %v3684
        %v3686 = vpop.f32.mrf.mxu0
        %v3687 = vadd.f32 %v3584, %v3686
        %v3688 = vpop.f32.mrf.mxu0
        %v3689 = vadd.f32 %v3584, %v3688
        %3690 = vdwg.mxu0
        %v3691 = vmul.f32 %v3653, %v3653
        %v3692 = vmul.f32 %v3655, %v3655
        %v3693 = vmul.f32 %v3657, %v3657
        %v3694 = vmul.f32 %v3659, %v3659
        %v3695 = vmul.f32 %v3663, %v3663
        %v3696 = vmul.f32 %v3665, %v3665
        %v3697 = vmul.f32 %v3667, %v3667
        %v3698 = vmul.f32 %v3669, %v3669
        %v3699 = vmul.f32 %v3673, %v3673
        %v3700 = vmul.f32 %v3675, %v3675
        %v3701 = vmul.f32 %v3677, %v3677
        %v3702 = vmul.f32 %v3679, %v3679
        %v3703 = vmul.f32 %v3683, %v3683
        %v3704 = vmul.f32 %v3685, %v3685
        %v3705 = vmul.f32 %v3687, %v3687
        %v3706 = vmul.f32 %v3689, %v3689
        %v3707 = vmul.f32 %v3653, %v3691
        %v3708 = vmul.f32 %v3655, %v3692
        %v3709 = vmul.f32 %v3657, %v3693
        %v3710 = vmul.f32 %v3659, %v3694
        %v3711 = vmul.f32 %v3663, %v3695
        %v3712 = vmul.f32 %v3665, %v3696
        %v3713 = vmul.f32 %v3667, %v3697
        %v3714 = vmul.f32 %v3669, %v3698
        %v3715 = vmul.f32 %v3673, %v3699
        %v3716 = vmul.f32 %v3675, %v3700
        %v3717 = vmul.f32 %v3677, %v3701
        %v3718 = vmul.f32 %v3679, %v3702
        %v3719 = vmul.f32 %v3683, %v3703
        %v3720 = vmul.f32 %v3685, %v3704
        %v3721 = vmul.f32 %v3687, %v3705
        %v3722 = vmul.f32 %v3689, %v3706
        %v3723 = vmul.f32 %v3707, 0.044715
        %v3724 = vmul.f32 %v3708, 0.044715
        %v3725 = vmul.f32 %v3709, 0.044715
        %v3726 = vmul.f32 %v3710, 0.044715
        %v3727 = vmul.f32 %v3711, 0.044715
        %v3728 = vmul.f32 %v3712, 0.044715
        %v3729 = vmul.f32 %v3713, 0.044715
        %v3730 = vmul.f32 %v3714, 0.044715
        %v3731 = vmul.f32 %v3715, 0.044715
        %v3732 = vmul.f32 %v3716, 0.044715
        %v3733 = vmul.f32 %v3717, 0.044715
        %v3734 = vmul.f32 %v3718, 0.044715
        %v3735 = vmul.f32 %v3719, 0.044715
        %v3736 = vmul.f32 %v3720, 0.044715
        %v3737 = vmul.f32 %v3721, 0.044715
        %v3738 = vmul.f32 %v3722, 0.044715
        %v3739 = vadd.f32 %v3653, %v3723
        %v3740 = vadd.f32 %v3655, %v3724
        %v3741 = vadd.f32 %v3657, %v3725
        %v3742 = vadd.f32 %v3659, %v3726
        %v3743 = vadd.f32 %v3663, %v3727
        %v3744 = vadd.f32 %v3665, %v3728
        %v3745 = vadd.f32 %v3667, %v3729
        %v3746 = vadd.f32 %v3669, %v3730
        %v3747 = vadd.f32 %v3673, %v3731
        %v3748 = vadd.f32 %v3675, %v3732
        %v3749 = vadd.f32 %v3677, %v3733
        %v3750 = vadd.f32 %v3679, %v3734
        %v3751 = vadd.f32 %v3683, %v3735
        %v3752 = vadd.f32 %v3685, %v3736
        %v3753 = vadd.f32 %v3687, %v3737
        %v3754 = vadd.f32 %v3689, %v3738
        %v3755 = vmul.f32 %v3739, 0.7978846
        %v3756 = vmul.f32 %v3740, 0.7978846
        %v3757 = vmul.f32 %v3741, 0.7978846
        %v3758 = vmul.f32 %v3742, 0.7978846
        %v3759 = vmul.f32 %v3743, 0.7978846
        %v3760 = vmul.f32 %v3744, 0.7978846
        %v3761 = vmul.f32 %v3745, 0.7978846
        %v3762 = vmul.f32 %v3746, 0.7978846
        %v3763 = vmul.f32 %v3747, 0.7978846
        %v3764 = vmul.f32 %v3748, 0.7978846
        %v3765 = vmul.f32 %v3749, 0.7978846
        %v3766 = vmul.f32 %v3750, 0.7978846
        %v3767 = vmul.f32 %v3751, 0.7978846
        %v3768 = vmul.f32 %v3752, 0.7978846
        %v3769 = vmul.f32 %v3753, 0.7978846
        %v3770 = vmul.f32 %v3754, 0.7978846
        %v3771 = vtanh.pop %v3755
        %v3772 = vtanh.pop %v3756
        %v3773 = vtanh.pop %v3757
        %v3774 = vtanh.pop %v3758
        %v3775 = vtanh.pop %v3759
        %v3776 = vtanh.pop %v3760
        %v3777 = vtanh.pop %v3761
        %v3778 = vtanh.pop %v3762
        %v3779 = vtanh.pop %v3763
        %v3780 = vtanh.pop %v3764
        %v3781 = vtanh.pop %v3765
        %v3782 = vtanh.pop %v3766
        %v3783 = vtanh.pop %v3767
        %v3784 = vtanh.pop %v3768
        %v3785 = vtanh.pop %v3769
        %v3786 = vtanh.pop %v3770
        %v3787 = vadd.f32 %v3771, 1.0
        %v3788 = vadd.f32 %v3772, 1.0
        %v3789 = vadd.f32 %v3773, 1.0
        %v3790 = vadd.f32 %v3774, 1.0
        %v3791 = vadd.f32 %v3775, 1.0
        %v3792 = vadd.f32 %v3776, 1.0
        %v3793 = vadd.f32 %v3777, 1.0
        %v3794 = vadd.f32 %v3778, 1.0
        %v3795 = vadd.f32 %v3779, 1.0
        %v3796 = vadd.f32 %v3780, 1.0
        %v3797 = vadd.f32 %v3781, 1.0
        %v3798 = vadd.f32 %v3782, 1.0
        %v3799 = vadd.f32 %v3783, 1.0
        %v3800 = vadd.f32 %v3784, 1.0
        %v3801 = vadd.f32 %v3785, 1.0
        %v3802 = vadd.f32 %v3786, 1.0
        %v3803 = vmul.f32 %v3787, 0.5
        %v3804 = vmul.f32 %v3788, 0.5
        %v3805 = vmul.f32 %v3789, 0.5
        %v3806 = vmul.f32 %v3790, 0.5
        %v3807 = vmul.f32 %v3791, 0.5
        %v3808 = vmul.f32 %v3792, 0.5
        %v3809 = vmul.f32 %v3793, 0.5
        %v3810 = vmul.f32 %v3794, 0.5
        %v3811 = vmul.f32 %v3795, 0.5
        %v3812 = vmul.f32 %v3796, 0.5
        %v3813 = vmul.f32 %v3797, 0.5
        %v3814 = vmul.f32 %v3798, 0.5
        %v3815 = vmul.f32 %v3799, 0.5
        %v3816 = vmul.f32 %v3800, 0.5
        %v3817 = vmul.f32 %v3801, 0.5
        %v3818 = vmul.f32 %v3802, 0.5
        %v3819 = vmul.f32 %v3653, %v3803
        %v3820 = vmul.f32 %v3655, %v3804
        %v3821 = vmul.f32 %v3657, %v3805
        %v3822 = vmul.f32 %v3659, %v3806
        %v3823 = vmul.f32 %v3663, %v3807
        %v3824 = vmul.f32 %v3665, %v3808
        %v3825 = vmul.f32 %v3667, %v3809
        %v3826 = vmul.f32 %v3669, %v3810
        %v3827 = vmul.f32 %v3673, %v3811
        %v3828 = vmul.f32 %v3675, %v3812
        %v3829 = vmul.f32 %v3677, %v3813
        %v3830 = vmul.f32 %v3679, %v3814
        %v3831 = vmul.f32 %v3683, %v3815
        %v3832 = vmul.f32 %v3685, %v3816
        %v3833 = vmul.f32 %v3687, %v3817
        %v3834 = vmul.f32 %v3689, %v3818
        %v3835 = vadd.f32 %v3827, %v3829
        %v3836 = vadd.f32 %v3835, %v3831
        %v3837 = vadd.f32 %v3836, %v3833
        %v3838 = vrot.slane %v3837, 4
        %v3839 = vadd.f32 %v3837, %v3838
        %v3840 = vrot.slane %v3839, 2
        %v3841 = vadd.f32 %v3839, %v3840
        %v3842 = vrot.slane %v3841, 1
        %v3843 = vadd.f32 %v3841, %v3842
        %v3844 = vadd.f32 %v3828, %v3830
        %v3845 = vadd.f32 %v3844, %v3832
        %v3846 = vadd.f32 %v3845, %v3834
        %v3847 = vrot.slane %v3846, 4
        %v3848 = vadd.f32 %v3846, %v3847
        %v3849 = vrot.slane %v3848, 2
        %v3850 = vadd.f32 %v3848, %v3849
        %v3851 = vrot.slane %v3850, 1
        %v3852 = vadd.f32 %v3850, %v3851
        %v3853 = vmul.f32 %v3843, %v480
        %v3854 = vmul.f32 %v3852, %v480
        %v3855 = vsub.f32 %v3827, %v3853
        %v3856 = vsub.f32 %v3828, %v3854
        %v3857 = vsub.f32 %v3829, %v3853
        %v3858 = vsub.f32 %v3830, %v3854
        %v3859 = vsub.f32 %v3831, %v3853
        %v3860 = vsub.f32 %v3832, %v3854
        %v3861 = vsub.f32 %v3833, %v3853
        %v3862 = vsub.f32 %v3834, %v3854
        %v3863 = vmul.f32 %v3855, %v3855
        %v3864 = vmul.f32 %v3856, %v3856
        %v3865 = vmul.f32 %v3857, %v3857
        %v3866 = vmul.f32 %v3858, %v3858
        %v3867 = vmul.f32 %v3859, %v3859
        %v3868 = vmul.f32 %v3860, %v3860
        %v3869 = vmul.f32 %v3861, %v3861
        %v3870 = vmul.f32 %v3862, %v3862
        %v3871 = vadd.f32 %v3863, %v3865
        %v3872 = vadd.f32 %v3871, %v3867
        %v3873 = vadd.f32 %v3872, %v3869
        %v3874 = vrot.slane %v3873, 4
        %v3875 = vadd.f32 %v3873, %v3874
        %v3876 = vrot.slane %v3875, 2
        %v3877 = vadd.f32 %v3875, %v3876
        %v3878 = vrot.slane %v3877, 1
        %v3879 = vadd.f32 %v3877, %v3878
        %v3880 = vadd.f32 %v3864, %v3866
        %v3881 = vadd.f32 %v3880, %v3868
        %v3882 = vadd.f32 %v3881, %v3870
        %v3883 = vrot.slane %v3882, 4
        %v3884 = vadd.f32 %v3882, %v3883
        %v3885 = vrot.slane %v3884, 2
        %v3886 = vadd.f32 %v3884, %v3885
        %v3887 = vrot.slane %v3886, 1
        %v3888 = vadd.f32 %v3886, %v3887
        %v3889 = vmul.f32 %v3879, %v480
        %v3890 = vmul.f32 %v3888, %v480
        %v3891 = vadd.f32 %v3889, 1e-06
        %v3892 = vadd.f32 %v3890, 1e-06
        %v3893 = vrsqrt.pop %v3891
        %v3894 = vrsqrt.pop %v3892
        %v3895 = vmul.f32 %v3855, %v3893
        %v3896 = vmul.f32 %v3856, %v3894
        %v3897 = vmul.f32 %v3857, %v3893
        %v3898 = vmul.f32 %v3858, %v3894
        %v3899 = vmul.f32 %v3859, %v3893
        %v3900 = vmul.f32 %v3860, %v3894
        %v3901 = vmul.f32 %v3861, %v3893
        %v3902 = vmul.f32 %v3862, %v3894
        %3903 = vset.pattern.permute.xlu0 11
        %3904 = vperm.xlu0 %3903, %v348
        %v3905 = vpop.permute.xlu0 %3904
        %3907 = vset.pattern.permute.xlu0 11
        %3908 = vperm.xlu0 %3907, %v349
        %v3909 = vpop.permute.xlu0 %3908
        %3911 = vset.pattern.permute.xlu0 11
        %3912 = vperm.xlu0 %3911, %v350
        %v3913 = vpop.permute.xlu0 %3912
        %3915 = vset.pattern.permute.xlu0 11
        %3916 = vperm.xlu0 %3915, %v351
        %v3917 = vpop.permute.xlu0 %3916
        %v3919 = vmul.f32 %v3895, %v3905
        %v3920 = vmul.f32 %v3896, %v3905
        %v3921 = vmul.f32 %v3897, %v3909
        %v3922 = vmul.f32 %v3898, %v3909
        %v3923 = vmul.f32 %v3899, %v3913
        %v3924 = vmul.f32 %v3900, %v3913
        %v3925 = vmul.f32 %v3901, %v3917
        %v3926 = vmul.f32 %v3902, %v3917
        %s3927 = scalar_lea.vmem [#allocation5], 512
        %v3928 = vld [vmem:[%s3927] sm:$0xff]
        %v3929 = vld [vmem:[%s3927 + $0x8] sm:$0xff]
        %v3930 = vld [vmem:[%s3927 + $0x10] sm:$0xff]
        %v3931 = vld [vmem:[%s3927 + $0x18] sm:$0xff]
        %v3932 = vld [vmem:[%s3927 + $0x20] sm:$0xff]
        %v3933 = vld [vmem:[%s3927 + $0x28] sm:$0xff]
        %v3934 = vld [vmem:[%s3927 + $0x30] sm:$0xff]
        %v3935 = vld [vmem:[%s3927 + $0x38] sm:$0xff]
        %v3936 = vld [vmem:[%s3927 + $0x40] sm:$0xff]
        %v3937 = vld [vmem:[%s3927 + $0x48] sm:$0xff]
        %v3938 = vld [vmem:[%s3927 + $0x50] sm:$0xff]
        %v3939 = vld [vmem:[%s3927 + $0x58] sm:$0xff]
        %v3940 = vld [vmem:[%s3927 + $0x60] sm:$0xff]
        %v3941 = vld [vmem:[%s3927 + $0x68] sm:$0xff]
        %v3942 = vld [vmem:[%s3927 + $0x70] sm:$0xff]
        %v3943 = vld [vmem:[%s3927 + $0x78] sm:$0xff]
        %v3944 = vld [vmem:[%s3927 + $0x80] sm:$0xff]
        %v3945 = vld [vmem:[%s3927 + $0x88] sm:$0xff]
        %v3946 = vld [vmem:[%s3927 + $0x90] sm:$0xff]
        %v3947 = vld [vmem:[%s3927 + $0x98] sm:$0xff]
        %v3948 = vld [vmem:[%s3927 + $0xa0] sm:$0xff]
        %v3949 = vld [vmem:[%s3927 + $0xa8] sm:$0xff]
        %v3950 = vld [vmem:[%s3927 + $0xb0] sm:$0xff]
        %v3951 = vld [vmem:[%s3927 + $0xb8] sm:$0xff]
        %v3952 = vld [vmem:[%s3927 + $0xc0] sm:$0xff]
        %v3953 = vld [vmem:[%s3927 + $0xc8] sm:$0xff]
        %v3954 = vld [vmem:[%s3927 + $0xd0] sm:$0xff]
        %v3955 = vld [vmem:[%s3927 + $0xd8] sm:$0xff]
        %v3956 = vld [vmem:[%s3927 + $0xe0] sm:$0xff]
        %v3957 = vld [vmem:[%s3927 + $0xe8] sm:$0xff]
        %v3958 = vld [vmem:[%s3927 + $0xf0] sm:$0xff]
        %v3959 = vld [vmem:[%s3927 + $0xf8] sm:$0xff]
        %s3960 = scalar_lea.vmem %s2, 128
        %v3961 = vld [vmem:[%s3960] sm:$0xff]
        %v3962 = vld [vmem:[%s3960 + $0x8] sm:$0xff]
        %v3963 = vld [vmem:[%s3960 + $0x10] sm:$0xff]
        %v3964 = vld [vmem:[%s3960 + $0x18] sm:$0xff]
        %v3965 = vld [vmem:[%s3960 + $0x20] sm:$0xff]
        %v3966 = vld [vmem:[%s3960 + $0x28] sm:$0xff]
        %v3967 = vld [vmem:[%s3960 + $0x30] sm:$0xff]
        %v3968 = vld [vmem:[%s3960 + $0x38] sm:$0xff]
        %v3969 = vpack.c.bf16 %v3921, %v3919
        %v3970 = vpack.c.bf16 %v3922, %v3920
        %v3971 = vpack.c.bf16 %v3925, %v3923
        %v3972 = vpack.c.bf16 %v3926, %v3924
        %v4005 = vunpack.c.l.b16 %v3928
        %v4006 = vunpack.c.h.b16 %v3928
        %v4007 = vunpack.c.l.b16 %v3929
        %v4008 = vunpack.c.h.b16 %v3929
        %v4009 = vunpack.c.l.b16 %v3930
        %v4010 = vunpack.c.h.b16 %v3930
        %v4011 = vunpack.c.l.b16 %v3931
        %v4012 = vunpack.c.h.b16 %v3931
        %v4013 = vunpack.c.l.b16 %v3932
        %v4014 = vunpack.c.h.b16 %v3932
        %v4015 = vunpack.c.l.b16 %v3933
        %v4016 = vunpack.c.h.b16 %v3933
        %v4017 = vunpack.c.l.b16 %v3934
        %v4018 = vunpack.c.h.b16 %v3934
        %v4019 = vunpack.c.l.b16 %v3935
        %v4020 = vunpack.c.h.b16 %v3935
        %v4021 = vunpack.c.l.b16 %v3936
        %v4022 = vunpack.c.h.b16 %v3936
        %v4023 = vunpack.c.l.b16 %v3937
        %v4024 = vunpack.c.h.b16 %v3937
        %v4025 = vunpack.c.l.b16 %v3938
        %v4026 = vunpack.c.h.b16 %v3938
        %v4027 = vunpack.c.l.b16 %v3939
        %v4028 = vunpack.c.h.b16 %v3939
        %v4029 = vunpack.c.l.b16 %v3940
        %v4030 = vunpack.c.h.b16 %v3940
        %v4031 = vunpack.c.l.b16 %v3941
        %v4032 = vunpack.c.h.b16 %v3941
        %v4033 = vunpack.c.l.b16 %v3942
        %v4034 = vunpack.c.h.b16 %v3942
        %v4035 = vunpack.c.l.b16 %v3943
        %v4036 = vunpack.c.h.b16 %v3943
        %v4037 = vunpack.c.l.b16 %v3944
        %v4038 = vunpack.c.h.b16 %v3944
        %v4039 = vunpack.c.l.b16 %v3945
        %v4040 = vunpack.c.h.b16 %v3945
        %v4041 = vunpack.c.l.b16 %v3946
        %v4042 = vunpack.c.h.b16 %v3946
        %v4043 = vunpack.c.l.b16 %v3947
        %v4044 = vunpack.c.h.b16 %v3947
        %v4045 = vunpack.c.l.b16 %v3948
        %v4046 = vunpack.c.h.b16 %v3948
        %v4047 = vunpack.c.l.b16 %v3949
        %v4048 = vunpack.c.h.b16 %v3949
        %v4049 = vunpack.c.l.b16 %v3950
        %v4050 = vunpack.c.h.b16 %v3950
        %v4051 = vunpack.c.l.b16 %v3951
        %v4052 = vunpack.c.h.b16 %v3951
        %v4053 = vunpack.c.l.b16 %v3952
        %v4054 = vunpack.c.h.b16 %v3952
        %v4055 = vunpack.c.l.b16 %v3953
        %v4056 = vunpack.c.h.b16 %v3953
        %v4057 = vunpack.c.l.b16 %v3954
        %v4058 = vunpack.c.h.b16 %v3954
        %v4059 = vunpack.c.l.b16 %v3955
        %v4060 = vunpack.c.h.b16 %v3955
        %v4061 = vunpack.c.l.b16 %v3956
        %v4062 = vunpack.c.h.b16 %v3956
        %v4063 = vunpack.c.l.b16 %v3957
        %v4064 = vunpack.c.h.b16 %v3957
        %v4065 = vunpack.c.l.b16 %v3958
        %v4066 = vunpack.c.h.b16 %v3958
        %v4067 = vunpack.c.l.b16 %v3959
        %v4068 = vunpack.c.h.b16 %v3959
        %v4069 = vpack.c.b16 %v4007, %v4005
        %v4070 = vpack.c.b16 %v4008, %v4006
        %v4071 = vpack.c.b16 %v4011, %v4009
        %v4072 = vpack.c.b16 %v4012, %v4010
        %v4073 = vpack.c.b16 %v4015, %v4013
        %v4074 = vpack.c.b16 %v4016, %v4014
        %v4075 = vpack.c.b16 %v4019, %v4017
        %v4076 = vpack.c.b16 %v4020, %v4018
        %v4077 = vpack.c.b16 %v4023, %v4021
        %v4078 = vpack.c.b16 %v4024, %v4022
        %v4079 = vpack.c.b16 %v4027, %v4025
        %v4080 = vpack.c.b16 %v4028, %v4026
        %v4081 = vpack.c.b16 %v4031, %v4029
        %v4082 = vpack.c.b16 %v4032, %v4030
        %v4083 = vpack.c.b16 %v4035, %v4033
        %v4084 = vpack.c.b16 %v4036, %v4034
        %v4085 = vpack.c.b16 %v4039, %v4037
        %v4086 = vpack.c.b16 %v4040, %v4038
        %v4087 = vpack.c.b16 %v4043, %v4041
        %v4088 = vpack.c.b16 %v4044, %v4042
        %v4089 = vpack.c.b16 %v4047, %v4045
        %v4090 = vpack.c.b16 %v4048, %v4046
        %v4091 = vpack.c.b16 %v4051, %v4049
        %v4092 = vpack.c.b16 %v4052, %v4050
        %v4093 = vpack.c.b16 %v4055, %v4053
        %v4094 = vpack.c.b16 %v4056, %v4054
        %v4095 = vpack.c.b16 %v4059, %v4057
        %v4096 = vpack.c.b16 %v4060, %v4058
        %v4097 = vpack.c.b16 %v4063, %v4061
        %v4098 = vpack.c.b16 %v4064, %v4062
        %v4099 = vpack.c.b16 %v4067, %v4065
        %v4100 = vpack.c.b16 %v4068, %v4066
        %4133 = vmatprep.subr.bf16.mxu0 %v4084
        %4134 = vmatpush1.bf16.msra.mxu0 %v4083
        %4135 = vmatprep.subr.bf16.mxu0 %v4082
        %4136 = vmatpush1.bf16.msra.mxu0 %v4081
        %4137 = vmatprep.subr.bf16.mxu0 %v4080
        %4138 = vmatpush1.bf16.msra.mxu0 %v4079
        %4139 = vmatprep.subr.bf16.mxu0 %v4078
        %4140 = vmatpush1.bf16.msra.mxu0 %v4077
        %4141 = vmatprep.subr.bf16.mxu0 %v4076
        %4142 = vmatpush1.bf16.msra.mxu0 %v4075
        %4143 = vmatprep.subr.bf16.mxu0 %v4074
        %4144 = vmatpush1.bf16.msra.mxu0 %v4073
        %4145 = vmatprep.subr.bf16.mxu0 %v4072
        %4146 = vmatpush1.bf16.msra.mxu0 %v4071
        %4147 = vmatprep.subr.bf16.mxu0 %v4070
        %4148 = vmatpush1.bf16.msra.mxu0 %v4069
        %4149 = vmatprep.subr.bf16.mxu0 %v4100
        %4150 = vmatpush2.bf16.msra.mxu0 %v4099
        %4151 = vmatprep.subr.bf16.mxu0 %v4098
        %4152 = vmatpush2.bf16.msra.mxu0 %v4097
        %4153 = vmatprep.subr.bf16.mxu0 %v4096
        %4154 = vmatpush2.bf16.msra.mxu0 %v4095
        %4155 = vmatprep.subr.bf16.mxu0 %v4094
        %4156 = vmatpush2.bf16.msra.mxu0 %v4093
        %4157 = vmatprep.subr.bf16.mxu0 %v4092
        %4158 = vmatpush2.bf16.msra.mxu0 %v4091
        %4159 = vmatprep.subr.bf16.mxu0 %v4090
        %4160 = vmatpush2.bf16.msra.mxu0 %v4089
        %4161 = vmatprep.subr.bf16.mxu0 %v4088
        %4162 = vmatpush2.bf16.msra.mxu0 %v4087
        %4163 = vmatprep.subr.bf16.mxu0 %v4086
        %4164 = vmatpush2.bf16.msra.mxu0 %v4085
        %4165 = vmatprep.mubr.bf16.mxu0 %v3970
        %4166 = vmatmul.mubr.bf16.gmra.mxu0 %v3969
        %v4167 = vpop.f32.mrf.mxu0
        %v4168 = vadd.f32 %v3961, %v4167
        %v4169 = vpop.f32.mrf.mxu0
        %v4170 = vadd.f32 %v3962, %v4169
        %v4171 = vpop.f32.mrf.mxu0
        %v4172 = vadd.f32 %v3963, %v4171
        %v4173 = vpop.f32.mrf.mxu0
        %v4174 = vadd.f32 %v3964, %v4173
        %4175 = vmatprep.mubr.bf16.mxu0 %v3972
        %4176 = vmatmul.mubr.bf16.gmra.mxu0 %v3971
        %v4177 = vpop.f32.mrf.mxu0
        %v4178 = vadd.f32 %v3965, %v4177
        %v4179 = vpop.f32.mrf.mxu0
        %v4180 = vadd.f32 %v3966, %v4179
        %v4181 = vpop.f32.mrf.mxu0
        %v4182 = vadd.f32 %v3967, %v4181
        %v4183 = vpop.f32.mrf.mxu0
        %v4184 = vadd.f32 %v3968, %v4183
        %4185 = vdwg.mxu0
        %v4186 = vmul.f32 %v3819, %v4168
        %v4187 = vmul.f32 %v3820, %v4170
        %v4188 = vmul.f32 %v3821, %v4172
        %v4189 = vmul.f32 %v3822, %v4174
        %v4190 = vmul.f32 %v3823, %v4178
        %v4191 = vmul.f32 %v3824, %v4180
        %v4192 = vmul.f32 %v3825, %v4182
        %v4193 = vmul.f32 %v3826, %v4184
        %s4194 = scalar_lea.vmem %s3, 80
        %v4195 = vld [vmem:[%s4194] sm:$0xf]
        %v4196 = vld [vmem:[%s4194 + $0x4] sm:$0xf]
        %v4197 = vld [vmem:[%s4194 + $0x8] sm:$0xf]
        %v4198 = vld [vmem:[%s4194 + $0xc] sm:$0xf]
        %v4199 = vpack.c.bf16 %v4188, %v4186
        %v4200 = vpack.c.bf16 %v4189, %v4187
        %v4201 = vpack.c.bf16 %v4192, %v4190
        %v4202 = vpack.c.bf16 %v4193, %v4191
        %4203 = vset.pattern.permute.xlu0 12
        %4204 = vperm.xlu0 %4203, %v348
        %v4205 = vpop.permute.xlu0 %4204
        %4207 = vset.pattern.permute.xlu0 12
        %4208 = vperm.xlu0 %4207, %v349
        %v4209 = vpop.permute.xlu0 %4208
        %4211 = vset.pattern.permute.xlu0 12
        %4212 = vperm.xlu0 %4211, %v350
        %v4213 = vpop.permute.xlu0 %4212
        %4215 = vset.pattern.permute.xlu0 12
        %4216 = vperm.xlu0 %4215, %v351
        %v4217 = vpop.permute.xlu0 %4216
        %v4223 = vunpack.c.l.b16 %v4195
        %v4224 = vunpack.c.l.b16 %v4196
        %v4225 = vunpack.c.l.b16 %v4197
        %v4226 = vunpack.c.l.b16 %v4198
        %v4227 = vpack.c.b16 %v4224, %v4223
        %v4228 = vpack.c.b16 %v4226, %v4225
        %v4230 = vsel %vm394, %v4227, 0
        %v4233 = vsel %vm394, %v4228, 0
        %4235 = vmatprep.subr.bf16.mxu0 0
        %4236 = vmatpush1.bf16.msra.mxu0 0
        %4237 = vmatprep.subr.bf16.mxu0 0
        %4238 = vmatpush1.bf16.msra.mxu0 0
        %4239 = vmatprep.subr.bf16.mxu0 0
        %4240 = vmatpush1.bf16.msra.mxu0 0
        %4241 = vmatprep.subr.bf16.mxu0 0
        %4242 = vmatpush1.bf16.msra.mxu0 0
        %4243 = vmatprep.subr.bf16.mxu0 0
        %4244 = vmatpush1.bf16.msra.mxu0 0
        %4245 = vmatprep.subr.bf16.mxu0 0
        %4246 = vmatpush1.bf16.msra.mxu0 0
        %4247 = vmatprep.subr.bf16.mxu0 %v4202
        %4248 = vmatpush1.bf16.msra.mxu0 %v4201
        %4249 = vmatprep.subr.bf16.mxu0 %v4200
        %4250 = vmatpush1.bf16.msra.mxu0 %v4199
        %4251 = vmatprep.subr.bf16.mxu0 0
        %4252 = vmatpush2.bf16.msra.mxu0 0
        %4253 = vmatprep.subr.bf16.mxu0 0
        %4254 = vmatpush2.bf16.msra.mxu0 0
        %4255 = vmatprep.subr.bf16.mxu0 0
        %4256 = vmatpush2.bf16.msra.mxu0 0
        %4257 = vmatprep.subr.bf16.mxu0 0
        %4258 = vmatpush2.bf16.msra.mxu0 0
        %4259 = vmatprep.subr.bf16.mxu0 0
        %4260 = vmatpush2.bf16.msra.mxu0 0
        %4261 = vmatprep.subr.bf16.mxu0 0
        %4262 = vmatpush2.bf16.msra.mxu0 0
        %4263 = vmatprep.subr.bf16.mxu0 0
        %4264 = vmatpush2.bf16.msra.mxu0 0
        %4265 = vmatprep.subr.bf16.mxu0 0
        %4266 = vmatpush2.bf16.msra.mxu0 0
        %4267 = vmatprep.mubr.bf16.mxu0 0
        %4268 = vmatmul.mubr.bf16.gmra.mxu0 %v4230
        %v4269 = vpop.f32.mrf.mxu0
        %v4270 = vadd.f32 %v4205, %v4269
        %v4271 = vpop.f32.mrf.mxu0
        %v4272 = vadd.f32 %v4205, %v4271
        %v4273 = vpop.f32.mrf.mxu0
        %v4274 = vadd.f32 %v4209, %v4273
        %v4275 = vpop.f32.mrf.mxu0
        %v4276 = vadd.f32 %v4209, %v4275
        %4277 = vmatprep.mubr.bf16.mxu0 0
        %4278 = vmatmul.mubr.bf16.gmra.mxu0 %v4233
        %v4279 = vpop.f32.mrf.mxu0
        %v4280 = vadd.f32 %v4213, %v4279
        %v4281 = vpop.f32.mrf.mxu0
        %v4282 = vadd.f32 %v4213, %v4281
        %v4283 = vpop.f32.mrf.mxu0
        %v4284 = vadd.f32 %v4217, %v4283
        %v4285 = vpop.f32.mrf.mxu0
        %v4286 = vadd.f32 %v4217, %v4285
        %4287 = vdwg.mxu0
        %v4288 = vadd.f32 %v3457, %v4270
        %v4289 = vadd.f32 %v3458, %v4272
        %v4290 = vadd.f32 %v3459, %v4274
        %v4291 = vadd.f32 %v3460, %v4276
        %v4292 = vadd.f32 %v3461, %v4280
        %v4293 = vadd.f32 %v3462, %v4282
        %v4294 = vadd.f32 %v3463, %v4284
        %v4295 = vadd.f32 %v3464, %v4286
        %v4296 = vadd.f32 %v3465, %v3467
        %v4297 = vadd.f32 %v4296, %v3469
        %v4298 = vadd.f32 %v4297, %v3471
        %v4299 = vrot.slane %v4298, 4
        %v4300 = vadd.f32 %v4298, %v4299
        %v4301 = vrot.slane %v4300, 2
        %v4302 = vadd.f32 %v4300, %v4301
        %v4303 = vrot.slane %v4302, 1
        %v4304 = vadd.f32 %v4302, %v4303
        %v4305 = vadd.f32 %v3466, %v3468
        %v4306 = vadd.f32 %v4305, %v3470
        %v4307 = vadd.f32 %v4306, %v3472
        %v4308 = vrot.slane %v4307, 4
        %v4309 = vadd.f32 %v4307, %v4308
        %v4310 = vrot.slane %v4309, 2
        %v4311 = vadd.f32 %v4309, %v4310
        %v4312 = vrot.slane %v4311, 1
        %v4313 = vadd.f32 %v4311, %v4312
        %v4314 = vmul.f32 %v4304, %v480
        %v4315 = vmul.f32 %v4313, %v480
        %v4316 = vsub.f32 %v3465, %v4314
        %v4317 = vsub.f32 %v3466, %v4315
        %v4318 = vsub.f32 %v3467, %v4314
        %v4319 = vsub.f32 %v3468, %v4315
        %v4320 = vsub.f32 %v3469, %v4314
        %v4321 = vsub.f32 %v3470, %v4315
        %v4322 = vsub.f32 %v3471, %v4314
        %v4323 = vsub.f32 %v3472, %v4315
        %v4324 = vmul.f32 %v4316, %v4316
        %v4325 = vmul.f32 %v4317, %v4317
        %v4326 = vmul.f32 %v4318, %v4318
        %v4327 = vmul.f32 %v4319, %v4319
        %v4328 = vmul.f32 %v4320, %v4320
        %v4329 = vmul.f32 %v4321, %v4321
        %v4330 = vmul.f32 %v4322, %v4322
        %v4331 = vmul.f32 %v4323, %v4323
        %v4332 = vadd.f32 %v4324, %v4326
        %v4333 = vadd.f32 %v4332, %v4328
        %v4334 = vadd.f32 %v4333, %v4330
        %v4335 = vrot.slane %v4334, 4
        %v4336 = vadd.f32 %v4334, %v4335
        %v4337 = vrot.slane %v4336, 2
        %v4338 = vadd.f32 %v4336, %v4337
        %v4339 = vrot.slane %v4338, 1
        %v4340 = vadd.f32 %v4338, %v4339
        %v4341 = vadd.f32 %v4325, %v4327
        %v4342 = vadd.f32 %v4341, %v4329
        %v4343 = vadd.f32 %v4342, %v4331
        %v4344 = vrot.slane %v4343, 4
        %v4345 = vadd.f32 %v4343, %v4344
        %v4346 = vrot.slane %v4345, 2
        %v4347 = vadd.f32 %v4345, %v4346
        %v4348 = vrot.slane %v4347, 1
        %v4349 = vadd.f32 %v4347, %v4348
        %v4350 = vmul.f32 %v4340, %v480
        %v4351 = vmul.f32 %v4349, %v480
        %v4352 = vadd.f32 %v4350, 1e-06
        %v4353 = vadd.f32 %v4351, 1e-06
        %v4354 = vrsqrt.pop %v4352
        %v4355 = vrsqrt.pop %v4353
        %v4356 = vmul.f32 %v4316, %v4354
        %v4357 = vmul.f32 %v4317, %v4355
        %v4358 = vmul.f32 %v4318, %v4354
        %v4359 = vmul.f32 %v4319, %v4355
        %v4360 = vmul.f32 %v4320, %v4354
        %v4361 = vmul.f32 %v4321, %v4355
        %v4362 = vmul.f32 %v4322, %v4354
        %v4363 = vmul.f32 %v4323, %v4355
        %s4364 = scalar_lea.vmem %s4, 160
        %v4365 = vld [vmem:[%s4364] sm:$0xf]
        %v4366 = vld [vmem:[%s4364 + $0x4] sm:$0xf]
        %v4367 = vld [vmem:[%s4364 + $0x8] sm:$0xf]
        %v4368 = vld [vmem:[%s4364 + $0xc] sm:$0xf]
        %v4369 = vld [vmem:[%s4364 + $0x10] sm:$0xf]
        %v4370 = vld [vmem:[%s4364 + $0x14] sm:$0xf]
        %v4371 = vld [vmem:[%s4364 + $0x18] sm:$0xf]
        %v4372 = vld [vmem:[%s4364 + $0x1c] sm:$0xf]
        %v4373 = vpack.c.bf16 %v4358, %v4356
        %v4374 = vpack.c.bf16 %v4359, %v4357
        %v4375 = vpack.c.bf16 %v4362, %v4360
        %v4376 = vpack.c.bf16 %v4363, %v4361
        %4377 = vset.pattern.permute.xlu0 13
        %4378 = vperm.xlu0 %4377, %v348
        %v4379 = vpop.permute.xlu0 %4378
        %4381 = vset.pattern.permute.xlu0 13
        %4382 = vperm.xlu0 %4381, %v349
        %v4383 = vpop.permute.xlu0 %4382
        %4385 = vset.pattern.permute.xlu0 13
        %4386 = vperm.xlu0 %4385, %v350
        %v4387 = vpop.permute.xlu0 %4386
        %4389 = vset.pattern.permute.xlu0 13
        %4390 = vperm.xlu0 %4389, %v351
        %v4391 = vpop.permute.xlu0 %4390
        %4393 = vset.pattern.permute.xlu0 13
        %4394 = vperm.xlu0 %4393, %v352
        %v4395 = vpop.permute.xlu0 %4394
        %4397 = vset.pattern.permute.xlu0 13
        %4398 = vperm.xlu0 %4397, %v353
        %v4399 = vpop.permute.xlu0 %4398
        %4401 = vset.pattern.permute.xlu0 13
        %4402 = vperm.xlu0 %4401, %v354
        %v4403 = vpop.permute.xlu0 %4402
        %4405 = vset.pattern.permute.xlu0 13
        %4406 = vperm.xlu0 %4405, %v355
        %v4407 = vpop.permute.xlu0 %4406
        %v4417 = vunpack.c.l.b16 %v4365
        %v4418 = vunpack.c.l.b16 %v4366
        %v4419 = vunpack.c.l.b16 %v4367
        %v4420 = vunpack.c.l.b16 %v4368
        %v4421 = vunpack.c.l.b16 %v4369
        %v4422 = vunpack.c.l.b16 %v4370
        %v4423 = vunpack.c.l.b16 %v4371
        %v4424 = vunpack.c.l.b16 %v4372
        %v4425 = vpack.c.b16 %v4418, %v4417
        %v4426 = vpack.c.b16 %v4420, %v4419
        %v4427 = vpack.c.b16 %v4422, %v4421
        %v4428 = vpack.c.b16 %v4424, %v4423
        %v4430 = vsel %vm394, %v4425, 0
        %v4433 = vsel %vm394, %v4426, 0
        %v4436 = vsel %vm394, %v4427, 0
        %v4439 = vsel %vm394, %v4428, 0
        %4441 = vmatprep.subr.bf16.mxu0 0
        %4442 = vmatpush1.bf16.msra.mxu0 0
        %4443 = vmatprep.subr.bf16.mxu0 0
        %4444 = vmatpush1.bf16.msra.mxu0 0
        %4445 = vmatprep.subr.bf16.mxu0 0
        %4446 = vmatpush1.bf16.msra.mxu0 0
        %4447 = vmatprep.subr.bf16.mxu0 0
        %4448 = vmatpush1.bf16.msra.mxu0 0
        %4449 = vmatprep.subr.bf16.mxu0 0
        %4450 = vmatpush1.bf16.msra.mxu0 0
        %4451 = vmatprep.subr.bf16.mxu0 0
        %4452 = vmatpush1.bf16.msra.mxu0 0
        %4453 = vmatprep.subr.bf16.mxu0 %v4376
        %4454 = vmatpush1.bf16.msra.mxu0 %v4375
        %4455 = vmatprep.subr.bf16.mxu0 %v4374
        %4456 = vmatpush1.bf16.msra.mxu0 %v4373
        %4457 = vmatprep.subr.bf16.mxu0 0
        %4458 = vmatpush2.bf16.msra.mxu0 0
        %4459 = vmatprep.subr.bf16.mxu0 0
        %4460 = vmatpush2.bf16.msra.mxu0 0
        %4461 = vmatprep.subr.bf16.mxu0 0
        %4462 = vmatpush2.bf16.msra.mxu0 0
        %4463 = vmatprep.subr.bf16.mxu0 0
        %4464 = vmatpush2.bf16.msra.mxu0 0
        %4465 = vmatprep.subr.bf16.mxu0 0
        %4466 = vmatpush2.bf16.msra.mxu0 0
        %4467 = vmatprep.subr.bf16.mxu0 0
        %4468 = vmatpush2.bf16.msra.mxu0 0
        %4469 = vmatprep.subr.bf16.mxu0 0
        %4470 = vmatpush2.bf16.msra.mxu0 0
        %4471 = vmatprep.subr.bf16.mxu0 0
        %4472 = vmatpush2.bf16.msra.mxu0 0
        %4473 = vmatprep.mubr.bf16.mxu0 0
        %4474 = vmatmul.mubr.bf16.gmra.mxu0 %v4430
        %v4475 = vpop.f32.mrf.mxu0
        %v4476 = vadd.f32 %v4379, %v4475
        %v4477 = vpop.f32.mrf.mxu0
        %v4478 = vadd.f32 %v4379, %v4477
        %v4479 = vpop.f32.mrf.mxu0
        %v4480 = vadd.f32 %v4383, %v4479
        %v4481 = vpop.f32.mrf.mxu0
        %v4482 = vadd.f32 %v4383, %v4481
        %4483 = vmatprep.mubr.bf16.mxu0 0
        %4484 = vmatmul.mubr.bf16.gmra.mxu0 %v4433
        %v4485 = vpop.f32.mrf.mxu0
        %v4486 = vadd.f32 %v4387, %v4485
        %v4487 = vpop.f32.mrf.mxu0
        %v4488 = vadd.f32 %v4387, %v4487
        %v4489 = vpop.f32.mrf.mxu0
        %v4490 = vadd.f32 %v4391, %v4489
        %v4491 = vpop.f32.mrf.mxu0
        %v4492 = vadd.f32 %v4391, %v4491
        %4493 = vmatprep.mubr.bf16.mxu0 0
        %4494 = vmatmul.mubr.bf16.gmra.mxu0 %v4436
        %v4495 = vpop.f32.mrf.mxu0
        %v4496 = vadd.f32 %v4395, %v4495
        %v4497 = vpop.f32.mrf.mxu0
        %v4498 = vadd.f32 %v4395, %v4497
        %v4499 = vpop.f32.mrf.mxu0
        %v4500 = vadd.f32 %v4399, %v4499
        %v4501 = vpop.f32.mrf.mxu0
        %v4502 = vadd.f32 %v4399, %v4501
        %4503 = vmatprep.mubr.bf16.mxu0 0
        %4504 = vmatmul.mubr.bf16.gmra.mxu0 %v4439
        %v4505 = vpop.f32.mrf.mxu0
        %v4506 = vadd.f32 %v4403, %v4505
        %v4507 = vpop.f32.mrf.mxu0
        %v4508 = vadd.f32 %v4403, %v4507
        %v4509 = vpop.f32.mrf.mxu0
        %v4510 = vadd.f32 %v4407, %v4509
        %v4511 = vpop.f32.mrf.mxu0
        %v4512 = vadd.f32 %v4407, %v4511
        %4513 = vdwg.mxu0
        %v4514 = vmul.f32 %v4476, %v4476
        %v4515 = vmul.f32 %v4478, %v4478
        %v4516 = vmul.f32 %v4480, %v4480
        %v4517 = vmul.f32 %v4482, %v4482
        %v4518 = vmul.f32 %v4486, %v4486
        %v4519 = vmul.f32 %v4488, %v4488
        %v4520 = vmul.f32 %v4490, %v4490
        %v4521 = vmul.f32 %v4492, %v4492
        %v4522 = vmul.f32 %v4496, %v4496
        %v4523 = vmul.f32 %v4498, %v4498
        %v4524 = vmul.f32 %v4500, %v4500
        %v4525 = vmul.f32 %v4502, %v4502
        %v4526 = vmul.f32 %v4506, %v4506
        %v4527 = vmul.f32 %v4508, %v4508
        %v4528 = vmul.f32 %v4510, %v4510
        %v4529 = vmul.f32 %v4512, %v4512
        %v4530 = vmul.f32 %v4476, %v4514
        %v4531 = vmul.f32 %v4478, %v4515
        %v4532 = vmul.f32 %v4480, %v4516
        %v4533 = vmul.f32 %v4482, %v4517
        %v4534 = vmul.f32 %v4486, %v4518
        %v4535 = vmul.f32 %v4488, %v4519
        %v4536 = vmul.f32 %v4490, %v4520
        %v4537 = vmul.f32 %v4492, %v4521
        %v4538 = vmul.f32 %v4496, %v4522
        %v4539 = vmul.f32 %v4498, %v4523
        %v4540 = vmul.f32 %v4500, %v4524
        %v4541 = vmul.f32 %v4502, %v4525
        %v4542 = vmul.f32 %v4506, %v4526
        %v4543 = vmul.f32 %v4508, %v4527
        %v4544 = vmul.f32 %v4510, %v4528
        %v4545 = vmul.f32 %v4512, %v4529
        %v4546 = vmul.f32 %v4530, 0.044715
        %v4547 = vmul.f32 %v4531, 0.044715
        %v4548 = vmul.f32 %v4532, 0.044715
        %v4549 = vmul.f32 %v4533, 0.044715
        %v4550 = vmul.f32 %v4534, 0.044715
        %v4551 = vmul.f32 %v4535, 0.044715
        %v4552 = vmul.f32 %v4536, 0.044715
        %v4553 = vmul.f32 %v4537, 0.044715
        %v4554 = vmul.f32 %v4538, 0.044715
        %v4555 = vmul.f32 %v4539, 0.044715
        %v4556 = vmul.f32 %v4540, 0.044715
        %v4557 = vmul.f32 %v4541, 0.044715
        %v4558 = vmul.f32 %v4542, 0.044715
        %v4559 = vmul.f32 %v4543, 0.044715
        %v4560 = vmul.f32 %v4544, 0.044715
        %v4561 = vmul.f32 %v4545, 0.044715
        %v4562 = vadd.f32 %v4476, %v4546
        %v4563 = vadd.f32 %v4478, %v4547
        %v4564 = vadd.f32 %v4480, %v4548
        %v4565 = vadd.f32 %v4482, %v4549
        %v4566 = vadd.f32 %v4486, %v4550
        %v4567 = vadd.f32 %v4488, %v4551
        %v4568 = vadd.f32 %v4490, %v4552
        %v4569 = vadd.f32 %v4492, %v4553
        %v4570 = vadd.f32 %v4496, %v4554
        %v4571 = vadd.f32 %v4498, %v4555
        %v4572 = vadd.f32 %v4500, %v4556
        %v4573 = vadd.f32 %v4502, %v4557
        %v4574 = vadd.f32 %v4506, %v4558
        %v4575 = vadd.f32 %v4508, %v4559
        %v4576 = vadd.f32 %v4510, %v4560
        %v4577 = vadd.f32 %v4512, %v4561
        %v4578 = vmul.f32 %v4562, 0.7978846
        %v4579 = vmul.f32 %v4563, 0.7978846
        %v4580 = vmul.f32 %v4564, 0.7978846
        %v4581 = vmul.f32 %v4565, 0.7978846
        %v4582 = vmul.f32 %v4566, 0.7978846
        %v4583 = vmul.f32 %v4567, 0.7978846
        %v4584 = vmul.f32 %v4568, 0.7978846
        %v4585 = vmul.f32 %v4569, 0.7978846
        %v4586 = vmul.f32 %v4570, 0.7978846
        %v4587 = vmul.f32 %v4571, 0.7978846
        %v4588 = vmul.f32 %v4572, 0.7978846
        %v4589 = vmul.f32 %v4573, 0.7978846
        %v4590 = vmul.f32 %v4574, 0.7978846
        %v4591 = vmul.f32 %v4575, 0.7978846
        %v4592 = vmul.f32 %v4576, 0.7978846
        %v4593 = vmul.f32 %v4577, 0.7978846
        %v4594 = vtanh.pop %v4578
        %v4595 = vtanh.pop %v4579
        %v4596 = vtanh.pop %v4580
        %v4597 = vtanh.pop %v4581
        %v4598 = vtanh.pop %v4582
        %v4599 = vtanh.pop %v4583
        %v4600 = vtanh.pop %v4584
        %v4601 = vtanh.pop %v4585
        %v4602 = vtanh.pop %v4586
        %v4603 = vtanh.pop %v4587
        %v4604 = vtanh.pop %v4588
        %v4605 = vtanh.pop %v4589
        %v4606 = vtanh.pop %v4590
        %v4607 = vtanh.pop %v4591
        %v4608 = vtanh.pop %v4592
        %v4609 = vtanh.pop %v4593
        %v4610 = vadd.f32 %v4594, 1.0
        %v4611 = vadd.f32 %v4595, 1.0
        %v4612 = vadd.f32 %v4596, 1.0
        %v4613 = vadd.f32 %v4597, 1.0
        %v4614 = vadd.f32 %v4598, 1.0
        %v4615 = vadd.f32 %v4599, 1.0
        %v4616 = vadd.f32 %v4600, 1.0
        %v4617 = vadd.f32 %v4601, 1.0
        %v4618 = vadd.f32 %v4602, 1.0
        %v4619 = vadd.f32 %v4603, 1.0
        %v4620 = vadd.f32 %v4604, 1.0
        %v4621 = vadd.f32 %v4605, 1.0
        %v4622 = vadd.f32 %v4606, 1.0
        %v4623 = vadd.f32 %v4607, 1.0
        %v4624 = vadd.f32 %v4608, 1.0
        %v4625 = vadd.f32 %v4609, 1.0
        %v4626 = vmul.f32 %v4610, 0.5
        %v4627 = vmul.f32 %v4611, 0.5
        %v4628 = vmul.f32 %v4612, 0.5
        %v4629 = vmul.f32 %v4613, 0.5
        %v4630 = vmul.f32 %v4614, 0.5
        %v4631 = vmul.f32 %v4615, 0.5
        %v4632 = vmul.f32 %v4616, 0.5
        %v4633 = vmul.f32 %v4617, 0.5
        %v4634 = vmul.f32 %v4618, 0.5
        %v4635 = vmul.f32 %v4619, 0.5
        %v4636 = vmul.f32 %v4620, 0.5
        %v4637 = vmul.f32 %v4621, 0.5
        %v4638 = vmul.f32 %v4622, 0.5
        %v4639 = vmul.f32 %v4623, 0.5
        %v4640 = vmul.f32 %v4624, 0.5
        %v4641 = vmul.f32 %v4625, 0.5
        %v4642 = vmul.f32 %v4476, %v4626
        %v4643 = vmul.f32 %v4478, %v4627
        %v4644 = vmul.f32 %v4480, %v4628
        %v4645 = vmul.f32 %v4482, %v4629
        %v4646 = vmul.f32 %v4486, %v4630
        %v4647 = vmul.f32 %v4488, %v4631
        %v4648 = vmul.f32 %v4490, %v4632
        %v4649 = vmul.f32 %v4492, %v4633
        %v4650 = vmul.f32 %v4496, %v4634
        %v4651 = vmul.f32 %v4498, %v4635
        %v4652 = vmul.f32 %v4500, %v4636
        %v4653 = vmul.f32 %v4502, %v4637
        %v4654 = vmul.f32 %v4506, %v4638
        %v4655 = vmul.f32 %v4508, %v4639
        %v4656 = vmul.f32 %v4510, %v4640
        %v4657 = vmul.f32 %v4512, %v4641
        %v4658 = vadd.f32 %v4650, %v4652
        %v4659 = vadd.f32 %v4658, %v4654
        %v4660 = vadd.f32 %v4659, %v4656
        %v4661 = vrot.slane %v4660, 4
        %v4662 = vadd.f32 %v4660, %v4661
        %v4663 = vrot.slane %v4662, 2
        %v4664 = vadd.f32 %v4662, %v4663
        %v4665 = vrot.slane %v4664, 1
        %v4666 = vadd.f32 %v4664, %v4665
        %v4667 = vadd.f32 %v4651, %v4653
        %v4668 = vadd.f32 %v4667, %v4655
        %v4669 = vadd.f32 %v4668, %v4657
        %v4670 = vrot.slane %v4669, 4
        %v4671 = vadd.f32 %v4669, %v4670
        %v4672 = vrot.slane %v4671, 2
        %v4673 = vadd.f32 %v4671, %v4672
        %v4674 = vrot.slane %v4673, 1
        %v4675 = vadd.f32 %v4673, %v4674
        %v4676 = vmul.f32 %v4666, %v480
        %v4677 = vmul.f32 %v4675, %v480
        %v4678 = vsub.f32 %v4650, %v4676
        %v4679 = vsub.f32 %v4651, %v4677
        %v4680 = vsub.f32 %v4652, %v4676
        %v4681 = vsub.f32 %v4653, %v4677
        %v4682 = vsub.f32 %v4654, %v4676
        %v4683 = vsub.f32 %v4655, %v4677
        %v4684 = vsub.f32 %v4656, %v4676
        %v4685 = vsub.f32 %v4657, %v4677
        %v4686 = vmul.f32 %v4678, %v4678
        %v4687 = vmul.f32 %v4679, %v4679
        %v4688 = vmul.f32 %v4680, %v4680
        %v4689 = vmul.f32 %v4681, %v4681
        %v4690 = vmul.f32 %v4682, %v4682
        %v4691 = vmul.f32 %v4683, %v4683
        %v4692 = vmul.f32 %v4684, %v4684
        %v4693 = vmul.f32 %v4685, %v4685
        %v4694 = vadd.f32 %v4686, %v4688
        %v4695 = vadd.f32 %v4694, %v4690
        %v4696 = vadd.f32 %v4695, %v4692
        %v4697 = vrot.slane %v4696, 4
        %v4698 = vadd.f32 %v4696, %v4697
        %v4699 = vrot.slane %v4698, 2
        %v4700 = vadd.f32 %v4698, %v4699
        %v4701 = vrot.slane %v4700, 1
        %v4702 = vadd.f32 %v4700, %v4701
        %v4703 = vadd.f32 %v4687, %v4689
        %v4704 = vadd.f32 %v4703, %v4691
        %v4705 = vadd.f32 %v4704, %v4693
        %v4706 = vrot.slane %v4705, 4
        %v4707 = vadd.f32 %v4705, %v4706
        %v4708 = vrot.slane %v4707, 2
        %v4709 = vadd.f32 %v4707, %v4708
        %v4710 = vrot.slane %v4709, 1
        %v4711 = vadd.f32 %v4709, %v4710
        %v4712 = vmul.f32 %v4702, %v480
        %v4713 = vmul.f32 %v4711, %v480
        %v4714 = vadd.f32 %v4712, 1e-06
        %v4715 = vadd.f32 %v4713, 1e-06
        %v4716 = vrsqrt.pop %v4714
        %v4717 = vrsqrt.pop %v4715
        %v4718 = vmul.f32 %v4678, %v4716
        %v4719 = vmul.f32 %v4679, %v4717
        %v4720 = vmul.f32 %v4680, %v4716
        %v4721 = vmul.f32 %v4681, %v4717
        %v4722 = vmul.f32 %v4682, %v4716
        %v4723 = vmul.f32 %v4683, %v4717
        %v4724 = vmul.f32 %v4684, %v4716
        %v4725 = vmul.f32 %v4685, %v4717
        %4726 = vset.pattern.permute.xlu0 14
        %4727 = vperm.xlu0 %4726, %v348
        %v4728 = vpop.permute.xlu0 %4727
        %4730 = vset.pattern.permute.xlu0 14
        %4731 = vperm.xlu0 %4730, %v349
        %v4732 = vpop.permute.xlu0 %4731
        %4734 = vset.pattern.permute.xlu0 14
        %4735 = vperm.xlu0 %4734, %v350
        %v4736 = vpop.permute.xlu0 %4735
        %4738 = vset.pattern.permute.xlu0 14
        %4739 = vperm.xlu0 %4738, %v351
        %v4740 = vpop.permute.xlu0 %4739
        %v4742 = vmul.f32 %v4718, %v4728
        %v4743 = vmul.f32 %v4719, %v4728
        %v4744 = vmul.f32 %v4720, %v4732
        %v4745 = vmul.f32 %v4721, %v4732
        %v4746 = vmul.f32 %v4722, %v4736
        %v4747 = vmul.f32 %v4723, %v4736
        %v4748 = vmul.f32 %v4724, %v4740
        %v4749 = vmul.f32 %v4725, %v4740
        %s4750 = scalar_lea.vmem [#allocation5], 768
        %v4751 = vld [vmem:[%s4750] sm:$0xff]
        %v4752 = vld [vmem:[%s4750 + $0x8] sm:$0xff]
        %v4753 = vld [vmem:[%s4750 + $0x10] sm:$0xff]
        %v4754 = vld [vmem:[%s4750 + $0x18] sm:$0xff]
        %v4755 = vld [vmem:[%s4750 + $0x20] sm:$0xff]
        %v4756 = vld [vmem:[%s4750 + $0x28] sm:$0xff]
        %v4757 = vld [vmem:[%s4750 + $0x30] sm:$0xff]
        %v4758 = vld [vmem:[%s4750 + $0x38] sm:$0xff]
        %v4759 = vld [vmem:[%s4750 + $0x40] sm:$0xff]
        %v4760 = vld [vmem:[%s4750 + $0x48] sm:$0xff]
        %v4761 = vld [vmem:[%s4750 + $0x50] sm:$0xff]
        %v4762 = vld [vmem:[%s4750 + $0x58] sm:$0xff]
        %v4763 = vld [vmem:[%s4750 + $0x60] sm:$0xff]
        %v4764 = vld [vmem:[%s4750 + $0x68] sm:$0xff]
        %v4765 = vld [vmem:[%s4750 + $0x70] sm:$0xff]
        %v4766 = vld [vmem:[%s4750 + $0x78] sm:$0xff]
        %v4767 = vld [vmem:[%s4750 + $0x80] sm:$0xff]
        %v4768 = vld [vmem:[%s4750 + $0x88] sm:$0xff]
        %v4769 = vld [vmem:[%s4750 + $0x90] sm:$0xff]
        %v4770 = vld [vmem:[%s4750 + $0x98] sm:$0xff]
        %v4771 = vld [vmem:[%s4750 + $0xa0] sm:$0xff]
        %v4772 = vld [vmem:[%s4750 + $0xa8] sm:$0xff]
        %v4773 = vld [vmem:[%s4750 + $0xb0] sm:$0xff]
        %v4774 = vld [vmem:[%s4750 + $0xb8] sm:$0xff]
        %v4775 = vld [vmem:[%s4750 + $0xc0] sm:$0xff]
        %v4776 = vld [vmem:[%s4750 + $0xc8] sm:$0xff]
        %v4777 = vld [vmem:[%s4750 + $0xd0] sm:$0xff]
        %v4778 = vld [vmem:[%s4750 + $0xd8] sm:$0xff]
        %v4779 = vld [vmem:[%s4750 + $0xe0] sm:$0xff]
        %v4780 = vld [vmem:[%s4750 + $0xe8] sm:$0xff]
        %v4781 = vld [vmem:[%s4750 + $0xf0] sm:$0xff]
        %v4782 = vld [vmem:[%s4750 + $0xf8] sm:$0xff]
        %s4783 = scalar_lea.vmem %s2, 192
        %v4784 = vld [vmem:[%s4783] sm:$0xff]
        %v4785 = vld [vmem:[%s4783 + $0x8] sm:$0xff]
        %v4786 = vld [vmem:[%s4783 + $0x10] sm:$0xff]
        %v4787 = vld [vmem:[%s4783 + $0x18] sm:$0xff]
        %v4788 = vld [vmem:[%s4783 + $0x20] sm:$0xff]
        %v4789 = vld [vmem:[%s4783 + $0x28] sm:$0xff]
        %v4790 = vld [vmem:[%s4783 + $0x30] sm:$0xff]
        %v4791 = vld [vmem:[%s4783 + $0x38] sm:$0xff]
        %v4792 = vpack.c.bf16 %v4744, %v4742
        %v4793 = vpack.c.bf16 %v4745, %v4743
        %v4794 = vpack.c.bf16 %v4748, %v4746
        %v4795 = vpack.c.bf16 %v4749, %v4747
        %v4828 = vunpack.c.l.b16 %v4751
        %v4829 = vunpack.c.h.b16 %v4751
        %v4830 = vunpack.c.l.b16 %v4752
        %v4831 = vunpack.c.h.b16 %v4752
        %v4832 = vunpack.c.l.b16 %v4753
        %v4833 = vunpack.c.h.b16 %v4753
        %v4834 = vunpack.c.l.b16 %v4754
        %v4835 = vunpack.c.h.b16 %v4754
        %v4836 = vunpack.c.l.b16 %v4755
        %v4837 = vunpack.c.h.b16 %v4755
        %v4838 = vunpack.c.l.b16 %v4756
        %v4839 = vunpack.c.h.b16 %v4756
        %v4840 = vunpack.c.l.b16 %v4757
        %v4841 = vunpack.c.h.b16 %v4757
        %v4842 = vunpack.c.l.b16 %v4758
        %v4843 = vunpack.c.h.b16 %v4758
        %v4844 = vunpack.c.l.b16 %v4759
        %v4845 = vunpack.c.h.b16 %v4759
        %v4846 = vunpack.c.l.b16 %v4760
        %v4847 = vunpack.c.h.b16 %v4760
        %v4848 = vunpack.c.l.b16 %v4761
        %v4849 = vunpack.c.h.b16 %v4761
        %v4850 = vunpack.c.l.b16 %v4762
        %v4851 = vunpack.c.h.b16 %v4762
        %v4852 = vunpack.c.l.b16 %v4763
        %v4853 = vunpack.c.h.b16 %v4763
        %v4854 = vunpack.c.l.b16 %v4764
        %v4855 = vunpack.c.h.b16 %v4764
        %v4856 = vunpack.c.l.b16 %v4765
        %v4857 = vunpack.c.h.b16 %v4765
        %v4858 = vunpack.c.l.b16 %v4766
        %v4859 = vunpack.c.h.b16 %v4766
        %v4860 = vunpack.c.l.b16 %v4767
        %v4861 = vunpack.c.h.b16 %v4767
        %v4862 = vunpack.c.l.b16 %v4768
        %v4863 = vunpack.c.h.b16 %v4768
        %v4864 = vunpack.c.l.b16 %v4769
        %v4865 = vunpack.c.h.b16 %v4769
        %v4866 = vunpack.c.l.b16 %v4770
        %v4867 = vunpack.c.h.b16 %v4770
        %v4868 = vunpack.c.l.b16 %v4771
        %v4869 = vunpack.c.h.b16 %v4771
        %v4870 = vunpack.c.l.b16 %v4772
        %v4871 = vunpack.c.h.b16 %v4772
        %v4872 = vunpack.c.l.b16 %v4773
        %v4873 = vunpack.c.h.b16 %v4773
        %v4874 = vunpack.c.l.b16 %v4774
        %v4875 = vunpack.c.h.b16 %v4774
        %v4876 = vunpack.c.l.b16 %v4775
        %v4877 = vunpack.c.h.b16 %v4775
        %v4878 = vunpack.c.l.b16 %v4776
        %v4879 = vunpack.c.h.b16 %v4776
        %v4880 = vunpack.c.l.b16 %v4777
        %v4881 = vunpack.c.h.b16 %v4777
        %v4882 = vunpack.c.l.b16 %v4778
        %v4883 = vunpack.c.h.b16 %v4778
        %v4884 = vunpack.c.l.b16 %v4779
        %v4885 = vunpack.c.h.b16 %v4779
        %v4886 = vunpack.c.l.b16 %v4780
        %v4887 = vunpack.c.h.b16 %v4780
        %v4888 = vunpack.c.l.b16 %v4781
        %v4889 = vunpack.c.h.b16 %v4781
        %v4890 = vunpack.c.l.b16 %v4782
        %v4891 = vunpack.c.h.b16 %v4782
        %v4892 = vpack.c.b16 %v4830, %v4828
        %v4893 = vpack.c.b16 %v4831, %v4829
        %v4894 = vpack.c.b16 %v4834, %v4832
        %v4895 = vpack.c.b16 %v4835, %v4833
        %v4896 = vpack.c.b16 %v4838, %v4836
        %v4897 = vpack.c.b16 %v4839, %v4837
        %v4898 = vpack.c.b16 %v4842, %v4840
        %v4899 = vpack.c.b16 %v4843, %v4841
        %v4900 = vpack.c.b16 %v4846, %v4844
        %v4901 = vpack.c.b16 %v4847, %v4845
        %v4902 = vpack.c.b16 %v4850, %v4848
        %v4903 = vpack.c.b16 %v4851, %v4849
        %v4904 = vpack.c.b16 %v4854, %v4852
        %v4905 = vpack.c.b16 %v4855, %v4853
        %v4906 = vpack.c.b16 %v4858, %v4856
        %v4907 = vpack.c.b16 %v4859, %v4857
        %v4908 = vpack.c.b16 %v4862, %v4860
        %v4909 = vpack.c.b16 %v4863, %v4861
        %v4910 = vpack.c.b16 %v4866, %v4864
        %v4911 = vpack.c.b16 %v4867, %v4865
        %v4912 = vpack.c.b16 %v4870, %v4868
        %v4913 = vpack.c.b16 %v4871, %v4869
        %v4914 = vpack.c.b16 %v4874, %v4872
        %v4915 = vpack.c.b16 %v4875, %v4873
        %v4916 = vpack.c.b16 %v4878, %v4876
        %v4917 = vpack.c.b16 %v4879, %v4877
        %v4918 = vpack.c.b16 %v4882, %v4880
        %v4919 = vpack.c.b16 %v4883, %v4881
        %v4920 = vpack.c.b16 %v4886, %v4884
        %v4921 = vpack.c.b16 %v4887, %v4885
        %v4922 = vpack.c.b16 %v4890, %v4888
        %v4923 = vpack.c.b16 %v4891, %v4889
        %4956 = vmatprep.subr.bf16.mxu0 %v4907
        %4957 = vmatpush1.bf16.msra.mxu0 %v4906
        %4958 = vmatprep.subr.bf16.mxu0 %v4905
        %4959 = vmatpush1.bf16.msra.mxu0 %v4904
        %4960 = vmatprep.subr.bf16.mxu0 %v4903
        %4961 = vmatpush1.bf16.msra.mxu0 %v4902
        %4962 = vmatprep.subr.bf16.mxu0 %v4901
        %4963 = vmatpush1.bf16.msra.mxu0 %v4900
        %4964 = vmatprep.subr.bf16.mxu0 %v4899
        %4965 = vmatpush1.bf16.msra.mxu0 %v4898
        %4966 = vmatprep.subr.bf16.mxu0 %v4897
        %4967 = vmatpush1.bf16.msra.mxu0 %v4896
        %4968 = vmatprep.subr.bf16.mxu0 %v4895
        %4969 = vmatpush1.bf16.msra.mxu0 %v4894
        %4970 = vmatprep.subr.bf16.mxu0 %v4893
        %4971 = vmatpush1.bf16.msra.mxu0 %v4892
        %4972 = vmatprep.subr.bf16.mxu0 %v4923
        %4973 = vmatpush2.bf16.msra.mxu0 %v4922
        %4974 = vmatprep.subr.bf16.mxu0 %v4921
        %4975 = vmatpush2.bf16.msra.mxu0 %v4920
        %4976 = vmatprep.subr.bf16.mxu0 %v4919
        %4977 = vmatpush2.bf16.msra.mxu0 %v4918
        %4978 = vmatprep.subr.bf16.mxu0 %v4917
        %4979 = vmatpush2.bf16.msra.mxu0 %v4916
        %4980 = vmatprep.subr.bf16.mxu0 %v4915
        %4981 = vmatpush2.bf16.msra.mxu0 %v4914
        %4982 = vmatprep.subr.bf16.mxu0 %v4913
        %4983 = vmatpush2.bf16.msra.mxu0 %v4912
        %4984 = vmatprep.subr.bf16.mxu0 %v4911
        %4985 = vmatpush2.bf16.msra.mxu0 %v4910
        %4986 = vmatprep.subr.bf16.mxu0 %v4909
        %4987 = vmatpush2.bf16.msra.mxu0 %v4908
        %4988 = vmatprep.mubr.bf16.mxu0 %v4793
        %4989 = vmatmul.mubr.bf16.gmra.mxu0 %v4792
        %v4990 = vpop.f32.mrf.mxu0
        %v4991 = vadd.f32 %v4784, %v4990
        %v4992 = vpop.f32.mrf.mxu0
        %v4993 = vadd.f32 %v4785, %v4992
        %v4994 = vpop.f32.mrf.mxu0
        %v4995 = vadd.f32 %v4786, %v4994
        %v4996 = vpop.f32.mrf.mxu0
        %v4997 = vadd.f32 %v4787, %v4996
        %4998 = vmatprep.mubr.bf16.mxu0 %v4795
        %4999 = vmatmul.mubr.bf16.gmra.mxu0 %v4794
        %v5000 = vpop.f32.mrf.mxu0
        %v5001 = vadd.f32 %v4788, %v5000
        %v5002 = vpop.f32.mrf.mxu0
        %v5003 = vadd.f32 %v4789, %v5002
        %v5004 = vpop.f32.mrf.mxu0
        %v5005 = vadd.f32 %v4790, %v5004
        %v5006 = vpop.f32.mrf.mxu0
        %v5007 = vadd.f32 %v4791, %v5006
        %5008 = vdwg.mxu0
        %v5009 = vmul.f32 %v4642, %v4991
        %v5010 = vmul.f32 %v4643, %v4993
        %v5011 = vmul.f32 %v4644, %v4995
        %v5012 = vmul.f32 %v4645, %v4997
        %v5013 = vmul.f32 %v4646, %v5001
        %v5014 = vmul.f32 %v4647, %v5003
        %v5015 = vmul.f32 %v4648, %v5005
        %v5016 = vmul.f32 %v4649, %v5007
        %s5017 = scalar_lea.vmem %s3, 96
        %v5018 = vld [vmem:[%s5017] sm:$0xf]
        %v5019 = vld [vmem:[%s5017 + $0x4] sm:$0xf]
        %v5020 = vld [vmem:[%s5017 + $0x8] sm:$0xf]
        %v5021 = vld [vmem:[%s5017 + $0xc] sm:$0xf]
        %v5022 = vpack.c.bf16 %v5011, %v5009
        %v5023 = vpack.c.bf16 %v5012, %v5010
        %v5024 = vpack.c.bf16 %v5015, %v5013
        %v5025 = vpack.c.bf16 %v5016, %v5014
        %5026 = vset.pattern.permute.xlu0 15
        %5027 = vperm.xlu0 %5026, %v348
        %v5028 = vpop.permute.xlu0 %5027
        %5030 = vset.pattern.permute.xlu0 15
        %5031 = vperm.xlu0 %5030, %v349
        %v5032 = vpop.permute.xlu0 %5031
        %5034 = vset.pattern.permute.xlu0 15
        %5035 = vperm.xlu0 %5034, %v350
        %v5036 = vpop.permute.xlu0 %5035
        %5038 = vset.pattern.permute.xlu0 15
        %5039 = vperm.xlu0 %5038, %v351
        %v5040 = vpop.permute.xlu0 %5039
        %v5046 = vunpack.c.l.b16 %v5018
        %v5047 = vunpack.c.l.b16 %v5019
        %v5048 = vunpack.c.l.b16 %v5020
        %v5049 = vunpack.c.l.b16 %v5021
        %v5050 = vpack.c.b16 %v5047, %v5046
        %v5051 = vpack.c.b16 %v5049, %v5048
        %v5053 = vsel %vm394, %v5050, 0
        %v5056 = vsel %vm394, %v5051, 0
        %5058 = vmatprep.subr.bf16.mxu0 0
        %5059 = vmatpush1.bf16.msra.mxu0 0
        %5060 = vmatprep.subr.bf16.mxu0 0
        %5061 = vmatpush1.bf16.msra.mxu0 0
        %5062 = vmatprep.subr.bf16.mxu0 0
        %5063 = vmatpush1.bf16.msra.mxu0 0
        %5064 = vmatprep.subr.bf16.mxu0 0
        %5065 = vmatpush1.bf16.msra.mxu0 0
        %5066 = vmatprep.subr.bf16.mxu0 0
        %5067 = vmatpush1.bf16.msra.mxu0 0
        %5068 = vmatprep.subr.bf16.mxu0 0
        %5069 = vmatpush1.bf16.msra.mxu0 0
        %5070 = vmatprep.subr.bf16.mxu0 %v5025
        %5071 = vmatpush1.bf16.msra.mxu0 %v5024
        %5072 = vmatprep.subr.bf16.mxu0 %v5023
        %5073 = vmatpush1.bf16.msra.mxu0 %v5022
        %5074 = vmatprep.subr.bf16.mxu0 0
        %5075 = vmatpush2.bf16.msra.mxu0 0
        %5076 = vmatprep.subr.bf16.mxu0 0
        %5077 = vmatpush2.bf16.msra.mxu0 0
        %5078 = vmatprep.subr.bf16.mxu0 0
        %5079 = vmatpush2.bf16.msra.mxu0 0
        %5080 = vmatprep.subr.bf16.mxu0 0
        %5081 = vmatpush2.bf16.msra.mxu0 0
        %5082 = vmatprep.subr.bf16.mxu0 0
        %5083 = vmatpush2.bf16.msra.mxu0 0
        %5084 = vmatprep.subr.bf16.mxu0 0
        %5085 = vmatpush2.bf16.msra.mxu0 0
        %5086 = vmatprep.subr.bf16.mxu0 0
        %5087 = vmatpush2.bf16.msra.mxu0 0
        %5088 = vmatprep.subr.bf16.mxu0 0
        %5089 = vmatpush2.bf16.msra.mxu0 0
        %5090 = vmatprep.mubr.bf16.mxu0 0
        %5091 = vmatmul.mubr.bf16.gmra.mxu0 %v5053
        %v5092 = vpop.f32.mrf.mxu0
        %v5093 = vadd.f32 %v5028, %v5092
        %v5094 = vpop.f32.mrf.mxu0
        %v5095 = vadd.f32 %v5028, %v5094
        %v5096 = vpop.f32.mrf.mxu0
        %v5097 = vadd.f32 %v5032, %v5096
        %v5098 = vpop.f32.mrf.mxu0
        %v5099 = vadd.f32 %v5032, %v5098
        %5100 = vmatprep.mubr.bf16.mxu0 0
        %5101 = vmatmul.mubr.bf16.gmra.mxu0 %v5056
        %v5102 = vpop.f32.mrf.mxu0
        %v5103 = vadd.f32 %v5036, %v5102
        %v5104 = vpop.f32.mrf.mxu0
        %v5105 = vadd.f32 %v5036, %v5104
        %v5106 = vpop.f32.mrf.mxu0
        %v5107 = vadd.f32 %v5040, %v5106
        %v5108 = vpop.f32.mrf.mxu0
        %v5109 = vadd.f32 %v5040, %v5108
        %5110 = vdwg.mxu0
        %v5111 = vadd.f32 %v3465, %v5093
        %v5112 = vadd.f32 %v3466, %v5095
        %v5113 = vadd.f32 %v3467, %v5097
        %v5114 = vadd.f32 %v3468, %v5099
        %v5115 = vadd.f32 %v3469, %v5103
        %v5116 = vadd.f32 %v3470, %v5105
        %v5117 = vadd.f32 %v3471, %v5107
        %v5118 = vadd.f32 %v3472, %v5109
        %s5119 = scalar_lea.vmem %s3, 112
        %v5120 = vld [vmem:[%s5119] sm:$0xf]
        %v5121 = vld [vmem:[%s5119 + $0x4] sm:$0xf]
        %v5122 = vld [vmem:[%s5119 + $0x8] sm:$0xf]
        %v5123 = vld [vmem:[%s5119 + $0xc] sm:$0xf]
        %v5124 = vpack.c.bf16 %v4290, %v4288
        %v5125 = vpack.c.bf16 %v4291, %v4289
        %v5126 = vpack.c.bf16 %v4294, %v4292
        %v5127 = vpack.c.bf16 %v4295, %v4293
        %s5128 = scalar_lea.vmem %s3, 128
        %v5129 = vld [vmem:[%s5128] sm:$0xf]
        %v5130 = vld [vmem:[%s5128 + $0x4] sm:$0xf]
        %v5131 = vld [vmem:[%s5128 + $0x8] sm:$0xf]
        %v5132 = vld [vmem:[%s5128 + $0xc] sm:$0xf]
        %v5133 = vpack.c.bf16 %v5113, %v5111
        %v5134 = vpack.c.bf16 %v5114, %v5112
        %v5135 = vpack.c.bf16 %v5117, %v5115
        %v5136 = vpack.c.bf16 %v5118, %v5116
        %v5141 = vunpack.c.l.b16 %v5129
        %v5142 = vunpack.c.l.b16 %v5130
        %v5143 = vunpack.c.l.b16 %v5131
        %v5144 = vunpack.c.l.b16 %v5132
        %v5145 = vpack.c.b16 %v5142, %v5141
        %v5146 = vpack.c.b16 %v5144, %v5143
        %v5148 = vsel %vm394, %v5145, 0
        %v5151 = vsel %vm394, %v5146, 0
        %5153 = vmatprep.subr.bf16.mxu0 0
        %5154 = vmatpush1.bf16.msra.mxu0 0
        %5155 = vmatprep.subr.bf16.mxu0 0
        %5156 = vmatpush1.bf16.msra.mxu0 0
        %5157 = vmatprep.subr.bf16.mxu0 0
        %5158 = vmatpush1.bf16.msra.mxu0 0
        %5159 = vmatprep.subr.bf16.mxu0 0
        %5160 = vmatpush1.bf16.msra.mxu0 0
        %5161 = vmatprep.subr.bf16.mxu0 0
        %5162 = vmatpush1.bf16.msra.mxu0 0
        %5163 = vmatprep.subr.bf16.mxu0 0
        %5164 = vmatpush1.bf16.msra.mxu0 0
        %5165 = vmatprep.subr.bf16.mxu0 %v5136
        %5166 = vmatpush1.bf16.msra.mxu0 %v5135
        %5167 = vmatprep.subr.bf16.mxu0 %v5134
        %5168 = vmatpush1.bf16.msra.mxu0 %v5133
        %5169 = vmatprep.subr.bf16.mxu0 0
        %5170 = vmatpush2.bf16.msra.mxu0 0
        %5171 = vmatprep.subr.bf16.mxu0 0
        %5172 = vmatpush2.bf16.msra.mxu0 0
        %5173 = vmatprep.subr.bf16.mxu0 0
        %5174 = vmatpush2.bf16.msra.mxu0 0
        %5175 = vmatprep.subr.bf16.mxu0 0
        %5176 = vmatpush2.bf16.msra.mxu0 0
        %5177 = vmatprep.subr.bf16.mxu0 0
        %5178 = vmatpush2.bf16.msra.mxu0 0
        %5179 = vmatprep.subr.bf16.mxu0 0
        %5180 = vmatpush2.bf16.msra.mxu0 0
        %5181 = vmatprep.subr.bf16.mxu0 0
        %5182 = vmatpush2.bf16.msra.mxu0 0
        %5183 = vmatprep.subr.bf16.mxu0 0
        %5184 = vmatpush2.bf16.msra.mxu0 0
        %5185 = vmatprep.mubr.bf16.mxu0 0
        %5186 = vmatmul.mubr.bf16.gmra.mxu0 %v5148
        %v5187 = vpop.f32.mrf.mxu0
        %v5188 = vadd.f32 0.0, %v5187
        %v5189 = vpop.f32.mrf.mxu0
        %v5190 = vadd.f32 0.0, %v5189
        %v5191 = vpop.f32.mrf.mxu0
        %v5192 = vadd.f32 0.0, %v5191
        %v5193 = vpop.f32.mrf.mxu0
        %v5194 = vadd.f32 0.0, %v5193
        %5195 = vmatprep.mubr.bf16.mxu0 0
        %5196 = vmatmul.mubr.bf16.gmra.mxu0 %v5151
        %v5197 = vpop.f32.mrf.mxu0
        %v5198 = vadd.f32 0.0, %v5197
        %v5199 = vpop.f32.mrf.mxu0
        %v5200 = vadd.f32 0.0, %v5199
        %v5201 = vpop.f32.mrf.mxu0
        %v5202 = vadd.f32 0.0, %v5201
        %v5203 = vpop.f32.mrf.mxu0
        %v5204 = vadd.f32 0.0, %v5203
        %5205 = vdwg.mxu0
        %v5210 = vunpack.c.l.b16 %v5120
        %v5211 = vunpack.c.l.b16 %v5121
        %v5212 = vunpack.c.l.b16 %v5122
        %v5213 = vunpack.c.l.b16 %v5123
        %v5214 = vpack.c.b16 %v5211, %v5210
        %v5215 = vpack.c.b16 %v5213, %v5212
        %v5217 = vsel %vm394, %v5214, 0
        %v5220 = vsel %vm394, %v5215, 0
        %5222 = vmatprep.subr.bf16.mxu0 0
        %5223 = vmatpush1.bf16.msra.mxu0 0
        %5224 = vmatprep.subr.bf16.mxu0 0
        %5225 = vmatpush1.bf16.msra.mxu0 0
        %5226 = vmatprep.subr.bf16.mxu0 0
        %5227 = vmatpush1.bf16.msra.mxu0 0
        %5228 = vmatprep.subr.bf16.mxu0 0
        %5229 = vmatpush1.bf16.msra.mxu0 0
        %5230 = vmatprep.subr.bf16.mxu0 0
        %5231 = vmatpush1.bf16.msra.mxu0 0
        %5232 = vmatprep.subr.bf16.mxu0 0
        %5233 = vmatpush1.bf16.msra.mxu0 0
        %5234 = vmatprep.subr.bf16.mxu0 %v5127
        %5235 = vmatpush1.bf16.msra.mxu0 %v5126
        %5236 = vmatprep.subr.bf16.mxu0 %v5125
        %5237 = vmatpush1.bf16.msra.mxu0 %v5124
        %5238 = vmatprep.subr.bf16.mxu0 0
        %5239 = vmatpush2.bf16.msra.mxu0 0
        %5240 = vmatprep.subr.bf16.mxu0 0
        %5241 = vmatpush2.bf16.msra.mxu0 0
        %5242 = vmatprep.subr.bf16.mxu0 0
        %5243 = vmatpush2.bf16.msra.mxu0 0
        %5244 = vmatprep.subr.bf16.mxu0 0
        %5245 = vmatpush2.bf16.msra.mxu0 0
        %5246 = vmatprep.subr.bf16.mxu0 0
        %5247 = vmatpush2.bf16.msra.mxu0 0
        %5248 = vmatprep.subr.bf16.mxu0 0
        %5249 = vmatpush2.bf16.msra.mxu0 0
        %5250 = vmatprep.subr.bf16.mxu0 0
        %5251 = vmatpush2.bf16.msra.mxu0 0
        %5252 = vmatprep.subr.bf16.mxu0 0
        %5253 = vmatpush2.bf16.msra.mxu0 0
        %5254 = vmatprep.mubr.bf16.mxu0 0
        %5255 = vmatmul.mubr.bf16.gmra.mxu0 %v5217
        %v5256 = vpop.f32.mrf.mxu0
        %v5257 = vadd.f32 %v5188, %v5256
        %v5258 = vpop.f32.mrf.mxu0
        %v5259 = vadd.f32 %v5190, %v5258
        %v5260 = vpop.f32.mrf.mxu0
        %v5261 = vadd.f32 %v5192, %v5260
        %v5262 = vpop.f32.mrf.mxu0
        %v5263 = vadd.f32 %v5194, %v5262
        %5264 = vmatprep.mubr.bf16.mxu0 0
        %5265 = vmatmul.mubr.bf16.gmra.mxu0 %v5220
        %v5266 = vpop.f32.mrf.mxu0
        %v5267 = vadd.f32 %v5198, %v5266
        %v5268 = vpop.f32.mrf.mxu0
        %v5269 = vadd.f32 %v5200, %v5268
        %v5270 = vpop.f32.mrf.mxu0
        %v5271 = vadd.f32 %v5202, %v5270
        %v5272 = vpop.f32.mrf.mxu0
        %v5273 = vadd.f32 %v5204, %v5272
        %5274 = vdwg.mxu0
        %5275 = vset.pattern.permute.xlu0 16
        %5276 = vperm.xlu0 %5275, %v348
        %v5277 = vpop.permute.xlu0 %5276
        %5279 = vset.pattern.permute.xlu0 16
        %5280 = vperm.xlu0 %5279, %v349
        %v5281 = vpop.permute.xlu0 %5280
        %5283 = vset.pattern.permute.xlu0 16
        %5284 = vperm.xlu0 %5283, %v350
        %v5285 = vpop.permute.xlu0 %5284
        %5287 = vset.pattern.permute.xlu0 16
        %5288 = vperm.xlu0 %5287, %v351
        %v5289 = vpop.permute.xlu0 %5288
        %v5291 = vadd.f32 %v5257, %v5277
        %v5292 = vadd.f32 %v5259, %v5277
        %v5293 = vadd.f32 %v5261, %v5281
        %v5294 = vadd.f32 %v5263, %v5281
        %v5295 = vadd.f32 %v5267, %v5285
        %v5296 = vadd.f32 %v5269, %v5285
        %v5297 = vadd.f32 %v5271, %v5289
        %v5298 = vadd.f32 %v5273, %v5289
        %v5299 = vadd.f32 %v3103, %v5291
        %v5300 = vadd.f32 %v3104, %v5292
        %v5301 = vadd.f32 %v3105, %v5293
        %v5302 = vadd.f32 %v3106, %v5294
        %v5303 = vadd.f32 %v3107, %v5295
        %v5304 = vadd.f32 %v3108, %v5296
        %v5305 = vadd.f32 %v3109, %v5297
        %v5306 = vadd.f32 %v3110, %v5298
        %s5307 = scalar_lea.vmem %s3, 176
        %v5308 = vld [vmem:[%s5307] sm:$0xf]
        %v5309 = vld [vmem:[%s5307 + $0x4] sm:$0xf]
        %v5310 = vld [vmem:[%s5307 + $0x8] sm:$0xf]
        %v5311 = vld [vmem:[%s5307 + $0xc] sm:$0xf]
        %v5312 = vadd.f32 %v5299, %v5301
        %v5313 = vadd.f32 %v5312, %v5303
        %v5314 = vadd.f32 %v5313, %v5305
        %v5315 = vrot.slane %v5314, 4
        %v5316 = vadd.f32 %v5314, %v5315
        %v5317 = vrot.slane %v5316, 2
        %v5318 = vadd.f32 %v5316, %v5317
        %v5319 = vrot.slane %v5318, 1
        %v5320 = vadd.f32 %v5318, %v5319
        %v5321 = vadd.f32 %v5300, %v5302
        %v5322 = vadd.f32 %v5321, %v5304
        %v5323 = vadd.f32 %v5322, %v5306
        %v5324 = vrot.slane %v5323, 4
        %v5325 = vadd.f32 %v5323, %v5324
        %v5326 = vrot.slane %v5325, 2
        %v5327 = vadd.f32 %v5325, %v5326
        %v5328 = vrot.slane %v5327, 1
        %v5329 = vadd.f32 %v5327, %v5328
        %v5330 = vmul.f32 %v5320, %v480
        %v5331 = vmul.f32 %v5329, %v480
        %v5332 = vsub.f32 %v5299, %v5330
        %v5333 = vsub.f32 %v5300, %v5331
        %v5334 = vsub.f32 %v5301, %v5330
        %v5335 = vsub.f32 %v5302, %v5331
        %v5336 = vsub.f32 %v5303, %v5330
        %v5337 = vsub.f32 %v5304, %v5331
        %v5338 = vsub.f32 %v5305, %v5330
        %v5339 = vsub.f32 %v5306, %v5331
        %v5340 = vmul.f32 %v5332, %v5332
        %v5341 = vmul.f32 %v5333, %v5333
        %v5342 = vmul.f32 %v5334, %v5334
        %v5343 = vmul.f32 %v5335, %v5335
        %v5344 = vmul.f32 %v5336, %v5336
        %v5345 = vmul.f32 %v5337, %v5337
        %v5346 = vmul.f32 %v5338, %v5338
        %v5347 = vmul.f32 %v5339, %v5339
        %v5348 = vadd.f32 %v5340, %v5342
        %v5349 = vadd.f32 %v5348, %v5344
        %v5350 = vadd.f32 %v5349, %v5346
        %v5351 = vrot.slane %v5350, 4
        %v5352 = vadd.f32 %v5350, %v5351
        %v5353 = vrot.slane %v5352, 2
        %v5354 = vadd.f32 %v5352, %v5353
        %v5355 = vrot.slane %v5354, 1
        %v5356 = vadd.f32 %v5354, %v5355
        %v5357 = vadd.f32 %v5341, %v5343
        %v5358 = vadd.f32 %v5357, %v5345
        %v5359 = vadd.f32 %v5358, %v5347
        %v5360 = vrot.slane %v5359, 4
        %v5361 = vadd.f32 %v5359, %v5360
        %v5362 = vrot.slane %v5361, 2
        %v5363 = vadd.f32 %v5361, %v5362
        %v5364 = vrot.slane %v5363, 1
        %v5365 = vadd.f32 %v5363, %v5364
        %v5366 = vmul.f32 %v5356, %v480
        %v5367 = vmul.f32 %v5365, %v480
        %v5368 = vadd.f32 %v5366, 1e-06
        %v5369 = vadd.f32 %v5367, 1e-06
        %v5370 = vrsqrt.pop %v5368
        %v5371 = vrsqrt.pop %v5369
        %v5372 = vmul.f32 %v5332, %v5370
        %v5373 = vmul.f32 %v5333, %v5371
        %v5374 = vmul.f32 %v5334, %v5370
        %v5375 = vmul.f32 %v5335, %v5371
        %v5376 = vmul.f32 %v5336, %v5370
        %v5377 = vmul.f32 %v5337, %v5371
        %v5378 = vmul.f32 %v5338, %v5370
        %v5379 = vmul.f32 %v5339, %v5371
        %v5380 = vpack.c.bf16 %v5374, %v5372
        %v5381 = vpack.c.bf16 %v5375, %v5373
        %v5382 = vpack.c.bf16 %v5378, %v5376
        %v5383 = vpack.c.bf16 %v5379, %v5377
        %5384 = vset.pattern.permute.xlu0 20
        %5385 = vperm.xlu0 %5384, %v348
        %v5386 = vpop.permute.xlu0 %5385
        %5388 = vset.pattern.permute.xlu0 20
        %5389 = vperm.xlu0 %5388, %v349
        %v5390 = vpop.permute.xlu0 %5389
        %5392 = vset.pattern.permute.xlu0 20
        %5393 = vperm.xlu0 %5392, %v350
        %v5394 = vpop.permute.xlu0 %5393
        %5396 = vset.pattern.permute.xlu0 20
        %5397 = vperm.xlu0 %5396, %v351
        %v5398 = vpop.permute.xlu0 %5397
        %v5404 = vunpack.c.l.b16 %v5308
        %v5405 = vunpack.c.l.b16 %v5309
        %v5406 = vunpack.c.l.b16 %v5310
        %v5407 = vunpack.c.l.b16 %v5311
        %v5408 = vpack.c.b16 %v5405, %v5404
        %v5409 = vpack.c.b16 %v5407, %v5406
        %v5411 = vsel %vm394, %v5408, 0
        %v5414 = vsel %vm394, %v5409, 0
        %5416 = vmatprep.subr.bf16.mxu0 0
        %5417 = vmatpush1.bf16.msra.mxu0 0
        %5418 = vmatprep.subr.bf16.mxu0 0
        %5419 = vmatpush1.bf16.msra.mxu0 0
        %5420 = vmatprep.subr.bf16.mxu0 0
        %5421 = vmatpush1.bf16.msra.mxu0 0
        %5422 = vmatprep.subr.bf16.mxu0 0
        %5423 = vmatpush1.bf16.msra.mxu0 0
        %5424 = vmatprep.subr.bf16.mxu0 0
        %5425 = vmatpush1.bf16.msra.mxu0 0
        %5426 = vmatprep.subr.bf16.mxu0 0
        %5427 = vmatpush1.bf16.msra.mxu0 0
        %5428 = vmatprep.subr.bf16.mxu0 %v5383
        %5429 = vmatpush1.bf16.msra.mxu0 %v5382
        %5430 = vmatprep.subr.bf16.mxu0 %v5381
        %5431 = vmatpush1.bf16.msra.mxu0 %v5380
        %5432 = vmatprep.subr.bf16.mxu0 0
        %5433 = vmatpush2.bf16.msra.mxu0 0
        %5434 = vmatprep.subr.bf16.mxu0 0
        %5435 = vmatpush2.bf16.msra.mxu0 0
        %5436 = vmatprep.subr.bf16.mxu0 0
        %5437 = vmatpush2.bf16.msra.mxu0 0
        %5438 = vmatprep.subr.bf16.mxu0 0
        %5439 = vmatpush2.bf16.msra.mxu0 0
        %5440 = vmatprep.subr.bf16.mxu0 0
        %5441 = vmatpush2.bf16.msra.mxu0 0
        %5442 = vmatprep.subr.bf16.mxu0 0
        %5443 = vmatpush2.bf16.msra.mxu0 0
        %5444 = vmatprep.subr.bf16.mxu0 0
        %5445 = vmatpush2.bf16.msra.mxu0 0
        %5446 = vmatprep.subr.bf16.mxu0 0
        %5447 = vmatpush2.bf16.msra.mxu0 0
        %5448 = vmatprep.mubr.bf16.mxu0 0
        %5449 = vmatmul.mubr.bf16.gmra.mxu0 %v5411
        %v5450 = vpop.f32.mrf.mxu0
        %v5451 = vadd.f32 %v5386, %v5450
        %v5452 = vpop.f32.mrf.mxu0
        %v5453 = vadd.f32 %v5386, %v5452
        %v5454 = vpop.f32.mrf.mxu0
        %v5455 = vadd.f32 %v5390, %v5454
        %v5456 = vpop.f32.mrf.mxu0
        %v5457 = vadd.f32 %v5390, %v5456
        %5458 = vmatprep.mubr.bf16.mxu0 0
        %5459 = vmatmul.mubr.bf16.gmra.mxu0 %v5414
        %v5460 = vpop.f32.mrf.mxu0
        %v5461 = vadd.f32 %v5394, %v5460
        %v5462 = vpop.f32.mrf.mxu0
        %v5463 = vadd.f32 %v5394, %v5462
        %v5464 = vpop.f32.mrf.mxu0
        %v5465 = vadd.f32 %v5398, %v5464
        %v5466 = vpop.f32.mrf.mxu0
        %v5467 = vadd.f32 %v5398, %v5466
        %5468 = vdwg.mxu0
        %v5469 = vmul.f32 %v5451, %v5451
        %v5470 = vmul.f32 %v5453, %v5453
        %v5471 = vmul.f32 %v5455, %v5455
        %v5472 = vmul.f32 %v5457, %v5457
        %v5473 = vmul.f32 %v5461, %v5461
        %v5474 = vmul.f32 %v5463, %v5463
        %v5475 = vmul.f32 %v5465, %v5465
        %v5476 = vmul.f32 %v5467, %v5467
        %v5477 = vmul.f32 %v5451, %v5469
        %v5478 = vmul.f32 %v5453, %v5470
        %v5479 = vmul.f32 %v5455, %v5471
        %v5480 = vmul.f32 %v5457, %v5472
        %v5481 = vmul.f32 %v5461, %v5473
        %v5482 = vmul.f32 %v5463, %v5474
        %v5483 = vmul.f32 %v5465, %v5475
        %v5484 = vmul.f32 %v5467, %v5476
        %v5485 = vmul.f32 %v5477, 0.044715
        %v5486 = vmul.f32 %v5478, 0.044715
        %v5487 = vmul.f32 %v5479, 0.044715
        %v5488 = vmul.f32 %v5480, 0.044715
        %v5489 = vmul.f32 %v5481, 0.044715
        %v5490 = vmul.f32 %v5482, 0.044715
        %v5491 = vmul.f32 %v5483, 0.044715
        %v5492 = vmul.f32 %v5484, 0.044715
        %v5493 = vadd.f32 %v5451, %v5485
        %v5494 = vadd.f32 %v5453, %v5486
        %v5495 = vadd.f32 %v5455, %v5487
        %v5496 = vadd.f32 %v5457, %v5488
        %v5497 = vadd.f32 %v5461, %v5489
        %v5498 = vadd.f32 %v5463, %v5490
        %v5499 = vadd.f32 %v5465, %v5491
        %v5500 = vadd.f32 %v5467, %v5492
        %v5501 = vmul.f32 %v5493, 0.7978846
        %v5502 = vmul.f32 %v5494, 0.7978846
        %v5503 = vmul.f32 %v5495, 0.7978846
        %v5504 = vmul.f32 %v5496, 0.7978846
        %v5505 = vmul.f32 %v5497, 0.7978846
        %v5506 = vmul.f32 %v5498, 0.7978846
        %v5507 = vmul.f32 %v5499, 0.7978846
        %v5508 = vmul.f32 %v5500, 0.7978846
        %v5509 = vtanh.pop %v5501
        %v5510 = vtanh.pop %v5502
        %v5511 = vtanh.pop %v5503
        %v5512 = vtanh.pop %v5504
        %v5513 = vtanh.pop %v5505
        %v5514 = vtanh.pop %v5506
        %v5515 = vtanh.pop %v5507
        %v5516 = vtanh.pop %v5508
        %v5517 = vadd.f32 %v5509, 1.0
        %v5518 = vadd.f32 %v5510, 1.0
        %v5519 = vadd.f32 %v5511, 1.0
        %v5520 = vadd.f32 %v5512, 1.0
        %v5521 = vadd.f32 %v5513, 1.0
        %v5522 = vadd.f32 %v5514, 1.0
        %v5523 = vadd.f32 %v5515, 1.0
        %v5524 = vadd.f32 %v5516, 1.0
        %v5525 = vmul.f32 %v5517, 0.5
        %v5526 = vmul.f32 %v5518, 0.5
        %v5527 = vmul.f32 %v5519, 0.5
        %v5528 = vmul.f32 %v5520, 0.5
        %v5529 = vmul.f32 %v5521, 0.5
        %v5530 = vmul.f32 %v5522, 0.5
        %v5531 = vmul.f32 %v5523, 0.5
        %v5532 = vmul.f32 %v5524, 0.5
        %v5533 = vmul.f32 %v5451, %v5525
        %v5534 = vmul.f32 %v5453, %v5526
        %v5535 = vmul.f32 %v5455, %v5527
        %v5536 = vmul.f32 %v5457, %v5528
        %v5537 = vmul.f32 %v5461, %v5529
        %v5538 = vmul.f32 %v5463, %v5530
        %v5539 = vmul.f32 %v5465, %v5531
        %v5540 = vmul.f32 %v5467, %v5532
        %s5541 = scalar_lea.vmem %s3, 192
        %v5542 = vld [vmem:[%s5541] sm:$0xf]
        %v5543 = vld [vmem:[%s5541 + $0x4] sm:$0xf]
        %v5544 = vld [vmem:[%s5541 + $0x8] sm:$0xf]
        %v5545 = vld [vmem:[%s5541 + $0xc] sm:$0xf]
        %v5546 = vpack.c.bf16 %v5535, %v5533
        %v5547 = vpack.c.bf16 %v5536, %v5534
        %v5548 = vpack.c.bf16 %v5539, %v5537
        %v5549 = vpack.c.bf16 %v5540, %v5538
        %5550 = vset.pattern.permute.xlu0 21
        %5551 = vperm.xlu0 %5550, %v348
        %v5552 = vpop.permute.xlu0 %5551
        %5554 = vset.pattern.permute.xlu0 21
        %5555 = vperm.xlu0 %5554, %v349
        %v5556 = vpop.permute.xlu0 %5555
        %5558 = vset.pattern.permute.xlu0 21
        %5559 = vperm.xlu0 %5558, %v350
        %v5560 = vpop.permute.xlu0 %5559
        %5562 = vset.pattern.permute.xlu0 21
        %5563 = vperm.xlu0 %5562, %v351
        %v5564 = vpop.permute.xlu0 %5563
        %v5570 = vunpack.c.l.b16 %v5542
        %v5571 = vunpack.c.l.b16 %v5543
        %v5572 = vunpack.c.l.b16 %v5544
        %v5573 = vunpack.c.l.b16 %v5545
        %v5574 = vpack.c.b16 %v5571, %v5570
        %v5575 = vpack.c.b16 %v5573, %v5572
        %v5577 = vsel %vm394, %v5574, 0
        %v5580 = vsel %vm394, %v5575, 0
        %5582 = vmatprep.subr.bf16.mxu0 0
        %5583 = vmatpush1.bf16.msra.mxu0 0
        %5584 = vmatprep.subr.bf16.mxu0 0
        %5585 = vmatpush1.bf16.msra.mxu0 0
        %5586 = vmatprep.subr.bf16.mxu0 0
        %5587 = vmatpush1.bf16.msra.mxu0 0
        %5588 = vmatprep.subr.bf16.mxu0 0
        %5589 = vmatpush1.bf16.msra.mxu0 0
        %5590 = vmatprep.subr.bf16.mxu0 0
        %5591 = vmatpush1.bf16.msra.mxu0 0
        %5592 = vmatprep.subr.bf16.mxu0 0
        %5593 = vmatpush1.bf16.msra.mxu0 0
        %5594 = vmatprep.subr.bf16.mxu0 %v5549
        %5595 = vmatpush1.bf16.msra.mxu0 %v5548
        %5596 = vmatprep.subr.bf16.mxu0 %v5547
        %5597 = vmatpush1.bf16.msra.mxu0 %v5546
        %5598 = vmatprep.subr.bf16.mxu0 0
        %5599 = vmatpush2.bf16.msra.mxu0 0
        %5600 = vmatprep.subr.bf16.mxu0 0
        %5601 = vmatpush2.bf16.msra.mxu0 0
        %5602 = vmatprep.subr.bf16.mxu0 0
        %5603 = vmatpush2.bf16.msra.mxu0 0
        %5604 = vmatprep.subr.bf16.mxu0 0
        %5605 = vmatpush2.bf16.msra.mxu0 0
        %5606 = vmatprep.subr.bf16.mxu0 0
        %5607 = vmatpush2.bf16.msra.mxu0 0
        %5608 = vmatprep.subr.bf16.mxu0 0
        %5609 = vmatpush2.bf16.msra.mxu0 0
        %5610 = vmatprep.subr.bf16.mxu0 0
        %5611 = vmatpush2.bf16.msra.mxu0 0
        %5612 = vmatprep.subr.bf16.mxu0 0
        %5613 = vmatpush2.bf16.msra.mxu0 0
        %5614 = vmatprep.mubr.bf16.mxu0 0
        %5615 = vmatmul.mubr.bf16.gmra.mxu0 %v5577
        %v5616 = vpop.f32.mrf.mxu0
        %v5617 = vadd.f32 %v5552, %v5616
        %v5618 = vpop.f32.mrf.mxu0
        %v5619 = vadd.f32 %v5552, %v5618
        %v5620 = vpop.f32.mrf.mxu0
        %v5621 = vadd.f32 %v5556, %v5620
        %v5622 = vpop.f32.mrf.mxu0
        %v5623 = vadd.f32 %v5556, %v5622
        %5624 = vmatprep.mubr.bf16.mxu0 0
        %5625 = vmatmul.mubr.bf16.gmra.mxu0 %v5580
        %v5626 = vpop.f32.mrf.mxu0
        %v5627 = vadd.f32 %v5560, %v5626
        %v5628 = vpop.f32.mrf.mxu0
        %v5629 = vadd.f32 %v5560, %v5628
        %v5630 = vpop.f32.mrf.mxu0
        %v5631 = vadd.f32 %v5564, %v5630
        %v5632 = vpop.f32.mrf.mxu0
        %v5633 = vadd.f32 %v5564, %v5632
        %5634 = vdwg.mxu0
        %s5635 = scalar_lea.vmem %s5, 64
        %v5636 = vld [vmem:[%s5635] sm:$0xff]
        %v5637 = vld [vmem:[%s5635 + $0x8] sm:$0xff]
        %v5638 = vld [vmem:[%s5635 + $0x10] sm:$0xff]
        %v5639 = vld [vmem:[%s5635 + $0x18] sm:$0xff]
        %s5640 = scalar_lea.vmem %s5, 96
        %v5641 = vld [vmem:[%s5640] sm:$0xff]
        %v5642 = vld [vmem:[%s5640 + $0x8] sm:$0xff]
        %v5643 = vld [vmem:[%s5640 + $0x10] sm:$0xff]
        %v5644 = vld [vmem:[%s5640 + $0x18] sm:$0xff]
        %s5645 = scalar_lea.vmem %s6, 1
        %v5646 = vld [vmem:[%s5645] sm:$0x1]
        %v5647 = vadd.f32 %v5617, %v5619
        %5648 = vadd.xlane.f32.xlu0 %v5647
        %v5649 = vpop.xlane.xlu0 %5648
        %v5650 = vadd.f32 %v5621, %v5623
        %5651 = vadd.xlane.f32.xlu0 %v5650
        %v5652 = vpop.xlane.xlu0 %5651
        %v5653 = vadd.f32 %v5627, %v5629
        %5654 = vadd.xlane.f32.xlu0 %v5653
        %v5655 = vpop.xlane.xlu0 %5654
        %v5656 = vadd.f32 %v5631, %v5633
        %5657 = vadd.xlane.f32.xlu0 %v5656
        %v5658 = vpop.xlane.xlu0 %5657
        %v5659 = vmul.f32 %v5649, %v3002
        %v5660 = vmul.f32 %v5652, %v3002
        %v5661 = vmul.f32 %v5655, %v3002
        %v5662 = vmul.f32 %v5658, %v3002
        %v5663 = vmul.f32 %v5636, %v5659
        %v5664 = vmul.f32 %v5637, %v5660
        %v5665 = vmul.f32 %v5638, %v5661
        %v5666 = vmul.f32 %v5639, %v5662
        %v5667 = vsel %vm3011, %v5663, 0.0
        %v5668 = vsel %vm3011, %v5664, 0.0
        %v5669 = vadd.f32 %v5667, %v5668
        %v5670 = vsel %vm3011, %v5665, 0.0
        %v5671 = vadd.f32 %v5669, %v5670
        %v5672 = vsel %vm3011, %v5666, 0.0
        %v5673 = vadd.f32 %v5671, %v5672
        %v5674 = vrot.slane %v5673, 4
        %v5675 = vadd.f32 %v5673, %v5674
        %v5676 = vrot.slane %v5675, 2
        %v5677 = vadd.f32 %v5675, %v5676
        %v5678 = vrot.slane %v5677, 1
        %v5679 = vadd.f32 %v5677, %v5678
        %v5680 = vadd.f32 %v5679, %v5646
        %v5681 = vmax.f32 %v5680, 0.0
        %v5682 = vlaneseq
        %v5683 = vshrl.u32 %v5682, 7
        %v5684 = vsub.s32 0, %v5683
        %v5685 = vrot.slane %v5681, %v5684
        %v5686 = vmul.f32 %v5641, %v5685
        %v5687 = vmul.f32 %v5642, %v5685
        %v5688 = vmul.f32 %v5643, %v5685
        %v5689 = vmul.f32 %v5644, %v5685
        %v5690 = vsel %vm3011, %v5686, 0.0
        %5691 = vadd.xlane.f32.xlu0 %v5690
        %v5692 = vpop.xlane.xlu0 %5691
        %v5693 = vsel %vm3011, %v5687, 0.0
        %5694 = vadd.xlane.f32.xlu0 %v5693
        %v5695 = vpop.xlane.xlu0 %5694
        %v5696 = vsel %vm3011, %v5688, 0.0
        %5697 = vadd.xlane.f32.xlu0 %v5696
        %v5698 = vpop.xlane.xlu0 %5697
        %v5699 = vsel %vm3011, %v5689, 0.0
        %5700 = vadd.xlane.f32.xlu0 %v5699
        %v5701 = vpop.xlane.xlu0 %5700
        %v5702 = vadd.f32 %v5692, %v348
        %v5703 = vadd.f32 %v5695, %v349
        %v5704 = vadd.f32 %v5698, %v350
        %v5705 = vadd.f32 %v5701, %v351
        %v5706 = vxor.u32 %v5702, 2147483648
        %v5707 = vxor.u32 %v5703, 2147483648
        %v5708 = vxor.u32 %v5704, 2147483648
        %v5709 = vxor.u32 %v5705, 2147483648
        %v5710 = vmul.f32 %v5706, 1.442695
        %v5711 = vpow.pop %v5710
        %v5712 = vmul.f32 %v5707, 1.442695
        %v5713 = vpow.pop %v5712
        %v5714 = vmul.f32 %v5708, 1.442695
        %v5715 = vpow.pop %v5714
        %v5716 = vmul.f32 %v5709, 1.442695
        %v5717 = vpow.pop %v5716
        %v5718 = vadd.f32 %v5711, 1.0
        %v5719 = vadd.f32 %v5713, 1.0
        %v5720 = vadd.f32 %v5715, 1.0
        %v5721 = vadd.f32 %v5717, 1.0
        %v5722 = vrcp.pop %v5718
        %v5723 = vmul.f32 1.0, %v5722
        %v5724 = vrcp.pop %v5719
        %v5725 = vmul.f32 1.0, %v5724
        %v5726 = vrcp.pop %v5720
        %v5727 = vmul.f32 1.0, %v5726
        %v5728 = vrcp.pop %v5721
        %v5729 = vmul.f32 1.0, %v5728
        %5731 = vset.pattern.permute.xlu0 22
        %5732 = vperm.xlu0 %5731, %v5723
        %v5733 = vpop.permute.xlu0 %5732
        %5736 = vset.pattern.permute.xlu0 22
        %5737 = vperm.xlu0 %5736, %v5725
        %v5738 = vpop.permute.xlu0 %5737
        %5741 = vset.pattern.permute.xlu0 22
        %5742 = vperm.xlu0 %5741, %v5727
        %v5743 = vpop.permute.xlu0 %5742
        %5746 = vset.pattern.permute.xlu0 22
        %5747 = vperm.xlu0 %5746, %v5729
        %v5748 = vpop.permute.xlu0 %5747
        %v5750 = vmul.f32 %v5617, %v5733
        %v5751 = vmul.f32 %v5619, %v5733
        %v5752 = vmul.f32 %v5621, %v5738
        %v5753 = vmul.f32 %v5623, %v5738
        %v5754 = vmul.f32 %v5627, %v5743
        %v5755 = vmul.f32 %v5629, %v5743
        %v5756 = vmul.f32 %v5631, %v5748
        %v5757 = vmul.f32 %v5633, %v5748
        %v5758 = vadd.f32 %v5299, %v5750
        %v5759 = vadd.f32 %v5300, %v5751
        %v5760 = vadd.f32 %v5301, %v5752
        %v5761 = vadd.f32 %v5302, %v5753
        %v5762 = vadd.f32 %v5303, %v5754
        %v5763 = vadd.f32 %v5304, %v5755
        %v5764 = vadd.f32 %v5305, %v5756
        %v5765 = vadd.f32 %v5306, %v5757
        %v5766 = vadd.f32 %v5758, %v436
        %v5767 = vadd.f32 %v5759, %v438
        %v5768 = vadd.f32 %v5760, %v440
        %v5769 = vadd.f32 %v5761, %v442
        %v5770 = vadd.f32 %v5762, %v446
        %v5771 = vadd.f32 %v5763, %v448
        %v5772 = vadd.f32 %v5764, %v450
        %v5773 = vadd.f32 %v5765, %v452
        %5774 = vst [vmem:[%s338] sm:$0xff] %v5766
        %5775 = vst [vmem:[%s338 + $0x8] sm:$0xff] %v5767
        %5776 = vst [vmem:[%s338 + $0x10] sm:$0xff] %v5768
        %5777 = vst [vmem:[%s338 + $0x18] sm:$0xff] %v5769
        %5778 = vst [vmem:[%s338 + $0x20] sm:$0xff] %v5770
        %5779 = vst [vmem:[%s338 + $0x28] sm:$0xff] %v5771
        %5780 = vst [vmem:[%s338 + $0x30] sm:$0xff] %v5772
        %5781 = vst [vmem:[%s338 + $0x38] sm:$0xff] %v5773
        %s5782 = sand.u32 %s207, 1
        %s5783 = scalar_lea.sflag [#allocation4], %s5782
        %s5784 = sand.u32 %s207, 1
        %s5785 = smul.addr %s5784, 64
        %s5786 = scalar_lea.vmem [#allocation7], %s5785
        // Predicated region
        $region61: #{tpu_custom_call.1} parent=51 // pred_check
          %p5787 = pneg %p217
        $region62: #{tpu_custom_call.1} parent=51 // pred_check_branch
          %5789 = sbr.rel (%p5787) target = $region64
        $region63: #{tpu_custom_call.1} parent=51 // pred_region
          %s5791 = ssub.s32 1024, 1024
          %5792 = vsyncadd %s5783, %s5791
          %s5793 = smul.addr %s26, 8
          %s5794 = smul.addr %s5793, 128
          %s5795 = scalar_lea.hbm %s8, %s5794
          %s5796 = sshll.u32 %s5786, 4
          %s5797 = int_to_ptr.vmem [resolvable:$true] %s5796
          %5802 = dma.vmem_to_hbm [thread:$0]  %s5797, 1024, %s5795, %s5783, 256, 256, 16
        $region64: #{tpu_custom_call.1} parent=51 // pred_fallthru
          _
      $region52: #{tpu_custom_call.1} parent=5 // pred_fallthru
        _
      %p5803 = scmp.le.s32.totalorder 2, %s21
      // Predicated region
      $region65: #{tpu_custom_call.1} parent=5 // pred_check
        %p5804 = pneg %p5803
      $region66: #{tpu_custom_call.1} parent=5 // pred_check_branch
        %5806 = sbr.rel (%p5804) target = $region68
      $region67: #{tpu_custom_call.1} parent=5 // pred_region
        %s5807 = ssub.s32 %s21, 2
        // Predicated region
        $region69: #{tpu_custom_call.1} parent=67 // pred_check
          %p5808 = pneg %p223
        $region70: #{tpu_custom_call.1} parent=67 // pred_check_branch
          %5810 = sbr.rel (%p5808) target = $region72
        $region71: #{tpu_custom_call.1} parent=67 // pred_region
          %s5811 = sand.u32 %s208, 1
          %s5812 = scalar_lea.sflag [#allocation4], %s5811
          %s5813 = sand.u32 %s208, 1
          %s5814 = smul.addr %s5813, 64
          %s5815 = scalar_lea.vmem [#allocation7], %s5814
          %5816 = dma.done %s5812, 1024
        $region72: #{tpu_custom_call.1} parent=67 // pred_fallthru
          _
      $region68: #{tpu_custom_call.1} parent=5 // pred_fallthru
        _
    $region6: #{tpu_custom_call.1} parent=1 // loop_footer
      %s25 = sadd.s32 1, %s21
    $region7: #{tpu_custom_call.1} parent=1 // loop_footer_branch
      %20 = sbr.rel target = $region3
    $region8: #{tpu_custom_call.1} parent=1 // loop_exit
      _
    %5817 = vsyncpa [#allocation3], 1
    %s5818 = scalar_lea.sflag [#allocation3], 1
    %5819 = vsyncpa %s5818, 1
    %5820 = vsyncpa [#allocation6], 1
    %5821 = vsyncpa [#allocation4], 1
    %s5822 = scalar_lea.sflag [#allocation4], 1
    %5823 = vsyncpa %s5822, 1

</llo_original>
